<compile_context>
chip_gen: v5e
topology: v5e:2x2
jax: 0.10.0
libtpu: 0.0.40
codegen_flags: <defaults>
</compile_context>

<pallas_src>
import jax
import jax.numpy as jnp
import numpy as np
from jax.experimental import pallas as pl
from jax.experimental.pallas import tpu as pltpu

GN_EPS = 1e-5
NUM_GROUPS = 8


def upblock_kernel(x_ref, s_ref, w1x_ref, w1s_ref, w2_ref, gmap_ref,
                   b1_ref, g1_ref, be1_ref, b2_ref, g2_ref, be2_ref,
                   o_ref, xpad_ref, spad_ref, hpad_ref):
    # x_ref    : (1, Hs, Ws, Cin)   low-res input tile (pre-upsample), bf16/f32
    # s_ref    : (1, H,  W,  Cout)  skip tile, bf16/f32
    # w1x_ref  : (3, 3, Cin,  Cout) conv1 weights, x part (HWIO)
    # w1s_ref  : (3, 3, Cout, Cout) conv1 weights, skip part (HWIO)
    # w2_ref   : (3, 3, Cout, Cout) conv2 weights (HWIO)
    # gmap_ref : (Cout, Cout)       group-averaging matrix (1/group_size within group)
    # b*/g*/be*: (1, Cout) f32      conv bias / GN gamma / GN beta per stage
    # o_ref    : (1, H, W, Cout) f32
    # *pad_ref : (H+2, W+2, C) f32  zero-halo VMEM scratches (x-up, skip, stage-1 out)
    H, W, C = o_ref.shape[1], o_ref.shape[2], o_ref.shape[3]
    Hs, Ws, Cin = x_ref.shape[1], x_ref.shape[2], x_ref.shape[3]
    mxu_dtype = w2_ref.dtype                 # bf16 (or f32 for the strict-check path)

    # Zero the halo scratches every grid step (keeps the batch axis "parallel"-safe).
    xpad_ref[...] = jnp.zeros(xpad_ref.shape, xpad_ref.dtype)
    spad_ref[...] = jnp.zeros(spad_ref.shape, spad_ref.dtype)
    hpad_ref[...] = jnp.zeros(hpad_ref.shape, hpad_ref.dtype)

    # ---- fused nearest-neighbour 2x upsample of x (VMEM only, no HBM pass) ----
    xt = x_ref[0].astype(jnp.float32)                                 # (Hs, Ws, Cin)
    xt = jnp.broadcast_to(xt[:, :, None, :], (Hs, Ws, 2, Cin)).reshape(Hs, 2 * Ws, Cin)
    xt = jnp.broadcast_to(xt[:, None, :, :], (Hs, 2, 2 * Ws, Cin)).reshape(2 * Hs, 2 * Ws, Cin)
    # fused "concat": x and skip stay separate; conv1 just splits its K accordingly
    xpad_ref[1:H + 1, 1:W + 1, :] = xt
    spad_ref[1:H + 1, 1:W + 1, :] = s_ref[0].astype(jnp.float32)

    def conv3x3(pad_ref, w_ref):
        # 3x3 "same" conv as 9 shifted matmuls; taps sliced straight from the padded
        # scratch ref, cast to the MXU dtype, accumulated in f32.
        Ci, Co = w_ref.shape[2], w_ref.shape[3]
        acc = jnp.zeros((H * W, Co), jnp.float32)
        for dy in range(3):
            for dx in range(3):
                patch = pad_ref[dy:dy + H, dx:dx + W, :]
                patch = patch.reshape(H * W, Ci).astype(mxu_dtype)
                acc = acc + jnp.dot(patch, w_ref[dy, dx],
                                    preferred_element_type=jnp.float32)
        return acc

    def gn_silu(acc, gamma, beta):
        # GroupNorm(8, C) with centred (two-pass) variance + SiLU, all f32.
        ch_mean = jnp.mean(acc, axis=0, keepdims=True)                       # (1, C)
        gmean = jnp.dot(ch_mean, gmap_ref[...], preferred_element_type=jnp.float32)
        d = acc - gmean
        ch_var = jnp.mean(d * d, axis=0, keepdims=True)                      # (1, C)
        gvar = jnp.dot(ch_var, gmap_ref[...], preferred_element_type=jnp.float32)
        y = d * jax.lax.rsqrt(gvar + GN_EPS) * gamma + beta
        return y * jax.nn.sigmoid(y)

    # ---- stage 1: Conv3x3(cat(up(x), skip)) + GroupNorm + SiLU ----
    a1 = conv3x3(xpad_ref, w1x_ref) + conv3x3(spad_ref, w1s_ref) + b1_ref[...]
    h1 = gn_silu(a1, g1_ref[...], be1_ref[...])                              # (H*W, C)
    # stage-1 output stays resident in VMEM (padded) -> no HBM round trip
    hpad_ref[1:H + 1, 1:W + 1, :] = h1.reshape(H, W, C)

    # ---- stage 2: Conv3x3 + GroupNorm + SiLU ----
    a2 = conv3x3(hpad_ref, w2_ref) + b2_ref[...]
    h2 = gn_silu(a2, g2_ref[...], be2_ref[...])
    o_ref[0] = h2.reshape(H, W, C)


def upblock_forward(x_nchw, skip_nchw, params, compute_dtype=jnp.bfloat16):
    """UpBlock.forward.  Upsample-2x, concat, halo padding and both
    Conv3x3+GroupNorm(8)+SiLU stages are fused into one pallas_call per batch
    element; wrapper work is NCHW<->NHWC layout plumbing and dtype casts only."""
    N, c_in, Hs, Ws = x_nchw.shape
    Nb, c_out, H, W = skip_nchw.shape
    assert Nb == N and H == 2 * Hs and W == 2 * Ws
    assert c_out % NUM_GROUPS == 0
    cg = c_out // NUM_GROUPS

    # layout plumbing only (no upsample / concat / pad materialized in HBM)
    x = jnp.transpose(x_nchw, (0, 2, 3, 1)).astype(compute_dtype)
    s = jnp.transpose(skip_nchw, (0, 2, 3, 1)).astype(compute_dtype)
    w1 = params["w1"]                                        # (3, 3, c_in+c_out, c_out)
    w1x = w1[:, :, :c_in, :].astype(compute_dtype)           # channel concat == split K
    w1s = w1[:, :, c_in:, :].astype(compute_dtype)
    w2 = params["w2"].astype(compute_dtype)

    # tiny (Cout,Cout) group-averaging constant (1 KiB): kept as an input to avoid
    # relying on in-kernel integer-division lowering for the group ids.
    gidx = np.arange(c_out) // cg
    gmap = jnp.asarray((gidx[:, None] == gidx[None, :]).astype(np.float32) / cg)
    row = lambda v: v.reshape(1, c_out).astype(jnp.float32)

    full4 = lambda n: (0, 0, 0, 0)
    full2 = lambda n: (0, 0)

    out_nhwc = pl.pallas_call(
        upblock_kernel,
        out_shape=jax.ShapeDtypeStruct((N, H, W, c_out), jnp.float32),
        grid_spec=pltpu.PrefetchScalarGridSpec(
            num_scalar_prefetch=0,
            grid=(N,),
            in_specs=[
                pl.BlockSpec((1, Hs, Ws, c_in), lambda n: (n, 0, 0, 0)),
                pl.BlockSpec((1, H, W, c_out), lambda n: (n, 0, 0, 0)),
                pl.BlockSpec((3, 3, c_in, c_out), full4),
                pl.BlockSpec((3, 3, c_out, c_out), full4),
                pl.BlockSpec((3, 3, c_out, c_out), full4),
                pl.BlockSpec((c_out, c_out), full2),
                pl.BlockSpec((1, c_out), full2),
                pl.BlockSpec((1, c_out), full2),
                pl.BlockSpec((1, c_out), full2),
                pl.BlockSpec((1, c_out), full2),
                pl.BlockSpec((1, c_out), full2),
                pl.BlockSpec((1, c_out), full2),
            ],
            out_specs=pl.BlockSpec((1, H, W, c_out), lambda n: (n, 0, 0, 0)),
            scratch_shapes=[
                pltpu.VMEM((H + 2, W + 2, c_in), jnp.float32),    # padded upsampled x
                pltpu.VMEM((H + 2, W + 2, c_out), jnp.float32),   # padded skip
                pltpu.VMEM((H + 2, W + 2, c_out), jnp.float32),   # padded stage-1 out
            ],
        ),
        # batch elements are independent -> shard across TensorCores on v7x
        compiler_params=pltpu.CompilerParams(
            dimension_semantics=("parallel",)),
        # NOTE: at production shapes (e.g. 64x64x512) tile H on a second grid axis
        # with a 1-row halo + two-pass GroupNorm, and set vmem_limit_bytes explicitly.
    )(x, s, w1x, w1s, w2, gmap,
      row(params["b1"]), row(params["g1"]), row(params["be1"]),
      row(params["b2"]), row(params["g2"]), row(params["be2"]))
    return jnp.transpose(out_nhwc, (0, 3, 1, 2))              # NHWC -> NCHW


# ---------------- pure-JAX reference (mirrors the PyTorch module) ----------------
def _ref_conv_gn_silu(x, w, b, gamma, beta, G=NUM_GROUPS):
    y = jax.lax.conv_general_dilated(
        x, w, window_strides=(1, 1), padding="SAME",
        dimension_numbers=("NHWC", "HWIO", "NHWC")) + b.reshape(1, 1, 1, -1)
    N, H, W, C = y.shape
    yg = y.reshape(N, H, W, G, C // G)
    mean = yg.mean(axis=(1, 2, 4), keepdims=True)
    var = ((yg - mean) ** 2).mean(axis=(1, 2, 4), keepdims=True)
    yn = (yg - mean) * jax.lax.rsqrt(var + GN_EPS)
    yn = yn.reshape(N, H, W, C) * gamma.reshape(1, 1, 1, -1) + beta.reshape(1, 1, 1, -1)
    return yn * jax.nn.sigmoid(yn)


def _ref_upblock(x_nchw, skip_nchw, p):
    x = jnp.repeat(jnp.repeat(x_nchw, 2, axis=2), 2, axis=3)
    x = jnp.concatenate([x, skip_nchw], axis=1)
    x = jnp.transpose(x, (0, 2, 3, 1))
    h = _ref_conv_gn_silu(x, p["w1"], p["b1"], p["g1"], p["be1"])
    h = _ref_conv_gn_silu(h, p["w2"], p["b2"], p["g2"], p["be2"])
    return jnp.transpose(h, (0, 3, 1, 2))


if __name__ == "__main__":
    key = jax.random.PRNGKey(0)
    N, c_in, c_out = 2, 8, 16          # c_out divisible by 8 (GroupNorm groups)
    Hs, Ws = 8, 8                      # x spatial; skip / output are 2x -> 16x16
    ks = jax.random.split(key, 10)

    x = jax.random.normal(ks[0], (N, c_in, Hs, Ws), jnp.float32)
    skip = jax.random.normal(ks[1], (N, c_out, 2 * Hs, 2 * Ws), jnp.float32)

    c_cat = c_in + c_out
    params = {
        "w1": 0.1 * jax.random.normal(ks[2], (3, 3, c_cat, c_out), jnp.float32),
        "b1": 0.1 * jax.random.normal(ks[3], (c_out,), jnp.float32),
        "g1": 1.0 + 0.1 * jax.random.normal(ks[4], (c_out,), jnp.float32),
        "be1": 0.1 * jax.random.normal(ks[5], (c_out,), jnp.float32),
        "w2": 0.1 * jax.random.normal(ks[6], (3, 3, c_out, c_out), jnp.float32),
        "b2": 0.1 * jax.random.normal(ks[7], (c_out,), jnp.float32),
        "g2": 1.0 + 0.1 * jax.random.normal(ks[8], (c_out,), jnp.float32),
        "be2": 0.1 * jax.random.normal(ks[9], (c_out,), jnp.float32),
    }

    ref = jax.block_until_ready(_ref_upblock(x, skip, params))

    # default bf16-MXU-operand path (loose tolerance: bf16 operand rounding)
    out = jax.block_until_ready(upblock_forward(x, skip, params))
    assert out.shape == (N, c_out, 2 * Hs, 2 * Ws)
    np.testing.assert_allclose(np.asarray(out), np.asarray(ref), rtol=1e-1, atol=1e-1)

    # f32 path for a strict numerical check of the fused kernel structure
    out_f32 = jax.block_until_ready(
        upblock_forward(x, skip, params, compute_dtype=jnp.float32))
    np.testing.assert_allclose(np.asarray(out_f32), np.asarray(ref),
                               rtol=1e-3, atol=1e-3)

    print("KERNEL_OK")
</pallas_src>

<mosaic_0001>
module attributes {stable_mosaic.version = 11 : i64} {
  func.func @upblock_kernel(%arg0: i32, %arg1: memref<1x8x8x8xbf16, #tpu.memory_space<vmem>>, %arg2: memref<1x16x16x16xbf16, #tpu.memory_space<vmem>>, %arg3: memref<3x3x8x16xbf16, #tpu.memory_space<vmem>>, %arg4: memref<3x3x16x16xbf16, #tpu.memory_space<vmem>>, %arg5: memref<3x3x16x16xbf16, #tpu.memory_space<vmem>>, %arg6: memref<16x16xf32, #tpu.memory_space<vmem>>, %arg7: memref<1x16xf32, #tpu.memory_space<vmem>>, %arg8: memref<1x16xf32, #tpu.memory_space<vmem>>, %arg9: memref<1x16xf32, #tpu.memory_space<vmem>>, %arg10: memref<1x16xf32, #tpu.memory_space<vmem>>, %arg11: memref<1x16xf32, #tpu.memory_space<vmem>>, %arg12: memref<1x16xf32, #tpu.memory_space<vmem>>, %arg13: memref<1x16x16x16xf32, #tpu.memory_space<vmem>>, %arg14: memref<18x18x8xf32, #tpu.memory_space<vmem>>, %arg15: memref<18x18x16xf32, #tpu.memory_space<vmem>>, %arg16: memref<18x18x16xf32, #tpu.memory_space<vmem>>) attributes {dimension_semantics = [#tpu.dimension_semantics<parallel>], iteration_bounds = array<i64: 2>, scalar_prefetch = 0 : i64, scratch_operands = 3 : i64, tpu.core_type = #tpu.core_type<tc>, window_params = [{transform_indices = @transform_0, window_bounds = array<i64: 1, 8, 8, 8>}, {transform_indices = @transform_1, window_bounds = array<i64: 1, 16, 16, 16>}, {pipeline_mode = #tpu.pipeline_mode<synchronous>, transform_indices = @transform_2, window_bounds = array<i64: 3, 3, 8, 16>}, {pipeline_mode = #tpu.pipeline_mode<synchronous>, transform_indices = @transform_3, window_bounds = array<i64: 3, 3, 16, 16>}, {pipeline_mode = #tpu.pipeline_mode<synchronous>, transform_indices = @transform_4, window_bounds = array<i64: 3, 3, 16, 16>}, {pipeline_mode = #tpu.pipeline_mode<synchronous>, transform_indices = @transform_5, window_bounds = array<i64: 16, 16>}, {pipeline_mode = #tpu.pipeline_mode<synchronous>, transform_indices = @transform_6, window_bounds = array<i64: 1, 16>}, {pipeline_mode = #tpu.pipeline_mode<synchronous>, transform_indices = @transform_7, window_bounds = array<i64: 1, 16>}, {pipeline_mode = #tpu.pipeline_mode<synchronous>, transform_indices = @transform_8, window_bounds = array<i64: 1, 16>}, {pipeline_mode = #tpu.pipeline_mode<synchronous>, transform_indices = @transform_9, window_bounds = array<i64: 1, 16>}, {pipeline_mode = #tpu.pipeline_mode<synchronous>, transform_indices = @transform_10, window_bounds = array<i64: 1, 16>}, {pipeline_mode = #tpu.pipeline_mode<synchronous>, transform_indices = @transform_11, window_bounds = array<i64: 1, 16>}, {transform_indices = @transform_12, window_bounds = array<i64: 1, 16, 16, 16>}]} {
    %cst = arith.constant 0.000000e+00 : f32
    %0 = vector.broadcast %cst : f32 to vector<18x18x8xf32>
    %c0 = arith.constant 0 : index
    %c0_0 = arith.constant 0 : index
    %c0_1 = arith.constant 0 : index
    %1 = vector.load %arg14[%c0, %c0_0, %c0_1] : memref<18x18x8xf32, #tpu.memory_space<vmem>>, vector<18x18x8xf32>
    tpu.vector_store %arg14[%c0, %c0_0, %c0_1], %0 {strides = array<i32>} : memref<18x18x8xf32, #tpu.memory_space<vmem>>, vector<18x18x8xf32>,
    %cst_2 = arith.constant 0.000000e+00 : f32
    %2 = vector.broadcast %cst_2 : f32 to vector<18x18x16xf32>
    %c0_3 = arith.constant 0 : index
    %c0_4 = arith.constant 0 : index
    %c0_5 = arith.constant 0 : index
    %3 = vector.load %arg15[%c0_3, %c0_4, %c0_5] : memref<18x18x16xf32, #tpu.memory_space<vmem>>, vector<18x18x16xf32>
    tpu.vector_store %arg15[%c0_3, %c0_4, %c0_5], %2 {strides = array<i32>} : memref<18x18x16xf32, #tpu.memory_space<vmem>>, vector<18x18x16xf32>,
    %cst_6 = arith.constant 0.000000e+00 : f32
    %4 = vector.broadcast %cst_6 : f32 to vector<18x18x16xf32>
    %c0_7 = arith.constant 0 : index
    %c0_8 = arith.constant 0 : index
    %c0_9 = arith.constant 0 : index
    %5 = vector.load %arg16[%c0_7, %c0_8, %c0_9] : memref<18x18x16xf32, #tpu.memory_space<vmem>>, vector<18x18x16xf32>
    tpu.vector_store %arg16[%c0_7, %c0_8, %c0_9], %4 {strides = array<i32>} : memref<18x18x16xf32, #tpu.memory_space<vmem>>, vector<18x18x16xf32>,
    %c0_10 = arith.constant 0 : index
    %c0_11 = arith.constant 0 : index
    %c0_12 = arith.constant 0 : index
    %c0_13 = arith.constant 0 : index
    %6 = vector.load %arg1[%c0_10, %c0_11, %c0_12, %c0_13] : memref<1x8x8x8xbf16, #tpu.memory_space<vmem>>, vector<1x8x8x8xbf16>
    %7 = vector.shape_cast %6 : vector<1x8x8x8xbf16> to vector<8x8x8xbf16>
    %8 = arith.extf %7 : vector<8x8x8xbf16> to vector<8x8x8xf32>
    %9 = vector.shape_cast %8 : vector<8x8x8xf32> to vector<8x8x1x8xf32>
    %10 = vector.shape_cast %9 : vector<8x8x1x8xf32> to vector<8x8x1x8xf32>
    %11 = vector.broadcast %10 : vector<8x8x1x8xf32> to vector<8x8x2x8xf32>
    %12 = vector.shape_cast %11 : vector<8x8x2x8xf32> to vector<8x16x8xf32>
    %13 = vector.shape_cast %12 : vector<8x16x8xf32> to vector<8x1x16x8xf32>
    %14 = vector.shape_cast %13 : vector<8x1x16x8xf32> to vector<8x1x16x8xf32>
    %15 = vector.broadcast %14 : vector<8x1x16x8xf32> to vector<8x2x16x8xf32>
    %16 = vector.shape_cast %15 : vector<8x2x16x8xf32> to vector<16x16x8xf32>
    %c1 = arith.constant 1 : index
    %c1_14 = arith.constant 1 : index
    %c0_15 = arith.constant 0 : index
    %17 = vector.load %arg14[%c1, %c1_14, %c0_15] : memref<18x18x8xf32, #tpu.memory_space<vmem>>, vector<16x16x8xf32>
    tpu.vector_store %arg14[%c1, %c1_14, %c0_15], %16 {strides = array<i32>} : memref<18x18x8xf32, #tpu.memory_space<vmem>>, vector<16x16x8xf32>,
    %c0_16 = arith.constant 0 : index
    %c0_17 = arith.constant 0 : index
    %c0_18 = arith.constant 0 : index
    %c0_19 = arith.constant 0 : index
    %18 = vector.load %arg2[%c0_16, %c0_17, %c0_18, %c0_19] : memref<1x16x16x16xbf16, #tpu.memory_space<vmem>>, vector<1x16x16x16xbf16>
    %19 = vector.shape_cast %18 : vector<1x16x16x16xbf16> to vector<16x16x16xbf16>
    %20 = arith.extf %19 : vector<16x16x16xbf16> to vector<16x16x16xf32>
    %c1_20 = arith.constant 1 : index
    %c1_21 = arith.constant 1 : index
    %c0_22 = arith.constant 0 : index
    %21 = vector.load %arg15[%c1_20, %c1_21, %c0_22] : memref<18x18x16xf32, #tpu.memory_space<vmem>>, vector<16x16x16xf32>
    tpu.vector_store %arg15[%c1_20, %c1_21, %c0_22], %20 {strides = array<i32>} : memref<18x18x16xf32, #tpu.memory_space<vmem>>, vector<16x16x16xf32>,
    %cst_23 = arith.constant 0.000000e+00 : f32
    %22 = vector.broadcast %cst_23 : f32 to vector<256x16xf32>
    %c0_24 = arith.constant 0 : index
    %c0_25 = arith.constant 0 : index
    %c0_26 = arith.constant 0 : index
    %23 = vector.load %arg14[%c0_24, %c0_25, %c0_26] : memref<18x18x8xf32, #tpu.memory_space<vmem>>, vector<16x16x8xf32>
    %24 = vector.shape_cast %23 : vector<16x16x8xf32> to vector<256x8xf32>
    %25 = arith.truncf %24 : vector<256x8xf32> to vector<256x8xbf16>
    %c0_27 = arith.constant 0 : index
    %c0_28 = arith.constant 0 : index
    %c0_29 = arith.constant 0 : index
    %c0_30 = arith.constant 0 : index
    %26 = vector.load %arg3[%c0_27, %c0_28, %c0_29, %c0_30] : memref<3x3x8x16xbf16, #tpu.memory_space<vmem>>, vector<1x1x8x16xbf16>
    %27 = vector.shape_cast %26 : vector<1x1x8x16xbf16> to vector<8x16xbf16>
    %cst_31 = arith.constant dense<0.000000e+00> : vector<256x16xf32>
    %28 = tpu.matmul %25, %27, %cst_31 {dimension_numbers = #tpu.dot_dimension_numbers<[1], [0], [0], [1], [0, 0, 1, 1], [], []>} : vector<256x8xbf16>, vector<8x16xbf16>, vector<256x16xf32> -> vector<256x16xf32>
    %29 = arith.addf %22, %28 : vector<256x16xf32>
    %c0_32 = arith.constant 0 : index
    %c1_33 = arith.constant 1 : index
    %c0_34 = arith.constant 0 : index
    %30 = vector.load %arg14[%c0_32, %c1_33, %c0_34] : memref<18x18x8xf32, #tpu.memory_space<vmem>>, vector<16x16x8xf32>
    %31 = vector.shape_cast %30 : vector<16x16x8xf32> to vector<256x8xf32>
    %32 = arith.truncf %31 : vector<256x8xf32> to vector<256x8xbf16>
    %c0_35 = arith.constant 0 : index
    %c1_36 = arith.constant 1 : index
    %c0_37 = arith.constant 0 : index
    %c0_38 = arith.constant 0 : index
    %33 = vector.load %arg3[%c0_35, %c1_36, %c0_37, %c0_38] : memref<3x3x8x16xbf16, #tpu.memory_space<vmem>>, vector<1x1x8x16xbf16>
    %34 = vector.shape_cast %33 : vector<1x1x8x16xbf16> to vector<8x16xbf16>
    %cst_39 = arith.constant dense<0.000000e+00> : vector<256x16xf32>
    %35 = tpu.matmul %32, %34, %cst_39 {dimension_numbers = #tpu.dot_dimension_numbers<[1], [0], [0], [1], [0, 0, 1, 1], [], []>} : vector<256x8xbf16>, vector<8x16xbf16>, vector<256x16xf32> -> vector<256x16xf32>
    %36 = arith.addf %29, %35 : vector<256x16xf32>
    %c0_40 = arith.constant 0 : index
    %c2 = arith.constant 2 : index
    %c0_41 = arith.constant 0 : index
    %37 = vector.load %arg14[%c0_40, %c2, %c0_41] : memref<18x18x8xf32, #tpu.memory_space<vmem>>, vector<16x16x8xf32>
    %38 = vector.shape_cast %37 : vector<16x16x8xf32> to vector<256x8xf32>
    %39 = arith.truncf %38 : vector<256x8xf32> to vector<256x8xbf16>
    %c0_42 = arith.constant 0 : index
    %c2_43 = arith.constant 2 : index
    %c0_44 = arith.constant 0 : index
    %c0_45 = arith.constant 0 : index
    %40 = vector.load %arg3[%c0_42, %c2_43, %c0_44, %c0_45] : memref<3x3x8x16xbf16, #tpu.memory_space<vmem>>, vector<1x1x8x16xbf16>
    %41 = vector.shape_cast %40 : vector<1x1x8x16xbf16> to vector<8x16xbf16>
    %cst_46 = arith.constant dense<0.000000e+00> : vector<256x16xf32>
    %42 = tpu.matmul %39, %41, %cst_46 {dimension_numbers = #tpu.dot_dimension_numbers<[1], [0], [0], [1], [0, 0, 1, 1], [], []>} : vector<256x8xbf16>, vector<8x16xbf16>, vector<256x16xf32> -> vector<256x16xf32>
    %43 = arith.addf %36, %42 : vector<256x16xf32>
    %c1_47 = arith.constant 1 : index
    %c0_48 = arith.constant 0 : index
    %c0_49 = arith.constant 0 : index
    %44 = vector.load %arg14[%c1_47, %c0_48, %c0_49] : memref<18x18x8xf32, #tpu.memory_space<vmem>>, vector<16x16x8xf32>
    %45 = vector.shape_cast %44 : vector<16x16x8xf32> to vector<256x8xf32>
    %46 = arith.truncf %45 : vector<256x8xf32> to vector<256x8xbf16>
    %c1_50 = arith.constant 1 : index
    %c0_51 = arith.constant 0 : index
    %c0_52 = arith.constant 0 : index
    %c0_53 = arith.constant 0 : index
    %47 = vector.load %arg3[%c1_50, %c0_51, %c0_52, %c0_53] : memref<3x3x8x16xbf16, #tpu.memory_space<vmem>>, vector<1x1x8x16xbf16>
    %48 = vector.shape_cast %47 : vector<1x1x8x16xbf16> to vector<8x16xbf16>
    %cst_54 = arith.constant dense<0.000000e+00> : vector<256x16xf32>
    %49 = tpu.matmul %46, %48, %cst_54 {dimension_numbers = #tpu.dot_dimension_numbers<[1], [0], [0], [1], [0, 0, 1, 1], [], []>} : vector<256x8xbf16>, vector<8x16xbf16>, vector<256x16xf32> -> vector<256x16xf32>
    %50 = arith.addf %43, %49 : vector<256x16xf32>
    %c1_55 = arith.constant 1 : index
    %c1_56 = arith.constant 1 : index
    %c0_57 = arith.constant 0 : index
    %51 = vector.load %arg14[%c1_55, %c1_56, %c0_57] : memref<18x18x8xf32, #tpu.memory_space<vmem>>, vector<16x16x8xf32>
    %52 = vector.shape_cast %51 : vector<16x16x8xf32> to vector<256x8xf32>
    %53 = arith.truncf %52 : vector<256x8xf32> to vector<256x8xbf16>
    %c1_58 = arith.constant 1 : index
    %c1_59 = arith.constant 1 : index
    %c0_60 = arith.constant 0 : index
    %c0_61 = arith.constant 0 : index
    %54 = vector.load %arg3[%c1_58, %c1_59, %c0_60, %c0_61] : memref<3x3x8x16xbf16, #tpu.memory_space<vmem>>, vector<1x1x8x16xbf16>
    %55 = vector.shape_cast %54 : vector<1x1x8x16xbf16> to vector<8x16xbf16>
    %cst_62 = arith.constant dense<0.000000e+00> : vector<256x16xf32>
    %56 = tpu.matmul %53, %55, %cst_62 {dimension_numbers = #tpu.dot_dimension_numbers<[1], [0], [0], [1], [0, 0, 1, 1], [], []>} : vector<256x8xbf16>, vector<8x16xbf16>, vector<256x16xf32> -> vector<256x16xf32>
    %57 = arith.addf %50, %56 : vector<256x16xf32>
    %c1_63 = arith.constant 1 : index
    %c2_64 = arith.constant 2 : index
    %c0_65 = arith.constant 0 : index
    %58 = vector.load %arg14[%c1_63, %c2_64, %c0_65] : memref<18x18x8xf32, #tpu.memory_space<vmem>>, vector<16x16x8xf32>
    %59 = vector.shape_cast %58 : vector<16x16x8xf32> to vector<256x8xf32>
    %60 = arith.truncf %59 : vector<256x8xf32> to vector<256x8xbf16>
    %c1_66 = arith.constant 1 : index
    %c2_67 = arith.constant 2 : index
    %c0_68 = arith.constant 0 : index
    %c0_69 = arith.constant 0 : index
    %61 = vector.load %arg3[%c1_66, %c2_67, %c0_68, %c0_69] : memref<3x3x8x16xbf16, #tpu.memory_space<vmem>>, vector<1x1x8x16xbf16>
    %62 = vector.shape_cast %61 : vector<1x1x8x16xbf16> to vector<8x16xbf16>
    %cst_70 = arith.constant dense<0.000000e+00> : vector<256x16xf32>
    %63 = tpu.matmul %60, %62, %cst_70 {dimension_numbers = #tpu.dot_dimension_numbers<[1], [0], [0], [1], [0, 0, 1, 1], [], []>} : vector<256x8xbf16>, vector<8x16xbf16>, vector<256x16xf32> -> vector<256x16xf32>
    %64 = arith.addf %57, %63 : vector<256x16xf32>
    %c2_71 = arith.constant 2 : index
    %c0_72 = arith.constant 0 : index
    %c0_73 = arith.constant 0 : index
    %65 = vector.load %arg14[%c2_71, %c0_72, %c0_73] : memref<18x18x8xf32, #tpu.memory_space<vmem>>, vector<16x16x8xf32>
    %66 = vector.shape_cast %65 : vector<16x16x8xf32> to vector<256x8xf32>
    %67 = arith.truncf %66 : vector<256x8xf32> to vector<256x8xbf16>
    %c2_74 = arith.constant 2 : index
    %c0_75 = arith.constant 0 : index
    %c0_76 = arith.constant 0 : index
    %c0_77 = arith.constant 0 : index
    %68 = vector.load %arg3[%c2_74, %c0_75, %c0_76, %c0_77] : memref<3x3x8x16xbf16, #tpu.memory_space<vmem>>, vector<1x1x8x16xbf16>
    %69 = vector.shape_cast %68 : vector<1x1x8x16xbf16> to vector<8x16xbf16>
    %cst_78 = arith.constant dense<0.000000e+00> : vector<256x16xf32>
    %70 = tpu.matmul %67, %69, %cst_78 {dimension_numbers = #tpu.dot_dimension_numbers<[1], [0], [0], [1], [0, 0, 1, 1], [], []>} : vector<256x8xbf16>, vector<8x16xbf16>, vector<256x16xf32> -> vector<256x16xf32>
    %71 = arith.addf %64, %70 : vector<256x16xf32>
    %c2_79 = arith.constant 2 : index
    %c1_80 = arith.constant 1 : index
    %c0_81 = arith.constant 0 : index
    %72 = vector.load %arg14[%c2_79, %c1_80, %c0_81] : memref<18x18x8xf32, #tpu.memory_space<vmem>>, vector<16x16x8xf32>
    %73 = vector.shape_cast %72 : vector<16x16x8xf32> to vector<256x8xf32>
    %74 = arith.truncf %73 : vector<256x8xf32> to vector<256x8xbf16>
    %c2_82 = arith.constant 2 : index
    %c1_83 = arith.constant 1 : index
    %c0_84 = arith.constant 0 : index
    %c0_85 = arith.constant 0 : index
    %75 = vector.load %arg3[%c2_82, %c1_83, %c0_84, %c0_85] : memref<3x3x8x16xbf16, #tpu.memory_space<vmem>>, vector<1x1x8x16xbf16>
    %76 = vector.shape_cast %75 : vector<1x1x8x16xbf16> to vector<8x16xbf16>
    %cst_86 = arith.constant dense<0.000000e+00> : vector<256x16xf32>
    %77 = tpu.matmul %74, %76, %cst_86 {dimension_numbers = #tpu.dot_dimension_numbers<[1], [0], [0], [1], [0, 0, 1, 1], [], []>} : vector<256x8xbf16>, vector<8x16xbf16>, vector<256x16xf32> -> vector<256x16xf32>
    %78 = arith.addf %71, %77 : vector<256x16xf32>
    %c2_87 = arith.constant 2 : index
    %c2_88 = arith.constant 2 : index
    %c0_89 = arith.constant 0 : index
    %79 = vector.load %arg14[%c2_87, %c2_88, %c0_89] : memref<18x18x8xf32, #tpu.memory_space<vmem>>, vector<16x16x8xf32>
    %80 = vector.shape_cast %79 : vector<16x16x8xf32> to vector<256x8xf32>
    %81 = arith.truncf %80 : vector<256x8xf32> to vector<256x8xbf16>
    %c2_90 = arith.constant 2 : index
    %c2_91 = arith.constant 2 : index
    %c0_92 = arith.constant 0 : index
    %c0_93 = arith.constant 0 : index
    %82 = vector.load %arg3[%c2_90, %c2_91, %c0_92, %c0_93] : memref<3x3x8x16xbf16, #tpu.memory_space<vmem>>, vector<1x1x8x16xbf16>
    %83 = vector.shape_cast %82 : vector<1x1x8x16xbf16> to vector<8x16xbf16>
    %cst_94 = arith.constant dense<0.000000e+00> : vector<256x16xf32>
    %84 = tpu.matmul %81, %83, %cst_94 {dimension_numbers = #tpu.dot_dimension_numbers<[1], [0], [0], [1], [0, 0, 1, 1], [], []>} : vector<256x8xbf16>, vector<8x16xbf16>, vector<256x16xf32> -> vector<256x16xf32>
    %85 = arith.addf %78, %84 : vector<256x16xf32>
    %cst_95 = arith.constant 0.000000e+00 : f32
    %86 = vector.broadcast %cst_95 : f32 to vector<256x16xf32>
    %c0_96 = arith.constant 0 : index
    %c0_97 = arith.constant 0 : index
    %c0_98 = arith.constant 0 : index
    %87 = vector.load %arg15[%c0_96, %c0_97, %c0_98] : memref<18x18x16xf32, #tpu.memory_space<vmem>>, vector<16x16x16xf32>
    %88 = vector.shape_cast %87 : vector<16x16x16xf32> to vector<256x16xf32>
    %89 = arith.truncf %88 : vector<256x16xf32> to vector<256x16xbf16>
    %c0_99 = arith.constant 0 : index
    %c0_100 = arith.constant 0 : index
    %c0_101 = arith.constant 0 : index
    %c0_102 = arith.constant 0 : index
    %90 = vector.load %arg4[%c0_99, %c0_100, %c0_101, %c0_102] : memref<3x3x16x16xbf16, #tpu.memory_space<vmem>>, vector<1x1x16x16xbf16>
    %91 = vector.shape_cast %90 : vector<1x1x16x16xbf16> to vector<16x16xbf16>
    %cst_103 = arith.constant dense<0.000000e+00> : vector<256x16xf32>
    %92 = tpu.matmul %89, %91, %cst_103 {dimension_numbers = #tpu.dot_dimension_numbers<[1], [0], [0], [1], [0, 0, 1, 1], [], []>} : vector<256x16xbf16>, vector<16x16xbf16>, vector<256x16xf32> -> vector<256x16xf32>
    %93 = arith.addf %86, %92 : vector<256x16xf32>
    %c0_104 = arith.constant 0 : index
    %c1_105 = arith.constant 1 : index
    %c0_106 = arith.constant 0 : index
    %94 = vector.load %arg15[%c0_104, %c1_105, %c0_106] : memref<18x18x16xf32, #tpu.memory_space<vmem>>, vector<16x16x16xf32>
    %95 = vector.shape_cast %94 : vector<16x16x16xf32> to vector<256x16xf32>
    %96 = arith.truncf %95 : vector<256x16xf32> to vector<256x16xbf16>
    %c0_107 = arith.constant 0 : index
    %c1_108 = arith.constant 1 : index
    %c0_109 = arith.constant 0 : index
    %c0_110 = arith.constant 0 : index
    %97 = vector.load %arg4[%c0_107, %c1_108, %c0_109, %c0_110] : memref<3x3x16x16xbf16, #tpu.memory_space<vmem>>, vector<1x1x16x16xbf16>
    %98 = vector.shape_cast %97 : vector<1x1x16x16xbf16> to vector<16x16xbf16>
    %cst_111 = arith.constant dense<0.000000e+00> : vector<256x16xf32>
    %99 = tpu.matmul %96, %98, %cst_111 {dimension_numbers = #tpu.dot_dimension_numbers<[1], [0], [0], [1], [0, 0, 1, 1], [], []>} : vector<256x16xbf16>, vector<16x16xbf16>, vector<256x16xf32> -> vector<256x16xf32>
    %100 = arith.addf %93, %99 : vector<256x16xf32>
    %c0_112 = arith.constant 0 : index
    %c2_113 = arith.constant 2 : index
    %c0_114 = arith.constant 0 : index
    %101 = vector.load %arg15[%c0_112, %c2_113, %c0_114] : memref<18x18x16xf32, #tpu.memory_space<vmem>>, vector<16x16x16xf32>
    %102 = vector.shape_cast %101 : vector<16x16x16xf32> to vector<256x16xf32>
    %103 = arith.truncf %102 : vector<256x16xf32> to vector<256x16xbf16>
    %c0_115 = arith.constant 0 : index
    %c2_116 = arith.constant 2 : index
    %c0_117 = arith.constant 0 : index
    %c0_118 = arith.constant 0 : index
    %104 = vector.load %arg4[%c0_115, %c2_116, %c0_117, %c0_118] : memref<3x3x16x16xbf16, #tpu.memory_space<vmem>>, vector<1x1x16x16xbf16>
    %105 = vector.shape_cast %104 : vector<1x1x16x16xbf16> to vector<16x16xbf16>
    %cst_119 = arith.constant dense<0.000000e+00> : vector<256x16xf32>
    %106 = tpu.matmul %103, %105, %cst_119 {dimension_numbers = #tpu.dot_dimension_numbers<[1], [0], [0], [1], [0, 0, 1, 1], [], []>} : vector<256x16xbf16>, vector<16x16xbf16>, vector<256x16xf32> -> vector<256x16xf32>
    %107 = arith.addf %100, %106 : vector<256x16xf32>
    %c1_120 = arith.constant 1 : index
    %c0_121 = arith.constant 0 : index
    %c0_122 = arith.constant 0 : index
    %108 = vector.load %arg15[%c1_120, %c0_121, %c0_122] : memref<18x18x16xf32, #tpu.memory_space<vmem>>, vector<16x16x16xf32>
    %109 = vector.shape_cast %108 : vector<16x16x16xf32> to vector<256x16xf32>
    %110 = arith.truncf %109 : vector<256x16xf32> to vector<256x16xbf16>
    %c1_123 = arith.constant 1 : index
    %c0_124 = arith.constant 0 : index
    %c0_125 = arith.constant 0 : index
    %c0_126 = arith.constant 0 : index
    %111 = vector.load %arg4[%c1_123, %c0_124, %c0_125, %c0_126] : memref<3x3x16x16xbf16, #tpu.memory_space<vmem>>, vector<1x1x16x16xbf16>
    %112 = vector.shape_cast %111 : vector<1x1x16x16xbf16> to vector<16x16xbf16>
    %cst_127 = arith.constant dense<0.000000e+00> : vector<256x16xf32>
    %113 = tpu.matmul %110, %112, %cst_127 {dimension_numbers = #tpu.dot_dimension_numbers<[1], [0], [0], [1], [0, 0, 1, 1], [], []>} : vector<256x16xbf16>, vector<16x16xbf16>, vector<256x16xf32> -> vector<256x16xf32>
    %114 = arith.addf %107, %113 : vector<256x16xf32>
    %c1_128 = arith.constant 1 : index
    %c1_129 = arith.constant 1 : index
    %c0_130 = arith.constant 0 : index
    %115 = vector.load %arg15[%c1_128, %c1_129, %c0_130] : memref<18x18x16xf32, #tpu.memory_space<vmem>>, vector<16x16x16xf32>
    %116 = vector.shape_cast %115 : vector<16x16x16xf32> to vector<256x16xf32>
    %117 = arith.truncf %116 : vector<256x16xf32> to vector<256x16xbf16>
    %c1_131 = arith.constant 1 : index
    %c1_132 = arith.constant 1 : index
    %c0_133 = arith.constant 0 : index
    %c0_134 = arith.constant 0 : index
    %118 = vector.load %arg4[%c1_131, %c1_132, %c0_133, %c0_134] : memref<3x3x16x16xbf16, #tpu.memory_space<vmem>>, vector<1x1x16x16xbf16>
    %119 = vector.shape_cast %118 : vector<1x1x16x16xbf16> to vector<16x16xbf16>
    %cst_135 = arith.constant dense<0.000000e+00> : vector<256x16xf32>
    %120 = tpu.matmul %117, %119, %cst_135 {dimension_numbers = #tpu.dot_dimension_numbers<[1], [0], [0], [1], [0, 0, 1, 1], [], []>} : vector<256x16xbf16>, vector<16x16xbf16>, vector<256x16xf32> -> vector<256x16xf32>
    %121 = arith.addf %114, %120 : vector<256x16xf32>
    %c1_136 = arith.constant 1 : index
    %c2_137 = arith.constant 2 : index
    %c0_138 = arith.constant 0 : index
    %122 = vector.load %arg15[%c1_136, %c2_137, %c0_138] : memref<18x18x16xf32, #tpu.memory_space<vmem>>, vector<16x16x16xf32>
    %123 = vector.shape_cast %122 : vector<16x16x16xf32> to vector<256x16xf32>
    %124 = arith.truncf %123 : vector<256x16xf32> to vector<256x16xbf16>
    %c1_139 = arith.constant 1 : index
    %c2_140 = arith.constant 2 : index
    %c0_141 = arith.constant 0 : index
    %c0_142 = arith.constant 0 : index
    %125 = vector.load %arg4[%c1_139, %c2_140, %c0_141, %c0_142] : memref<3x3x16x16xbf16, #tpu.memory_space<vmem>>, vector<1x1x16x16xbf16>
    %126 = vector.shape_cast %125 : vector<1x1x16x16xbf16> to vector<16x16xbf16>
    %cst_143 = arith.constant dense<0.000000e+00> : vector<256x16xf32>
    %127 = tpu.matmul %124, %126, %cst_143 {dimension_numbers = #tpu.dot_dimension_numbers<[1], [0], [0], [1], [0, 0, 1, 1], [], []>} : vector<256x16xbf16>, vector<16x16xbf16>, vector<256x16xf32> -> vector<256x16xf32>
    %128 = arith.addf %121, %127 : vector<256x16xf32>
    %c2_144 = arith.constant 2 : index
    %c0_145 = arith.constant 0 : index
    %c0_146 = arith.constant 0 : index
    %129 = vector.load %arg15[%c2_144, %c0_145, %c0_146] : memref<18x18x16xf32, #tpu.memory_space<vmem>>, vector<16x16x16xf32>
    %130 = vector.shape_cast %129 : vector<16x16x16xf32> to vector<256x16xf32>
    %131 = arith.truncf %130 : vector<256x16xf32> to vector<256x16xbf16>
    %c2_147 = arith.constant 2 : index
    %c0_148 = arith.constant 0 : index
    %c0_149 = arith.constant 0 : index
    %c0_150 = arith.constant 0 : index
    %132 = vector.load %arg4[%c2_147, %c0_148, %c0_149, %c0_150] : memref<3x3x16x16xbf16, #tpu.memory_space<vmem>>, vector<1x1x16x16xbf16>
    %133 = vector.shape_cast %132 : vector<1x1x16x16xbf16> to vector<16x16xbf16>
    %cst_151 = arith.constant dense<0.000000e+00> : vector<256x16xf32>
    %134 = tpu.matmul %131, %133, %cst_151 {dimension_numbers = #tpu.dot_dimension_numbers<[1], [0], [0], [1], [0, 0, 1, 1], [], []>} : vector<256x16xbf16>, vector<16x16xbf16>, vector<256x16xf32> -> vector<256x16xf32>
    %135 = arith.addf %128, %134 : vector<256x16xf32>
    %c2_152 = arith.constant 2 : index
    %c1_153 = arith.constant 1 : index
    %c0_154 = arith.constant 0 : index
    %136 = vector.load %arg15[%c2_152, %c1_153, %c0_154] : memref<18x18x16xf32, #tpu.memory_space<vmem>>, vector<16x16x16xf32>
    %137 = vector.shape_cast %136 : vector<16x16x16xf32> to vector<256x16xf32>
    %138 = arith.truncf %137 : vector<256x16xf32> to vector<256x16xbf16>
    %c2_155 = arith.constant 2 : index
    %c1_156 = arith.constant 1 : index
    %c0_157 = arith.constant 0 : index
    %c0_158 = arith.constant 0 : index
    %139 = vector.load %arg4[%c2_155, %c1_156, %c0_157, %c0_158] : memref<3x3x16x16xbf16, #tpu.memory_space<vmem>>, vector<1x1x16x16xbf16>
    %140 = vector.shape_cast %139 : vector<1x1x16x16xbf16> to vector<16x16xbf16>
    %cst_159 = arith.constant dense<0.000000e+00> : vector<256x16xf32>
    %141 = tpu.matmul %138, %140, %cst_159 {dimension_numbers = #tpu.dot_dimension_numbers<[1], [0], [0], [1], [0, 0, 1, 1], [], []>} : vector<256x16xbf16>, vector<16x16xbf16>, vector<256x16xf32> -> vector<256x16xf32>
    %142 = arith.addf %135, %141 : vector<256x16xf32>
    %c2_160 = arith.constant 2 : index
    %c2_161 = arith.constant 2 : index
    %c0_162 = arith.constant 0 : index
    %143 = vector.load %arg15[%c2_160, %c2_161, %c0_162] : memref<18x18x16xf32, #tpu.memory_space<vmem>>, vector<16x16x16xf32>
    %144 = vector.shape_cast %143 : vector<16x16x16xf32> to vector<256x16xf32>
    %145 = arith.truncf %144 : vector<256x16xf32> to vector<256x16xbf16>
    %c2_163 = arith.constant 2 : index
    %c2_164 = arith.constant 2 : index
    %c0_165 = arith.constant 0 : index
    %c0_166 = arith.constant 0 : index
    %146 = vector.load %arg4[%c2_163, %c2_164, %c0_165, %c0_166] : memref<3x3x16x16xbf16, #tpu.memory_space<vmem>>, vector<1x1x16x16xbf16>
    %147 = vector.shape_cast %146 : vector<1x1x16x16xbf16> to vector<16x16xbf16>
    %cst_167 = arith.constant dense<0.000000e+00> : vector<256x16xf32>
    %148 = tpu.matmul %145, %147, %cst_167 {dimension_numbers = #tpu.dot_dimension_numbers<[1], [0], [0], [1], [0, 0, 1, 1], [], []>} : vector<256x16xbf16>, vector<16x16xbf16>, vector<256x16xf32> -> vector<256x16xf32>
    %149 = arith.addf %142, %148 : vector<256x16xf32>
    %150 = arith.addf %85, %149 : vector<256x16xf32>
    %c0_168 = arith.constant 0 : index
    %c0_169 = arith.constant 0 : index
    %151 = vector.load %arg7[%c0_168, %c0_169] : memref<1x16xf32, #tpu.memory_space<vmem>>, vector<1x16xf32>
    %152 = vector.broadcast %151 : vector<1x16xf32> to vector<256x16xf32>
    %153 = arith.addf %150, %152 : vector<256x16xf32>
    %c0_170 = arith.constant 0 : index
    %c0_171 = arith.constant 0 : index
    %154 = vector.load %arg8[%c0_170, %c0_171] : memref<1x16xf32, #tpu.memory_space<vmem>>, vector<1x16xf32>
    %c0_172 = arith.constant 0 : index
    %c0_173 = arith.constant 0 : index
    %155 = vector.load %arg9[%c0_172, %c0_173] : memref<1x16xf32, #tpu.memory_space<vmem>>, vector<1x16xf32>
    %cst_174 = arith.constant dense<0.000000e+00> : vector<16xf32>
    %156 = vector.multi_reduction <add>, %153, %cst_174 [0] : vector<256x16xf32> to vector<16xf32>
    %157 = vector.shape_cast %156 : vector<16xf32> to vector<1x16xf32>
    %cst_175 = arith.constant 2.560000e+02 : f32
    %158 = vector.broadcast %cst_175 : f32 to vector<1x16xf32>
    %159 = arith.divf %157, %158 : vector<1x16xf32>
    %c0_176 = arith.constant 0 : index
    %c0_177 = arith.constant 0 : index
    %160 = vector.load %arg6[%c0_176, %c0_177] : memref<16x16xf32, #tpu.memory_space<vmem>>, vector<16x16xf32>
    %cst_178 = arith.constant dense<0.000000e+00> : vector<1x16xf32>
    %161 = tpu.matmul %159, %160, %cst_178 {dimension_numbers = #tpu.dot_dimension_numbers<[1], [0], [0], [1], [0, 0, 1, 1], [], []>} : vector<1x16xf32>, vector<16x16xf32>, vector<1x16xf32> -> vector<1x16xf32>
    %162 = vector.broadcast %161 : vector<1x16xf32> to vector<256x16xf32>
    %163 = arith.subf %153, %162 : vector<256x16xf32>
    %164 = arith.mulf %163, %163 : vector<256x16xf32>
    %cst_179 = arith.constant dense<0.000000e+00> : vector<16xf32>
    %165 = vector.multi_reduction <add>, %164, %cst_179 [0] : vector<256x16xf32> to vector<16xf32>
    %166 = vector.shape_cast %165 : vector<16xf32> to vector<1x16xf32>
    %cst_180 = arith.constant 2.560000e+02 : f32
    %167 = vector.broadcast %cst_180 : f32 to vector<1x16xf32>
    %168 = arith.divf %166, %167 : vector<1x16xf32>
    %c0_181 = arith.constant 0 : index
    %c0_182 = arith.constant 0 : index
    %169 = vector.load %arg6[%c0_181, %c0_182] : memref<16x16xf32, #tpu.memory_space<vmem>>, vector<16x16xf32>
    %cst_183 = arith.constant dense<0.000000e+00> : vector<1x16xf32>
    %170 = tpu.matmul %168, %169, %cst_183 {dimension_numbers = #tpu.dot_dimension_numbers<[1], [0], [0], [1], [0, 0, 1, 1], [], []>} : vector<1x16xf32>, vector<16x16xf32>, vector<1x16xf32> -> vector<1x16xf32>
    %cst_184 = arith.constant 9.99999974E-6 : f32
    %171 = vector.broadcast %cst_184 : f32 to vector<1x16xf32>
    %172 = arith.addf %170, %171 : vector<1x16xf32>
    %173 = math.rsqrt %172 : vector<1x16xf32>
    %174 = vector.broadcast %173 : vector<1x16xf32> to vector<256x16xf32>
    %175 = arith.mulf %163, %174 : vector<256x16xf32>
    %176 = vector.broadcast %154 : vector<1x16xf32> to vector<256x16xf32>
    %177 = arith.mulf %175, %176 : vector<256x16xf32>
    %178 = vector.broadcast %155 : vector<1x16xf32> to vector<256x16xf32>
    %179 = arith.addf %177, %178 : vector<256x16xf32>
    %180 = arith.negf %179 : vector<256x16xf32>
    %181 = math.exp %180 : vector<256x16xf32>
    %cst_185 = arith.constant 1.000000e+00 : f32
    %182 = vector.broadcast %cst_185 : f32 to vector<256x16xf32>
    %183 = arith.addf %182, %181 : vector<256x16xf32>
    %184 = arith.divf %182, %183 : vector<256x16xf32>
    %185 = arith.mulf %179, %184 : vector<256x16xf32>
    %186 = vector.shape_cast %185 : vector<256x16xf32> to vector<16x16x16xf32>
    %c1_186 = arith.constant 1 : index
    %c1_187 = arith.constant 1 : index
    %c0_188 = arith.constant 0 : index
    %187 = vector.load %arg16[%c1_186, %c1_187, %c0_188] : memref<18x18x16xf32, #tpu.memory_space<vmem>>, vector<16x16x16xf32>
    tpu.vector_store %arg16[%c1_186, %c1_187, %c0_188], %186 {strides = array<i32>} : memref<18x18x16xf32, #tpu.memory_space<vmem>>, vector<16x16x16xf32>,
    %cst_189 = arith.constant 0.000000e+00 : f32
    %188 = vector.broadcast %cst_189 : f32 to vector<256x16xf32>
    %c0_190 = arith.constant 0 : index
    %c0_191 = arith.constant 0 : index
    %c0_192 = arith.constant 0 : index
    %189 = vector.load %arg16[%c0_190, %c0_191, %c0_192] : memref<18x18x16xf32, #tpu.memory_space<vmem>>, vector<16x16x16xf32>
    %190 = vector.shape_cast %189 : vector<16x16x16xf32> to vector<256x16xf32>
    %191 = arith.truncf %190 : vector<256x16xf32> to vector<256x16xbf16>
    %c0_193 = arith.constant 0 : index
    %c0_194 = arith.constant 0 : index
    %c0_195 = arith.constant 0 : index
    %c0_196 = arith.constant 0 : index
    %192 = vector.load %arg5[%c0_193, %c0_194, %c0_195, %c0_196] : memref<3x3x16x16xbf16, #tpu.memory_space<vmem>>, vector<1x1x16x16xbf16>
    %193 = vector.shape_cast %192 : vector<1x1x16x16xbf16> to vector<16x16xbf16>
    %cst_197 = arith.constant dense<0.000000e+00> : vector<256x16xf32>
    %194 = tpu.matmul %191, %193, %cst_197 {dimension_numbers = #tpu.dot_dimension_numbers<[1], [0], [0], [1], [0, 0, 1, 1], [], []>} : vector<256x16xbf16>, vector<16x16xbf16>, vector<256x16xf32> -> vector<256x16xf32>
    %195 = arith.addf %188, %194 : vector<256x16xf32>
    %c0_198 = arith.constant 0 : index
    %c1_199 = arith.constant 1 : index
    %c0_200 = arith.constant 0 : index
    %196 = vector.load %arg16[%c0_198, %c1_199, %c0_200] : memref<18x18x16xf32, #tpu.memory_space<vmem>>, vector<16x16x16xf32>
    %197 = vector.shape_cast %196 : vector<16x16x16xf32> to vector<256x16xf32>
    %198 = arith.truncf %197 : vector<256x16xf32> to vector<256x16xbf16>
    %c0_201 = arith.constant 0 : index
    %c1_202 = arith.constant 1 : index
    %c0_203 = arith.constant 0 : index
    %c0_204 = arith.constant 0 : index
    %199 = vector.load %arg5[%c0_201, %c1_202, %c0_203, %c0_204] : memref<3x3x16x16xbf16, #tpu.memory_space<vmem>>, vector<1x1x16x16xbf16>
    %200 = vector.shape_cast %199 : vector<1x1x16x16xbf16> to vector<16x16xbf16>
    %cst_205 = arith.constant dense<0.000000e+00> : vector<256x16xf32>
    %201 = tpu.matmul %198, %200, %cst_205 {dimension_numbers = #tpu.dot_dimension_numbers<[1], [0], [0], [1], [0, 0, 1, 1], [], []>} : vector<256x16xbf16>, vector<16x16xbf16>, vector<256x16xf32> -> vector<256x16xf32>
    %202 = arith.addf %195, %201 : vector<256x16xf32>
    %c0_206 = arith.constant 0 : index
    %c2_207 = arith.constant 2 : index
    %c0_208 = arith.constant 0 : index
    %203 = vector.load %arg16[%c0_206, %c2_207, %c0_208] : memref<18x18x16xf32, #tpu.memory_space<vmem>>, vector<16x16x16xf32>
    %204 = vector.shape_cast %203 : vector<16x16x16xf32> to vector<256x16xf32>
    %205 = arith.truncf %204 : vector<256x16xf32> to vector<256x16xbf16>
    %c0_209 = arith.constant 0 : index
    %c2_210 = arith.constant 2 : index
    %c0_211 = arith.constant 0 : index
    %c0_212 = arith.constant 0 : index
    %206 = vector.load %arg5[%c0_209, %c2_210, %c0_211, %c0_212] : memref<3x3x16x16xbf16, #tpu.memory_space<vmem>>, vector<1x1x16x16xbf16>
    %207 = vector.shape_cast %206 : vector<1x1x16x16xbf16> to vector<16x16xbf16>
    %cst_213 = arith.constant dense<0.000000e+00> : vector<256x16xf32>
    %208 = tpu.matmul %205, %207, %cst_213 {dimension_numbers = #tpu.dot_dimension_numbers<[1], [0], [0], [1], [0, 0, 1, 1], [], []>} : vector<256x16xbf16>, vector<16x16xbf16>, vector<256x16xf32> -> vector<256x16xf32>
    %209 = arith.addf %202, %208 : vector<256x16xf32>
    %c1_214 = arith.constant 1 : index
    %c0_215 = arith.constant 0 : index
    %c0_216 = arith.constant 0 : index
    %210 = vector.load %arg16[%c1_214, %c0_215, %c0_216] : memref<18x18x16xf32, #tpu.memory_space<vmem>>, vector<16x16x16xf32>
    %211 = vector.shape_cast %210 : vector<16x16x16xf32> to vector<256x16xf32>
    %212 = arith.truncf %211 : vector<256x16xf32> to vector<256x16xbf16>
    %c1_217 = arith.constant 1 : index
    %c0_218 = arith.constant 0 : index
    %c0_219 = arith.constant 0 : index
    %c0_220 = arith.constant 0 : index
    %213 = vector.load %arg5[%c1_217, %c0_218, %c0_219, %c0_220] : memref<3x3x16x16xbf16, #tpu.memory_space<vmem>>, vector<1x1x16x16xbf16>
    %214 = vector.shape_cast %213 : vector<1x1x16x16xbf16> to vector<16x16xbf16>
    %cst_221 = arith.constant dense<0.000000e+00> : vector<256x16xf32>
    %215 = tpu.matmul %212, %214, %cst_221 {dimension_numbers = #tpu.dot_dimension_numbers<[1], [0], [0], [1], [0, 0, 1, 1], [], []>} : vector<256x16xbf16>, vector<16x16xbf16>, vector<256x16xf32> -> vector<256x16xf32>
    %216 = arith.addf %209, %215 : vector<256x16xf32>
    %c1_222 = arith.constant 1 : index
    %c1_223 = arith.constant 1 : index
    %c0_224 = arith.constant 0 : index
    %217 = vector.load %arg16[%c1_222, %c1_223, %c0_224] : memref<18x18x16xf32, #tpu.memory_space<vmem>>, vector<16x16x16xf32>
    %218 = vector.shape_cast %217 : vector<16x16x16xf32> to vector<256x16xf32>
    %219 = arith.truncf %218 : vector<256x16xf32> to vector<256x16xbf16>
    %c1_225 = arith.constant 1 : index
    %c1_226 = arith.constant 1 : index
    %c0_227 = arith.constant 0 : index
    %c0_228 = arith.constant 0 : index
    %220 = vector.load %arg5[%c1_225, %c1_226, %c0_227, %c0_228] : memref<3x3x16x16xbf16, #tpu.memory_space<vmem>>, vector<1x1x16x16xbf16>
    %221 = vector.shape_cast %220 : vector<1x1x16x16xbf16> to vector<16x16xbf16>
    %cst_229 = arith.constant dense<0.000000e+00> : vector<256x16xf32>
    %222 = tpu.matmul %219, %221, %cst_229 {dimension_numbers = #tpu.dot_dimension_numbers<[1], [0], [0], [1], [0, 0, 1, 1], [], []>} : vector<256x16xbf16>, vector<16x16xbf16>, vector<256x16xf32> -> vector<256x16xf32>
    %223 = arith.addf %216, %222 : vector<256x16xf32>
    %c1_230 = arith.constant 1 : index
    %c2_231 = arith.constant 2 : index
    %c0_232 = arith.constant 0 : index
    %224 = vector.load %arg16[%c1_230, %c2_231, %c0_232] : memref<18x18x16xf32, #tpu.memory_space<vmem>>, vector<16x16x16xf32>
    %225 = vector.shape_cast %224 : vector<16x16x16xf32> to vector<256x16xf32>
    %226 = arith.truncf %225 : vector<256x16xf32> to vector<256x16xbf16>
    %c1_233 = arith.constant 1 : index
    %c2_234 = arith.constant 2 : index
    %c0_235 = arith.constant 0 : index
    %c0_236 = arith.constant 0 : index
    %227 = vector.load %arg5[%c1_233, %c2_234, %c0_235, %c0_236] : memref<3x3x16x16xbf16, #tpu.memory_space<vmem>>, vector<1x1x16x16xbf16>
    %228 = vector.shape_cast %227 : vector<1x1x16x16xbf16> to vector<16x16xbf16>
    %cst_237 = arith.constant dense<0.000000e+00> : vector<256x16xf32>
    %229 = tpu.matmul %226, %228, %cst_237 {dimension_numbers = #tpu.dot_dimension_numbers<[1], [0], [0], [1], [0, 0, 1, 1], [], []>} : vector<256x16xbf16>, vector<16x16xbf16>, vector<256x16xf32> -> vector<256x16xf32>
    %230 = arith.addf %223, %229 : vector<256x16xf32>
    %c2_238 = arith.constant 2 : index
    %c0_239 = arith.constant 0 : index
    %c0_240 = arith.constant 0 : index
    %231 = vector.load %arg16[%c2_238, %c0_239, %c0_240] : memref<18x18x16xf32, #tpu.memory_space<vmem>>, vector<16x16x16xf32>
    %232 = vector.shape_cast %231 : vector<16x16x16xf32> to vector<256x16xf32>
    %233 = arith.truncf %232 : vector<256x16xf32> to vector<256x16xbf16>
    %c2_241 = arith.constant 2 : index
    %c0_242 = arith.constant 0 : index
    %c0_243 = arith.constant 0 : index
    %c0_244 = arith.constant 0 : index
    %234 = vector.load %arg5[%c2_241, %c0_242, %c0_243, %c0_244] : memref<3x3x16x16xbf16, #tpu.memory_space<vmem>>, vector<1x1x16x16xbf16>
    %235 = vector.shape_cast %234 : vector<1x1x16x16xbf16> to vector<16x16xbf16>
    %cst_245 = arith.constant dense<0.000000e+00> : vector<256x16xf32>
    %236 = tpu.matmul %233, %235, %cst_245 {dimension_numbers = #tpu.dot_dimension_numbers<[1], [0], [0], [1], [0, 0, 1, 1], [], []>} : vector<256x16xbf16>, vector<16x16xbf16>, vector<256x16xf32> -> vector<256x16xf32>
    %237 = arith.addf %230, %236 : vector<256x16xf32>
    %c2_246 = arith.constant 2 : index
    %c1_247 = arith.constant 1 : index
    %c0_248 = arith.constant 0 : index
    %238 = vector.load %arg16[%c2_246, %c1_247, %c0_248] : memref<18x18x16xf32, #tpu.memory_space<vmem>>, vector<16x16x16xf32>
    %239 = vector.shape_cast %238 : vector<16x16x16xf32> to vector<256x16xf32>
    %240 = arith.truncf %239 : vector<256x16xf32> to vector<256x16xbf16>
    %c2_249 = arith.constant 2 : index
    %c1_250 = arith.constant 1 : index
    %c0_251 = arith.constant 0 : index
    %c0_252 = arith.constant 0 : index
    %241 = vector.load %arg5[%c2_249, %c1_250, %c0_251, %c0_252] : memref<3x3x16x16xbf16, #tpu.memory_space<vmem>>, vector<1x1x16x16xbf16>
    %242 = vector.shape_cast %241 : vector<1x1x16x16xbf16> to vector<16x16xbf16>
    %cst_253 = arith.constant dense<0.000000e+00> : vector<256x16xf32>
    %243 = tpu.matmul %240, %242, %cst_253 {dimension_numbers = #tpu.dot_dimension_numbers<[1], [0], [0], [1], [0, 0, 1, 1], [], []>} : vector<256x16xbf16>, vector<16x16xbf16>, vector<256x16xf32> -> vector<256x16xf32>
    %244 = arith.addf %237, %243 : vector<256x16xf32>
    %c2_254 = arith.constant 2 : index
    %c2_255 = arith.constant 2 : index
    %c0_256 = arith.constant 0 : index
    %245 = vector.load %arg16[%c2_254, %c2_255, %c0_256] : memref<18x18x16xf32, #tpu.memory_space<vmem>>, vector<16x16x16xf32>
    %246 = vector.shape_cast %245 : vector<16x16x16xf32> to vector<256x16xf32>
    %247 = arith.truncf %246 : vector<256x16xf32> to vector<256x16xbf16>
    %c2_257 = arith.constant 2 : index
    %c2_258 = arith.constant 2 : index
    %c0_259 = arith.constant 0 : index
    %c0_260 = arith.constant 0 : index
    %248 = vector.load %arg5[%c2_257, %c2_258, %c0_259, %c0_260] : memref<3x3x16x16xbf16, #tpu.memory_space<vmem>>, vector<1x1x16x16xbf16>
    %249 = vector.shape_cast %248 : vector<1x1x16x16xbf16> to vector<16x16xbf16>
    %cst_261 = arith.constant dense<0.000000e+00> : vector<256x16xf32>
    %250 = tpu.matmul %247, %249, %cst_261 {dimension_numbers = #tpu.dot_dimension_numbers<[1], [0], [0], [1], [0, 0, 1, 1], [], []>} : vector<256x16xbf16>, vector<16x16xbf16>, vector<256x16xf32> -> vector<256x16xf32>
    %251 = arith.addf %244, %250 : vector<256x16xf32>
    %c0_262 = arith.constant 0 : index
    %c0_263 = arith.constant 0 : index
    %252 = vector.load %arg10[%c0_262, %c0_263] : memref<1x16xf32, #tpu.memory_space<vmem>>, vector<1x16xf32>
    %253 = vector.broadcast %252 : vector<1x16xf32> to vector<256x16xf32>
    %254 = arith.addf %251, %253 : vector<256x16xf32>
    %c0_264 = arith.constant 0 : index
    %c0_265 = arith.constant 0 : index
    %255 = vector.load %arg11[%c0_264, %c0_265] : memref<1x16xf32, #tpu.memory_space<vmem>>, vector<1x16xf32>
    %c0_266 = arith.constant 0 : index
    %c0_267 = arith.constant 0 : index
    %256 = vector.load %arg12[%c0_266, %c0_267] : memref<1x16xf32, #tpu.memory_space<vmem>>, vector<1x16xf32>
    %cst_268 = arith.constant dense<0.000000e+00> : vector<16xf32>
    %257 = vector.multi_reduction <add>, %254, %cst_268 [0] : vector<256x16xf32> to vector<16xf32>
    %258 = vector.shape_cast %257 : vector<16xf32> to vector<1x16xf32>
    %cst_269 = arith.constant 2.560000e+02 : f32
    %259 = vector.broadcast %cst_269 : f32 to vector<1x16xf32>
    %260 = arith.divf %258, %259 : vector<1x16xf32>
    %c0_270 = arith.constant 0 : index
    %c0_271 = arith.constant 0 : index
    %261 = vector.load %arg6[%c0_270, %c0_271] : memref<16x16xf32, #tpu.memory_space<vmem>>, vector<16x16xf32>
    %cst_272 = arith.constant dense<0.000000e+00> : vector<1x16xf32>
    %262 = tpu.matmul %260, %261, %cst_272 {dimension_numbers = #tpu.dot_dimension_numbers<[1], [0], [0], [1], [0, 0, 1, 1], [], []>} : vector<1x16xf32>, vector<16x16xf32>, vector<1x16xf32> -> vector<1x16xf32>
    %263 = vector.broadcast %262 : vector<1x16xf32> to vector<256x16xf32>
    %264 = arith.subf %254, %263 : vector<256x16xf32>
    %265 = arith.mulf %264, %264 : vector<256x16xf32>
    %cst_273 = arith.constant dense<0.000000e+00> : vector<16xf32>
    %266 = vector.multi_reduction <add>, %265, %cst_273 [0] : vector<256x16xf32> to vector<16xf32>
    %267 = vector.shape_cast %266 : vector<16xf32> to vector<1x16xf32>
    %cst_274 = arith.constant 2.560000e+02 : f32
    %268 = vector.broadcast %cst_274 : f32 to vector<1x16xf32>
    %269 = arith.divf %267, %268 : vector<1x16xf32>
    %c0_275 = arith.constant 0 : index
    %c0_276 = arith.constant 0 : index
    %270 = vector.load %arg6[%c0_275, %c0_276] : memref<16x16xf32, #tpu.memory_space<vmem>>, vector<16x16xf32>
    %cst_277 = arith.constant dense<0.000000e+00> : vector<1x16xf32>
    %271 = tpu.matmul %269, %270, %cst_277 {dimension_numbers = #tpu.dot_dimension_numbers<[1], [0], [0], [1], [0, 0, 1, 1], [], []>} : vector<1x16xf32>, vector<16x16xf32>, vector<1x16xf32> -> vector<1x16xf32>
    %cst_278 = arith.constant 9.99999974E-6 : f32
    %272 = vector.broadcast %cst_278 : f32 to vector<1x16xf32>
    %273 = arith.addf %271, %272 : vector<1x16xf32>
    %274 = math.rsqrt %273 : vector<1x16xf32>
    %275 = vector.broadcast %274 : vector<1x16xf32> to vector<256x16xf32>
    %276 = arith.mulf %264, %275 : vector<256x16xf32>
    %277 = vector.broadcast %255 : vector<1x16xf32> to vector<256x16xf32>
    %278 = arith.mulf %276, %277 : vector<256x16xf32>
    %279 = vector.broadcast %256 : vector<1x16xf32> to vector<256x16xf32>
    %280 = arith.addf %278, %279 : vector<256x16xf32>
    %281 = arith.negf %280 : vector<256x16xf32>
    %282 = math.exp %281 : vector<256x16xf32>
    %cst_279 = arith.constant 1.000000e+00 : f32
    %283 = vector.broadcast %cst_279 : f32 to vector<256x16xf32>
    %284 = arith.addf %283, %282 : vector<256x16xf32>
    %285 = arith.divf %283, %284 : vector<256x16xf32>
    %286 = arith.mulf %280, %285 : vector<256x16xf32>
    %287 = vector.shape_cast %286 : vector<256x16xf32> to vector<16x16x16xf32>
    %c0_280 = arith.constant 0 : index
    %c0_281 = arith.constant 0 : index
    %c0_282 = arith.constant 0 : index
    %c0_283 = arith.constant 0 : index
    %288 = vector.load %arg13[%c0_280, %c0_281, %c0_282, %c0_283] : memref<1x16x16x16xf32, #tpu.memory_space<vmem>>, vector<1x16x16x16xf32>
    %289 = vector.shape_cast %288 : vector<1x16x16x16xf32> to vector<16x16x16xf32>
    %290 = vector.shape_cast %287 : vector<16x16x16xf32> to vector<1x16x16x16xf32>
    tpu.vector_store %arg13[%c0_280, %c0_281, %c0_282, %c0_283], %290 {strides = array<i32>} : memref<1x16x16x16xf32, #tpu.memory_space<vmem>>, vector<1x16x16x16xf32>,
    return
  }
  func.func @transform_0(%arg0: i32) -> (i32, i32, i32, i32) {
    %c0_i32 = arith.constant 0 : i32
    %c0_i32_0 = arith.constant 0 : i32
    %c0_i32_1 = arith.constant 0 : i32
    %c0_i32_2 = arith.constant 0 : i32
    return %arg0, %c0_i32, %c0_i32_0, %c0_i32_1 : i32, i32, i32, i32
  }
  func.func @transform_1(%arg0: i32) -> (i32, i32, i32, i32) {
    %c0_i32 = arith.constant 0 : i32
    %c0_i32_0 = arith.constant 0 : i32
    %c0_i32_1 = arith.constant 0 : i32
    %c0_i32_2 = arith.constant 0 : i32
    return %arg0, %c0_i32, %c0_i32_0, %c0_i32_1 : i32, i32, i32, i32
  }
  func.func @transform_2(%arg0: i32) -> (i32, i32, i32, i32) {
    %c0_i32 = arith.constant 0 : i32
    %c0_i32_0 = arith.constant 0 : i32
    %c0_i32_1 = arith.constant 0 : i32
    %c0_i32_2 = arith.constant 0 : i32
    %c0_i32_3 = arith.constant 0 : i32
    return %c0_i32, %c0_i32_0, %c0_i32_1, %c0_i32_2 : i32, i32, i32, i32
  }
  func.func @transform_3(%arg0: i32) -> (i32, i32, i32, i32) {
    %c0_i32 = arith.constant 0 : i32
    %c0_i32_0 = arith.constant 0 : i32
    %c0_i32_1 = arith.constant 0 : i32
    %c0_i32_2 = arith.constant 0 : i32
    %c0_i32_3 = arith.constant 0 : i32
    return %c0_i32, %c0_i32_0, %c0_i32_1, %c0_i32_2 : i32, i32, i32, i32
  }
  func.func @transform_4(%arg0: i32) -> (i32, i32, i32, i32) {
    %c0_i32 = arith.constant 0 : i32
    %c0_i32_0 = arith.constant 0 : i32
    %c0_i32_1 = arith.constant 0 : i32
    %c0_i32_2 = arith.constant 0 : i32
    %c0_i32_3 = arith.constant 0 : i32
    return %c0_i32, %c0_i32_0, %c0_i32_1, %c0_i32_2 : i32, i32, i32, i32
  }
  func.func @transform_5(%arg0: i32) -> (i32, i32) {
    %c0_i32 = arith.constant 0 : i32
    %c0_i32_0 = arith.constant 0 : i32
    %c0_i32_1 = arith.constant 0 : i32
    return %c0_i32, %c0_i32_0 : i32, i32
  }
  func.func @transform_6(%arg0: i32) -> (i32, i32) {
    %c0_i32 = arith.constant 0 : i32
    %c0_i32_0 = arith.constant 0 : i32
    %c0_i32_1 = arith.constant 0 : i32
    return %c0_i32, %c0_i32_0 : i32, i32
  }
  func.func @transform_7(%arg0: i32) -> (i32, i32) {
    %c0_i32 = arith.constant 0 : i32
    %c0_i32_0 = arith.constant 0 : i32
    %c0_i32_1 = arith.constant 0 : i32
    return %c0_i32, %c0_i32_0 : i32, i32
  }
  func.func @transform_8(%arg0: i32) -> (i32, i32) {
    %c0_i32 = arith.constant 0 : i32
    %c0_i32_0 = arith.constant 0 : i32
    %c0_i32_1 = arith.constant 0 : i32
    return %c0_i32, %c0_i32_0 : i32, i32
  }
  func.func @transform_9(%arg0: i32) -> (i32, i32) {
    %c0_i32 = arith.constant 0 : i32
    %c0_i32_0 = arith.constant 0 : i32
    %c0_i32_1 = arith.constant 0 : i32
    return %c0_i32, %c0_i32_0 : i32, i32
  }
  func.func @transform_10(%arg0: i32) -> (i32, i32) {
    %c0_i32 = arith.constant 0 : i32
    %c0_i32_0 = arith.constant 0 : i32
    %c0_i32_1 = arith.constant 0 : i32
    return %c0_i32, %c0_i32_0 : i32, i32
  }
  func.func @transform_11(%arg0: i32) -> (i32, i32) {
    %c0_i32 = arith.constant 0 : i32
    %c0_i32_0 = arith.constant 0 : i32
    %c0_i32_1 = arith.constant 0 : i32
    return %c0_i32, %c0_i32_0 : i32, i32
  }
  func.func @transform_12(%arg0: i32) -> (i32, i32, i32, i32) {
    %c0_i32 = arith.constant 0 : i32
    %c0_i32_0 = arith.constant 0 : i32
    %c0_i32_1 = arith.constant 0 : i32
    %c0_i32_2 = arith.constant 0 : i32
    return %arg0, %c0_i32, %c0_i32_0, %c0_i32_1 : i32, i32, i32, i32
  }
}

</mosaic_0001>

<llo_original>
// kernel: tpu_custom_call.1
$region0: #{tpu_custom_call.1}
  #allocation0 [shape = 'u32[]', space=smem, size = 0x4, offset = 0x4, fixed_abs, tag = 'smem constant byte address 0x4 - core index']
  #allocation1 [shape = 'u32[72,128]{1,0:T(1,128)}', space=vmem, size = 0x9000, scoped, tag = 'internal scratch']
  #allocation2 [shape = 'f32[18,18,8]{2,1,0:T(8,128)}', space=vmem, size = 0x36000, scoped, tag = 'scratch operand']
  #allocation3 [shape = 'f32[18,18,16]{2,1,0:T(8,128)}', space=vmem, size = 0x36000, scoped, tag = 'scratch operand']
  #allocation4 [shape = 'f32[18,18,16]{2,1,0:T(8,128)}', space=vmem, size = 0x36000, scoped, tag = 'scratch operand']
  %s0 = inlined_call_operand.hbm [shape: bf16[2,8,8,8], index: 0, kind: input, shape index: {}]
  %s1 = inlined_call_operand.hbm [shape: bf16[2,16,16,16], index: 1, kind: input, shape index: {}]
  %s2 = inlined_call_operand.hbm [shape: bf16[3,3,8,16], index: 2, kind: input, shape index: {}]
  %s3 = inlined_call_operand.hbm [shape: bf16[3,3,16,16], index: 3, kind: input, shape index: {}]
  %s4 = inlined_call_operand.hbm [shape: bf16[3,3,16,16], index: 4, kind: input, shape index: {}]
  %s5 = inlined_call_operand.hbm [shape: f32[16,16], index: 5, kind: input, shape index: {}]
  %s6 = inlined_call_operand.vmem [shape: f32[1,16], index: 6, kind: input, shape index: {}]
  %s7 = inlined_call_operand.vmem [shape: f32[1,16], index: 7, kind: input, shape index: {}]
  %s8 = inlined_call_operand.vmem [shape: f32[1,16], index: 8, kind: input, shape index: {}]
  %s9 = inlined_call_operand.vmem [shape: f32[1,16], index: 9, kind: input, shape index: {}]
  %s10 = inlined_call_operand.vmem [shape: f32[1,16], index: 10, kind: input, shape index: {}]
  %s11 = inlined_call_operand.vmem [shape: f32[1,16], index: 11, kind: input, shape index: {}]
  %s12 = inlined_call_operand.hbm [shape: f32[2,16,16,16], index: 12, kind: output, shape index: {}]
  %s13 = sld [smem:[#allocation0]]
  $region105: #{tpu_custom_call.1} parent=0
    _
  %s15 = ssub.s32 1, %s13
  %s16 = scalar_select 0, %s15, %s13
  $region1: #{tpu_custom_call.1} parent=0
    #allocation5 [shape = 'u8[32768]{0}', space=vmem, size = 0x8000, scoped, tag = 'input window, operand 0']
    #allocation6 [shape = 's32[2]{0}', space=sflag, size = 0x8, scoped, tag = 'scoped memory for tpu_custom_call.1']
    #allocation7 [shape = 's32[2]{0}', space=sflag, size = 0x8, scoped, tag = 'scoped memory for tpu_custom_call.1']
    #allocation8 [shape = 'u8[131072]{0}', space=vmem, size = 0x20000, scoped, tag = 'input window, operand 1']
    #allocation9 [shape = 's32[2]{0}', space=sflag, size = 0x8, scoped, tag = 'scoped memory for tpu_custom_call.1']
    #allocation10 [shape = 'u8[18432]{0}', space=vmem, size = 0x4800, scoped, tag = 'input window, operand 2, single buffered']
    #allocation11 [shape = 'u8[36864]{0}', space=vmem, size = 0x9000, scoped, tag = 'input window, operand 3, single buffered']
    #allocation12 [shape = 's32[1]{0}', space=sflag, size = 0x4, scoped, tag = 'scoped memory for tpu_custom_call.1']
    #allocation13 [shape = 'u8[36864]{0}', space=vmem, size = 0x9000, scoped, tag = 'input window, operand 4, single buffered']
    #allocation14 [shape = 'u8[8192]{0}', space=vmem, size = 0x2000, scoped, tag = 'input window, operand 5, single buffered']
    #allocation15 [shape = 's32[1]{0}', space=sflag, size = 0x4, scoped, tag = 'scoped memory for tpu_custom_call.1']
    #allocation16 [shape = 'u8[262144]{0}', space=vmem, size = 0x40000, scoped, tag = 'output window, operand 0']
    %17 = vsyncpa [#allocation6], 0
    %s18 = scalar_lea.sflag [#allocation6], 1
    %19 = vsyncpa %s18, 0
    %20 = vsyncpa [#allocation9], 0
    %s21 = scalar_lea.sflag [#allocation9], 1
    %22 = vsyncpa %s21, 0
    %23 = vsyncpa [#allocation12], 0
    %24 = vsyncpa [#allocation15], 0
    %25 = vsyncpa [#allocation7], 0
    %s26 = scalar_lea.sflag [#allocation7], 1
    %27 = vsyncpa %s26, 0
    loop: start=0, step=1, limit=4
    $region2: #{tpu_custom_call.1} parent=1 // loop_pre_header
      _
    $region3: #{tpu_custom_call.1} parent=1 // loop_header
      %s29 = sphi 0, %s33
      %p30 = scmp.ge.s32.totalorder %s29, 4
      %s39 = sphi 0, %s41
      %s42 = sphi 0, %s39
      %s43 = sphi 0, %s42
      %s59 = sphi 0, %s43
      %s65 = sphi 0, %s67
      %s68 = sphi 0, %s65
      %s69 = sphi 0, %s68
      %s85 = sphi 0, %s69
      %s89 = sphi 0, %s89
      %s91 = sphi 0, %s89
      %s92 = sphi 0, %s91
      %s106 = sphi 0, %s92
      %s110 = sphi 0, %s110
      %s112 = sphi 0, %s110
      %s113 = sphi 0, %s112
      %s127 = sphi 0, %s113
      %s131 = sphi 0, %s131
      %s133 = sphi 0, %s131
      %s134 = sphi 0, %s133
      %s148 = sphi 0, %s134
      %s152 = sphi 0, %s152
      %s154 = sphi 0, %s152
      %s155 = sphi 0, %s154
      %s169 = sphi 0, %s155
      %s173 = sphi 0, %s173
      %s175 = sphi 0, %s173
      %s176 = sphi 0, %s175
      %s190 = sphi 0, %s176
      %s194 = sphi 0, %s194
      %s196 = sphi 0, %s194
      %s197 = sphi 0, %s196
      %s211 = sphi 0, %s197
      %s215 = sphi 0, %s215
      %s217 = sphi 0, %s215
      %s218 = sphi 0, %s217
      %s232 = sphi 0, %s218
      %s236 = sphi 0, %s236
      %s238 = sphi 0, %s236
      %s239 = sphi 0, %s238
      %s253 = sphi 0, %s239
      %s257 = sphi 0, %s257
      %s259 = sphi 0, %s257
      %s260 = sphi 0, %s259
      %s274 = sphi 0, %s260
      %s278 = sphi 0, %s278
      %s280 = sphi 0, %s278
      %s281 = sphi 0, %s280
      %s295 = sphi 0, %s281
      %s301 = sphi 0, %s303
      %s304 = sphi 0, %s301
      %s305 = sphi 0, %s304
      %s321 = sphi 0, %s305
    $region4: #{tpu_custom_call.1} parent=1 // loop_header_branch
      %32 = sbr.rel (%p30) target = $region8
    $region5: #{tpu_custom_call.1} parent=1 // loop_body
      %s34 = ssub.s32 %s29, 1
      %s35 = ssub.s32 %s29, 2
      %s36 = sadd.s32 %s29, 1
      %s37 = ssub.s32 %s29, %s36
      %p38 = scmp.eq.s32.totalorder %s37, 0
      %s40 = sadd.s32 %s39, 1
      %s41 = scalar_select %p38, %s39, %s40
      %p44 = pneg %p38
      %p45 = scmp.eq.s32.totalorder %s29, 1
      %p46 = por %p44, %p45
      %p47 = scmp.ne.s32.totalorder %s39, %s42
      %p48 = scmp.eq.s32.totalorder %s29, 0
      %p49 = por %p47, %p48
      %p50 = scmp.ne.s32.totalorder %s39, %s42
      %p51 = scmp.eq.s32.totalorder %s34, 1
      %p52 = por %p50, %p51
      %p53 = scmp.ne.s32.totalorder %s42, %s43
      %p54 = scmp.eq.s32.totalorder %s34, 0
      %p55 = por %p53, %p54
      %p56 = scmp.ne.s32.totalorder %s42, %s43
      %p57 = scmp.eq.s32.totalorder %s35, 1
      %p58 = por %p56, %p57
      %p60 = scmp.ne.s32.totalorder %s43, %s59
      %p61 = scmp.eq.s32.totalorder %s35, 0
      %p62 = por %p60, %p61
      %s63 = ssub.s32 %s29, %s36
      %p64 = scmp.eq.s32.totalorder %s63, 0
      %s66 = sadd.s32 %s65, 1
      %s67 = scalar_select %p64, %s65, %s66
      %p70 = pneg %p64
      %p71 = scmp.eq.s32.totalorder %s29, 1
      %p72 = por %p70, %p71
      %p73 = scmp.ne.s32.totalorder %s65, %s68
      %p74 = scmp.eq.s32.totalorder %s29, 0
      %p75 = por %p73, %p74
      %p76 = scmp.ne.s32.totalorder %s65, %s68
      %p77 = scmp.eq.s32.totalorder %s34, 1
      %p78 = por %p76, %p77
      %p79 = scmp.ne.s32.totalorder %s68, %s69
      %p80 = scmp.eq.s32.totalorder %s34, 0
      %p81 = por %p79, %p80
      %p82 = scmp.ne.s32.totalorder %s68, %s69
      %p83 = scmp.eq.s32.totalorder %s35, 1
      %p84 = por %p82, %p83
      %p86 = scmp.ne.s32.totalorder %s69, %s85
      %p87 = scmp.eq.s32.totalorder %s35, 0
      %p88 = por %p86, %p87
      %s90 = sadd.s32 %s89, 1
      %p93 = scmp.eq.s32.totalorder %s29, 1
      %p94 = scmp.ne.s32.totalorder %s89, %s91
      %p95 = scmp.eq.s32.totalorder %s29, 0
      %p96 = por %p94, %p95
      %p97 = scmp.ne.s32.totalorder %s89, %s91
      %p98 = scmp.eq.s32.totalorder %s34, 1
      %p99 = por %p97, %p98
      %p100 = scmp.ne.s32.totalorder %s91, %s92
      %p101 = scmp.eq.s32.totalorder %s34, 0
      %p102 = por %p100, %p101
      %p103 = scmp.ne.s32.totalorder %s91, %s92
      %p104 = scmp.eq.s32.totalorder %s35, 1
      %p105 = por %p103, %p104
      %p107 = scmp.ne.s32.totalorder %s92, %s106
      %p108 = scmp.eq.s32.totalorder %s35, 0
      %p109 = por %p107, %p108
      %s111 = sadd.s32 %s110, 1
      %p114 = scmp.eq.s32.totalorder %s29, 1
      %p115 = scmp.ne.s32.totalorder %s110, %s112
      %p116 = scmp.eq.s32.totalorder %s29, 0
      %p117 = por %p115, %p116
      %p118 = scmp.ne.s32.totalorder %s110, %s112
      %p119 = scmp.eq.s32.totalorder %s34, 1
      %p120 = por %p118, %p119
      %p121 = scmp.ne.s32.totalorder %s112, %s113
      %p122 = scmp.eq.s32.totalorder %s34, 0
      %p123 = por %p121, %p122
      %p124 = scmp.ne.s32.totalorder %s112, %s113
      %p125 = scmp.eq.s32.totalorder %s35, 1
      %p126 = por %p124, %p125
      %p128 = scmp.ne.s32.totalorder %s113, %s127
      %p129 = scmp.eq.s32.totalorder %s35, 0
      %p130 = por %p128, %p129
      %s132 = sadd.s32 %s131, 1
      %p135 = scmp.eq.s32.totalorder %s29, 1
      %p136 = scmp.ne.s32.totalorder %s131, %s133
      %p137 = scmp.eq.s32.totalorder %s29, 0
      %p138 = por %p136, %p137
      %p139 = scmp.ne.s32.totalorder %s131, %s133
      %p140 = scmp.eq.s32.totalorder %s34, 1
      %p141 = por %p139, %p140
      %p142 = scmp.ne.s32.totalorder %s133, %s134
      %p143 = scmp.eq.s32.totalorder %s34, 0
      %p144 = por %p142, %p143
      %p145 = scmp.ne.s32.totalorder %s133, %s134
      %p146 = scmp.eq.s32.totalorder %s35, 1
      %p147 = por %p145, %p146
      %p149 = scmp.ne.s32.totalorder %s134, %s148
      %p150 = scmp.eq.s32.totalorder %s35, 0
      %p151 = por %p149, %p150
      %s153 = sadd.s32 %s152, 1
      %p156 = scmp.eq.s32.totalorder %s29, 1
      %p157 = scmp.ne.s32.totalorder %s152, %s154
      %p158 = scmp.eq.s32.totalorder %s29, 0
      %p159 = por %p157, %p158
      %p160 = scmp.ne.s32.totalorder %s152, %s154
      %p161 = scmp.eq.s32.totalorder %s34, 1
      %p162 = por %p160, %p161
      %p163 = scmp.ne.s32.totalorder %s154, %s155
      %p164 = scmp.eq.s32.totalorder %s34, 0
      %p165 = por %p163, %p164
      %p166 = scmp.ne.s32.totalorder %s154, %s155
      %p167 = scmp.eq.s32.totalorder %s35, 1
      %p168 = por %p166, %p167
      %p170 = scmp.ne.s32.totalorder %s155, %s169
      %p171 = scmp.eq.s32.totalorder %s35, 0
      %p172 = por %p170, %p171
      %s174 = sadd.s32 %s173, 1
      %p177 = scmp.eq.s32.totalorder %s29, 1
      %p178 = scmp.ne.s32.totalorder %s173, %s175
      %p179 = scmp.eq.s32.totalorder %s29, 0
      %p180 = por %p178, %p179
      %p181 = scmp.ne.s32.totalorder %s173, %s175
      %p182 = scmp.eq.s32.totalorder %s34, 1
      %p183 = por %p181, %p182
      %p184 = scmp.ne.s32.totalorder %s175, %s176
      %p185 = scmp.eq.s32.totalorder %s34, 0
      %p186 = por %p184, %p185
      %p187 = scmp.ne.s32.totalorder %s175, %s176
      %p188 = scmp.eq.s32.totalorder %s35, 1
      %p189 = por %p187, %p188
      %p191 = scmp.ne.s32.totalorder %s176, %s190
      %p192 = scmp.eq.s32.totalorder %s35, 0
      %p193 = por %p191, %p192
      %s195 = sadd.s32 %s194, 1
      %p198 = scmp.eq.s32.totalorder %s29, 1
      %p199 = scmp.ne.s32.totalorder %s194, %s196
      %p200 = scmp.eq.s32.totalorder %s29, 0
      %p201 = por %p199, %p200
      %p202 = scmp.ne.s32.totalorder %s194, %s196
      %p203 = scmp.eq.s32.totalorder %s34, 1
      %p204 = por %p202, %p203
      %p205 = scmp.ne.s32.totalorder %s196, %s197
      %p206 = scmp.eq.s32.totalorder %s34, 0
      %p207 = por %p205, %p206
      %p208 = scmp.ne.s32.totalorder %s196, %s197
      %p209 = scmp.eq.s32.totalorder %s35, 1
      %p210 = por %p208, %p209
      %p212 = scmp.ne.s32.totalorder %s197, %s211
      %p213 = scmp.eq.s32.totalorder %s35, 0
      %p214 = por %p212, %p213
      %s216 = sadd.s32 %s215, 1
      %p219 = scmp.eq.s32.totalorder %s29, 1
      %p220 = scmp.ne.s32.totalorder %s215, %s217
      %p221 = scmp.eq.s32.totalorder %s29, 0
      %p222 = por %p220, %p221
      %p223 = scmp.ne.s32.totalorder %s215, %s217
      %p224 = scmp.eq.s32.totalorder %s34, 1
      %p225 = por %p223, %p224
      %p226 = scmp.ne.s32.totalorder %s217, %s218
      %p227 = scmp.eq.s32.totalorder %s34, 0
      %p228 = por %p226, %p227
      %p229 = scmp.ne.s32.totalorder %s217, %s218
      %p230 = scmp.eq.s32.totalorder %s35, 1
      %p231 = por %p229, %p230
      %p233 = scmp.ne.s32.totalorder %s218, %s232
      %p234 = scmp.eq.s32.totalorder %s35, 0
      %p235 = por %p233, %p234
      %s237 = sadd.s32 %s236, 1
      %p240 = scmp.eq.s32.totalorder %s29, 1
      %p241 = scmp.ne.s32.totalorder %s236, %s238
      %p242 = scmp.eq.s32.totalorder %s29, 0
      %p243 = por %p241, %p242
      %p244 = scmp.ne.s32.totalorder %s236, %s238
      %p245 = scmp.eq.s32.totalorder %s34, 1
      %p246 = por %p244, %p245
      %p247 = scmp.ne.s32.totalorder %s238, %s239
      %p248 = scmp.eq.s32.totalorder %s34, 0
      %p249 = por %p247, %p248
      %p250 = scmp.ne.s32.totalorder %s238, %s239
      %p251 = scmp.eq.s32.totalorder %s35, 1
      %p252 = por %p250, %p251
      %p254 = scmp.ne.s32.totalorder %s239, %s253
      %p255 = scmp.eq.s32.totalorder %s35, 0
      %p256 = por %p254, %p255
      %s258 = sadd.s32 %s257, 1
      %p261 = scmp.eq.s32.totalorder %s29, 1
      %p262 = scmp.ne.s32.totalorder %s257, %s259
      %p263 = scmp.eq.s32.totalorder %s29, 0
      %p264 = por %p262, %p263
      %p265 = scmp.ne.s32.totalorder %s257, %s259
      %p266 = scmp.eq.s32.totalorder %s34, 1
      %p267 = por %p265, %p266
      %p268 = scmp.ne.s32.totalorder %s259, %s260
      %p269 = scmp.eq.s32.totalorder %s34, 0
      %p270 = por %p268, %p269
      %p271 = scmp.ne.s32.totalorder %s259, %s260
      %p272 = scmp.eq.s32.totalorder %s35, 1
      %p273 = por %p271, %p272
      %p275 = scmp.ne.s32.totalorder %s260, %s274
      %p276 = scmp.eq.s32.totalorder %s35, 0
      %p277 = por %p275, %p276
      %s279 = sadd.s32 %s278, 1
      %p282 = scmp.eq.s32.totalorder %s29, 1
      %p283 = scmp.ne.s32.totalorder %s278, %s280
      %p284 = scmp.eq.s32.totalorder %s29, 0
      %p285 = por %p283, %p284
      %p286 = scmp.ne.s32.totalorder %s278, %s280
      %p287 = scmp.eq.s32.totalorder %s34, 1
      %p288 = por %p286, %p287
      %p289 = scmp.ne.s32.totalorder %s280, %s281
      %p290 = scmp.eq.s32.totalorder %s34, 0
      %p291 = por %p289, %p290
      %p292 = scmp.ne.s32.totalorder %s280, %s281
      %p293 = scmp.eq.s32.totalorder %s35, 1
      %p294 = por %p292, %p293
      %p296 = scmp.ne.s32.totalorder %s281, %s295
      %p297 = scmp.eq.s32.totalorder %s35, 0
      %p298 = por %p296, %p297
      %s299 = ssub.s32 %s29, %s36
      %p300 = scmp.eq.s32.totalorder %s299, 0
      %s302 = sadd.s32 %s301, 1
      %s303 = scalar_select %p300, %s301, %s302
      %p306 = pneg %p300
      %p307 = scmp.eq.s32.totalorder %s29, 1
      %p308 = por %p306, %p307
      %p309 = scmp.ne.s32.totalorder %s301, %s304
      %p310 = scmp.eq.s32.totalorder %s29, 0
      %p311 = por %p309, %p310
      %p312 = scmp.ne.s32.totalorder %s301, %s304
      %p313 = scmp.eq.s32.totalorder %s34, 1
      %p314 = por %p312, %p313
      %p315 = scmp.ne.s32.totalorder %s304, %s305
      %p316 = scmp.eq.s32.totalorder %s34, 0
      %p317 = por %p315, %p316
      %p318 = scmp.ne.s32.totalorder %s304, %s305
      %p319 = scmp.eq.s32.totalorder %s35, 1
      %p320 = por %p318, %p319
      %p322 = scmp.ne.s32.totalorder %s305, %s321
      %p323 = scmp.eq.s32.totalorder %s35, 0
      %p324 = por %p322, %p323
      %p325 = scmp.le.s32.totalorder 1, %s29
      %p326 = scmp.lt.s32.totalorder %s29, 3
      %p327 = pnand %p325, %p326
      %p328 = pneg %p327
      // Predicated region
      $region9: #{tpu_custom_call.1} parent=5 // pred_check
        _
      $region10: #{tpu_custom_call.1} parent=5 // pred_check_branch
        %330 = sbr.rel (%p327) target = $region12
      $region11: #{tpu_custom_call.1} parent=5 // pred_region
        %s331 = ssub.s32 %s29, 1
        // Predicated region
        $region13: #{tpu_custom_call.1} parent=11 // pred_check
          %p332 = pneg %p102
        $region14: #{tpu_custom_call.1} parent=11 // pred_check_branch
          %334 = sbr.rel (%p332) target = $region16
        $region15: #{tpu_custom_call.1} parent=11 // pred_region
          %336 = vsyncadd [#allocation9], 0
          %s337 = sshll.u32 %s2, 4
          %s338 = int_to_ptr.hbm [resolvable:$true] %s337
          %s339 = sshll.u32 [#allocation10], 4
          %s340 = int_to_ptr.vmem [resolvable:$true] %s339
          %345 = dma.hbm_to_vmem [thread:$0]  %s338, 576, %s340, [#allocation9], 64, 64, 4
        $region16: #{tpu_custom_call.1} parent=11 // pred_fallthru
          _
        // Predicated region
        $region17: #{tpu_custom_call.1} parent=11 // pred_check
          %p346 = pneg %p123
        $region18: #{tpu_custom_call.1} parent=11 // pred_check_branch
          %348 = sbr.rel (%p346) target = $region20
        $region19: #{tpu_custom_call.1} parent=11 // pred_region
          %350 = vsyncadd [#allocation12], 0
          %s351 = sshll.u32 %s3, 4
          %s352 = int_to_ptr.hbm [resolvable:$true] %s351
          %s353 = sshll.u32 [#allocation11], 4
          %s354 = int_to_ptr.vmem [resolvable:$true] %s353
          %359 = dma.hbm_to_vmem [thread:$0]  %s352, 1152, %s354, [#allocation12], 64, 64, 4
        $region20: #{tpu_custom_call.1} parent=11 // pred_fallthru
          _
        // Predicated region
        $region21: #{tpu_custom_call.1} parent=11 // pred_check
          %p360 = pneg %p144
        $region22: #{tpu_custom_call.1} parent=11 // pred_check_branch
          %362 = sbr.rel (%p360) target = $region24
        $region23: #{tpu_custom_call.1} parent=11 // pred_region
          %364 = vsyncadd [#allocation12], 0
          %s365 = sshll.u32 %s4, 4
          %s366 = int_to_ptr.hbm [resolvable:$true] %s365
          %s367 = sshll.u32 [#allocation13], 4
          %s368 = int_to_ptr.vmem [resolvable:$true] %s367
          %373 = dma.hbm_to_vmem [thread:$0]  %s366, 1152, %s368, [#allocation12], 64, 64, 4
        $region24: #{tpu_custom_call.1} parent=11 // pred_fallthru
          _
        // Predicated region
        $region25: #{tpu_custom_call.1} parent=11 // pred_check
          %p374 = pneg %p165
        $region26: #{tpu_custom_call.1} parent=11 // pred_check_branch
          %376 = sbr.rel (%p374) target = $region28
        $region27: #{tpu_custom_call.1} parent=11 // pred_region
          %378 = vsyncadd [#allocation15], 0
          %s379 = sshll.u32 %s5, 4
          %s380 = int_to_ptr.hbm [resolvable:$true] %s379
          %s381 = sshll.u32 [#allocation14], 4
          %s382 = int_to_ptr.vmem [resolvable:$true] %s381
          %387 = dma.hbm_to_vmem [thread:$0]  %s380, 256, %s382, [#allocation15], 128, 128, 8
        $region28: #{tpu_custom_call.1} parent=11 // pred_fallthru
          _
        // Predicated region
        $region29: #{tpu_custom_call.1} parent=11 // pred_check
          %p388 = pneg %p186
        $region30: #{tpu_custom_call.1} parent=11 // pred_check_branch
          %390 = sbr.rel (%p388) target = $region32
        $region31: #{tpu_custom_call.1} parent=11 // pred_region
          _
        $region32: #{tpu_custom_call.1} parent=11 // pred_fallthru
          _
        // Predicated region
        $region33: #{tpu_custom_call.1} parent=11 // pred_check
          %p391 = pneg %p207
        $region34: #{tpu_custom_call.1} parent=11 // pred_check_branch
          %393 = sbr.rel (%p391) target = $region36
        $region35: #{tpu_custom_call.1} parent=11 // pred_region
          _
        $region36: #{tpu_custom_call.1} parent=11 // pred_fallthru
          _
        // Predicated region
        $region37: #{tpu_custom_call.1} parent=11 // pred_check
          %p394 = pneg %p228
        $region38: #{tpu_custom_call.1} parent=11 // pred_check_branch
          %396 = sbr.rel (%p394) target = $region40
        $region39: #{tpu_custom_call.1} parent=11 // pred_region
          _
        $region40: #{tpu_custom_call.1} parent=11 // pred_fallthru
          _
        // Predicated region
        $region41: #{tpu_custom_call.1} parent=11 // pred_check
          %p397 = pneg %p249
        $region42: #{tpu_custom_call.1} parent=11 // pred_check_branch
          %399 = sbr.rel (%p397) target = $region44
        $region43: #{tpu_custom_call.1} parent=11 // pred_region
          _
        $region44: #{tpu_custom_call.1} parent=11 // pred_fallthru
          _
        // Predicated region
        $region45: #{tpu_custom_call.1} parent=11 // pred_check
          %p400 = pneg %p270
        $region46: #{tpu_custom_call.1} parent=11 // pred_check_branch
          %402 = sbr.rel (%p400) target = $region48
        $region47: #{tpu_custom_call.1} parent=11 // pred_region
          _
        $region48: #{tpu_custom_call.1} parent=11 // pred_fallthru
          _
        // Predicated region
        $region49: #{tpu_custom_call.1} parent=11 // pred_check
          %p403 = pneg %p291
        $region50: #{tpu_custom_call.1} parent=11 // pred_check_branch
          %405 = sbr.rel (%p403) target = $region52
        $region51: #{tpu_custom_call.1} parent=11 // pred_region
          _
        $region52: #{tpu_custom_call.1} parent=11 // pred_fallthru
          _
      $region12: #{tpu_custom_call.1} parent=5 // pred_fallthru
        _
      %p406 = scmp.lt.s32.totalorder %s29, 2
      // Predicated region
      $region53: #{tpu_custom_call.1} parent=5 // pred_check
        %p407 = pneg %p406
      $region54: #{tpu_custom_call.1} parent=5 // pred_check_branch
        %409 = sbr.rel (%p407) target = $region56
      $region55: #{tpu_custom_call.1} parent=5 // pred_region
        // Predicated region
        $region57: #{tpu_custom_call.1} parent=55 // pred_check
          %p410 = pneg %p49
        $region58: #{tpu_custom_call.1} parent=55 // pred_check_branch
          %412 = sbr.rel (%p410) target = $region60
        $region59: #{tpu_custom_call.1} parent=55 // pred_region
          %s413 = sand.u32 %s39, 1
          %s414 = scalar_lea.sflag [#allocation6], %s413
          %s415 = sand.u32 %s39, 1
          %s416 = smul.addr %s415, 32
          %s417 = scalar_lea.vmem [#allocation5], %s416
          %419 = vsyncadd %s414, 0
          %s420 = smul.addr %s29, 8
          %s421 = smul.addr %s420, 4
          %s422 = scalar_lea.hbm %s0, %s421
          %s423 = sshll.u32 %s422, 4
          %s424 = int_to_ptr.hbm [resolvable:$true] %s423
          %s425 = sshll.u32 %s417, 4
          %s426 = int_to_ptr.vmem [resolvable:$true] %s425
          %431 = dma.hbm_to_vmem [thread:$0]  %s424, 512, %s426, %s414, 64, 64, 4
        $region60: #{tpu_custom_call.1} parent=55 // pred_fallthru
          _
        // Predicated region
        $region61: #{tpu_custom_call.1} parent=55 // pred_check
          %p432 = pneg %p75
        $region62: #{tpu_custom_call.1} parent=55 // pred_check_branch
          %434 = sbr.rel (%p432) target = $region64
        $region63: #{tpu_custom_call.1} parent=55 // pred_region
          %s435 = sand.u32 %s29, 1
          %s436 = scalar_lea.sflag [#allocation9], %s435
          %s437 = sand.u32 %s65, 1
          %s438 = smul.addr %s437, 128
          %s439 = scalar_lea.vmem [#allocation8], %s438
          %441 = vsyncadd %s436, 0
          %s442 = smul.addr %s29, 32
          %s443 = smul.addr %s442, 4
          %s444 = scalar_lea.hbm %s1, %s443
          %s445 = sshll.u32 %s444, 4
          %s446 = int_to_ptr.hbm [resolvable:$true] %s445
          %s447 = sshll.u32 %s439, 4
          %s448 = int_to_ptr.vmem [resolvable:$true] %s447
          %453 = dma.hbm_to_vmem [thread:$0]  %s446, 2048, %s448, %s436, 64, 64, 4
        $region64: #{tpu_custom_call.1} parent=55 // pred_fallthru
          _
      $region56: #{tpu_custom_call.1} parent=5 // pred_fallthru
        _
      %p454 = scmp.le.s32.totalorder 1, %s29
      %p455 = scmp.lt.s32.totalorder %s29, 3
      %p456 = pnand %p454, %p455
      %p457 = pneg %p456
      // Predicated region
      $region65: #{tpu_custom_call.1} parent=5 // pred_check
        _
      $region66: #{tpu_custom_call.1} parent=5 // pred_check_branch
        %459 = sbr.rel (%p456) target = $region68
      $region67: #{tpu_custom_call.1} parent=5 // pred_region
        %s460 = ssub.s32 %s29, 1
        %s461 = sand.u32 %s42, 1
        %s462 = scalar_lea.sflag [#allocation6], %s461
        %s463 = sand.u32 %s42, 1
        %s464 = smul.addr %s463, 32
        %s465 = scalar_lea.vmem [#allocation5], %s464
        // Predicated region
        $region69: #{tpu_custom_call.1} parent=67 // pred_check
          %p466 = pneg %p55
        $region70: #{tpu_custom_call.1} parent=67 // pred_check_branch
          %468 = sbr.rel (%p466) target = $region72
        $region71: #{tpu_custom_call.1} parent=67 // pred_region
          %470 = dma.done %s462, 512
        $region72: #{tpu_custom_call.1} parent=67 // pred_fallthru
          _
        %s471 = sand.u32 %s34, 1
        %s472 = scalar_lea.sflag [#allocation9], %s471
        %s473 = sand.u32 %s68, 1
        %s474 = smul.addr %s473, 128
        %s475 = scalar_lea.vmem [#allocation8], %s474
        // Predicated region
        $region73: #{tpu_custom_call.1} parent=67 // pred_check
          %p476 = pneg %p81
        $region74: #{tpu_custom_call.1} parent=67 // pred_check_branch
          %478 = sbr.rel (%p476) target = $region76
        $region75: #{tpu_custom_call.1} parent=67 // pred_region
          %480 = dma.done %s472, 2048
        $region76: #{tpu_custom_call.1} parent=67 // pred_fallthru
          _
        // Predicated region
        $region77: #{tpu_custom_call.1} parent=67 // pred_check
          %p481 = pneg %p102
        $region78: #{tpu_custom_call.1} parent=67 // pred_check_branch
          %483 = sbr.rel (%p481) target = $region80
        $region79: #{tpu_custom_call.1} parent=67 // pred_region
          %485 = dma.done [#allocation9], 576
        $region80: #{tpu_custom_call.1} parent=67 // pred_fallthru
          _
        // Predicated region
        $region81: #{tpu_custom_call.1} parent=67 // pred_check
          %p486 = pneg %p123
        $region82: #{tpu_custom_call.1} parent=67 // pred_check_branch
          %488 = sbr.rel (%p486) target = $region84
        $region83: #{tpu_custom_call.1} parent=67 // pred_region
          %490 = dma.done [#allocation12], 1152
        $region84: #{tpu_custom_call.1} parent=67 // pred_fallthru
          _
        // Predicated region
        $region85: #{tpu_custom_call.1} parent=67 // pred_check
          %p491 = pneg %p144
        $region86: #{tpu_custom_call.1} parent=67 // pred_check_branch
          %493 = sbr.rel (%p491) target = $region88
        $region87: #{tpu_custom_call.1} parent=67 // pred_region
          %495 = dma.done [#allocation12], 1152
        $region88: #{tpu_custom_call.1} parent=67 // pred_fallthru
          _
        // Predicated region
        $region89: #{tpu_custom_call.1} parent=67 // pred_check
          %p496 = pneg %p165
        $region90: #{tpu_custom_call.1} parent=67 // pred_check_branch
          %498 = sbr.rel (%p496) target = $region92
        $region91: #{tpu_custom_call.1} parent=67 // pred_region
          %500 = dma.done [#allocation15], 256
        $region92: #{tpu_custom_call.1} parent=67 // pred_fallthru
          _
        %s501 = sand.u32 %s42, 1
        %s502 = scalar_lea.sflag [#allocation6], %s501
        %s503 = sand.u32 %s42, 1
        %s504 = smul.addr %s503, 32
        %s505 = scalar_lea.vmem [#allocation5], %s504
        %p506 = pneg %p55
        %p507 = pneg %p52
        %s508 = sand.u32 %s34, 1
        %s509 = scalar_lea.sflag [#allocation9], %s508
        %s510 = sand.u32 %s68, 1
        %s511 = smul.addr %s510, 128
        %s512 = scalar_lea.vmem [#allocation8], %s511
        %p513 = pneg %p81
        %p514 = pneg %p78
        %p515 = pneg %p102
        %p516 = pneg %p99
        %p517 = pneg %p123
        %p518 = pneg %p120
        %p519 = pneg %p144
        %p520 = pneg %p141
        %p521 = pneg %p165
        %p522 = pneg %p162
        %p523 = pneg %p186
        %p524 = pneg %p183
        %p525 = pneg %p207
        %p526 = pneg %p204
        %p527 = pneg %p228
        %p528 = pneg %p225
        %p529 = pneg %p249
        %p530 = pneg %p246
        %p531 = pneg %p270
        %p532 = pneg %p267
        %p533 = pneg %p291
        %p534 = pneg %p288
        %p535 = pneg %p317
        %p536 = pneg %p314
        %s537 = sand.u32 %s304, 1
        %s538 = scalar_lea.sflag [#allocation7], %s537
        %s539 = sand.u32 %s304, 1
        %s540 = smul.addr %s539, 256
        %s541 = scalar_lea.vmem [#allocation16], %s540
        %vm543 = vcmask 64512
        %544 = vst.msk [vmem:[#allocation2] sm:$0xff] %vm543, 0.0
        %545 = vst.msk [vmem:[#allocation2 + $0x8] sm:$0xff] %vm543, 0.0
        %vm546 = vcmask 58368
        %547 = vst.msk [vmem:[#allocation2 + $0x10] sm:$0x3] %vm546, 0.0
        %548 = vst.msk [vmem:[#allocation2 + $0x18] sm:$0xff] %vm543, 0.0
        %549 = vst.msk [vmem:[#allocation2 + $0x20] sm:$0xff] %vm543, 0.0
        %550 = vst.msk [vmem:[#allocation2 + $0x28] sm:$0x3] %vm546, 0.0
        %551 = vst.msk [vmem:[#allocation2 + $0x30] sm:$0xff] %vm543, 0.0
        %552 = vst.msk [vmem:[#allocation2 + $0x38] sm:$0xff] %vm543, 0.0
        %553 = vst.msk [vmem:[#allocation2 + $0x40] sm:$0x3] %vm546, 0.0
        %554 = vst.msk [vmem:[#allocation2 + $0x48] sm:$0xff] %vm543, 0.0
        %555 = vst.msk [vmem:[#allocation2 + $0x50] sm:$0xff] %vm543, 0.0
        %556 = vst.msk [vmem:[#allocation2 + $0x58] sm:$0x3] %vm546, 0.0
        %557 = vst.msk [vmem:[#allocation2 + $0x60] sm:$0xff] %vm543, 0.0
        %558 = vst.msk [vmem:[#allocation2 + $0x68] sm:$0xff] %vm543, 0.0
        %559 = vst.msk [vmem:[#allocation2 + $0x70] sm:$0x3] %vm546, 0.0
        %560 = vst.msk [vmem:[#allocation2 + $0x78] sm:$0xff] %vm543, 0.0
        %561 = vst.msk [vmem:[#allocation2 + $0x80] sm:$0xff] %vm543, 0.0
        %562 = vst.msk [vmem:[#allocation2 + $0x88] sm:$0x3] %vm546, 0.0
        %563 = vst.msk [vmem:[#allocation2 + $0x90] sm:$0xff] %vm543, 0.0
        %564 = vst.msk [vmem:[#allocation2 + $0x98] sm:$0xff] %vm543, 0.0
        %565 = vst.msk [vmem:[#allocation2 + $0xa0] sm:$0x3] %vm546, 0.0
        %566 = vst.msk [vmem:[#allocation2 + $0xa8] sm:$0xff] %vm543, 0.0
        %567 = vst.msk [vmem:[#allocation2 + $0xb0] sm:$0xff] %vm543, 0.0
        %568 = vst.msk [vmem:[#allocation2 + $0xb8] sm:$0x3] %vm546, 0.0
        %569 = vst.msk [vmem:[#allocation2 + $0xc0] sm:$0xff] %vm543, 0.0
        %570 = vst.msk [vmem:[#allocation2 + $0xc8] sm:$0xff] %vm543, 0.0
        %571 = vst.msk [vmem:[#allocation2 + $0xd0] sm:$0x3] %vm546, 0.0
        %572 = vst.msk [vmem:[#allocation2 + $0xd8] sm:$0xff] %vm543, 0.0
        %573 = vst.msk [vmem:[#allocation2 + $0xe0] sm:$0xff] %vm543, 0.0
        %574 = vst.msk [vmem:[#allocation2 + $0xe8] sm:$0x3] %vm546, 0.0
        %575 = vst.msk [vmem:[#allocation2 + $0xf0] sm:$0xff] %vm543, 0.0
        %576 = vst.msk [vmem:[#allocation2 + $0xf8] sm:$0xff] %vm543, 0.0
        %577 = vst.msk [vmem:[#allocation2 + $0x100] sm:$0x3] %vm546, 0.0
        %578 = vst.msk [vmem:[#allocation2 + $0x108] sm:$0xff] %vm543, 0.0
        %579 = vst.msk [vmem:[#allocation2 + $0x110] sm:$0xff] %vm543, 0.0
        %580 = vst.msk [vmem:[#allocation2 + $0x118] sm:$0x3] %vm546, 0.0
        %581 = vst.msk [vmem:[#allocation2 + $0x120] sm:$0xff] %vm543, 0.0
        %582 = vst.msk [vmem:[#allocation2 + $0x128] sm:$0xff] %vm543, 0.0
        %583 = vst.msk [vmem:[#allocation2 + $0x130] sm:$0x3] %vm546, 0.0
        %584 = vst.msk [vmem:[#allocation2 + $0x138] sm:$0xff] %vm543, 0.0
        %585 = vst.msk [vmem:[#allocation2 + $0x140] sm:$0xff] %vm543, 0.0
        %586 = vst.msk [vmem:[#allocation2 + $0x148] sm:$0x3] %vm546, 0.0
        %587 = vst.msk [vmem:[#allocation2 + $0x150] sm:$0xff] %vm543, 0.0
        %588 = vst.msk [vmem:[#allocation2 + $0x158] sm:$0xff] %vm543, 0.0
        %589 = vst.msk [vmem:[#allocation2 + $0x160] sm:$0x3] %vm546, 0.0
        %590 = vst.msk [vmem:[#allocation2 + $0x168] sm:$0xff] %vm543, 0.0
        %591 = vst.msk [vmem:[#allocation2 + $0x170] sm:$0xff] %vm543, 0.0
        %592 = vst.msk [vmem:[#allocation2 + $0x178] sm:$0x3] %vm546, 0.0
        %593 = vst.msk [vmem:[#allocation2 + $0x180] sm:$0xff] %vm543, 0.0
        %594 = vst.msk [vmem:[#allocation2 + $0x188] sm:$0xff] %vm543, 0.0
        %595 = vst.msk [vmem:[#allocation2 + $0x190] sm:$0x3] %vm546, 0.0
        %596 = vst.msk [vmem:[#allocation2 + $0x198] sm:$0xff] %vm543, 0.0
        %597 = vst.msk [vmem:[#allocation2 + $0x1a0] sm:$0xff] %vm543, 0.0
        %598 = vst.msk [vmem:[#allocation2 + $0x1a8] sm:$0x3] %vm546, 0.0
        %vm599 = vcmask 130048
        %600 = vst.msk [vmem:[#allocation3] sm:$0xff] %vm599, 0.0
        %601 = vst.msk [vmem:[#allocation3 + $0x8] sm:$0xff] %vm599, 0.0
        %vm602 = vcmask 123904
        %603 = vst.msk [vmem:[#allocation3 + $0x10] sm:$0x3] %vm602, 0.0
        %604 = vst.msk [vmem:[#allocation3 + $0x18] sm:$0xff] %vm599, 0.0
        %605 = vst.msk [vmem:[#allocation3 + $0x20] sm:$0xff] %vm599, 0.0
        %606 = vst.msk [vmem:[#allocation3 + $0x28] sm:$0x3] %vm602, 0.0
        %607 = vst.msk [vmem:[#allocation3 + $0x30] sm:$0xff] %vm599, 0.0
        %608 = vst.msk [vmem:[#allocation3 + $0x38] sm:$0xff] %vm599, 0.0
        %609 = vst.msk [vmem:[#allocation3 + $0x40] sm:$0x3] %vm602, 0.0
        %610 = vst.msk [vmem:[#allocation3 + $0x48] sm:$0xff] %vm599, 0.0
        %611 = vst.msk [vmem:[#allocation3 + $0x50] sm:$0xff] %vm599, 0.0
        %612 = vst.msk [vmem:[#allocation3 + $0x58] sm:$0x3] %vm602, 0.0
        %613 = vst.msk [vmem:[#allocation3 + $0x60] sm:$0xff] %vm599, 0.0
        %614 = vst.msk [vmem:[#allocation3 + $0x68] sm:$0xff] %vm599, 0.0
        %615 = vst.msk [vmem:[#allocation3 + $0x70] sm:$0x3] %vm602, 0.0
        %616 = vst.msk [vmem:[#allocation3 + $0x78] sm:$0xff] %vm599, 0.0
        %617 = vst.msk [vmem:[#allocation3 + $0x80] sm:$0xff] %vm599, 0.0
        %618 = vst.msk [vmem:[#allocation3 + $0x88] sm:$0x3] %vm602, 0.0
        %619 = vst.msk [vmem:[#allocation3 + $0x90] sm:$0xff] %vm599, 0.0
        %620 = vst.msk [vmem:[#allocation3 + $0x98] sm:$0xff] %vm599, 0.0
        %621 = vst.msk [vmem:[#allocation3 + $0xa0] sm:$0x3] %vm602, 0.0
        %622 = vst.msk [vmem:[#allocation3 + $0xa8] sm:$0xff] %vm599, 0.0
        %623 = vst.msk [vmem:[#allocation3 + $0xb0] sm:$0xff] %vm599, 0.0
        %624 = vst.msk [vmem:[#allocation3 + $0xb8] sm:$0x3] %vm602, 0.0
        %625 = vst.msk [vmem:[#allocation3 + $0xc0] sm:$0xff] %vm599, 0.0
        %626 = vst.msk [vmem:[#allocation3 + $0xc8] sm:$0xff] %vm599, 0.0
        %627 = vst.msk [vmem:[#allocation3 + $0xd0] sm:$0x3] %vm602, 0.0
        %628 = vst.msk [vmem:[#allocation3 + $0xd8] sm:$0xff] %vm599, 0.0
        %629 = vst.msk [vmem:[#allocation3 + $0xe0] sm:$0xff] %vm599, 0.0
        %630 = vst.msk [vmem:[#allocation3 + $0xe8] sm:$0x3] %vm602, 0.0
        %631 = vst.msk [vmem:[#allocation3 + $0xf0] sm:$0xff] %vm599, 0.0
        %632 = vst.msk [vmem:[#allocation3 + $0xf8] sm:$0xff] %vm599, 0.0
        %633 = vst.msk [vmem:[#allocation3 + $0x100] sm:$0x3] %vm602, 0.0
        %634 = vst.msk [vmem:[#allocation3 + $0x108] sm:$0xff] %vm599, 0.0
        %635 = vst.msk [vmem:[#allocation3 + $0x110] sm:$0xff] %vm599, 0.0
        %636 = vst.msk [vmem:[#allocation3 + $0x118] sm:$0x3] %vm602, 0.0
        %637 = vst.msk [vmem:[#allocation3 + $0x120] sm:$0xff] %vm599, 0.0
        %638 = vst.msk [vmem:[#allocation3 + $0x128] sm:$0xff] %vm599, 0.0
        %639 = vst.msk [vmem:[#allocation3 + $0x130] sm:$0x3] %vm602, 0.0
        %640 = vst.msk [vmem:[#allocation3 + $0x138] sm:$0xff] %vm599, 0.0
        %641 = vst.msk [vmem:[#allocation3 + $0x140] sm:$0xff] %vm599, 0.0
        %642 = vst.msk [vmem:[#allocation3 + $0x148] sm:$0x3] %vm602, 0.0
        %643 = vst.msk [vmem:[#allocation3 + $0x150] sm:$0xff] %vm599, 0.0
        %644 = vst.msk [vmem:[#allocation3 + $0x158] sm:$0xff] %vm599, 0.0
        %645 = vst.msk [vmem:[#allocation3 + $0x160] sm:$0x3] %vm602, 0.0
        %646 = vst.msk [vmem:[#allocation3 + $0x168] sm:$0xff] %vm599, 0.0
        %647 = vst.msk [vmem:[#allocation3 + $0x170] sm:$0xff] %vm599, 0.0
        %648 = vst.msk [vmem:[#allocation3 + $0x178] sm:$0x3] %vm602, 0.0
        %649 = vst.msk [vmem:[#allocation3 + $0x180] sm:$0xff] %vm599, 0.0
        %650 = vst.msk [vmem:[#allocation3 + $0x188] sm:$0xff] %vm599, 0.0
        %651 = vst.msk [vmem:[#allocation3 + $0x190] sm:$0x3] %vm602, 0.0
        %652 = vst.msk [vmem:[#allocation3 + $0x198] sm:$0xff] %vm599, 0.0
        %653 = vst.msk [vmem:[#allocation3 + $0x1a0] sm:$0xff] %vm599, 0.0
        %654 = vst.msk [vmem:[#allocation3 + $0x1a8] sm:$0x3] %vm602, 0.0
        %655 = vst.msk [vmem:[#allocation4] sm:$0xff] %vm599, 0.0
        %656 = vst.msk [vmem:[#allocation4 + $0x8] sm:$0xff] %vm599, 0.0
        %657 = vst.msk [vmem:[#allocation4 + $0x10] sm:$0x3] %vm602, 0.0
        %658 = vst.msk [vmem:[#allocation4 + $0x18] sm:$0xff] %vm599, 0.0
        %659 = vst.msk [vmem:[#allocation4 + $0x20] sm:$0xff] %vm599, 0.0
        %660 = vst.msk [vmem:[#allocation4 + $0x28] sm:$0x3] %vm602, 0.0
        %661 = vst.msk [vmem:[#allocation4 + $0x30] sm:$0xff] %vm599, 0.0
        %662 = vst.msk [vmem:[#allocation4 + $0x38] sm:$0xff] %vm599, 0.0
        %663 = vst.msk [vmem:[#allocation4 + $0x40] sm:$0x3] %vm602, 0.0
        %664 = vst.msk [vmem:[#allocation4 + $0x48] sm:$0xff] %vm599, 0.0
        %665 = vst.msk [vmem:[#allocation4 + $0x50] sm:$0xff] %vm599, 0.0
        %666 = vst.msk [vmem:[#allocation4 + $0x58] sm:$0x3] %vm602, 0.0
        %667 = vst.msk [vmem:[#allocation4 + $0x60] sm:$0xff] %vm599, 0.0
        %668 = vst.msk [vmem:[#allocation4 + $0x68] sm:$0xff] %vm599, 0.0
        %669 = vst.msk [vmem:[#allocation4 + $0x70] sm:$0x3] %vm602, 0.0
        %670 = vst.msk [vmem:[#allocation4 + $0x78] sm:$0xff] %vm599, 0.0
        %671 = vst.msk [vmem:[#allocation4 + $0x80] sm:$0xff] %vm599, 0.0
        %672 = vst.msk [vmem:[#allocation4 + $0x88] sm:$0x3] %vm602, 0.0
        %673 = vst.msk [vmem:[#allocation4 + $0x90] sm:$0xff] %vm599, 0.0
        %674 = vst.msk [vmem:[#allocation4 + $0x98] sm:$0xff] %vm599, 0.0
        %675 = vst.msk [vmem:[#allocation4 + $0xa0] sm:$0x3] %vm602, 0.0
        %676 = vst.msk [vmem:[#allocation4 + $0xa8] sm:$0xff] %vm599, 0.0
        %677 = vst.msk [vmem:[#allocation4 + $0xb0] sm:$0xff] %vm599, 0.0
        %678 = vst.msk [vmem:[#allocation4 + $0xb8] sm:$0x3] %vm602, 0.0
        %679 = vst.msk [vmem:[#allocation4 + $0xc0] sm:$0xff] %vm599, 0.0
        %680 = vst.msk [vmem:[#allocation4 + $0xc8] sm:$0xff] %vm599, 0.0
        %681 = vst.msk [vmem:[#allocation4 + $0xd0] sm:$0x3] %vm602, 0.0
        %682 = vst.msk [vmem:[#allocation4 + $0xd8] sm:$0xff] %vm599, 0.0
        %683 = vst.msk [vmem:[#allocation4 + $0xe0] sm:$0xff] %vm599, 0.0
        %684 = vst.msk [vmem:[#allocation4 + $0xe8] sm:$0x3] %vm602, 0.0
        %685 = vst.msk [vmem:[#allocation4 + $0xf0] sm:$0xff] %vm599, 0.0
        %686 = vst.msk [vmem:[#allocation4 + $0xf8] sm:$0xff] %vm599, 0.0
        %687 = vst.msk [vmem:[#allocation4 + $0x100] sm:$0x3] %vm602, 0.0
        %688 = vst.msk [vmem:[#allocation4 + $0x108] sm:$0xff] %vm599, 0.0
        %689 = vst.msk [vmem:[#allocation4 + $0x110] sm:$0xff] %vm599, 0.0
        %690 = vst.msk [vmem:[#allocation4 + $0x118] sm:$0x3] %vm602, 0.0
        %691 = vst.msk [vmem:[#allocation4 + $0x120] sm:$0xff] %vm599, 0.0
        %692 = vst.msk [vmem:[#allocation4 + $0x128] sm:$0xff] %vm599, 0.0
        %693 = vst.msk [vmem:[#allocation4 + $0x130] sm:$0x3] %vm602, 0.0
        %694 = vst.msk [vmem:[#allocation4 + $0x138] sm:$0xff] %vm599, 0.0
        %695 = vst.msk [vmem:[#allocation4 + $0x140] sm:$0xff] %vm599, 0.0
        %696 = vst.msk [vmem:[#allocation4 + $0x148] sm:$0x3] %vm602, 0.0
        %697 = vst.msk [vmem:[#allocation4 + $0x150] sm:$0xff] %vm599, 0.0
        %698 = vst.msk [vmem:[#allocation4 + $0x158] sm:$0xff] %vm599, 0.0
        %699 = vst.msk [vmem:[#allocation4 + $0x160] sm:$0x3] %vm602, 0.0
        %700 = vst.msk [vmem:[#allocation4 + $0x168] sm:$0xff] %vm599, 0.0
        %701 = vst.msk [vmem:[#allocation4 + $0x170] sm:$0xff] %vm599, 0.0
        %702 = vst.msk [vmem:[#allocation4 + $0x178] sm:$0x3] %vm602, 0.0
        %703 = vst.msk [vmem:[#allocation4 + $0x180] sm:$0xff] %vm599, 0.0
        %704 = vst.msk [vmem:[#allocation4 + $0x188] sm:$0xff] %vm599, 0.0
        %705 = vst.msk [vmem:[#allocation4 + $0x190] sm:$0x3] %vm602, 0.0
        %706 = vst.msk [vmem:[#allocation4 + $0x198] sm:$0xff] %vm599, 0.0
        %707 = vst.msk [vmem:[#allocation4 + $0x1a0] sm:$0xff] %vm599, 0.0
        %708 = vst.msk [vmem:[#allocation4 + $0x1a8] sm:$0x3] %vm602, 0.0
        %v709 = vld [vmem:[%s465] sm:$0xf]
        %v710 = vld [vmem:[%s465 + $0x4] sm:$0xf]
        %v711 = vld [vmem:[%s465 + $0x8] sm:$0xf]
        %v712 = vld [vmem:[%s465 + $0xc] sm:$0xf]
        %v713 = vld [vmem:[%s465 + $0x10] sm:$0xf]
        %v714 = vld [vmem:[%s465 + $0x14] sm:$0xf]
        %v715 = vld [vmem:[%s465 + $0x18] sm:$0xf]
        %v716 = vld [vmem:[%s465 + $0x1c] sm:$0xf]
        %v717 = vunpack.c.l.bf16 %v709
        %v718 = vunpack.c.l.bf16 %v710
        %v719 = vunpack.c.l.bf16 %v711
        %v720 = vunpack.c.l.bf16 %v712
        %v721 = vunpack.c.l.bf16 %v713
        %v722 = vunpack.c.l.bf16 %v714
        %v723 = vunpack.c.l.bf16 %v715
        %v724 = vunpack.c.l.bf16 %v716
        %v733 = vrot.slane %v717, 1
        %v734 = vrot.slane %v717, 2
        %v735 = vrot.slane %v717, 3
        %v736 = vrot.slane %v717, 4
        %v737 = vrot.slane %v717, 5
        %v738 = vrot.slane %v717, 6
        %v739 = vrot.slane %v717, 7
        %v740 = vrot.slane %v718, 1
        %v741 = vrot.slane %v718, 2
        %v742 = vrot.slane %v718, 3
        %v743 = vrot.slane %v718, 4
        %v744 = vrot.slane %v718, 5
        %v745 = vrot.slane %v718, 6
        %v746 = vrot.slane %v718, 7
        %v747 = vrot.slane %v719, 1
        %v748 = vrot.slane %v719, 2
        %v749 = vrot.slane %v719, 3
        %v750 = vrot.slane %v719, 4
        %v751 = vrot.slane %v719, 5
        %v752 = vrot.slane %v719, 6
        %v753 = vrot.slane %v719, 7
        %v754 = vrot.slane %v720, 1
        %v755 = vrot.slane %v720, 2
        %v756 = vrot.slane %v720, 3
        %v757 = vrot.slane %v720, 4
        %v758 = vrot.slane %v720, 5
        %v759 = vrot.slane %v720, 6
        %v760 = vrot.slane %v720, 7
        %v761 = vrot.slane %v721, 1
        %v762 = vrot.slane %v721, 2
        %v763 = vrot.slane %v721, 3
        %v764 = vrot.slane %v721, 4
        %v765 = vrot.slane %v721, 5
        %v766 = vrot.slane %v721, 6
        %v767 = vrot.slane %v721, 7
        %v768 = vrot.slane %v722, 1
        %v769 = vrot.slane %v722, 2
        %v770 = vrot.slane %v722, 3
        %v771 = vrot.slane %v722, 4
        %v772 = vrot.slane %v722, 5
        %v773 = vrot.slane %v722, 6
        %v774 = vrot.slane %v722, 7
        %v775 = vrot.slane %v723, 1
        %v776 = vrot.slane %v723, 2
        %v777 = vrot.slane %v723, 3
        %v778 = vrot.slane %v723, 4
        %v779 = vrot.slane %v723, 5
        %v780 = vrot.slane %v723, 6
        %v781 = vrot.slane %v723, 7
        %v782 = vrot.slane %v724, 1
        %v783 = vrot.slane %v724, 2
        %v784 = vrot.slane %v724, 3
        %v785 = vrot.slane %v724, 4
        %v786 = vrot.slane %v724, 5
        %v787 = vrot.slane %v724, 6
        %v788 = vrot.slane %v724, 7
        %v789 = vperm.slane %v717, 0
        %v790 = vperm.slane %v733, 0
        %v791 = vperm.slane %v734, 0
        %v792 = vperm.slane %v735, 0
        %v793 = vperm.slane %v736, 0
        %v794 = vperm.slane %v737, 0
        %v795 = vperm.slane %v738, 0
        %v796 = vperm.slane %v739, 0
        %v797 = vperm.slane %v718, 0
        %v798 = vperm.slane %v740, 0
        %v799 = vperm.slane %v741, 0
        %v800 = vperm.slane %v742, 0
        %v801 = vperm.slane %v743, 0
        %v802 = vperm.slane %v744, 0
        %v803 = vperm.slane %v745, 0
        %v804 = vperm.slane %v746, 0
        %v805 = vperm.slane %v719, 0
        %v806 = vperm.slane %v747, 0
        %v807 = vperm.slane %v748, 0
        %v808 = vperm.slane %v749, 0
        %v809 = vperm.slane %v750, 0
        %v810 = vperm.slane %v751, 0
        %v811 = vperm.slane %v752, 0
        %v812 = vperm.slane %v753, 0
        %v813 = vperm.slane %v720, 0
        %v814 = vperm.slane %v754, 0
        %v815 = vperm.slane %v755, 0
        %v816 = vperm.slane %v756, 0
        %v817 = vperm.slane %v757, 0
        %v818 = vperm.slane %v758, 0
        %v819 = vperm.slane %v759, 0
        %v820 = vperm.slane %v760, 0
        %v821 = vperm.slane %v721, 0
        %v822 = vperm.slane %v761, 0
        %v823 = vperm.slane %v762, 0
        %v824 = vperm.slane %v763, 0
        %v825 = vperm.slane %v764, 0
        %v826 = vperm.slane %v765, 0
        %v827 = vperm.slane %v766, 0
        %v828 = vperm.slane %v767, 0
        %v829 = vperm.slane %v722, 0
        %v830 = vperm.slane %v768, 0
        %v831 = vperm.slane %v769, 0
        %v832 = vperm.slane %v770, 0
        %v833 = vperm.slane %v771, 0
        %v834 = vperm.slane %v772, 0
        %v835 = vperm.slane %v773, 0
        %v836 = vperm.slane %v774, 0
        %v837 = vperm.slane %v723, 0
        %v838 = vperm.slane %v775, 0
        %v839 = vperm.slane %v776, 0
        %v840 = vperm.slane %v777, 0
        %v841 = vperm.slane %v778, 0
        %v842 = vperm.slane %v779, 0
        %v843 = vperm.slane %v780, 0
        %v844 = vperm.slane %v781, 0
        %v845 = vperm.slane %v724, 0
        %v846 = vperm.slane %v782, 0
        %v847 = vperm.slane %v783, 0
        %v848 = vperm.slane %v784, 0
        %v849 = vperm.slane %v785, 0
        %v850 = vperm.slane %v786, 0
        %v851 = vperm.slane %v787, 0
        %v852 = vperm.slane %v788, 0
        %853 = vst [vmem:[#allocation1] ss:$4 sm:$0xff] %v789
        %s854 = scalar_lea.vmem [#allocation1], 1
        %855 = vst [vmem:[%s854] ss:$4 sm:$0xff] %v790
        %s856 = scalar_lea.vmem [#allocation1], 2
        %857 = vst [vmem:[%s856] ss:$4 sm:$0xff] %v791
        %s858 = scalar_lea.vmem [#allocation1], 3
        %859 = vst [vmem:[%s858] ss:$4 sm:$0xff] %v792
        %s860 = scalar_lea.vmem [#allocation1], 32
        %861 = vst [vmem:[%s860] ss:$4 sm:$0xff] %v793
        %s862 = scalar_lea.vmem [#allocation1], 33
        %863 = vst [vmem:[%s862] ss:$4 sm:$0xff] %v794
        %s864 = scalar_lea.vmem [#allocation1], 34
        %865 = vst [vmem:[%s864] ss:$4 sm:$0xff] %v795
        %s866 = scalar_lea.vmem [#allocation1], 35
        %867 = vst [vmem:[%s866] ss:$4 sm:$0xff] %v796
        %v868 = vld.sshfl [vmem:[#allocation1] sm:$0xff pattern:$0x73625140]
        %v869 = vld.sshfl [vmem:[#allocation1 + $0x20] sm:$0xff pattern:$0x73625140]
        %870 = vst [vmem:[#allocation1] ss:$4 sm:$0xff] %v789
        %871 = vst [vmem:[%s854] ss:$4 sm:$0xff] %v790
        %872 = vst [vmem:[%s856] ss:$4 sm:$0xff] %v791
        %873 = vst [vmem:[%s858] ss:$4 sm:$0xff] %v792
        %874 = vst [vmem:[%s860] ss:$4 sm:$0xff] %v793
        %875 = vst [vmem:[%s862] ss:$4 sm:$0xff] %v794
        %876 = vst [vmem:[%s864] ss:$4 sm:$0xff] %v795
        %877 = vst [vmem:[%s866] ss:$4 sm:$0xff] %v796
        %v878 = vld.sshfl [vmem:[#allocation1] sm:$0xff pattern:$0x73625140]
        %v879 = vld.sshfl [vmem:[#allocation1 + $0x20] sm:$0xff pattern:$0x73625140]
        %880 = vst [vmem:[#allocation1] ss:$4 sm:$0xff] %v797
        %881 = vst [vmem:[%s854] ss:$4 sm:$0xff] %v798
        %882 = vst [vmem:[%s856] ss:$4 sm:$0xff] %v799
        %883 = vst [vmem:[%s858] ss:$4 sm:$0xff] %v800
        %884 = vst [vmem:[%s860] ss:$4 sm:$0xff] %v801
        %885 = vst [vmem:[%s862] ss:$4 sm:$0xff] %v802
        %886 = vst [vmem:[%s864] ss:$4 sm:$0xff] %v803
        %887 = vst [vmem:[%s866] ss:$4 sm:$0xff] %v804
        %v888 = vld.sshfl [vmem:[#allocation1] sm:$0xff pattern:$0x73625140]
        %v889 = vld.sshfl [vmem:[#allocation1 + $0x20] sm:$0xff pattern:$0x73625140]
        %890 = vst [vmem:[#allocation1] ss:$4 sm:$0xff] %v797
        %891 = vst [vmem:[%s854] ss:$4 sm:$0xff] %v798
        %892 = vst [vmem:[%s856] ss:$4 sm:$0xff] %v799
        %893 = vst [vmem:[%s858] ss:$4 sm:$0xff] %v800
        %894 = vst [vmem:[%s860] ss:$4 sm:$0xff] %v801
        %895 = vst [vmem:[%s862] ss:$4 sm:$0xff] %v802
        %896 = vst [vmem:[%s864] ss:$4 sm:$0xff] %v803
        %897 = vst [vmem:[%s866] ss:$4 sm:$0xff] %v804
        %v898 = vld.sshfl [vmem:[#allocation1] sm:$0xff pattern:$0x73625140]
        %v899 = vld.sshfl [vmem:[#allocation1 + $0x20] sm:$0xff pattern:$0x73625140]
        %900 = vst [vmem:[#allocation1] ss:$4 sm:$0xff] %v805
        %901 = vst [vmem:[%s854] ss:$4 sm:$0xff] %v806
        %902 = vst [vmem:[%s856] ss:$4 sm:$0xff] %v807
        %903 = vst [vmem:[%s858] ss:$4 sm:$0xff] %v808
        %904 = vst [vmem:[%s860] ss:$4 sm:$0xff] %v809
        %905 = vst [vmem:[%s862] ss:$4 sm:$0xff] %v810
        %906 = vst [vmem:[%s864] ss:$4 sm:$0xff] %v811
        %907 = vst [vmem:[%s866] ss:$4 sm:$0xff] %v812
        %v908 = vld.sshfl [vmem:[#allocation1] sm:$0xff pattern:$0x73625140]
        %v909 = vld.sshfl [vmem:[#allocation1 + $0x20] sm:$0xff pattern:$0x73625140]
        %910 = vst [vmem:[#allocation1] ss:$4 sm:$0xff] %v805
        %911 = vst [vmem:[%s854] ss:$4 sm:$0xff] %v806
        %912 = vst [vmem:[%s856] ss:$4 sm:$0xff] %v807
        %913 = vst [vmem:[%s858] ss:$4 sm:$0xff] %v808
        %914 = vst [vmem:[%s860] ss:$4 sm:$0xff] %v809
        %915 = vst [vmem:[%s862] ss:$4 sm:$0xff] %v810
        %916 = vst [vmem:[%s864] ss:$4 sm:$0xff] %v811
        %917 = vst [vmem:[%s866] ss:$4 sm:$0xff] %v812
        %v918 = vld.sshfl [vmem:[#allocation1] sm:$0xff pattern:$0x73625140]
        %v919 = vld.sshfl [vmem:[#allocation1 + $0x20] sm:$0xff pattern:$0x73625140]
        %920 = vst [vmem:[#allocation1] ss:$4 sm:$0xff] %v813
        %921 = vst [vmem:[%s854] ss:$4 sm:$0xff] %v814
        %922 = vst [vmem:[%s856] ss:$4 sm:$0xff] %v815
        %923 = vst [vmem:[%s858] ss:$4 sm:$0xff] %v816
        %924 = vst [vmem:[%s860] ss:$4 sm:$0xff] %v817
        %925 = vst [vmem:[%s862] ss:$4 sm:$0xff] %v818
        %926 = vst [vmem:[%s864] ss:$4 sm:$0xff] %v819
        %927 = vst [vmem:[%s866] ss:$4 sm:$0xff] %v820
        %v928 = vld.sshfl [vmem:[#allocation1] sm:$0xff pattern:$0x73625140]
        %v929 = vld.sshfl [vmem:[#allocation1 + $0x20] sm:$0xff pattern:$0x73625140]
        %930 = vst [vmem:[#allocation1] ss:$4 sm:$0xff] %v813
        %931 = vst [vmem:[%s854] ss:$4 sm:$0xff] %v814
        %932 = vst [vmem:[%s856] ss:$4 sm:$0xff] %v815
        %933 = vst [vmem:[%s858] ss:$4 sm:$0xff] %v816
        %934 = vst [vmem:[%s860] ss:$4 sm:$0xff] %v817
        %935 = vst [vmem:[%s862] ss:$4 sm:$0xff] %v818
        %936 = vst [vmem:[%s864] ss:$4 sm:$0xff] %v819
        %937 = vst [vmem:[%s866] ss:$4 sm:$0xff] %v820
        %v938 = vld.sshfl [vmem:[#allocation1] sm:$0xff pattern:$0x73625140]
        %v939 = vld.sshfl [vmem:[#allocation1 + $0x20] sm:$0xff pattern:$0x73625140]
        %940 = vst [vmem:[#allocation1] ss:$4 sm:$0xff] %v821
        %941 = vst [vmem:[%s854] ss:$4 sm:$0xff] %v822
        %942 = vst [vmem:[%s856] ss:$4 sm:$0xff] %v823
        %943 = vst [vmem:[%s858] ss:$4 sm:$0xff] %v824
        %944 = vst [vmem:[%s860] ss:$4 sm:$0xff] %v825
        %945 = vst [vmem:[%s862] ss:$4 sm:$0xff] %v826
        %946 = vst [vmem:[%s864] ss:$4 sm:$0xff] %v827
        %947 = vst [vmem:[%s866] ss:$4 sm:$0xff] %v828
        %v948 = vld.sshfl [vmem:[#allocation1] sm:$0xff pattern:$0x73625140]
        %v949 = vld.sshfl [vmem:[#allocation1 + $0x20] sm:$0xff pattern:$0x73625140]
        %950 = vst [vmem:[#allocation1] ss:$4 sm:$0xff] %v821
        %951 = vst [vmem:[%s854] ss:$4 sm:$0xff] %v822
        %952 = vst [vmem:[%s856] ss:$4 sm:$0xff] %v823
        %953 = vst [vmem:[%s858] ss:$4 sm:$0xff] %v824
        %954 = vst [vmem:[%s860] ss:$4 sm:$0xff] %v825
        %955 = vst [vmem:[%s862] ss:$4 sm:$0xff] %v826
        %956 = vst [vmem:[%s864] ss:$4 sm:$0xff] %v827
        %957 = vst [vmem:[%s866] ss:$4 sm:$0xff] %v828
        %v958 = vld.sshfl [vmem:[#allocation1] sm:$0xff pattern:$0x73625140]
        %v959 = vld.sshfl [vmem:[#allocation1 + $0x20] sm:$0xff pattern:$0x73625140]
        %960 = vst [vmem:[#allocation1] ss:$4 sm:$0xff] %v829
        %961 = vst [vmem:[%s854] ss:$4 sm:$0xff] %v830
        %962 = vst [vmem:[%s856] ss:$4 sm:$0xff] %v831
        %963 = vst [vmem:[%s858] ss:$4 sm:$0xff] %v832
        %964 = vst [vmem:[%s860] ss:$4 sm:$0xff] %v833
        %965 = vst [vmem:[%s862] ss:$4 sm:$0xff] %v834
        %966 = vst [vmem:[%s864] ss:$4 sm:$0xff] %v835
        %967 = vst [vmem:[%s866] ss:$4 sm:$0xff] %v836
        %v968 = vld.sshfl [vmem:[#allocation1] sm:$0xff pattern:$0x73625140]
        %v969 = vld.sshfl [vmem:[#allocation1 + $0x20] sm:$0xff pattern:$0x73625140]
        %970 = vst [vmem:[#allocation1] ss:$4 sm:$0xff] %v829
        %971 = vst [vmem:[%s854] ss:$4 sm:$0xff] %v830
        %972 = vst [vmem:[%s856] ss:$4 sm:$0xff] %v831
        %973 = vst [vmem:[%s858] ss:$4 sm:$0xff] %v832
        %974 = vst [vmem:[%s860] ss:$4 sm:$0xff] %v833
        %975 = vst [vmem:[%s862] ss:$4 sm:$0xff] %v834
        %976 = vst [vmem:[%s864] ss:$4 sm:$0xff] %v835
        %977 = vst [vmem:[%s866] ss:$4 sm:$0xff] %v836
        %v978 = vld.sshfl [vmem:[#allocation1] sm:$0xff pattern:$0x73625140]
        %v979 = vld.sshfl [vmem:[#allocation1 + $0x20] sm:$0xff pattern:$0x73625140]
        %980 = vst [vmem:[#allocation1] ss:$4 sm:$0xff] %v837
        %981 = vst [vmem:[%s854] ss:$4 sm:$0xff] %v838
        %982 = vst [vmem:[%s856] ss:$4 sm:$0xff] %v839
        %983 = vst [vmem:[%s858] ss:$4 sm:$0xff] %v840
        %984 = vst [vmem:[%s860] ss:$4 sm:$0xff] %v841
        %985 = vst [vmem:[%s862] ss:$4 sm:$0xff] %v842
        %986 = vst [vmem:[%s864] ss:$4 sm:$0xff] %v843
        %987 = vst [vmem:[%s866] ss:$4 sm:$0xff] %v844
        %v988 = vld.sshfl [vmem:[#allocation1] sm:$0xff pattern:$0x73625140]
        %v989 = vld.sshfl [vmem:[#allocation1 + $0x20] sm:$0xff pattern:$0x73625140]
        %990 = vst [vmem:[#allocation1] ss:$4 sm:$0xff] %v837
        %991 = vst [vmem:[%s854] ss:$4 sm:$0xff] %v838
        %992 = vst [vmem:[%s856] ss:$4 sm:$0xff] %v839
        %993 = vst [vmem:[%s858] ss:$4 sm:$0xff] %v840
        %994 = vst [vmem:[%s860] ss:$4 sm:$0xff] %v841
        %995 = vst [vmem:[%s862] ss:$4 sm:$0xff] %v842
        %996 = vst [vmem:[%s864] ss:$4 sm:$0xff] %v843
        %997 = vst [vmem:[%s866] ss:$4 sm:$0xff] %v844
        %v998 = vld.sshfl [vmem:[#allocation1] sm:$0xff pattern:$0x73625140]
        %v999 = vld.sshfl [vmem:[#allocation1 + $0x20] sm:$0xff pattern:$0x73625140]
        %1000 = vst [vmem:[#allocation1] ss:$4 sm:$0xff] %v845
        %1001 = vst [vmem:[%s854] ss:$4 sm:$0xff] %v846
        %1002 = vst [vmem:[%s856] ss:$4 sm:$0xff] %v847
        %1003 = vst [vmem:[%s858] ss:$4 sm:$0xff] %v848
        %1004 = vst [vmem:[%s860] ss:$4 sm:$0xff] %v849
        %1005 = vst [vmem:[%s862] ss:$4 sm:$0xff] %v850
        %1006 = vst [vmem:[%s864] ss:$4 sm:$0xff] %v851
        %1007 = vst [vmem:[%s866] ss:$4 sm:$0xff] %v852
        %v1008 = vld.sshfl [vmem:[#allocation1] sm:$0xff pattern:$0x73625140]
        %v1009 = vld.sshfl [vmem:[#allocation1 + $0x20] sm:$0xff pattern:$0x73625140]
        %1010 = vst [vmem:[#allocation1] ss:$4 sm:$0xff] %v845
        %1011 = vst [vmem:[%s854] ss:$4 sm:$0xff] %v846
        %1012 = vst [vmem:[%s856] ss:$4 sm:$0xff] %v847
        %1013 = vst [vmem:[%s858] ss:$4 sm:$0xff] %v848
        %1014 = vst [vmem:[%s860] ss:$4 sm:$0xff] %v849
        %1015 = vst [vmem:[%s862] ss:$4 sm:$0xff] %v850
        %1016 = vst [vmem:[%s864] ss:$4 sm:$0xff] %v851
        %1017 = vst [vmem:[%s866] ss:$4 sm:$0xff] %v852
        %v1018 = vld.sshfl [vmem:[#allocation1] sm:$0xff pattern:$0x73625140]
        %v1019 = vld.sshfl [vmem:[#allocation1 + $0x20] sm:$0xff pattern:$0x73625140]
        %s1052 = scalar_lea.vmem [#allocation2], 24
        %1053 = vst.msk [vmem:[%s1052 + $0x1] sm:$0xff] %vm543, %v868
        %1054 = vst.msk [vmem:[%s1052 + $0x9] sm:$0xff] %vm543, %v869
        %1055 = vst.msk [vmem:[%s1052 + $0x19] sm:$0xff] %vm543, %v878
        %1056 = vst.msk [vmem:[%s1052 + $0x21] sm:$0xff] %vm543, %v879
        %1057 = vst.msk [vmem:[%s1052 + $0x31] sm:$0xff] %vm543, %v888
        %1058 = vst.msk [vmem:[%s1052 + $0x39] sm:$0xff] %vm543, %v889
        %1059 = vst.msk [vmem:[%s1052 + $0x49] sm:$0xff] %vm543, %v898
        %1060 = vst.msk [vmem:[%s1052 + $0x51] sm:$0xff] %vm543, %v899
        %1061 = vst.msk [vmem:[%s1052 + $0x61] sm:$0xff] %vm543, %v908
        %1062 = vst.msk [vmem:[%s1052 + $0x69] sm:$0xff] %vm543, %v909
        %1063 = vst.msk [vmem:[%s1052 + $0x79] sm:$0xff] %vm543, %v918
        %1064 = vst.msk [vmem:[%s1052 + $0x81] sm:$0xff] %vm543, %v919
        %1065 = vst.msk [vmem:[%s1052 + $0x91] sm:$0xff] %vm543, %v928
        %1066 = vst.msk [vmem:[%s1052 + $0x99] sm:$0xff] %vm543, %v929
        %1067 = vst.msk [vmem:[%s1052 + $0xa9] sm:$0xff] %vm543, %v938
        %1068 = vst.msk [vmem:[%s1052 + $0xb1] sm:$0xff] %vm543, %v939
        %1069 = vst.msk [vmem:[%s1052 + $0xc1] sm:$0xff] %vm543, %v948
        %1070 = vst.msk [vmem:[%s1052 + $0xc9] sm:$0xff] %vm543, %v949
        %1071 = vst.msk [vmem:[%s1052 + $0xd9] sm:$0xff] %vm543, %v958
        %1072 = vst.msk [vmem:[%s1052 + $0xe1] sm:$0xff] %vm543, %v959
        %1073 = vst.msk [vmem:[%s1052 + $0xf1] sm:$0xff] %vm543, %v968
        %1074 = vst.msk [vmem:[%s1052 + $0xf9] sm:$0xff] %vm543, %v969
        %1075 = vst.msk [vmem:[%s1052 + $0x109] sm:$0xff] %vm543, %v978
        %1076 = vst.msk [vmem:[%s1052 + $0x111] sm:$0xff] %vm543, %v979
        %1077 = vst.msk [vmem:[%s1052 + $0x121] sm:$0xff] %vm543, %v988
        %1078 = vst.msk [vmem:[%s1052 + $0x129] sm:$0xff] %vm543, %v989
        %1079 = vst.msk [vmem:[%s1052 + $0x139] sm:$0xff] %vm543, %v998
        %1080 = vst.msk [vmem:[%s1052 + $0x141] sm:$0xff] %vm543, %v999
        %1081 = vst.msk [vmem:[%s1052 + $0x151] sm:$0xff] %vm543, %v1008
        %1082 = vst.msk [vmem:[%s1052 + $0x159] sm:$0xff] %vm543, %v1009
        %1083 = vst.msk [vmem:[%s1052 + $0x169] sm:$0xff] %vm543, %v1018
        %1084 = vst.msk [vmem:[%s1052 + $0x171] sm:$0xff] %vm543, %v1019
        %v1085 = vld [vmem:[%s475] sm:$0xf]
        %v1086 = vld [vmem:[%s475 + $0x4] sm:$0xf]
        %v1087 = vld [vmem:[%s475 + $0x8] sm:$0xf]
        %v1088 = vld [vmem:[%s475 + $0xc] sm:$0xf]
        %v1089 = vld [vmem:[%s475 + $0x10] sm:$0xf]
        %v1090 = vld [vmem:[%s475 + $0x14] sm:$0xf]
        %v1091 = vld [vmem:[%s475 + $0x18] sm:$0xf]
        %v1092 = vld [vmem:[%s475 + $0x1c] sm:$0xf]
        %v1093 = vld [vmem:[%s475 + $0x20] sm:$0xf]
        %v1094 = vld [vmem:[%s475 + $0x24] sm:$0xf]
        %v1095 = vld [vmem:[%s475 + $0x28] sm:$0xf]
        %v1096 = vld [vmem:[%s475 + $0x2c] sm:$0xf]
        %v1097 = vld [vmem:[%s475 + $0x30] sm:$0xf]
        %v1098 = vld [vmem:[%s475 + $0x34] sm:$0xf]
        %v1099 = vld [vmem:[%s475 + $0x38] sm:$0xf]
        %v1100 = vld [vmem:[%s475 + $0x3c] sm:$0xf]
        %v1101 = vld [vmem:[%s475 + $0x40] sm:$0xf]
        %v1102 = vld [vmem:[%s475 + $0x44] sm:$0xf]
        %v1103 = vld [vmem:[%s475 + $0x48] sm:$0xf]
        %v1104 = vld [vmem:[%s475 + $0x4c] sm:$0xf]
        %v1105 = vld [vmem:[%s475 + $0x50] sm:$0xf]
        %v1106 = vld [vmem:[%s475 + $0x54] sm:$0xf]
        %v1107 = vld [vmem:[%s475 + $0x58] sm:$0xf]
        %v1108 = vld [vmem:[%s475 + $0x5c] sm:$0xf]
        %v1109 = vld [vmem:[%s475 + $0x60] sm:$0xf]
        %v1110 = vld [vmem:[%s475 + $0x64] sm:$0xf]
        %v1111 = vld [vmem:[%s475 + $0x68] sm:$0xf]
        %v1112 = vld [vmem:[%s475 + $0x6c] sm:$0xf]
        %v1113 = vld [vmem:[%s475 + $0x70] sm:$0xf]
        %v1114 = vld [vmem:[%s475 + $0x74] sm:$0xf]
        %v1115 = vld [vmem:[%s475 + $0x78] sm:$0xf]
        %v1116 = vld [vmem:[%s475 + $0x7c] sm:$0xf]
        %v1117 = vunpack.c.l.bf16 %v1085
        %v1118 = vunpack.c.l.bf16 %v1086
        %v1119 = vunpack.c.l.bf16 %v1087
        %v1120 = vunpack.c.l.bf16 %v1088
        %v1121 = vunpack.c.l.bf16 %v1089
        %v1122 = vunpack.c.l.bf16 %v1090
        %v1123 = vunpack.c.l.bf16 %v1091
        %v1124 = vunpack.c.l.bf16 %v1092
        %v1125 = vunpack.c.l.bf16 %v1093
        %v1126 = vunpack.c.l.bf16 %v1094
        %v1127 = vunpack.c.l.bf16 %v1095
        %v1128 = vunpack.c.l.bf16 %v1096
        %v1129 = vunpack.c.l.bf16 %v1097
        %v1130 = vunpack.c.l.bf16 %v1098
        %v1131 = vunpack.c.l.bf16 %v1099
        %v1132 = vunpack.c.l.bf16 %v1100
        %v1133 = vunpack.c.l.bf16 %v1101
        %v1134 = vunpack.c.l.bf16 %v1102
        %v1135 = vunpack.c.l.bf16 %v1103
        %v1136 = vunpack.c.l.bf16 %v1104
        %v1137 = vunpack.c.l.bf16 %v1105
        %v1138 = vunpack.c.l.bf16 %v1106
        %v1139 = vunpack.c.l.bf16 %v1107
        %v1140 = vunpack.c.l.bf16 %v1108
        %v1141 = vunpack.c.l.bf16 %v1109
        %v1142 = vunpack.c.l.bf16 %v1110
        %v1143 = vunpack.c.l.bf16 %v1111
        %v1144 = vunpack.c.l.bf16 %v1112
        %v1145 = vunpack.c.l.bf16 %v1113
        %v1146 = vunpack.c.l.bf16 %v1114
        %v1147 = vunpack.c.l.bf16 %v1115
        %v1148 = vunpack.c.l.bf16 %v1116
        %s1149 = scalar_lea.vmem [#allocation3], 24
        %1150 = vst.msk [vmem:[%s1149 + $0x1] sm:$0xff] %vm599, %v1117
        %1151 = vst.msk [vmem:[%s1149 + $0x9] sm:$0xff] %vm599, %v1118
        %1152 = vst.msk [vmem:[%s1149 + $0x19] sm:$0xff] %vm599, %v1119
        %1153 = vst.msk [vmem:[%s1149 + $0x21] sm:$0xff] %vm599, %v1120
        %1154 = vst.msk [vmem:[%s1149 + $0x31] sm:$0xff] %vm599, %v1121
        %1155 = vst.msk [vmem:[%s1149 + $0x39] sm:$0xff] %vm599, %v1122
        %1156 = vst.msk [vmem:[%s1149 + $0x49] sm:$0xff] %vm599, %v1123
        %1157 = vst.msk [vmem:[%s1149 + $0x51] sm:$0xff] %vm599, %v1124
        %1158 = vst.msk [vmem:[%s1149 + $0x61] sm:$0xff] %vm599, %v1125
        %1159 = vst.msk [vmem:[%s1149 + $0x69] sm:$0xff] %vm599, %v1126
        %1160 = vst.msk [vmem:[%s1149 + $0x79] sm:$0xff] %vm599, %v1127
        %1161 = vst.msk [vmem:[%s1149 + $0x81] sm:$0xff] %vm599, %v1128
        %1162 = vst.msk [vmem:[%s1149 + $0x91] sm:$0xff] %vm599, %v1129
        %1163 = vst.msk [vmem:[%s1149 + $0x99] sm:$0xff] %vm599, %v1130
        %1164 = vst.msk [vmem:[%s1149 + $0xa9] sm:$0xff] %vm599, %v1131
        %1165 = vst.msk [vmem:[%s1149 + $0xb1] sm:$0xff] %vm599, %v1132
        %1166 = vst.msk [vmem:[%s1149 + $0xc1] sm:$0xff] %vm599, %v1133
        %1167 = vst.msk [vmem:[%s1149 + $0xc9] sm:$0xff] %vm599, %v1134
        %1168 = vst.msk [vmem:[%s1149 + $0xd9] sm:$0xff] %vm599, %v1135
        %1169 = vst.msk [vmem:[%s1149 + $0xe1] sm:$0xff] %vm599, %v1136
        %1170 = vst.msk [vmem:[%s1149 + $0xf1] sm:$0xff] %vm599, %v1137
        %1171 = vst.msk [vmem:[%s1149 + $0xf9] sm:$0xff] %vm599, %v1138
        %1172 = vst.msk [vmem:[%s1149 + $0x109] sm:$0xff] %vm599, %v1139
        %1173 = vst.msk [vmem:[%s1149 + $0x111] sm:$0xff] %vm599, %v1140
        %1174 = vst.msk [vmem:[%s1149 + $0x121] sm:$0xff] %vm599, %v1141
        %1175 = vst.msk [vmem:[%s1149 + $0x129] sm:$0xff] %vm599, %v1142
        %1176 = vst.msk [vmem:[%s1149 + $0x139] sm:$0xff] %vm599, %v1143
        %1177 = vst.msk [vmem:[%s1149 + $0x141] sm:$0xff] %vm599, %v1144
        %1178 = vst.msk [vmem:[%s1149 + $0x151] sm:$0xff] %vm599, %v1145
        %1179 = vst.msk [vmem:[%s1149 + $0x159] sm:$0xff] %vm599, %v1146
        %1180 = vst.msk [vmem:[%s1149 + $0x169] sm:$0xff] %vm599, %v1147
        %1181 = vst.msk [vmem:[%s1149 + $0x171] sm:$0xff] %vm599, %v1148
        %v1182 = vld [vmem:[#allocation2] sm:$0xff]
        %v1183 = vld [vmem:[#allocation2 + $0x8] sm:$0xff]
        %v1184 = vld [vmem:[#allocation2 + $0x18] sm:$0xff]
        %v1185 = vld [vmem:[#allocation2 + $0x20] sm:$0xff]
        %v1186 = vld [vmem:[#allocation2 + $0x30] sm:$0xff]
        %v1187 = vld [vmem:[#allocation2 + $0x38] sm:$0xff]
        %v1188 = vld [vmem:[#allocation2 + $0x48] sm:$0xff]
        %v1189 = vld [vmem:[#allocation2 + $0x50] sm:$0xff]
        %v1190 = vld [vmem:[#allocation2 + $0x60] sm:$0xff]
        %v1191 = vld [vmem:[#allocation2 + $0x68] sm:$0xff]
        %v1192 = vld [vmem:[#allocation2 + $0x78] sm:$0xff]
        %v1193 = vld [vmem:[#allocation2 + $0x80] sm:$0xff]
        %v1194 = vld [vmem:[#allocation2 + $0x90] sm:$0xff]
        %v1195 = vld [vmem:[#allocation2 + $0x98] sm:$0xff]
        %v1196 = vld [vmem:[#allocation2 + $0xa8] sm:$0xff]
        %v1197 = vld [vmem:[#allocation2 + $0xb0] sm:$0xff]
        %v1198 = vld [vmem:[#allocation2 + $0xc0] sm:$0xff]
        %v1199 = vld [vmem:[#allocation2 + $0xc8] sm:$0xff]
        %v1200 = vld [vmem:[#allocation2 + $0xd8] sm:$0xff]
        %v1201 = vld [vmem:[#allocation2 + $0xe0] sm:$0xff]
        %v1202 = vld [vmem:[#allocation2 + $0xf0] sm:$0xff]
        %v1203 = vld [vmem:[#allocation2 + $0xf8] sm:$0xff]
        %v1204 = vld [vmem:[#allocation2 + $0x108] sm:$0xff]
        %v1205 = vld [vmem:[#allocation2 + $0x110] sm:$0xff]
        %v1206 = vld [vmem:[#allocation2 + $0x120] sm:$0xff]
        %v1207 = vld [vmem:[#allocation2 + $0x128] sm:$0xff]
        %v1208 = vld [vmem:[#allocation2 + $0x138] sm:$0xff]
        %v1209 = vld [vmem:[#allocation2 + $0x140] sm:$0xff]
        %v1210 = vld [vmem:[#allocation2 + $0x150] sm:$0xff]
        %v1211 = vld [vmem:[#allocation2 + $0x158] sm:$0xff]
        %v1212 = vld [vmem:[#allocation2 + $0x168] sm:$0xff]
        %v1213 = vld [vmem:[#allocation2 + $0x170] sm:$0xff]
        %v1214 = vpack.c.bf16 %v1183, %v1182
        %v1215 = vpack.c.bf16 %v1185, %v1184
        %v1216 = vpack.c.bf16 %v1187, %v1186
        %v1217 = vpack.c.bf16 %v1189, %v1188
        %v1218 = vpack.c.bf16 %v1191, %v1190
        %v1219 = vpack.c.bf16 %v1193, %v1192
        %v1220 = vpack.c.bf16 %v1195, %v1194
        %v1221 = vpack.c.bf16 %v1197, %v1196
        %v1222 = vpack.c.bf16 %v1199, %v1198
        %v1223 = vpack.c.bf16 %v1201, %v1200
        %v1224 = vpack.c.bf16 %v1203, %v1202
        %v1225 = vpack.c.bf16 %v1205, %v1204
        %v1226 = vpack.c.bf16 %v1207, %v1206
        %v1227 = vpack.c.bf16 %v1209, %v1208
        %v1228 = vpack.c.bf16 %v1211, %v1210
        %v1229 = vpack.c.bf16 %v1213, %v1212
        %v1230 = vld [vmem:[#allocation10] sm:$0xf]
        %v1231 = vld [vmem:[#allocation2 + $0x1] sm:$0xff]
        %v1232 = vld [vmem:[#allocation2 + $0x9] sm:$0xff]
        %v1233 = vld [vmem:[#allocation2 + $0x19] sm:$0xff]
        %v1234 = vld [vmem:[#allocation2 + $0x21] sm:$0xff]
        %v1235 = vld [vmem:[#allocation2 + $0x31] sm:$0xff]
        %v1236 = vld [vmem:[#allocation2 + $0x39] sm:$0xff]
        %v1237 = vld [vmem:[#allocation2 + $0x49] sm:$0xff]
        %v1238 = vld [vmem:[#allocation2 + $0x51] sm:$0xff]
        %v1239 = vld [vmem:[#allocation2 + $0x61] sm:$0xff]
        %v1240 = vld [vmem:[#allocation2 + $0x69] sm:$0xff]
        %v1241 = vld [vmem:[#allocation2 + $0x79] sm:$0xff]
        %v1242 = vld [vmem:[#allocation2 + $0x81] sm:$0xff]
        %v1243 = vld [vmem:[#allocation2 + $0x91] sm:$0xff]
        %v1244 = vld [vmem:[#allocation2 + $0x99] sm:$0xff]
        %v1245 = vld [vmem:[#allocation2 + $0xa9] sm:$0xff]
        %v1246 = vld [vmem:[#allocation2 + $0xb1] sm:$0xff]
        %v1247 = vld [vmem:[#allocation2 + $0xc1] sm:$0xff]
        %v1248 = vld [vmem:[#allocation2 + $0xc9] sm:$0xff]
        %v1249 = vld [vmem:[#allocation2 + $0xd9] sm:$0xff]
        %v1250 = vld [vmem:[#allocation2 + $0xe1] sm:$0xff]
        %v1251 = vld [vmem:[#allocation2 + $0xf1] sm:$0xff]
        %v1252 = vld [vmem:[#allocation2 + $0xf9] sm:$0xff]
        %v1253 = vld [vmem:[#allocation2 + $0x109] sm:$0xff]
        %v1254 = vld [vmem:[#allocation2 + $0x111] sm:$0xff]
        %v1255 = vld [vmem:[#allocation2 + $0x121] sm:$0xff]
        %v1256 = vld [vmem:[#allocation2 + $0x129] sm:$0xff]
        %v1257 = vld [vmem:[#allocation2 + $0x139] sm:$0xff]
        %v1258 = vld [vmem:[#allocation2 + $0x141] sm:$0xff]
        %v1259 = vld [vmem:[#allocation2 + $0x151] sm:$0xff]
        %v1260 = vld [vmem:[#allocation2 + $0x159] sm:$0xff]
        %v1261 = vld [vmem:[#allocation2 + $0x169] sm:$0xff]
        %v1262 = vld [vmem:[#allocation2 + $0x171] sm:$0xff]
        %v1263 = vpack.c.bf16 %v1232, %v1231
        %v1264 = vpack.c.bf16 %v1234, %v1233
        %v1265 = vpack.c.bf16 %v1236, %v1235
        %v1266 = vpack.c.bf16 %v1238, %v1237
        %v1267 = vpack.c.bf16 %v1240, %v1239
        %v1268 = vpack.c.bf16 %v1242, %v1241
        %v1269 = vpack.c.bf16 %v1244, %v1243
        %v1270 = vpack.c.bf16 %v1246, %v1245
        %v1271 = vpack.c.bf16 %v1248, %v1247
        %v1272 = vpack.c.bf16 %v1250, %v1249
        %v1273 = vpack.c.bf16 %v1252, %v1251
        %v1274 = vpack.c.bf16 %v1254, %v1253
        %v1275 = vpack.c.bf16 %v1256, %v1255
        %v1276 = vpack.c.bf16 %v1258, %v1257
        %v1277 = vpack.c.bf16 %v1260, %v1259
        %v1278 = vpack.c.bf16 %v1262, %v1261
        %s1279 = scalar_lea.vmem [#allocation10], 4
        %v1280 = vld [vmem:[%s1279] sm:$0xf]
        %v1282 = vsel %vm543, %v1263, 0
        %v1285 = vsel %vm543, %v1264, 0
        %v1288 = vsel %vm543, %v1265, 0
        %v1291 = vsel %vm543, %v1266, 0
        %v1294 = vsel %vm543, %v1267, 0
        %v1297 = vsel %vm543, %v1268, 0
        %v1300 = vsel %vm543, %v1269, 0
        %v1303 = vsel %vm543, %v1270, 0
        %v1306 = vsel %vm543, %v1271, 0
        %v1309 = vsel %vm543, %v1272, 0
        %v1312 = vsel %vm543, %v1273, 0
        %v1315 = vsel %vm543, %v1274, 0
        %v1318 = vsel %vm543, %v1275, 0
        %v1321 = vsel %vm543, %v1276, 0
        %v1324 = vsel %vm543, %v1277, 0
        %v1327 = vsel %vm543, %v1278, 0
        %vm1329 = vcmask 1043456
        %v1331 = vsel %vm1329, %v1280, 0
        %1333 = vmatpush.bf16.msra.mxu0 0
        %1334 = vmatpush.bf16.msra.mxu0 0
        %1335 = vmatpush.bf16.msra.mxu0 0
        %1336 = vmatpush.bf16.msra.mxu0 0
        %1337 = vmatpush.bf16.msra.mxu0 0
        %1338 = vmatpush.bf16.msra.mxu0 0
        %1339 = vmatpush.bf16.msra.mxu0 0
        %1340 = vmatpush.bf16.msra.mxu0 %v1331
        %1341 = vmatmul.bf16.gmra.mxu0 %v1282
        %v1342 = vpop.f32.mrf.mxu0
        %v1343 = vadd.f32 0.0, %v1342
        %v1344 = vpop.f32.mrf.mxu0
        %v1345 = vadd.f32 0.0, %v1344
        %1346 = vmatmul.bf16.gmra.mxu0 %v1285
        %v1347 = vpop.f32.mrf.mxu0
        %v1348 = vadd.f32 0.0, %v1347
        %v1349 = vpop.f32.mrf.mxu0
        %v1350 = vadd.f32 0.0, %v1349
        %1351 = vmatmul.bf16.gmra.mxu0 %v1288
        %v1352 = vpop.f32.mrf.mxu0
        %v1353 = vadd.f32 0.0, %v1352
        %v1354 = vpop.f32.mrf.mxu0
        %v1355 = vadd.f32 0.0, %v1354
        %1356 = vmatmul.bf16.gmra.mxu0 %v1291
        %v1357 = vpop.f32.mrf.mxu0
        %v1358 = vadd.f32 0.0, %v1357
        %v1359 = vpop.f32.mrf.mxu0
        %v1360 = vadd.f32 0.0, %v1359
        %1361 = vmatmul.bf16.gmra.mxu0 %v1294
        %v1362 = vpop.f32.mrf.mxu0
        %v1363 = vadd.f32 0.0, %v1362
        %v1364 = vpop.f32.mrf.mxu0
        %v1365 = vadd.f32 0.0, %v1364
        %1366 = vmatmul.bf16.gmra.mxu0 %v1297
        %v1367 = vpop.f32.mrf.mxu0
        %v1368 = vadd.f32 0.0, %v1367
        %v1369 = vpop.f32.mrf.mxu0
        %v1370 = vadd.f32 0.0, %v1369
        %1371 = vmatmul.bf16.gmra.mxu0 %v1300
        %v1372 = vpop.f32.mrf.mxu0
        %v1373 = vadd.f32 0.0, %v1372
        %v1374 = vpop.f32.mrf.mxu0
        %v1375 = vadd.f32 0.0, %v1374
        %1376 = vmatmul.bf16.gmra.mxu0 %v1303
        %v1377 = vpop.f32.mrf.mxu0
        %v1378 = vadd.f32 0.0, %v1377
        %v1379 = vpop.f32.mrf.mxu0
        %v1380 = vadd.f32 0.0, %v1379
        %1381 = vmatmul.bf16.gmra.mxu0 %v1306
        %v1382 = vpop.f32.mrf.mxu0
        %v1383 = vadd.f32 0.0, %v1382
        %v1384 = vpop.f32.mrf.mxu0
        %v1385 = vadd.f32 0.0, %v1384
        %1386 = vmatmul.bf16.gmra.mxu0 %v1309
        %v1387 = vpop.f32.mrf.mxu0
        %v1388 = vadd.f32 0.0, %v1387
        %v1389 = vpop.f32.mrf.mxu0
        %v1390 = vadd.f32 0.0, %v1389
        %1391 = vmatmul.bf16.gmra.mxu0 %v1312
        %v1392 = vpop.f32.mrf.mxu0
        %v1393 = vadd.f32 0.0, %v1392
        %v1394 = vpop.f32.mrf.mxu0
        %v1395 = vadd.f32 0.0, %v1394
        %1396 = vmatmul.bf16.gmra.mxu0 %v1315
        %v1397 = vpop.f32.mrf.mxu0
        %v1398 = vadd.f32 0.0, %v1397
        %v1399 = vpop.f32.mrf.mxu0
        %v1400 = vadd.f32 0.0, %v1399
        %1401 = vmatmul.bf16.gmra.mxu0 %v1318
        %v1402 = vpop.f32.mrf.mxu0
        %v1403 = vadd.f32 0.0, %v1402
        %v1404 = vpop.f32.mrf.mxu0
        %v1405 = vadd.f32 0.0, %v1404
        %1406 = vmatmul.bf16.gmra.mxu0 %v1321
        %v1407 = vpop.f32.mrf.mxu0
        %v1408 = vadd.f32 0.0, %v1407
        %v1409 = vpop.f32.mrf.mxu0
        %v1410 = vadd.f32 0.0, %v1409
        %1411 = vmatmul.bf16.gmra.mxu0 %v1324
        %v1412 = vpop.f32.mrf.mxu0
        %v1413 = vadd.f32 0.0, %v1412
        %v1414 = vpop.f32.mrf.mxu0
        %v1415 = vadd.f32 0.0, %v1414
        %1416 = vmatmul.bf16.gmra.mxu0 %v1327
        %v1417 = vpop.f32.mrf.mxu0
        %v1418 = vadd.f32 0.0, %v1417
        %v1419 = vpop.f32.mrf.mxu0
        %v1420 = vadd.f32 0.0, %v1419
        %1421 = vdwg.mxu0
        %v1423 = vsel %vm543, %v1214, 0
        %v1426 = vsel %vm543, %v1215, 0
        %v1429 = vsel %vm543, %v1216, 0
        %v1432 = vsel %vm543, %v1217, 0
        %v1435 = vsel %vm543, %v1218, 0
        %v1438 = vsel %vm543, %v1219, 0
        %v1441 = vsel %vm543, %v1220, 0
        %v1444 = vsel %vm543, %v1221, 0
        %v1447 = vsel %vm543, %v1222, 0
        %v1450 = vsel %vm543, %v1223, 0
        %v1453 = vsel %vm543, %v1224, 0
        %v1456 = vsel %vm543, %v1225, 0
        %v1459 = vsel %vm543, %v1226, 0
        %v1462 = vsel %vm543, %v1227, 0
        %v1465 = vsel %vm543, %v1228, 0
        %v1468 = vsel %vm543, %v1229, 0
        %v1471 = vsel %vm1329, %v1230, 0
        %1473 = vmatpush.bf16.msra.mxu0 0
        %1474 = vmatpush.bf16.msra.mxu0 0
        %1475 = vmatpush.bf16.msra.mxu0 0
        %1476 = vmatpush.bf16.msra.mxu0 0
        %1477 = vmatpush.bf16.msra.mxu0 0
        %1478 = vmatpush.bf16.msra.mxu0 0
        %1479 = vmatpush.bf16.msra.mxu0 0
        %1480 = vmatpush.bf16.msra.mxu0 %v1471
        %1481 = vmatmul.bf16.gmra.mxu0 %v1423
        %v1482 = vpop.f32.mrf.mxu0
        %v1483 = vadd.f32 %v1343, %v1482
        %v1484 = vpop.f32.mrf.mxu0
        %v1485 = vadd.f32 %v1345, %v1484
        %1486 = vmatmul.bf16.gmra.mxu0 %v1426
        %v1487 = vpop.f32.mrf.mxu0
        %v1488 = vadd.f32 %v1348, %v1487
        %v1489 = vpop.f32.mrf.mxu0
        %v1490 = vadd.f32 %v1350, %v1489
        %1491 = vmatmul.bf16.gmra.mxu0 %v1429
        %v1492 = vpop.f32.mrf.mxu0
        %v1493 = vadd.f32 %v1353, %v1492
        %v1494 = vpop.f32.mrf.mxu0
        %v1495 = vadd.f32 %v1355, %v1494
        %1496 = vmatmul.bf16.gmra.mxu0 %v1432
        %v1497 = vpop.f32.mrf.mxu0
        %v1498 = vadd.f32 %v1358, %v1497
        %v1499 = vpop.f32.mrf.mxu0
        %v1500 = vadd.f32 %v1360, %v1499
        %1501 = vmatmul.bf16.gmra.mxu0 %v1435
        %v1502 = vpop.f32.mrf.mxu0
        %v1503 = vadd.f32 %v1363, %v1502
        %v1504 = vpop.f32.mrf.mxu0
        %v1505 = vadd.f32 %v1365, %v1504
        %1506 = vmatmul.bf16.gmra.mxu0 %v1438
        %v1507 = vpop.f32.mrf.mxu0
        %v1508 = vadd.f32 %v1368, %v1507
        %v1509 = vpop.f32.mrf.mxu0
        %v1510 = vadd.f32 %v1370, %v1509
        %1511 = vmatmul.bf16.gmra.mxu0 %v1441
        %v1512 = vpop.f32.mrf.mxu0
        %v1513 = vadd.f32 %v1373, %v1512
        %v1514 = vpop.f32.mrf.mxu0
        %v1515 = vadd.f32 %v1375, %v1514
        %1516 = vmatmul.bf16.gmra.mxu0 %v1444
        %v1517 = vpop.f32.mrf.mxu0
        %v1518 = vadd.f32 %v1378, %v1517
        %v1519 = vpop.f32.mrf.mxu0
        %v1520 = vadd.f32 %v1380, %v1519
        %1521 = vmatmul.bf16.gmra.mxu0 %v1447
        %v1522 = vpop.f32.mrf.mxu0
        %v1523 = vadd.f32 %v1383, %v1522
        %v1524 = vpop.f32.mrf.mxu0
        %v1525 = vadd.f32 %v1385, %v1524
        %1526 = vmatmul.bf16.gmra.mxu0 %v1450
        %v1527 = vpop.f32.mrf.mxu0
        %v1528 = vadd.f32 %v1388, %v1527
        %v1529 = vpop.f32.mrf.mxu0
        %v1530 = vadd.f32 %v1390, %v1529
        %1531 = vmatmul.bf16.gmra.mxu0 %v1453
        %v1532 = vpop.f32.mrf.mxu0
        %v1533 = vadd.f32 %v1393, %v1532
        %v1534 = vpop.f32.mrf.mxu0
        %v1535 = vadd.f32 %v1395, %v1534
        %1536 = vmatmul.bf16.gmra.mxu0 %v1456
        %v1537 = vpop.f32.mrf.mxu0
        %v1538 = vadd.f32 %v1398, %v1537
        %v1539 = vpop.f32.mrf.mxu0
        %v1540 = vadd.f32 %v1400, %v1539
        %1541 = vmatmul.bf16.gmra.mxu0 %v1459
        %v1542 = vpop.f32.mrf.mxu0
        %v1543 = vadd.f32 %v1403, %v1542
        %v1544 = vpop.f32.mrf.mxu0
        %v1545 = vadd.f32 %v1405, %v1544
        %1546 = vmatmul.bf16.gmra.mxu0 %v1462
        %v1547 = vpop.f32.mrf.mxu0
        %v1548 = vadd.f32 %v1408, %v1547
        %v1549 = vpop.f32.mrf.mxu0
        %v1550 = vadd.f32 %v1410, %v1549
        %1551 = vmatmul.bf16.gmra.mxu0 %v1465
        %v1552 = vpop.f32.mrf.mxu0
        %v1553 = vadd.f32 %v1413, %v1552
        %v1554 = vpop.f32.mrf.mxu0
        %v1555 = vadd.f32 %v1415, %v1554
        %1556 = vmatmul.bf16.gmra.mxu0 %v1468
        %v1557 = vpop.f32.mrf.mxu0
        %v1558 = vadd.f32 %v1418, %v1557
        %v1559 = vpop.f32.mrf.mxu0
        %v1560 = vadd.f32 %v1420, %v1559
        %1561 = vdwg.mxu0
        %v1562 = vld [vmem:[#allocation2 + $0x2] sm:$0xff]
        %v1563 = vld [vmem:[#allocation2 + $0xa] sm:$0xff]
        %v1564 = vld [vmem:[#allocation2 + $0x1a] sm:$0xff]
        %v1565 = vld [vmem:[#allocation2 + $0x22] sm:$0xff]
        %v1566 = vld [vmem:[#allocation2 + $0x32] sm:$0xff]
        %v1567 = vld [vmem:[#allocation2 + $0x3a] sm:$0xff]
        %v1568 = vld [vmem:[#allocation2 + $0x4a] sm:$0xff]
        %v1569 = vld [vmem:[#allocation2 + $0x52] sm:$0xff]
        %v1570 = vld [vmem:[#allocation2 + $0x62] sm:$0xff]
        %v1571 = vld [vmem:[#allocation2 + $0x6a] sm:$0xff]
        %v1572 = vld [vmem:[#allocation2 + $0x7a] sm:$0xff]
        %v1573 = vld [vmem:[#allocation2 + $0x82] sm:$0xff]
        %v1574 = vld [vmem:[#allocation2 + $0x92] sm:$0xff]
        %v1575 = vld [vmem:[#allocation2 + $0x9a] sm:$0xff]
        %v1576 = vld [vmem:[#allocation2 + $0xaa] sm:$0xff]
        %v1577 = vld [vmem:[#allocation2 + $0xb2] sm:$0xff]
        %v1578 = vld [vmem:[#allocation2 + $0xc2] sm:$0xff]
        %v1579 = vld [vmem:[#allocation2 + $0xca] sm:$0xff]
        %v1580 = vld [vmem:[#allocation2 + $0xda] sm:$0xff]
        %v1581 = vld [vmem:[#allocation2 + $0xe2] sm:$0xff]
        %v1582 = vld [vmem:[#allocation2 + $0xf2] sm:$0xff]
        %v1583 = vld [vmem:[#allocation2 + $0xfa] sm:$0xff]
        %v1584 = vld [vmem:[#allocation2 + $0x10a] sm:$0xff]
        %v1585 = vld [vmem:[#allocation2 + $0x112] sm:$0xff]
        %v1586 = vld [vmem:[#allocation2 + $0x122] sm:$0xff]
        %v1587 = vld [vmem:[#allocation2 + $0x12a] sm:$0xff]
        %v1588 = vld [vmem:[#allocation2 + $0x13a] sm:$0xff]
        %v1589 = vld [vmem:[#allocation2 + $0x142] sm:$0xff]
        %v1590 = vld [vmem:[#allocation2 + $0x152] sm:$0xff]
        %v1591 = vld [vmem:[#allocation2 + $0x15a] sm:$0xff]
        %v1592 = vld [vmem:[#allocation2 + $0x16a] sm:$0xff]
        %v1593 = vld [vmem:[#allocation2 + $0x172] sm:$0xff]
        %v1594 = vpack.c.bf16 %v1563, %v1562
        %v1595 = vpack.c.bf16 %v1565, %v1564
        %v1596 = vpack.c.bf16 %v1567, %v1566
        %v1597 = vpack.c.bf16 %v1569, %v1568
        %v1598 = vpack.c.bf16 %v1571, %v1570
        %v1599 = vpack.c.bf16 %v1573, %v1572
        %v1600 = vpack.c.bf16 %v1575, %v1574
        %v1601 = vpack.c.bf16 %v1577, %v1576
        %v1602 = vpack.c.bf16 %v1579, %v1578
        %v1603 = vpack.c.bf16 %v1581, %v1580
        %v1604 = vpack.c.bf16 %v1583, %v1582
        %v1605 = vpack.c.bf16 %v1585, %v1584
        %v1606 = vpack.c.bf16 %v1587, %v1586
        %v1607 = vpack.c.bf16 %v1589, %v1588
        %v1608 = vpack.c.bf16 %v1591, %v1590
        %v1609 = vpack.c.bf16 %v1593, %v1592
        %s1610 = scalar_lea.vmem [#allocation10], 8
        %v1611 = vld [vmem:[%s1610] sm:$0xf]
        %v1613 = vsel %vm543, %v1594, 0
        %v1616 = vsel %vm543, %v1595, 0
        %v1619 = vsel %vm543, %v1596, 0
        %v1622 = vsel %vm543, %v1597, 0
        %v1625 = vsel %vm543, %v1598, 0
        %v1628 = vsel %vm543, %v1599, 0
        %v1631 = vsel %vm543, %v1600, 0
        %v1634 = vsel %vm543, %v1601, 0
        %v1637 = vsel %vm543, %v1602, 0
        %v1640 = vsel %vm543, %v1603, 0
        %v1643 = vsel %vm543, %v1604, 0
        %v1646 = vsel %vm543, %v1605, 0
        %v1649 = vsel %vm543, %v1606, 0
        %v1652 = vsel %vm543, %v1607, 0
        %v1655 = vsel %vm543, %v1608, 0
        %v1658 = vsel %vm543, %v1609, 0
        %v1661 = vsel %vm1329, %v1611, 0
        %1663 = vmatpush.bf16.msra.mxu0 0
        %1664 = vmatpush.bf16.msra.mxu0 0
        %1665 = vmatpush.bf16.msra.mxu0 0
        %1666 = vmatpush.bf16.msra.mxu0 0
        %1667 = vmatpush.bf16.msra.mxu0 0
        %1668 = vmatpush.bf16.msra.mxu0 0
        %1669 = vmatpush.bf16.msra.mxu0 0
        %1670 = vmatpush.bf16.msra.mxu0 %v1661
        %1671 = vmatmul.bf16.gmra.mxu0 %v1613
        %v1672 = vpop.f32.mrf.mxu0
        %v1673 = vadd.f32 0.0, %v1672
        %v1674 = vpop.f32.mrf.mxu0
        %v1675 = vadd.f32 0.0, %v1674
        %1676 = vmatmul.bf16.gmra.mxu0 %v1616
        %v1677 = vpop.f32.mrf.mxu0
        %v1678 = vadd.f32 0.0, %v1677
        %v1679 = vpop.f32.mrf.mxu0
        %v1680 = vadd.f32 0.0, %v1679
        %1681 = vmatmul.bf16.gmra.mxu0 %v1619
        %v1682 = vpop.f32.mrf.mxu0
        %v1683 = vadd.f32 0.0, %v1682
        %v1684 = vpop.f32.mrf.mxu0
        %v1685 = vadd.f32 0.0, %v1684
        %1686 = vmatmul.bf16.gmra.mxu0 %v1622
        %v1687 = vpop.f32.mrf.mxu0
        %v1688 = vadd.f32 0.0, %v1687
        %v1689 = vpop.f32.mrf.mxu0
        %v1690 = vadd.f32 0.0, %v1689
        %1691 = vmatmul.bf16.gmra.mxu0 %v1625
        %v1692 = vpop.f32.mrf.mxu0
        %v1693 = vadd.f32 0.0, %v1692
        %v1694 = vpop.f32.mrf.mxu0
        %v1695 = vadd.f32 0.0, %v1694
        %1696 = vmatmul.bf16.gmra.mxu0 %v1628
        %v1697 = vpop.f32.mrf.mxu0
        %v1698 = vadd.f32 0.0, %v1697
        %v1699 = vpop.f32.mrf.mxu0
        %v1700 = vadd.f32 0.0, %v1699
        %1701 = vmatmul.bf16.gmra.mxu0 %v1631
        %v1702 = vpop.f32.mrf.mxu0
        %v1703 = vadd.f32 0.0, %v1702
        %v1704 = vpop.f32.mrf.mxu0
        %v1705 = vadd.f32 0.0, %v1704
        %1706 = vmatmul.bf16.gmra.mxu0 %v1634
        %v1707 = vpop.f32.mrf.mxu0
        %v1708 = vadd.f32 0.0, %v1707
        %v1709 = vpop.f32.mrf.mxu0
        %v1710 = vadd.f32 0.0, %v1709
        %1711 = vmatmul.bf16.gmra.mxu0 %v1637
        %v1712 = vpop.f32.mrf.mxu0
        %v1713 = vadd.f32 0.0, %v1712
        %v1714 = vpop.f32.mrf.mxu0
        %v1715 = vadd.f32 0.0, %v1714
        %1716 = vmatmul.bf16.gmra.mxu0 %v1640
        %v1717 = vpop.f32.mrf.mxu0
        %v1718 = vadd.f32 0.0, %v1717
        %v1719 = vpop.f32.mrf.mxu0
        %v1720 = vadd.f32 0.0, %v1719
        %1721 = vmatmul.bf16.gmra.mxu0 %v1643
        %v1722 = vpop.f32.mrf.mxu0
        %v1723 = vadd.f32 0.0, %v1722
        %v1724 = vpop.f32.mrf.mxu0
        %v1725 = vadd.f32 0.0, %v1724
        %1726 = vmatmul.bf16.gmra.mxu0 %v1646
        %v1727 = vpop.f32.mrf.mxu0
        %v1728 = vadd.f32 0.0, %v1727
        %v1729 = vpop.f32.mrf.mxu0
        %v1730 = vadd.f32 0.0, %v1729
        %1731 = vmatmul.bf16.gmra.mxu0 %v1649
        %v1732 = vpop.f32.mrf.mxu0
        %v1733 = vadd.f32 0.0, %v1732
        %v1734 = vpop.f32.mrf.mxu0
        %v1735 = vadd.f32 0.0, %v1734
        %1736 = vmatmul.bf16.gmra.mxu0 %v1652
        %v1737 = vpop.f32.mrf.mxu0
        %v1738 = vadd.f32 0.0, %v1737
        %v1739 = vpop.f32.mrf.mxu0
        %v1740 = vadd.f32 0.0, %v1739
        %1741 = vmatmul.bf16.gmra.mxu0 %v1655
        %v1742 = vpop.f32.mrf.mxu0
        %v1743 = vadd.f32 0.0, %v1742
        %v1744 = vpop.f32.mrf.mxu0
        %v1745 = vadd.f32 0.0, %v1744
        %1746 = vmatmul.bf16.gmra.mxu0 %v1658
        %v1747 = vpop.f32.mrf.mxu0
        %v1748 = vadd.f32 0.0, %v1747
        %v1749 = vpop.f32.mrf.mxu0
        %v1750 = vadd.f32 0.0, %v1749
        %1751 = vdwg.mxu0
        %v1752 = vadd.f32 %v1483, %v1673
        %v1753 = vadd.f32 %v1485, %v1675
        %v1754 = vadd.f32 %v1488, %v1678
        %v1755 = vadd.f32 %v1490, %v1680
        %v1756 = vadd.f32 %v1493, %v1683
        %v1757 = vadd.f32 %v1495, %v1685
        %v1758 = vadd.f32 %v1498, %v1688
        %v1759 = vadd.f32 %v1500, %v1690
        %v1760 = vadd.f32 %v1503, %v1693
        %v1761 = vadd.f32 %v1505, %v1695
        %v1762 = vadd.f32 %v1508, %v1698
        %v1763 = vadd.f32 %v1510, %v1700
        %v1764 = vadd.f32 %v1513, %v1703
        %v1765 = vadd.f32 %v1515, %v1705
        %v1766 = vadd.f32 %v1518, %v1708
        %v1767 = vadd.f32 %v1520, %v1710
        %v1768 = vadd.f32 %v1523, %v1713
        %v1769 = vadd.f32 %v1525, %v1715
        %v1770 = vadd.f32 %v1528, %v1718
        %v1771 = vadd.f32 %v1530, %v1720
        %v1772 = vadd.f32 %v1533, %v1723
        %v1773 = vadd.f32 %v1535, %v1725
        %v1774 = vadd.f32 %v1538, %v1728
        %v1775 = vadd.f32 %v1540, %v1730
        %v1776 = vadd.f32 %v1543, %v1733
        %v1777 = vadd.f32 %v1545, %v1735
        %v1778 = vadd.f32 %v1548, %v1738
        %v1779 = vadd.f32 %v1550, %v1740
        %v1780 = vadd.f32 %v1553, %v1743
        %v1781 = vadd.f32 %v1555, %v1745
        %v1782 = vadd.f32 %v1558, %v1748
        %v1783 = vadd.f32 %v1560, %v1750
        %v1784 = vld [vmem:[%s1052] sm:$0xff]
        %v1785 = vld [vmem:[%s1052 + $0x8] sm:$0xff]
        %v1786 = vld [vmem:[%s1052 + $0x18] sm:$0xff]
        %v1787 = vld [vmem:[%s1052 + $0x20] sm:$0xff]
        %v1788 = vld [vmem:[%s1052 + $0x30] sm:$0xff]
        %v1789 = vld [vmem:[%s1052 + $0x38] sm:$0xff]
        %v1790 = vld [vmem:[%s1052 + $0x48] sm:$0xff]
        %v1791 = vld [vmem:[%s1052 + $0x50] sm:$0xff]
        %v1792 = vld [vmem:[%s1052 + $0x60] sm:$0xff]
        %v1793 = vld [vmem:[%s1052 + $0x68] sm:$0xff]
        %v1794 = vld [vmem:[%s1052 + $0x78] sm:$0xff]
        %v1795 = vld [vmem:[%s1052 + $0x80] sm:$0xff]
        %v1796 = vld [vmem:[%s1052 + $0x90] sm:$0xff]
        %v1797 = vld [vmem:[%s1052 + $0x98] sm:$0xff]
        %v1798 = vld [vmem:[%s1052 + $0xa8] sm:$0xff]
        %v1799 = vld [vmem:[%s1052 + $0xb0] sm:$0xff]
        %v1800 = vld [vmem:[%s1052 + $0xc0] sm:$0xff]
        %v1801 = vld [vmem:[%s1052 + $0xc8] sm:$0xff]
        %v1802 = vld [vmem:[%s1052 + $0xd8] sm:$0xff]
        %v1803 = vld [vmem:[%s1052 + $0xe0] sm:$0xff]
        %v1804 = vld [vmem:[%s1052 + $0xf0] sm:$0xff]
        %v1805 = vld [vmem:[%s1052 + $0xf8] sm:$0xff]
        %v1806 = vld [vmem:[%s1052 + $0x108] sm:$0xff]
        %v1807 = vld [vmem:[%s1052 + $0x110] sm:$0xff]
        %v1808 = vld [vmem:[%s1052 + $0x120] sm:$0xff]
        %v1809 = vld [vmem:[%s1052 + $0x128] sm:$0xff]
        %v1810 = vld [vmem:[%s1052 + $0x138] sm:$0xff]
        %v1811 = vld [vmem:[%s1052 + $0x140] sm:$0xff]
        %v1812 = vld [vmem:[%s1052 + $0x150] sm:$0xff]
        %v1813 = vld [vmem:[%s1052 + $0x158] sm:$0xff]
        %v1814 = vld [vmem:[%s1052 + $0x168] sm:$0xff]
        %v1815 = vld [vmem:[%s1052 + $0x170] sm:$0xff]
        %v1816 = vpack.c.bf16 %v1785, %v1784
        %v1817 = vpack.c.bf16 %v1787, %v1786
        %v1818 = vpack.c.bf16 %v1789, %v1788
        %v1819 = vpack.c.bf16 %v1791, %v1790
        %v1820 = vpack.c.bf16 %v1793, %v1792
        %v1821 = vpack.c.bf16 %v1795, %v1794
        %v1822 = vpack.c.bf16 %v1797, %v1796
        %v1823 = vpack.c.bf16 %v1799, %v1798
        %v1824 = vpack.c.bf16 %v1801, %v1800
        %v1825 = vpack.c.bf16 %v1803, %v1802
        %v1826 = vpack.c.bf16 %v1805, %v1804
        %v1827 = vpack.c.bf16 %v1807, %v1806
        %v1828 = vpack.c.bf16 %v1809, %v1808
        %v1829 = vpack.c.bf16 %v1811, %v1810
        %v1830 = vpack.c.bf16 %v1813, %v1812
        %v1831 = vpack.c.bf16 %v1815, %v1814
        %s1832 = scalar_lea.vmem [#allocation10], 12
        %v1833 = vld [vmem:[%s1832] sm:$0xf]
        %v1835 = vsel %vm543, %v1816, 0
        %v1838 = vsel %vm543, %v1817, 0
        %v1841 = vsel %vm543, %v1818, 0
        %v1844 = vsel %vm543, %v1819, 0
        %v1847 = vsel %vm543, %v1820, 0
        %v1850 = vsel %vm543, %v1821, 0
        %v1853 = vsel %vm543, %v1822, 0
        %v1856 = vsel %vm543, %v1823, 0
        %v1859 = vsel %vm543, %v1824, 0
        %v1862 = vsel %vm543, %v1825, 0
        %v1865 = vsel %vm543, %v1826, 0
        %v1868 = vsel %vm543, %v1827, 0
        %v1871 = vsel %vm543, %v1828, 0
        %v1874 = vsel %vm543, %v1829, 0
        %v1877 = vsel %vm543, %v1830, 0
        %v1880 = vsel %vm543, %v1831, 0
        %v1883 = vsel %vm1329, %v1833, 0
        %1885 = vmatpush.bf16.msra.mxu0 0
        %1886 = vmatpush.bf16.msra.mxu0 0
        %1887 = vmatpush.bf16.msra.mxu0 0
        %1888 = vmatpush.bf16.msra.mxu0 0
        %1889 = vmatpush.bf16.msra.mxu0 0
        %1890 = vmatpush.bf16.msra.mxu0 0
        %1891 = vmatpush.bf16.msra.mxu0 0
        %1892 = vmatpush.bf16.msra.mxu0 %v1883
        %1893 = vmatmul.bf16.gmra.mxu0 %v1835
        %v1894 = vpop.f32.mrf.mxu0
        %v1895 = vadd.f32 0.0, %v1894
        %v1896 = vpop.f32.mrf.mxu0
        %v1897 = vadd.f32 0.0, %v1896
        %1898 = vmatmul.bf16.gmra.mxu0 %v1838
        %v1899 = vpop.f32.mrf.mxu0
        %v1900 = vadd.f32 0.0, %v1899
        %v1901 = vpop.f32.mrf.mxu0
        %v1902 = vadd.f32 0.0, %v1901
        %1903 = vmatmul.bf16.gmra.mxu0 %v1841
        %v1904 = vpop.f32.mrf.mxu0
        %v1905 = vadd.f32 0.0, %v1904
        %v1906 = vpop.f32.mrf.mxu0
        %v1907 = vadd.f32 0.0, %v1906
        %1908 = vmatmul.bf16.gmra.mxu0 %v1844
        %v1909 = vpop.f32.mrf.mxu0
        %v1910 = vadd.f32 0.0, %v1909
        %v1911 = vpop.f32.mrf.mxu0
        %v1912 = vadd.f32 0.0, %v1911
        %1913 = vmatmul.bf16.gmra.mxu0 %v1847
        %v1914 = vpop.f32.mrf.mxu0
        %v1915 = vadd.f32 0.0, %v1914
        %v1916 = vpop.f32.mrf.mxu0
        %v1917 = vadd.f32 0.0, %v1916
        %1918 = vmatmul.bf16.gmra.mxu0 %v1850
        %v1919 = vpop.f32.mrf.mxu0
        %v1920 = vadd.f32 0.0, %v1919
        %v1921 = vpop.f32.mrf.mxu0
        %v1922 = vadd.f32 0.0, %v1921
        %1923 = vmatmul.bf16.gmra.mxu0 %v1853
        %v1924 = vpop.f32.mrf.mxu0
        %v1925 = vadd.f32 0.0, %v1924
        %v1926 = vpop.f32.mrf.mxu0
        %v1927 = vadd.f32 0.0, %v1926
        %1928 = vmatmul.bf16.gmra.mxu0 %v1856
        %v1929 = vpop.f32.mrf.mxu0
        %v1930 = vadd.f32 0.0, %v1929
        %v1931 = vpop.f32.mrf.mxu0
        %v1932 = vadd.f32 0.0, %v1931
        %1933 = vmatmul.bf16.gmra.mxu0 %v1859
        %v1934 = vpop.f32.mrf.mxu0
        %v1935 = vadd.f32 0.0, %v1934
        %v1936 = vpop.f32.mrf.mxu0
        %v1937 = vadd.f32 0.0, %v1936
        %1938 = vmatmul.bf16.gmra.mxu0 %v1862
        %v1939 = vpop.f32.mrf.mxu0
        %v1940 = vadd.f32 0.0, %v1939
        %v1941 = vpop.f32.mrf.mxu0
        %v1942 = vadd.f32 0.0, %v1941
        %1943 = vmatmul.bf16.gmra.mxu0 %v1865
        %v1944 = vpop.f32.mrf.mxu0
        %v1945 = vadd.f32 0.0, %v1944
        %v1946 = vpop.f32.mrf.mxu0
        %v1947 = vadd.f32 0.0, %v1946
        %1948 = vmatmul.bf16.gmra.mxu0 %v1868
        %v1949 = vpop.f32.mrf.mxu0
        %v1950 = vadd.f32 0.0, %v1949
        %v1951 = vpop.f32.mrf.mxu0
        %v1952 = vadd.f32 0.0, %v1951
        %1953 = vmatmul.bf16.gmra.mxu0 %v1871
        %v1954 = vpop.f32.mrf.mxu0
        %v1955 = vadd.f32 0.0, %v1954
        %v1956 = vpop.f32.mrf.mxu0
        %v1957 = vadd.f32 0.0, %v1956
        %1958 = vmatmul.bf16.gmra.mxu0 %v1874
        %v1959 = vpop.f32.mrf.mxu0
        %v1960 = vadd.f32 0.0, %v1959
        %v1961 = vpop.f32.mrf.mxu0
        %v1962 = vadd.f32 0.0, %v1961
        %1963 = vmatmul.bf16.gmra.mxu0 %v1877
        %v1964 = vpop.f32.mrf.mxu0
        %v1965 = vadd.f32 0.0, %v1964
        %v1966 = vpop.f32.mrf.mxu0
        %v1967 = vadd.f32 0.0, %v1966
        %1968 = vmatmul.bf16.gmra.mxu0 %v1880
        %v1969 = vpop.f32.mrf.mxu0
        %v1970 = vadd.f32 0.0, %v1969
        %v1971 = vpop.f32.mrf.mxu0
        %v1972 = vadd.f32 0.0, %v1971
        %1973 = vdwg.mxu0
        %v1974 = vadd.f32 %v1752, %v1895
        %v1975 = vadd.f32 %v1753, %v1897
        %v1976 = vadd.f32 %v1754, %v1900
        %v1977 = vadd.f32 %v1755, %v1902
        %v1978 = vadd.f32 %v1756, %v1905
        %v1979 = vadd.f32 %v1757, %v1907
        %v1980 = vadd.f32 %v1758, %v1910
        %v1981 = vadd.f32 %v1759, %v1912
        %v1982 = vadd.f32 %v1760, %v1915
        %v1983 = vadd.f32 %v1761, %v1917
        %v1984 = vadd.f32 %v1762, %v1920
        %v1985 = vadd.f32 %v1763, %v1922
        %v1986 = vadd.f32 %v1764, %v1925
        %v1987 = vadd.f32 %v1765, %v1927
        %v1988 = vadd.f32 %v1766, %v1930
        %v1989 = vadd.f32 %v1767, %v1932
        %v1990 = vadd.f32 %v1768, %v1935
        %v1991 = vadd.f32 %v1769, %v1937
        %v1992 = vadd.f32 %v1770, %v1940
        %v1993 = vadd.f32 %v1771, %v1942
        %v1994 = vadd.f32 %v1772, %v1945
        %v1995 = vadd.f32 %v1773, %v1947
        %v1996 = vadd.f32 %v1774, %v1950
        %v1997 = vadd.f32 %v1775, %v1952
        %v1998 = vadd.f32 %v1776, %v1955
        %v1999 = vadd.f32 %v1777, %v1957
        %v2000 = vadd.f32 %v1778, %v1960
        %v2001 = vadd.f32 %v1779, %v1962
        %v2002 = vadd.f32 %v1780, %v1965
        %v2003 = vadd.f32 %v1781, %v1967
        %v2004 = vadd.f32 %v1782, %v1970
        %v2005 = vadd.f32 %v1783, %v1972
        %v2006 = vld [vmem:[%s1052 + $0x1] sm:$0xff]
        %v2007 = vld [vmem:[%s1052 + $0x9] sm:$0xff]
        %v2008 = vld [vmem:[%s1052 + $0x19] sm:$0xff]
        %v2009 = vld [vmem:[%s1052 + $0x21] sm:$0xff]
        %v2010 = vld [vmem:[%s1052 + $0x31] sm:$0xff]
        %v2011 = vld [vmem:[%s1052 + $0x39] sm:$0xff]
        %v2012 = vld [vmem:[%s1052 + $0x49] sm:$0xff]
        %v2013 = vld [vmem:[%s1052 + $0x51] sm:$0xff]
        %v2014 = vld [vmem:[%s1052 + $0x61] sm:$0xff]
        %v2015 = vld [vmem:[%s1052 + $0x69] sm:$0xff]
        %v2016 = vld [vmem:[%s1052 + $0x79] sm:$0xff]
        %v2017 = vld [vmem:[%s1052 + $0x81] sm:$0xff]
        %v2018 = vld [vmem:[%s1052 + $0x91] sm:$0xff]
        %v2019 = vld [vmem:[%s1052 + $0x99] sm:$0xff]
        %v2020 = vld [vmem:[%s1052 + $0xa9] sm:$0xff]
        %v2021 = vld [vmem:[%s1052 + $0xb1] sm:$0xff]
        %v2022 = vld [vmem:[%s1052 + $0xc1] sm:$0xff]
        %v2023 = vld [vmem:[%s1052 + $0xc9] sm:$0xff]
        %v2024 = vld [vmem:[%s1052 + $0xd9] sm:$0xff]
        %v2025 = vld [vmem:[%s1052 + $0xe1] sm:$0xff]
        %v2026 = vld [vmem:[%s1052 + $0xf1] sm:$0xff]
        %v2027 = vld [vmem:[%s1052 + $0xf9] sm:$0xff]
        %v2028 = vld [vmem:[%s1052 + $0x109] sm:$0xff]
        %v2029 = vld [vmem:[%s1052 + $0x111] sm:$0xff]
        %v2030 = vld [vmem:[%s1052 + $0x121] sm:$0xff]
        %v2031 = vld [vmem:[%s1052 + $0x129] sm:$0xff]
        %v2032 = vld [vmem:[%s1052 + $0x139] sm:$0xff]
        %v2033 = vld [vmem:[%s1052 + $0x141] sm:$0xff]
        %v2034 = vld [vmem:[%s1052 + $0x151] sm:$0xff]
        %v2035 = vld [vmem:[%s1052 + $0x159] sm:$0xff]
        %v2036 = vld [vmem:[%s1052 + $0x169] sm:$0xff]
        %v2037 = vld [vmem:[%s1052 + $0x171] sm:$0xff]
        %v2038 = vpack.c.bf16 %v2007, %v2006
        %v2039 = vpack.c.bf16 %v2009, %v2008
        %v2040 = vpack.c.bf16 %v2011, %v2010
        %v2041 = vpack.c.bf16 %v2013, %v2012
        %v2042 = vpack.c.bf16 %v2015, %v2014
        %v2043 = vpack.c.bf16 %v2017, %v2016
        %v2044 = vpack.c.bf16 %v2019, %v2018
        %v2045 = vpack.c.bf16 %v2021, %v2020
        %v2046 = vpack.c.bf16 %v2023, %v2022
        %v2047 = vpack.c.bf16 %v2025, %v2024
        %v2048 = vpack.c.bf16 %v2027, %v2026
        %v2049 = vpack.c.bf16 %v2029, %v2028
        %v2050 = vpack.c.bf16 %v2031, %v2030
        %v2051 = vpack.c.bf16 %v2033, %v2032
        %v2052 = vpack.c.bf16 %v2035, %v2034
        %v2053 = vpack.c.bf16 %v2037, %v2036
        %s2054 = scalar_lea.vmem [#allocation10], 16
        %v2055 = vld [vmem:[%s2054] sm:$0xf]
        %v2057 = vsel %vm543, %v2038, 0
        %v2060 = vsel %vm543, %v2039, 0
        %v2063 = vsel %vm543, %v2040, 0
        %v2066 = vsel %vm543, %v2041, 0
        %v2069 = vsel %vm543, %v2042, 0
        %v2072 = vsel %vm543, %v2043, 0
        %v2075 = vsel %vm543, %v2044, 0
        %v2078 = vsel %vm543, %v2045, 0
        %v2081 = vsel %vm543, %v2046, 0
        %v2084 = vsel %vm543, %v2047, 0
        %v2087 = vsel %vm543, %v2048, 0
        %v2090 = vsel %vm543, %v2049, 0
        %v2093 = vsel %vm543, %v2050, 0
        %v2096 = vsel %vm543, %v2051, 0
        %v2099 = vsel %vm543, %v2052, 0
        %v2102 = vsel %vm543, %v2053, 0
        %v2105 = vsel %vm1329, %v2055, 0
        %2107 = vmatpush.bf16.msra.mxu0 0
        %2108 = vmatpush.bf16.msra.mxu0 0
        %2109 = vmatpush.bf16.msra.mxu0 0
        %2110 = vmatpush.bf16.msra.mxu0 0
        %2111 = vmatpush.bf16.msra.mxu0 0
        %2112 = vmatpush.bf16.msra.mxu0 0
        %2113 = vmatpush.bf16.msra.mxu0 0
        %2114 = vmatpush.bf16.msra.mxu0 %v2105
        %2115 = vmatmul.bf16.gmra.mxu0 %v2057
        %v2116 = vpop.f32.mrf.mxu0
        %v2117 = vadd.f32 0.0, %v2116
        %v2118 = vpop.f32.mrf.mxu0
        %v2119 = vadd.f32 0.0, %v2118
        %2120 = vmatmul.bf16.gmra.mxu0 %v2060
        %v2121 = vpop.f32.mrf.mxu0
        %v2122 = vadd.f32 0.0, %v2121
        %v2123 = vpop.f32.mrf.mxu0
        %v2124 = vadd.f32 0.0, %v2123
        %2125 = vmatmul.bf16.gmra.mxu0 %v2063
        %v2126 = vpop.f32.mrf.mxu0
        %v2127 = vadd.f32 0.0, %v2126
        %v2128 = vpop.f32.mrf.mxu0
        %v2129 = vadd.f32 0.0, %v2128
        %2130 = vmatmul.bf16.gmra.mxu0 %v2066
        %v2131 = vpop.f32.mrf.mxu0
        %v2132 = vadd.f32 0.0, %v2131
        %v2133 = vpop.f32.mrf.mxu0
        %v2134 = vadd.f32 0.0, %v2133
        %2135 = vmatmul.bf16.gmra.mxu0 %v2069
        %v2136 = vpop.f32.mrf.mxu0
        %v2137 = vadd.f32 0.0, %v2136
        %v2138 = vpop.f32.mrf.mxu0
        %v2139 = vadd.f32 0.0, %v2138
        %2140 = vmatmul.bf16.gmra.mxu0 %v2072
        %v2141 = vpop.f32.mrf.mxu0
        %v2142 = vadd.f32 0.0, %v2141
        %v2143 = vpop.f32.mrf.mxu0
        %v2144 = vadd.f32 0.0, %v2143
        %2145 = vmatmul.bf16.gmra.mxu0 %v2075
        %v2146 = vpop.f32.mrf.mxu0
        %v2147 = vadd.f32 0.0, %v2146
        %v2148 = vpop.f32.mrf.mxu0
        %v2149 = vadd.f32 0.0, %v2148
        %2150 = vmatmul.bf16.gmra.mxu0 %v2078
        %v2151 = vpop.f32.mrf.mxu0
        %v2152 = vadd.f32 0.0, %v2151
        %v2153 = vpop.f32.mrf.mxu0
        %v2154 = vadd.f32 0.0, %v2153
        %2155 = vmatmul.bf16.gmra.mxu0 %v2081
        %v2156 = vpop.f32.mrf.mxu0
        %v2157 = vadd.f32 0.0, %v2156
        %v2158 = vpop.f32.mrf.mxu0
        %v2159 = vadd.f32 0.0, %v2158
        %2160 = vmatmul.bf16.gmra.mxu0 %v2084
        %v2161 = vpop.f32.mrf.mxu0
        %v2162 = vadd.f32 0.0, %v2161
        %v2163 = vpop.f32.mrf.mxu0
        %v2164 = vadd.f32 0.0, %v2163
        %2165 = vmatmul.bf16.gmra.mxu0 %v2087
        %v2166 = vpop.f32.mrf.mxu0
        %v2167 = vadd.f32 0.0, %v2166
        %v2168 = vpop.f32.mrf.mxu0
        %v2169 = vadd.f32 0.0, %v2168
        %2170 = vmatmul.bf16.gmra.mxu0 %v2090
        %v2171 = vpop.f32.mrf.mxu0
        %v2172 = vadd.f32 0.0, %v2171
        %v2173 = vpop.f32.mrf.mxu0
        %v2174 = vadd.f32 0.0, %v2173
        %2175 = vmatmul.bf16.gmra.mxu0 %v2093
        %v2176 = vpop.f32.mrf.mxu0
        %v2177 = vadd.f32 0.0, %v2176
        %v2178 = vpop.f32.mrf.mxu0
        %v2179 = vadd.f32 0.0, %v2178
        %2180 = vmatmul.bf16.gmra.mxu0 %v2096
        %v2181 = vpop.f32.mrf.mxu0
        %v2182 = vadd.f32 0.0, %v2181
        %v2183 = vpop.f32.mrf.mxu0
        %v2184 = vadd.f32 0.0, %v2183
        %2185 = vmatmul.bf16.gmra.mxu0 %v2099
        %v2186 = vpop.f32.mrf.mxu0
        %v2187 = vadd.f32 0.0, %v2186
        %v2188 = vpop.f32.mrf.mxu0
        %v2189 = vadd.f32 0.0, %v2188
        %2190 = vmatmul.bf16.gmra.mxu0 %v2102
        %v2191 = vpop.f32.mrf.mxu0
        %v2192 = vadd.f32 0.0, %v2191
        %v2193 = vpop.f32.mrf.mxu0
        %v2194 = vadd.f32 0.0, %v2193
        %2195 = vdwg.mxu0
        %v2196 = vadd.f32 %v1974, %v2117
        %v2197 = vadd.f32 %v1975, %v2119
        %v2198 = vadd.f32 %v1976, %v2122
        %v2199 = vadd.f32 %v1977, %v2124
        %v2200 = vadd.f32 %v1978, %v2127
        %v2201 = vadd.f32 %v1979, %v2129
        %v2202 = vadd.f32 %v1980, %v2132
        %v2203 = vadd.f32 %v1981, %v2134
        %v2204 = vadd.f32 %v1982, %v2137
        %v2205 = vadd.f32 %v1983, %v2139
        %v2206 = vadd.f32 %v1984, %v2142
        %v2207 = vadd.f32 %v1985, %v2144
        %v2208 = vadd.f32 %v1986, %v2147
        %v2209 = vadd.f32 %v1987, %v2149
        %v2210 = vadd.f32 %v1988, %v2152
        %v2211 = vadd.f32 %v1989, %v2154
        %v2212 = vadd.f32 %v1990, %v2157
        %v2213 = vadd.f32 %v1991, %v2159
        %v2214 = vadd.f32 %v1992, %v2162
        %v2215 = vadd.f32 %v1993, %v2164
        %v2216 = vadd.f32 %v1994, %v2167
        %v2217 = vadd.f32 %v1995, %v2169
        %v2218 = vadd.f32 %v1996, %v2172
        %v2219 = vadd.f32 %v1997, %v2174
        %v2220 = vadd.f32 %v1998, %v2177
        %v2221 = vadd.f32 %v1999, %v2179
        %v2222 = vadd.f32 %v2000, %v2182
        %v2223 = vadd.f32 %v2001, %v2184
        %v2224 = vadd.f32 %v2002, %v2187
        %v2225 = vadd.f32 %v2003, %v2189
        %v2226 = vadd.f32 %v2004, %v2192
        %v2227 = vadd.f32 %v2005, %v2194
        %v2228 = vld [vmem:[%s1052 + $0x2] sm:$0xff]
        %v2229 = vld [vmem:[%s1052 + $0xa] sm:$0xff]
        %v2230 = vld [vmem:[%s1052 + $0x1a] sm:$0xff]
        %v2231 = vld [vmem:[%s1052 + $0x22] sm:$0xff]
        %v2232 = vld [vmem:[%s1052 + $0x32] sm:$0xff]
        %v2233 = vld [vmem:[%s1052 + $0x3a] sm:$0xff]
        %v2234 = vld [vmem:[%s1052 + $0x4a] sm:$0xff]
        %v2235 = vld [vmem:[%s1052 + $0x52] sm:$0xff]
        %v2236 = vld [vmem:[%s1052 + $0x62] sm:$0xff]
        %v2237 = vld [vmem:[%s1052 + $0x6a] sm:$0xff]
        %v2238 = vld [vmem:[%s1052 + $0x7a] sm:$0xff]
        %v2239 = vld [vmem:[%s1052 + $0x82] sm:$0xff]
        %v2240 = vld [vmem:[%s1052 + $0x92] sm:$0xff]
        %v2241 = vld [vmem:[%s1052 + $0x9a] sm:$0xff]
        %v2242 = vld [vmem:[%s1052 + $0xaa] sm:$0xff]
        %v2243 = vld [vmem:[%s1052 + $0xb2] sm:$0xff]
        %v2244 = vld [vmem:[%s1052 + $0xc2] sm:$0xff]
        %v2245 = vld [vmem:[%s1052 + $0xca] sm:$0xff]
        %v2246 = vld [vmem:[%s1052 + $0xda] sm:$0xff]
        %v2247 = vld [vmem:[%s1052 + $0xe2] sm:$0xff]
        %v2248 = vld [vmem:[%s1052 + $0xf2] sm:$0xff]
        %v2249 = vld [vmem:[%s1052 + $0xfa] sm:$0xff]
        %v2250 = vld [vmem:[%s1052 + $0x10a] sm:$0xff]
        %v2251 = vld [vmem:[%s1052 + $0x112] sm:$0xff]
        %v2252 = vld [vmem:[%s1052 + $0x122] sm:$0xff]
        %v2253 = vld [vmem:[%s1052 + $0x12a] sm:$0xff]
        %v2254 = vld [vmem:[%s1052 + $0x13a] sm:$0xff]
        %v2255 = vld [vmem:[%s1052 + $0x142] sm:$0xff]
        %v2256 = vld [vmem:[%s1052 + $0x152] sm:$0xff]
        %v2257 = vld [vmem:[%s1052 + $0x15a] sm:$0xff]
        %v2258 = vld [vmem:[%s1052 + $0x16a] sm:$0xff]
        %v2259 = vld [vmem:[%s1052 + $0x172] sm:$0xff]
        %v2260 = vpack.c.bf16 %v2229, %v2228
        %v2261 = vpack.c.bf16 %v2231, %v2230
        %v2262 = vpack.c.bf16 %v2233, %v2232
        %v2263 = vpack.c.bf16 %v2235, %v2234
        %v2264 = vpack.c.bf16 %v2237, %v2236
        %v2265 = vpack.c.bf16 %v2239, %v2238
        %v2266 = vpack.c.bf16 %v2241, %v2240
        %v2267 = vpack.c.bf16 %v2243, %v2242
        %v2268 = vpack.c.bf16 %v2245, %v2244
        %v2269 = vpack.c.bf16 %v2247, %v2246
        %v2270 = vpack.c.bf16 %v2249, %v2248
        %v2271 = vpack.c.bf16 %v2251, %v2250
        %v2272 = vpack.c.bf16 %v2253, %v2252
        %v2273 = vpack.c.bf16 %v2255, %v2254
        %v2274 = vpack.c.bf16 %v2257, %v2256
        %v2275 = vpack.c.bf16 %v2259, %v2258
        %s2276 = scalar_lea.vmem [#allocation10], 20
        %v2277 = vld [vmem:[%s2276] sm:$0xf]
        %v2279 = vsel %vm543, %v2260, 0
        %v2282 = vsel %vm543, %v2261, 0
        %v2285 = vsel %vm543, %v2262, 0
        %v2288 = vsel %vm543, %v2263, 0
        %v2291 = vsel %vm543, %v2264, 0
        %v2294 = vsel %vm543, %v2265, 0
        %v2297 = vsel %vm543, %v2266, 0
        %v2300 = vsel %vm543, %v2267, 0
        %v2303 = vsel %vm543, %v2268, 0
        %v2306 = vsel %vm543, %v2269, 0
        %v2309 = vsel %vm543, %v2270, 0
        %v2312 = vsel %vm543, %v2271, 0
        %v2315 = vsel %vm543, %v2272, 0
        %v2318 = vsel %vm543, %v2273, 0
        %v2321 = vsel %vm543, %v2274, 0
        %v2324 = vsel %vm543, %v2275, 0
        %v2327 = vsel %vm1329, %v2277, 0
        %2329 = vmatpush.bf16.msra.mxu0 0
        %2330 = vmatpush.bf16.msra.mxu0 0
        %2331 = vmatpush.bf16.msra.mxu0 0
        %2332 = vmatpush.bf16.msra.mxu0 0
        %2333 = vmatpush.bf16.msra.mxu0 0
        %2334 = vmatpush.bf16.msra.mxu0 0
        %2335 = vmatpush.bf16.msra.mxu0 0
        %2336 = vmatpush.bf16.msra.mxu0 %v2327
        %2337 = vmatmul.bf16.gmra.mxu0 %v2279
        %v2338 = vpop.f32.mrf.mxu0
        %v2339 = vadd.f32 0.0, %v2338
        %v2340 = vpop.f32.mrf.mxu0
        %v2341 = vadd.f32 0.0, %v2340
        %2342 = vmatmul.bf16.gmra.mxu0 %v2282
        %v2343 = vpop.f32.mrf.mxu0
        %v2344 = vadd.f32 0.0, %v2343
        %v2345 = vpop.f32.mrf.mxu0
        %v2346 = vadd.f32 0.0, %v2345
        %2347 = vmatmul.bf16.gmra.mxu0 %v2285
        %v2348 = vpop.f32.mrf.mxu0
        %v2349 = vadd.f32 0.0, %v2348
        %v2350 = vpop.f32.mrf.mxu0
        %v2351 = vadd.f32 0.0, %v2350
        %2352 = vmatmul.bf16.gmra.mxu0 %v2288
        %v2353 = vpop.f32.mrf.mxu0
        %v2354 = vadd.f32 0.0, %v2353
        %v2355 = vpop.f32.mrf.mxu0
        %v2356 = vadd.f32 0.0, %v2355
        %2357 = vmatmul.bf16.gmra.mxu0 %v2291
        %v2358 = vpop.f32.mrf.mxu0
        %v2359 = vadd.f32 0.0, %v2358
        %v2360 = vpop.f32.mrf.mxu0
        %v2361 = vadd.f32 0.0, %v2360
        %2362 = vmatmul.bf16.gmra.mxu0 %v2294
        %v2363 = vpop.f32.mrf.mxu0
        %v2364 = vadd.f32 0.0, %v2363
        %v2365 = vpop.f32.mrf.mxu0
        %v2366 = vadd.f32 0.0, %v2365
        %2367 = vmatmul.bf16.gmra.mxu0 %v2297
        %v2368 = vpop.f32.mrf.mxu0
        %v2369 = vadd.f32 0.0, %v2368
        %v2370 = vpop.f32.mrf.mxu0
        %v2371 = vadd.f32 0.0, %v2370
        %2372 = vmatmul.bf16.gmra.mxu0 %v2300
        %v2373 = vpop.f32.mrf.mxu0
        %v2374 = vadd.f32 0.0, %v2373
        %v2375 = vpop.f32.mrf.mxu0
        %v2376 = vadd.f32 0.0, %v2375
        %2377 = vmatmul.bf16.gmra.mxu0 %v2303
        %v2378 = vpop.f32.mrf.mxu0
        %v2379 = vadd.f32 0.0, %v2378
        %v2380 = vpop.f32.mrf.mxu0
        %v2381 = vadd.f32 0.0, %v2380
        %2382 = vmatmul.bf16.gmra.mxu0 %v2306
        %v2383 = vpop.f32.mrf.mxu0
        %v2384 = vadd.f32 0.0, %v2383
        %v2385 = vpop.f32.mrf.mxu0
        %v2386 = vadd.f32 0.0, %v2385
        %2387 = vmatmul.bf16.gmra.mxu0 %v2309
        %v2388 = vpop.f32.mrf.mxu0
        %v2389 = vadd.f32 0.0, %v2388
        %v2390 = vpop.f32.mrf.mxu0
        %v2391 = vadd.f32 0.0, %v2390
        %2392 = vmatmul.bf16.gmra.mxu0 %v2312
        %v2393 = vpop.f32.mrf.mxu0
        %v2394 = vadd.f32 0.0, %v2393
        %v2395 = vpop.f32.mrf.mxu0
        %v2396 = vadd.f32 0.0, %v2395
        %2397 = vmatmul.bf16.gmra.mxu0 %v2315
        %v2398 = vpop.f32.mrf.mxu0
        %v2399 = vadd.f32 0.0, %v2398
        %v2400 = vpop.f32.mrf.mxu0
        %v2401 = vadd.f32 0.0, %v2400
        %2402 = vmatmul.bf16.gmra.mxu0 %v2318
        %v2403 = vpop.f32.mrf.mxu0
        %v2404 = vadd.f32 0.0, %v2403
        %v2405 = vpop.f32.mrf.mxu0
        %v2406 = vadd.f32 0.0, %v2405
        %2407 = vmatmul.bf16.gmra.mxu0 %v2321
        %v2408 = vpop.f32.mrf.mxu0
        %v2409 = vadd.f32 0.0, %v2408
        %v2410 = vpop.f32.mrf.mxu0
        %v2411 = vadd.f32 0.0, %v2410
        %2412 = vmatmul.bf16.gmra.mxu0 %v2324
        %v2413 = vpop.f32.mrf.mxu0
        %v2414 = vadd.f32 0.0, %v2413
        %v2415 = vpop.f32.mrf.mxu0
        %v2416 = vadd.f32 0.0, %v2415
        %2417 = vdwg.mxu0
        %v2418 = vadd.f32 %v2196, %v2339
        %v2419 = vadd.f32 %v2197, %v2341
        %v2420 = vadd.f32 %v2198, %v2344
        %v2421 = vadd.f32 %v2199, %v2346
        %v2422 = vadd.f32 %v2200, %v2349
        %v2423 = vadd.f32 %v2201, %v2351
        %v2424 = vadd.f32 %v2202, %v2354
        %v2425 = vadd.f32 %v2203, %v2356
        %v2426 = vadd.f32 %v2204, %v2359
        %v2427 = vadd.f32 %v2205, %v2361
        %v2428 = vadd.f32 %v2206, %v2364
        %v2429 = vadd.f32 %v2207, %v2366
        %v2430 = vadd.f32 %v2208, %v2369
        %v2431 = vadd.f32 %v2209, %v2371
        %v2432 = vadd.f32 %v2210, %v2374
        %v2433 = vadd.f32 %v2211, %v2376
        %v2434 = vadd.f32 %v2212, %v2379
        %v2435 = vadd.f32 %v2213, %v2381
        %v2436 = vadd.f32 %v2214, %v2384
        %v2437 = vadd.f32 %v2215, %v2386
        %v2438 = vadd.f32 %v2216, %v2389
        %v2439 = vadd.f32 %v2217, %v2391
        %v2440 = vadd.f32 %v2218, %v2394
        %v2441 = vadd.f32 %v2219, %v2396
        %v2442 = vadd.f32 %v2220, %v2399
        %v2443 = vadd.f32 %v2221, %v2401
        %v2444 = vadd.f32 %v2222, %v2404
        %v2445 = vadd.f32 %v2223, %v2406
        %v2446 = vadd.f32 %v2224, %v2409
        %v2447 = vadd.f32 %v2225, %v2411
        %v2448 = vadd.f32 %v2226, %v2414
        %v2449 = vadd.f32 %v2227, %v2416
        %s2450 = scalar_lea.vmem [#allocation2], 48
        %v2451 = vld [vmem:[%s2450] sm:$0xff]
        %v2452 = vld [vmem:[%s2450 + $0x8] sm:$0xff]
        %v2453 = vld [vmem:[%s2450 + $0x18] sm:$0xff]
        %v2454 = vld [vmem:[%s2450 + $0x20] sm:$0xff]
        %v2455 = vld [vmem:[%s2450 + $0x30] sm:$0xff]
        %v2456 = vld [vmem:[%s2450 + $0x38] sm:$0xff]
        %v2457 = vld [vmem:[%s2450 + $0x48] sm:$0xff]
        %v2458 = vld [vmem:[%s2450 + $0x50] sm:$0xff]
        %v2459 = vld [vmem:[%s2450 + $0x60] sm:$0xff]
        %v2460 = vld [vmem:[%s2450 + $0x68] sm:$0xff]
        %v2461 = vld [vmem:[%s2450 + $0x78] sm:$0xff]
        %v2462 = vld [vmem:[%s2450 + $0x80] sm:$0xff]
        %v2463 = vld [vmem:[%s2450 + $0x90] sm:$0xff]
        %v2464 = vld [vmem:[%s2450 + $0x98] sm:$0xff]
        %v2465 = vld [vmem:[%s2450 + $0xa8] sm:$0xff]
        %v2466 = vld [vmem:[%s2450 + $0xb0] sm:$0xff]
        %v2467 = vld [vmem:[%s2450 + $0xc0] sm:$0xff]
        %v2468 = vld [vmem:[%s2450 + $0xc8] sm:$0xff]
        %v2469 = vld [vmem:[%s2450 + $0xd8] sm:$0xff]
        %v2470 = vld [vmem:[%s2450 + $0xe0] sm:$0xff]
        %v2471 = vld [vmem:[%s2450 + $0xf0] sm:$0xff]
        %v2472 = vld [vmem:[%s2450 + $0xf8] sm:$0xff]
        %v2473 = vld [vmem:[%s2450 + $0x108] sm:$0xff]
        %v2474 = vld [vmem:[%s2450 + $0x110] sm:$0xff]
        %v2475 = vld [vmem:[%s2450 + $0x120] sm:$0xff]
        %v2476 = vld [vmem:[%s2450 + $0x128] sm:$0xff]
        %v2477 = vld [vmem:[%s2450 + $0x138] sm:$0xff]
        %v2478 = vld [vmem:[%s2450 + $0x140] sm:$0xff]
        %v2479 = vld [vmem:[%s2450 + $0x150] sm:$0xff]
        %v2480 = vld [vmem:[%s2450 + $0x158] sm:$0xff]
        %v2481 = vld [vmem:[%s2450 + $0x168] sm:$0xff]
        %v2482 = vld [vmem:[%s2450 + $0x170] sm:$0xff]
        %v2483 = vpack.c.bf16 %v2452, %v2451
        %v2484 = vpack.c.bf16 %v2454, %v2453
        %v2485 = vpack.c.bf16 %v2456, %v2455
        %v2486 = vpack.c.bf16 %v2458, %v2457
        %v2487 = vpack.c.bf16 %v2460, %v2459
        %v2488 = vpack.c.bf16 %v2462, %v2461
        %v2489 = vpack.c.bf16 %v2464, %v2463
        %v2490 = vpack.c.bf16 %v2466, %v2465
        %v2491 = vpack.c.bf16 %v2468, %v2467
        %v2492 = vpack.c.bf16 %v2470, %v2469
        %v2493 = vpack.c.bf16 %v2472, %v2471
        %v2494 = vpack.c.bf16 %v2474, %v2473
        %v2495 = vpack.c.bf16 %v2476, %v2475
        %v2496 = vpack.c.bf16 %v2478, %v2477
        %v2497 = vpack.c.bf16 %v2480, %v2479
        %v2498 = vpack.c.bf16 %v2482, %v2481
        %s2499 = scalar_lea.vmem [#allocation10], 24
        %v2500 = vld [vmem:[%s2499] sm:$0xf]
        %v2502 = vsel %vm543, %v2483, 0
        %v2505 = vsel %vm543, %v2484, 0
        %v2508 = vsel %vm543, %v2485, 0
        %v2511 = vsel %vm543, %v2486, 0
        %v2514 = vsel %vm543, %v2487, 0
        %v2517 = vsel %vm543, %v2488, 0
        %v2520 = vsel %vm543, %v2489, 0
        %v2523 = vsel %vm543, %v2490, 0
        %v2526 = vsel %vm543, %v2491, 0
        %v2529 = vsel %vm543, %v2492, 0
        %v2532 = vsel %vm543, %v2493, 0
        %v2535 = vsel %vm543, %v2494, 0
        %v2538 = vsel %vm543, %v2495, 0
        %v2541 = vsel %vm543, %v2496, 0
        %v2544 = vsel %vm543, %v2497, 0
        %v2547 = vsel %vm543, %v2498, 0
        %v2550 = vsel %vm1329, %v2500, 0
        %2552 = vmatpush.bf16.msra.mxu0 0
        %2553 = vmatpush.bf16.msra.mxu0 0
        %2554 = vmatpush.bf16.msra.mxu0 0
        %2555 = vmatpush.bf16.msra.mxu0 0
        %2556 = vmatpush.bf16.msra.mxu0 0
        %2557 = vmatpush.bf16.msra.mxu0 0
        %2558 = vmatpush.bf16.msra.mxu0 0
        %2559 = vmatpush.bf16.msra.mxu0 %v2550
        %2560 = vmatmul.bf16.gmra.mxu0 %v2502
        %v2561 = vpop.f32.mrf.mxu0
        %v2562 = vadd.f32 0.0, %v2561
        %v2563 = vpop.f32.mrf.mxu0
        %v2564 = vadd.f32 0.0, %v2563
        %2565 = vmatmul.bf16.gmra.mxu0 %v2505
        %v2566 = vpop.f32.mrf.mxu0
        %v2567 = vadd.f32 0.0, %v2566
        %v2568 = vpop.f32.mrf.mxu0
        %v2569 = vadd.f32 0.0, %v2568
        %2570 = vmatmul.bf16.gmra.mxu0 %v2508
        %v2571 = vpop.f32.mrf.mxu0
        %v2572 = vadd.f32 0.0, %v2571
        %v2573 = vpop.f32.mrf.mxu0
        %v2574 = vadd.f32 0.0, %v2573
        %2575 = vmatmul.bf16.gmra.mxu0 %v2511
        %v2576 = vpop.f32.mrf.mxu0
        %v2577 = vadd.f32 0.0, %v2576
        %v2578 = vpop.f32.mrf.mxu0
        %v2579 = vadd.f32 0.0, %v2578
        %2580 = vmatmul.bf16.gmra.mxu0 %v2514
        %v2581 = vpop.f32.mrf.mxu0
        %v2582 = vadd.f32 0.0, %v2581
        %v2583 = vpop.f32.mrf.mxu0
        %v2584 = vadd.f32 0.0, %v2583
        %2585 = vmatmul.bf16.gmra.mxu0 %v2517
        %v2586 = vpop.f32.mrf.mxu0
        %v2587 = vadd.f32 0.0, %v2586
        %v2588 = vpop.f32.mrf.mxu0
        %v2589 = vadd.f32 0.0, %v2588
        %2590 = vmatmul.bf16.gmra.mxu0 %v2520
        %v2591 = vpop.f32.mrf.mxu0
        %v2592 = vadd.f32 0.0, %v2591
        %v2593 = vpop.f32.mrf.mxu0
        %v2594 = vadd.f32 0.0, %v2593
        %2595 = vmatmul.bf16.gmra.mxu0 %v2523
        %v2596 = vpop.f32.mrf.mxu0
        %v2597 = vadd.f32 0.0, %v2596
        %v2598 = vpop.f32.mrf.mxu0
        %v2599 = vadd.f32 0.0, %v2598
        %2600 = vmatmul.bf16.gmra.mxu0 %v2526
        %v2601 = vpop.f32.mrf.mxu0
        %v2602 = vadd.f32 0.0, %v2601
        %v2603 = vpop.f32.mrf.mxu0
        %v2604 = vadd.f32 0.0, %v2603
        %2605 = vmatmul.bf16.gmra.mxu0 %v2529
        %v2606 = vpop.f32.mrf.mxu0
        %v2607 = vadd.f32 0.0, %v2606
        %v2608 = vpop.f32.mrf.mxu0
        %v2609 = vadd.f32 0.0, %v2608
        %2610 = vmatmul.bf16.gmra.mxu0 %v2532
        %v2611 = vpop.f32.mrf.mxu0
        %v2612 = vadd.f32 0.0, %v2611
        %v2613 = vpop.f32.mrf.mxu0
        %v2614 = vadd.f32 0.0, %v2613
        %2615 = vmatmul.bf16.gmra.mxu0 %v2535
        %v2616 = vpop.f32.mrf.mxu0
        %v2617 = vadd.f32 0.0, %v2616
        %v2618 = vpop.f32.mrf.mxu0
        %v2619 = vadd.f32 0.0, %v2618
        %2620 = vmatmul.bf16.gmra.mxu0 %v2538
        %v2621 = vpop.f32.mrf.mxu0
        %v2622 = vadd.f32 0.0, %v2621
        %v2623 = vpop.f32.mrf.mxu0
        %v2624 = vadd.f32 0.0, %v2623
        %2625 = vmatmul.bf16.gmra.mxu0 %v2541
        %v2626 = vpop.f32.mrf.mxu0
        %v2627 = vadd.f32 0.0, %v2626
        %v2628 = vpop.f32.mrf.mxu0
        %v2629 = vadd.f32 0.0, %v2628
        %2630 = vmatmul.bf16.gmra.mxu0 %v2544
        %v2631 = vpop.f32.mrf.mxu0
        %v2632 = vadd.f32 0.0, %v2631
        %v2633 = vpop.f32.mrf.mxu0
        %v2634 = vadd.f32 0.0, %v2633
        %2635 = vmatmul.bf16.gmra.mxu0 %v2547
        %v2636 = vpop.f32.mrf.mxu0
        %v2637 = vadd.f32 0.0, %v2636
        %v2638 = vpop.f32.mrf.mxu0
        %v2639 = vadd.f32 0.0, %v2638
        %2640 = vdwg.mxu0
        %v2641 = vadd.f32 %v2418, %v2562
        %v2642 = vadd.f32 %v2419, %v2564
        %v2643 = vadd.f32 %v2420, %v2567
        %v2644 = vadd.f32 %v2421, %v2569
        %v2645 = vadd.f32 %v2422, %v2572
        %v2646 = vadd.f32 %v2423, %v2574
        %v2647 = vadd.f32 %v2424, %v2577
        %v2648 = vadd.f32 %v2425, %v2579
        %v2649 = vadd.f32 %v2426, %v2582
        %v2650 = vadd.f32 %v2427, %v2584
        %v2651 = vadd.f32 %v2428, %v2587
        %v2652 = vadd.f32 %v2429, %v2589
        %v2653 = vadd.f32 %v2430, %v2592
        %v2654 = vadd.f32 %v2431, %v2594
        %v2655 = vadd.f32 %v2432, %v2597
        %v2656 = vadd.f32 %v2433, %v2599
        %v2657 = vadd.f32 %v2434, %v2602
        %v2658 = vadd.f32 %v2435, %v2604
        %v2659 = vadd.f32 %v2436, %v2607
        %v2660 = vadd.f32 %v2437, %v2609
        %v2661 = vadd.f32 %v2438, %v2612
        %v2662 = vadd.f32 %v2439, %v2614
        %v2663 = vadd.f32 %v2440, %v2617
        %v2664 = vadd.f32 %v2441, %v2619
        %v2665 = vadd.f32 %v2442, %v2622
        %v2666 = vadd.f32 %v2443, %v2624
        %v2667 = vadd.f32 %v2444, %v2627
        %v2668 = vadd.f32 %v2445, %v2629
        %v2669 = vadd.f32 %v2446, %v2632
        %v2670 = vadd.f32 %v2447, %v2634
        %v2671 = vadd.f32 %v2448, %v2637
        %v2672 = vadd.f32 %v2449, %v2639
        %v2673 = vld [vmem:[%s2450 + $0x1] sm:$0xff]
        %v2674 = vld [vmem:[%s2450 + $0x9] sm:$0xff]
        %v2675 = vld [vmem:[%s2450 + $0x19] sm:$0xff]
        %v2676 = vld [vmem:[%s2450 + $0x21] sm:$0xff]
        %v2677 = vld [vmem:[%s2450 + $0x31] sm:$0xff]
        %v2678 = vld [vmem:[%s2450 + $0x39] sm:$0xff]
        %v2679 = vld [vmem:[%s2450 + $0x49] sm:$0xff]
        %v2680 = vld [vmem:[%s2450 + $0x51] sm:$0xff]
        %v2681 = vld [vmem:[%s2450 + $0x61] sm:$0xff]
        %v2682 = vld [vmem:[%s2450 + $0x69] sm:$0xff]
        %v2683 = vld [vmem:[%s2450 + $0x79] sm:$0xff]
        %v2684 = vld [vmem:[%s2450 + $0x81] sm:$0xff]
        %v2685 = vld [vmem:[%s2450 + $0x91] sm:$0xff]
        %v2686 = vld [vmem:[%s2450 + $0x99] sm:$0xff]
        %v2687 = vld [vmem:[%s2450 + $0xa9] sm:$0xff]
        %v2688 = vld [vmem:[%s2450 + $0xb1] sm:$0xff]
        %v2689 = vld [vmem:[%s2450 + $0xc1] sm:$0xff]
        %v2690 = vld [vmem:[%s2450 + $0xc9] sm:$0xff]
        %v2691 = vld [vmem:[%s2450 + $0xd9] sm:$0xff]
        %v2692 = vld [vmem:[%s2450 + $0xe1] sm:$0xff]
        %v2693 = vld [vmem:[%s2450 + $0xf1] sm:$0xff]
        %v2694 = vld [vmem:[%s2450 + $0xf9] sm:$0xff]
        %v2695 = vld [vmem:[%s2450 + $0x109] sm:$0xff]
        %v2696 = vld [vmem:[%s2450 + $0x111] sm:$0xff]
        %v2697 = vld [vmem:[%s2450 + $0x121] sm:$0xff]
        %v2698 = vld [vmem:[%s2450 + $0x129] sm:$0xff]
        %v2699 = vld [vmem:[%s2450 + $0x139] sm:$0xff]
        %v2700 = vld [vmem:[%s2450 + $0x141] sm:$0xff]
        %v2701 = vld [vmem:[%s2450 + $0x151] sm:$0xff]
        %v2702 = vld [vmem:[%s2450 + $0x159] sm:$0xff]
        %v2703 = vld [vmem:[%s2450 + $0x169] sm:$0xff]
        %v2704 = vld [vmem:[%s2450 + $0x171] sm:$0xff]
        %v2705 = vpack.c.bf16 %v2674, %v2673
        %v2706 = vpack.c.bf16 %v2676, %v2675
        %v2707 = vpack.c.bf16 %v2678, %v2677
        %v2708 = vpack.c.bf16 %v2680, %v2679
        %v2709 = vpack.c.bf16 %v2682, %v2681
        %v2710 = vpack.c.bf16 %v2684, %v2683
        %v2711 = vpack.c.bf16 %v2686, %v2685
        %v2712 = vpack.c.bf16 %v2688, %v2687
        %v2713 = vpack.c.bf16 %v2690, %v2689
        %v2714 = vpack.c.bf16 %v2692, %v2691
        %v2715 = vpack.c.bf16 %v2694, %v2693
        %v2716 = vpack.c.bf16 %v2696, %v2695
        %v2717 = vpack.c.bf16 %v2698, %v2697
        %v2718 = vpack.c.bf16 %v2700, %v2699
        %v2719 = vpack.c.bf16 %v2702, %v2701
        %v2720 = vpack.c.bf16 %v2704, %v2703
        %s2721 = scalar_lea.vmem [#allocation10], 28
        %v2722 = vld [vmem:[%s2721] sm:$0xf]
        %v2724 = vsel %vm543, %v2705, 0
        %v2727 = vsel %vm543, %v2706, 0
        %v2730 = vsel %vm543, %v2707, 0
        %v2733 = vsel %vm543, %v2708, 0
        %v2736 = vsel %vm543, %v2709, 0
        %v2739 = vsel %vm543, %v2710, 0
        %v2742 = vsel %vm543, %v2711, 0
        %v2745 = vsel %vm543, %v2712, 0
        %v2748 = vsel %vm543, %v2713, 0
        %v2751 = vsel %vm543, %v2714, 0
        %v2754 = vsel %vm543, %v2715, 0
        %v2757 = vsel %vm543, %v2716, 0
        %v2760 = vsel %vm543, %v2717, 0
        %v2763 = vsel %vm543, %v2718, 0
        %v2766 = vsel %vm543, %v2719, 0
        %v2769 = vsel %vm543, %v2720, 0
        %v2772 = vsel %vm1329, %v2722, 0
        %2774 = vmatpush.bf16.msra.mxu0 0
        %2775 = vmatpush.bf16.msra.mxu0 0
        %2776 = vmatpush.bf16.msra.mxu0 0
        %2777 = vmatpush.bf16.msra.mxu0 0
        %2778 = vmatpush.bf16.msra.mxu0 0
        %2779 = vmatpush.bf16.msra.mxu0 0
        %2780 = vmatpush.bf16.msra.mxu0 0
        %2781 = vmatpush.bf16.msra.mxu0 %v2772
        %2782 = vmatmul.bf16.gmra.mxu0 %v2724
        %v2783 = vpop.f32.mrf.mxu0
        %v2784 = vadd.f32 0.0, %v2783
        %v2785 = vpop.f32.mrf.mxu0
        %v2786 = vadd.f32 0.0, %v2785
        %2787 = vmatmul.bf16.gmra.mxu0 %v2727
        %v2788 = vpop.f32.mrf.mxu0
        %v2789 = vadd.f32 0.0, %v2788
        %v2790 = vpop.f32.mrf.mxu0
        %v2791 = vadd.f32 0.0, %v2790
        %2792 = vmatmul.bf16.gmra.mxu0 %v2730
        %v2793 = vpop.f32.mrf.mxu0
        %v2794 = vadd.f32 0.0, %v2793
        %v2795 = vpop.f32.mrf.mxu0
        %v2796 = vadd.f32 0.0, %v2795
        %2797 = vmatmul.bf16.gmra.mxu0 %v2733
        %v2798 = vpop.f32.mrf.mxu0
        %v2799 = vadd.f32 0.0, %v2798
        %v2800 = vpop.f32.mrf.mxu0
        %v2801 = vadd.f32 0.0, %v2800
        %2802 = vmatmul.bf16.gmra.mxu0 %v2736
        %v2803 = vpop.f32.mrf.mxu0
        %v2804 = vadd.f32 0.0, %v2803
        %v2805 = vpop.f32.mrf.mxu0
        %v2806 = vadd.f32 0.0, %v2805
        %2807 = vmatmul.bf16.gmra.mxu0 %v2739
        %v2808 = vpop.f32.mrf.mxu0
        %v2809 = vadd.f32 0.0, %v2808
        %v2810 = vpop.f32.mrf.mxu0
        %v2811 = vadd.f32 0.0, %v2810
        %2812 = vmatmul.bf16.gmra.mxu0 %v2742
        %v2813 = vpop.f32.mrf.mxu0
        %v2814 = vadd.f32 0.0, %v2813
        %v2815 = vpop.f32.mrf.mxu0
        %v2816 = vadd.f32 0.0, %v2815
        %2817 = vmatmul.bf16.gmra.mxu0 %v2745
        %v2818 = vpop.f32.mrf.mxu0
        %v2819 = vadd.f32 0.0, %v2818
        %v2820 = vpop.f32.mrf.mxu0
        %v2821 = vadd.f32 0.0, %v2820
        %2822 = vmatmul.bf16.gmra.mxu0 %v2748
        %v2823 = vpop.f32.mrf.mxu0
        %v2824 = vadd.f32 0.0, %v2823
        %v2825 = vpop.f32.mrf.mxu0
        %v2826 = vadd.f32 0.0, %v2825
        %2827 = vmatmul.bf16.gmra.mxu0 %v2751
        %v2828 = vpop.f32.mrf.mxu0
        %v2829 = vadd.f32 0.0, %v2828
        %v2830 = vpop.f32.mrf.mxu0
        %v2831 = vadd.f32 0.0, %v2830
        %2832 = vmatmul.bf16.gmra.mxu0 %v2754
        %v2833 = vpop.f32.mrf.mxu0
        %v2834 = vadd.f32 0.0, %v2833
        %v2835 = vpop.f32.mrf.mxu0
        %v2836 = vadd.f32 0.0, %v2835
        %2837 = vmatmul.bf16.gmra.mxu0 %v2757
        %v2838 = vpop.f32.mrf.mxu0
        %v2839 = vadd.f32 0.0, %v2838
        %v2840 = vpop.f32.mrf.mxu0
        %v2841 = vadd.f32 0.0, %v2840
        %2842 = vmatmul.bf16.gmra.mxu0 %v2760
        %v2843 = vpop.f32.mrf.mxu0
        %v2844 = vadd.f32 0.0, %v2843
        %v2845 = vpop.f32.mrf.mxu0
        %v2846 = vadd.f32 0.0, %v2845
        %2847 = vmatmul.bf16.gmra.mxu0 %v2763
        %v2848 = vpop.f32.mrf.mxu0
        %v2849 = vadd.f32 0.0, %v2848
        %v2850 = vpop.f32.mrf.mxu0
        %v2851 = vadd.f32 0.0, %v2850
        %2852 = vmatmul.bf16.gmra.mxu0 %v2766
        %v2853 = vpop.f32.mrf.mxu0
        %v2854 = vadd.f32 0.0, %v2853
        %v2855 = vpop.f32.mrf.mxu0
        %v2856 = vadd.f32 0.0, %v2855
        %2857 = vmatmul.bf16.gmra.mxu0 %v2769
        %v2858 = vpop.f32.mrf.mxu0
        %v2859 = vadd.f32 0.0, %v2858
        %v2860 = vpop.f32.mrf.mxu0
        %v2861 = vadd.f32 0.0, %v2860
        %2862 = vdwg.mxu0
        %v2863 = vadd.f32 %v2641, %v2784
        %v2864 = vadd.f32 %v2642, %v2786
        %v2865 = vadd.f32 %v2643, %v2789
        %v2866 = vadd.f32 %v2644, %v2791
        %v2867 = vadd.f32 %v2645, %v2794
        %v2868 = vadd.f32 %v2646, %v2796
        %v2869 = vadd.f32 %v2647, %v2799
        %v2870 = vadd.f32 %v2648, %v2801
        %v2871 = vadd.f32 %v2649, %v2804
        %v2872 = vadd.f32 %v2650, %v2806
        %v2873 = vadd.f32 %v2651, %v2809
        %v2874 = vadd.f32 %v2652, %v2811
        %v2875 = vadd.f32 %v2653, %v2814
        %v2876 = vadd.f32 %v2654, %v2816
        %v2877 = vadd.f32 %v2655, %v2819
        %v2878 = vadd.f32 %v2656, %v2821
        %v2879 = vadd.f32 %v2657, %v2824
        %v2880 = vadd.f32 %v2658, %v2826
        %v2881 = vadd.f32 %v2659, %v2829
        %v2882 = vadd.f32 %v2660, %v2831
        %v2883 = vadd.f32 %v2661, %v2834
        %v2884 = vadd.f32 %v2662, %v2836
        %v2885 = vadd.f32 %v2663, %v2839
        %v2886 = vadd.f32 %v2664, %v2841
        %v2887 = vadd.f32 %v2665, %v2844
        %v2888 = vadd.f32 %v2666, %v2846
        %v2889 = vadd.f32 %v2667, %v2849
        %v2890 = vadd.f32 %v2668, %v2851
        %v2891 = vadd.f32 %v2669, %v2854
        %v2892 = vadd.f32 %v2670, %v2856
        %v2893 = vadd.f32 %v2671, %v2859
        %v2894 = vadd.f32 %v2672, %v2861
        %v2895 = vld [vmem:[%s2450 + $0x2] sm:$0xff]
        %v2896 = vld [vmem:[%s2450 + $0xa] sm:$0xff]
        %v2897 = vld [vmem:[%s2450 + $0x1a] sm:$0xff]
        %v2898 = vld [vmem:[%s2450 + $0x22] sm:$0xff]
        %v2899 = vld [vmem:[%s2450 + $0x32] sm:$0xff]
        %v2900 = vld [vmem:[%s2450 + $0x3a] sm:$0xff]
        %v2901 = vld [vmem:[%s2450 + $0x4a] sm:$0xff]
        %v2902 = vld [vmem:[%s2450 + $0x52] sm:$0xff]
        %v2903 = vld [vmem:[%s2450 + $0x62] sm:$0xff]
        %v2904 = vld [vmem:[%s2450 + $0x6a] sm:$0xff]
        %v2905 = vld [vmem:[%s2450 + $0x7a] sm:$0xff]
        %v2906 = vld [vmem:[%s2450 + $0x82] sm:$0xff]
        %v2907 = vld [vmem:[%s2450 + $0x92] sm:$0xff]
        %v2908 = vld [vmem:[%s2450 + $0x9a] sm:$0xff]
        %v2909 = vld [vmem:[%s2450 + $0xaa] sm:$0xff]
        %v2910 = vld [vmem:[%s2450 + $0xb2] sm:$0xff]
        %v2911 = vld [vmem:[%s2450 + $0xc2] sm:$0xff]
        %v2912 = vld [vmem:[%s2450 + $0xca] sm:$0xff]
        %v2913 = vld [vmem:[%s2450 + $0xda] sm:$0xff]
        %v2914 = vld [vmem:[%s2450 + $0xe2] sm:$0xff]
        %v2915 = vld [vmem:[%s2450 + $0xf2] sm:$0xff]
        %v2916 = vld [vmem:[%s2450 + $0xfa] sm:$0xff]
        %v2917 = vld [vmem:[%s2450 + $0x10a] sm:$0xff]
        %v2918 = vld [vmem:[%s2450 + $0x112] sm:$0xff]
        %v2919 = vld [vmem:[%s2450 + $0x122] sm:$0xff]
        %v2920 = vld [vmem:[%s2450 + $0x12a] sm:$0xff]
        %v2921 = vld [vmem:[%s2450 + $0x13a] sm:$0xff]
        %v2922 = vld [vmem:[%s2450 + $0x142] sm:$0xff]
        %v2923 = vld [vmem:[%s2450 + $0x152] sm:$0xff]
        %v2924 = vld [vmem:[%s2450 + $0x15a] sm:$0xff]
        %v2925 = vld [vmem:[%s2450 + $0x16a] sm:$0xff]
        %v2926 = vld [vmem:[%s2450 + $0x172] sm:$0xff]
        %v2927 = vpack.c.bf16 %v2896, %v2895
        %v2928 = vpack.c.bf16 %v2898, %v2897
        %v2929 = vpack.c.bf16 %v2900, %v2899
        %v2930 = vpack.c.bf16 %v2902, %v2901
        %v2931 = vpack.c.bf16 %v2904, %v2903
        %v2932 = vpack.c.bf16 %v2906, %v2905
        %v2933 = vpack.c.bf16 %v2908, %v2907
        %v2934 = vpack.c.bf16 %v2910, %v2909
        %v2935 = vpack.c.bf16 %v2912, %v2911
        %v2936 = vpack.c.bf16 %v2914, %v2913
        %v2937 = vpack.c.bf16 %v2916, %v2915
        %v2938 = vpack.c.bf16 %v2918, %v2917
        %v2939 = vpack.c.bf16 %v2920, %v2919
        %v2940 = vpack.c.bf16 %v2922, %v2921
        %v2941 = vpack.c.bf16 %v2924, %v2923
        %v2942 = vpack.c.bf16 %v2926, %v2925
        %s2943 = scalar_lea.vmem [#allocation10], 32
        %v2944 = vld [vmem:[%s2943] sm:$0xf]
        %v2946 = vsel %vm543, %v2927, 0
        %v2949 = vsel %vm543, %v2928, 0
        %v2952 = vsel %vm543, %v2929, 0
        %v2955 = vsel %vm543, %v2930, 0
        %v2958 = vsel %vm543, %v2931, 0
        %v2961 = vsel %vm543, %v2932, 0
        %v2964 = vsel %vm543, %v2933, 0
        %v2967 = vsel %vm543, %v2934, 0
        %v2970 = vsel %vm543, %v2935, 0
        %v2973 = vsel %vm543, %v2936, 0
        %v2976 = vsel %vm543, %v2937, 0
        %v2979 = vsel %vm543, %v2938, 0
        %v2982 = vsel %vm543, %v2939, 0
        %v2985 = vsel %vm543, %v2940, 0
        %v2988 = vsel %vm543, %v2941, 0
        %v2991 = vsel %vm543, %v2942, 0
        %v2994 = vsel %vm1329, %v2944, 0
        %2996 = vmatpush.bf16.msra.mxu0 0
        %2997 = vmatpush.bf16.msra.mxu0 0
        %2998 = vmatpush.bf16.msra.mxu0 0
        %2999 = vmatpush.bf16.msra.mxu0 0
        %3000 = vmatpush.bf16.msra.mxu0 0
        %3001 = vmatpush.bf16.msra.mxu0 0
        %3002 = vmatpush.bf16.msra.mxu0 0
        %3003 = vmatpush.bf16.msra.mxu0 %v2994
        %3004 = vmatmul.bf16.gmra.mxu0 %v2946
        %v3005 = vpop.f32.mrf.mxu0
        %v3006 = vadd.f32 0.0, %v3005
        %v3007 = vpop.f32.mrf.mxu0
        %v3008 = vadd.f32 0.0, %v3007
        %3009 = vmatmul.bf16.gmra.mxu0 %v2949
        %v3010 = vpop.f32.mrf.mxu0
        %v3011 = vadd.f32 0.0, %v3010
        %v3012 = vpop.f32.mrf.mxu0
        %v3013 = vadd.f32 0.0, %v3012
        %3014 = vmatmul.bf16.gmra.mxu0 %v2952
        %v3015 = vpop.f32.mrf.mxu0
        %v3016 = vadd.f32 0.0, %v3015
        %v3017 = vpop.f32.mrf.mxu0
        %v3018 = vadd.f32 0.0, %v3017
        %3019 = vmatmul.bf16.gmra.mxu0 %v2955
        %v3020 = vpop.f32.mrf.mxu0
        %v3021 = vadd.f32 0.0, %v3020
        %v3022 = vpop.f32.mrf.mxu0
        %v3023 = vadd.f32 0.0, %v3022
        %3024 = vmatmul.bf16.gmra.mxu0 %v2958
        %v3025 = vpop.f32.mrf.mxu0
        %v3026 = vadd.f32 0.0, %v3025
        %v3027 = vpop.f32.mrf.mxu0
        %v3028 = vadd.f32 0.0, %v3027
        %3029 = vmatmul.bf16.gmra.mxu0 %v2961
        %v3030 = vpop.f32.mrf.mxu0
        %v3031 = vadd.f32 0.0, %v3030
        %v3032 = vpop.f32.mrf.mxu0
        %v3033 = vadd.f32 0.0, %v3032
        %3034 = vmatmul.bf16.gmra.mxu0 %v2964
        %v3035 = vpop.f32.mrf.mxu0
        %v3036 = vadd.f32 0.0, %v3035
        %v3037 = vpop.f32.mrf.mxu0
        %v3038 = vadd.f32 0.0, %v3037
        %3039 = vmatmul.bf16.gmra.mxu0 %v2967
        %v3040 = vpop.f32.mrf.mxu0
        %v3041 = vadd.f32 0.0, %v3040
        %v3042 = vpop.f32.mrf.mxu0
        %v3043 = vadd.f32 0.0, %v3042
        %3044 = vmatmul.bf16.gmra.mxu0 %v2970
        %v3045 = vpop.f32.mrf.mxu0
        %v3046 = vadd.f32 0.0, %v3045
        %v3047 = vpop.f32.mrf.mxu0
        %v3048 = vadd.f32 0.0, %v3047
        %3049 = vmatmul.bf16.gmra.mxu0 %v2973
        %v3050 = vpop.f32.mrf.mxu0
        %v3051 = vadd.f32 0.0, %v3050
        %v3052 = vpop.f32.mrf.mxu0
        %v3053 = vadd.f32 0.0, %v3052
        %3054 = vmatmul.bf16.gmra.mxu0 %v2976
        %v3055 = vpop.f32.mrf.mxu0
        %v3056 = vadd.f32 0.0, %v3055
        %v3057 = vpop.f32.mrf.mxu0
        %v3058 = vadd.f32 0.0, %v3057
        %3059 = vmatmul.bf16.gmra.mxu0 %v2979
        %v3060 = vpop.f32.mrf.mxu0
        %v3061 = vadd.f32 0.0, %v3060
        %v3062 = vpop.f32.mrf.mxu0
        %v3063 = vadd.f32 0.0, %v3062
        %3064 = vmatmul.bf16.gmra.mxu0 %v2982
        %v3065 = vpop.f32.mrf.mxu0
        %v3066 = vadd.f32 0.0, %v3065
        %v3067 = vpop.f32.mrf.mxu0
        %v3068 = vadd.f32 0.0, %v3067
        %3069 = vmatmul.bf16.gmra.mxu0 %v2985
        %v3070 = vpop.f32.mrf.mxu0
        %v3071 = vadd.f32 0.0, %v3070
        %v3072 = vpop.f32.mrf.mxu0
        %v3073 = vadd.f32 0.0, %v3072
        %3074 = vmatmul.bf16.gmra.mxu0 %v2988
        %v3075 = vpop.f32.mrf.mxu0
        %v3076 = vadd.f32 0.0, %v3075
        %v3077 = vpop.f32.mrf.mxu0
        %v3078 = vadd.f32 0.0, %v3077
        %3079 = vmatmul.bf16.gmra.mxu0 %v2991
        %v3080 = vpop.f32.mrf.mxu0
        %v3081 = vadd.f32 0.0, %v3080
        %v3082 = vpop.f32.mrf.mxu0
        %v3083 = vadd.f32 0.0, %v3082
        %3084 = vdwg.mxu0
        %v3085 = vadd.f32 %v2863, %v3006
        %v3086 = vadd.f32 %v2864, %v3008
        %v3087 = vadd.f32 %v2865, %v3011
        %v3088 = vadd.f32 %v2866, %v3013
        %v3089 = vadd.f32 %v2867, %v3016
        %v3090 = vadd.f32 %v2868, %v3018
        %v3091 = vadd.f32 %v2869, %v3021
        %v3092 = vadd.f32 %v2870, %v3023
        %v3093 = vadd.f32 %v2871, %v3026
        %v3094 = vadd.f32 %v2872, %v3028
        %v3095 = vadd.f32 %v2873, %v3031
        %v3096 = vadd.f32 %v2874, %v3033
        %v3097 = vadd.f32 %v2875, %v3036
        %v3098 = vadd.f32 %v2876, %v3038
        %v3099 = vadd.f32 %v2877, %v3041
        %v3100 = vadd.f32 %v2878, %v3043
        %v3101 = vadd.f32 %v2879, %v3046
        %v3102 = vadd.f32 %v2880, %v3048
        %v3103 = vadd.f32 %v2881, %v3051
        %v3104 = vadd.f32 %v2882, %v3053
        %v3105 = vadd.f32 %v2883, %v3056
        %v3106 = vadd.f32 %v2884, %v3058
        %v3107 = vadd.f32 %v2885, %v3061
        %v3108 = vadd.f32 %v2886, %v3063
        %v3109 = vadd.f32 %v2887, %v3066
        %v3110 = vadd.f32 %v2888, %v3068
        %v3111 = vadd.f32 %v2889, %v3071
        %v3112 = vadd.f32 %v2890, %v3073
        %v3113 = vadd.f32 %v2891, %v3076
        %v3114 = vadd.f32 %v2892, %v3078
        %v3115 = vadd.f32 %v2893, %v3081
        %v3116 = vadd.f32 %v2894, %v3083
        %v3117 = vld [vmem:[#allocation3] sm:$0xff]
        %v3118 = vld [vmem:[#allocation3 + $0x8] sm:$0xff]
        %v3119 = vld [vmem:[#allocation3 + $0x18] sm:$0xff]
        %v3120 = vld [vmem:[#allocation3 + $0x20] sm:$0xff]
        %v3121 = vld [vmem:[#allocation3 + $0x30] sm:$0xff]
        %v3122 = vld [vmem:[#allocation3 + $0x38] sm:$0xff]
        %v3123 = vld [vmem:[#allocation3 + $0x48] sm:$0xff]
        %v3124 = vld [vmem:[#allocation3 + $0x50] sm:$0xff]
        %v3125 = vld [vmem:[#allocation3 + $0x60] sm:$0xff]
        %v3126 = vld [vmem:[#allocation3 + $0x68] sm:$0xff]
        %v3127 = vld [vmem:[#allocation3 + $0x78] sm:$0xff]
        %v3128 = vld [vmem:[#allocation3 + $0x80] sm:$0xff]
        %v3129 = vld [vmem:[#allocation3 + $0x90] sm:$0xff]
        %v3130 = vld [vmem:[#allocation3 + $0x98] sm:$0xff]
        %v3131 = vld [vmem:[#allocation3 + $0xa8] sm:$0xff]
        %v3132 = vld [vmem:[#allocation3 + $0xb0] sm:$0xff]
        %v3133 = vld [vmem:[#allocation3 + $0xc0] sm:$0xff]
        %v3134 = vld [vmem:[#allocation3 + $0xc8] sm:$0xff]
        %v3135 = vld [vmem:[#allocation3 + $0xd8] sm:$0xff]
        %v3136 = vld [vmem:[#allocation3 + $0xe0] sm:$0xff]
        %v3137 = vld [vmem:[#allocation3 + $0xf0] sm:$0xff]
        %v3138 = vld [vmem:[#allocation3 + $0xf8] sm:$0xff]
        %v3139 = vld [vmem:[#allocation3 + $0x108] sm:$0xff]
        %v3140 = vld [vmem:[#allocation3 + $0x110] sm:$0xff]
        %v3141 = vld [vmem:[#allocation3 + $0x120] sm:$0xff]
        %v3142 = vld [vmem:[#allocation3 + $0x128] sm:$0xff]
        %v3143 = vld [vmem:[#allocation3 + $0x138] sm:$0xff]
        %v3144 = vld [vmem:[#allocation3 + $0x140] sm:$0xff]
        %v3145 = vld [vmem:[#allocation3 + $0x150] sm:$0xff]
        %v3146 = vld [vmem:[#allocation3 + $0x158] sm:$0xff]
        %v3147 = vld [vmem:[#allocation3 + $0x168] sm:$0xff]
        %v3148 = vld [vmem:[#allocation3 + $0x170] sm:$0xff]
        %v3149 = vpack.c.bf16 %v3118, %v3117
        %v3150 = vpack.c.bf16 %v3120, %v3119
        %v3151 = vpack.c.bf16 %v3122, %v3121
        %v3152 = vpack.c.bf16 %v3124, %v3123
        %v3153 = vpack.c.bf16 %v3126, %v3125
        %v3154 = vpack.c.bf16 %v3128, %v3127
        %v3155 = vpack.c.bf16 %v3130, %v3129
        %v3156 = vpack.c.bf16 %v3132, %v3131
        %v3157 = vpack.c.bf16 %v3134, %v3133
        %v3158 = vpack.c.bf16 %v3136, %v3135
        %v3159 = vpack.c.bf16 %v3138, %v3137
        %v3160 = vpack.c.bf16 %v3140, %v3139
        %v3161 = vpack.c.bf16 %v3142, %v3141
        %v3162 = vpack.c.bf16 %v3144, %v3143
        %v3163 = vpack.c.bf16 %v3146, %v3145
        %v3164 = vpack.c.bf16 %v3148, %v3147
        %v3165 = vld [vmem:[#allocation11] sm:$0xf]
        %v3166 = vld [vmem:[#allocation11 + $0x4] sm:$0xf]
        %v3167 = vld [vmem:[#allocation3 + $0x1] sm:$0xff]
        %v3168 = vld [vmem:[#allocation3 + $0x9] sm:$0xff]
        %v3169 = vld [vmem:[#allocation3 + $0x19] sm:$0xff]
        %v3170 = vld [vmem:[#allocation3 + $0x21] sm:$0xff]
        %v3171 = vld [vmem:[#allocation3 + $0x31] sm:$0xff]
        %v3172 = vld [vmem:[#allocation3 + $0x39] sm:$0xff]
        %v3173 = vld [vmem:[#allocation3 + $0x49] sm:$0xff]
        %v3174 = vld [vmem:[#allocation3 + $0x51] sm:$0xff]
        %v3175 = vld [vmem:[#allocation3 + $0x61] sm:$0xff]
        %v3176 = vld [vmem:[#allocation3 + $0x69] sm:$0xff]
        %v3177 = vld [vmem:[#allocation3 + $0x79] sm:$0xff]
        %v3178 = vld [vmem:[#allocation3 + $0x81] sm:$0xff]
        %v3179 = vld [vmem:[#allocation3 + $0x91] sm:$0xff]
        %v3180 = vld [vmem:[#allocation3 + $0x99] sm:$0xff]
        %v3181 = vld [vmem:[#allocation3 + $0xa9] sm:$0xff]
        %v3182 = vld [vmem:[#allocation3 + $0xb1] sm:$0xff]
        %v3183 = vld [vmem:[#allocation3 + $0xc1] sm:$0xff]
        %v3184 = vld [vmem:[#allocation3 + $0xc9] sm:$0xff]
        %v3185 = vld [vmem:[#allocation3 + $0xd9] sm:$0xff]
        %v3186 = vld [vmem:[#allocation3 + $0xe1] sm:$0xff]
        %v3187 = vld [vmem:[#allocation3 + $0xf1] sm:$0xff]
        %v3188 = vld [vmem:[#allocation3 + $0xf9] sm:$0xff]
        %v3189 = vld [vmem:[#allocation3 + $0x109] sm:$0xff]
        %v3190 = vld [vmem:[#allocation3 + $0x111] sm:$0xff]
        %v3191 = vld [vmem:[#allocation3 + $0x121] sm:$0xff]
        %v3192 = vld [vmem:[#allocation3 + $0x129] sm:$0xff]
        %v3193 = vld [vmem:[#allocation3 + $0x139] sm:$0xff]
        %v3194 = vld [vmem:[#allocation3 + $0x141] sm:$0xff]
        %v3195 = vld [vmem:[#allocation3 + $0x151] sm:$0xff]
        %v3196 = vld [vmem:[#allocation3 + $0x159] sm:$0xff]
        %v3197 = vld [vmem:[#allocation3 + $0x169] sm:$0xff]
        %v3198 = vld [vmem:[#allocation3 + $0x171] sm:$0xff]
        %v3199 = vpack.c.bf16 %v3168, %v3167
        %v3200 = vpack.c.bf16 %v3170, %v3169
        %v3201 = vpack.c.bf16 %v3172, %v3171
        %v3202 = vpack.c.bf16 %v3174, %v3173
        %v3203 = vpack.c.bf16 %v3176, %v3175
        %v3204 = vpack.c.bf16 %v3178, %v3177
        %v3205 = vpack.c.bf16 %v3180, %v3179
        %v3206 = vpack.c.bf16 %v3182, %v3181
        %v3207 = vpack.c.bf16 %v3184, %v3183
        %v3208 = vpack.c.bf16 %v3186, %v3185
        %v3209 = vpack.c.bf16 %v3188, %v3187
        %v3210 = vpack.c.bf16 %v3190, %v3189
        %v3211 = vpack.c.bf16 %v3192, %v3191
        %v3212 = vpack.c.bf16 %v3194, %v3193
        %v3213 = vpack.c.bf16 %v3196, %v3195
        %v3214 = vpack.c.bf16 %v3198, %v3197
        %s3215 = scalar_lea.vmem [#allocation11], 8
        %v3216 = vld [vmem:[%s3215] sm:$0xf]
        %v3217 = vld [vmem:[%s3215 + $0x4] sm:$0xf]
        %v3220 = vunpack.c.l.b16 %v3216
        %v3221 = vunpack.c.l.b16 %v3217
        %v3222 = vpack.c.b16 %v3221, %v3220
        %v3225 = vsel %vm599, %v3199, 0
        %v3228 = vsel %vm599, %v3200, 0
        %v3231 = vsel %vm599, %v3201, 0
        %v3234 = vsel %vm599, %v3202, 0
        %v3237 = vsel %vm599, %v3203, 0
        %v3240 = vsel %vm599, %v3204, 0
        %v3243 = vsel %vm599, %v3205, 0
        %v3246 = vsel %vm599, %v3206, 0
        %v3249 = vsel %vm599, %v3207, 0
        %v3252 = vsel %vm599, %v3208, 0
        %v3255 = vsel %vm599, %v3209, 0
        %v3258 = vsel %vm599, %v3210, 0
        %v3261 = vsel %vm599, %v3211, 0
        %v3264 = vsel %vm599, %v3212, 0
        %v3267 = vsel %vm599, %v3213, 0
        %v3270 = vsel %vm599, %v3214, 0
        %3272 = vmatpush.bf16.msra.mxu0 0
        %3273 = vmatpush.bf16.msra.mxu0 0
        %3274 = vmatpush.bf16.msra.mxu0 0
        %3275 = vmatpush.bf16.msra.mxu0 0
        %3276 = vmatpush.bf16.msra.mxu0 0
        %3277 = vmatpush.bf16.msra.mxu0 0
        %3278 = vmatpush.bf16.msra.mxu0 0
        %3279 = vmatpush.bf16.msra.mxu0 %v3222
        %3280 = vmatmul.bf16.gmra.mxu0 %v3225
        %v3281 = vpop.f32.mrf.mxu0
        %v3282 = vadd.f32 0.0, %v3281
        %v3283 = vpop.f32.mrf.mxu0
        %v3284 = vadd.f32 0.0, %v3283
        %3285 = vmatmul.bf16.gmra.mxu0 %v3228
        %v3286 = vpop.f32.mrf.mxu0
        %v3287 = vadd.f32 0.0, %v3286
        %v3288 = vpop.f32.mrf.mxu0
        %v3289 = vadd.f32 0.0, %v3288
        %3290 = vmatmul.bf16.gmra.mxu0 %v3231
        %v3291 = vpop.f32.mrf.mxu0
        %v3292 = vadd.f32 0.0, %v3291
        %v3293 = vpop.f32.mrf.mxu0
        %v3294 = vadd.f32 0.0, %v3293
        %3295 = vmatmul.bf16.gmra.mxu0 %v3234
        %v3296 = vpop.f32.mrf.mxu0
        %v3297 = vadd.f32 0.0, %v3296
        %v3298 = vpop.f32.mrf.mxu0
        %v3299 = vadd.f32 0.0, %v3298
        %3300 = vmatmul.bf16.gmra.mxu0 %v3237
        %v3301 = vpop.f32.mrf.mxu0
        %v3302 = vadd.f32 0.0, %v3301
        %v3303 = vpop.f32.mrf.mxu0
        %v3304 = vadd.f32 0.0, %v3303
        %3305 = vmatmul.bf16.gmra.mxu0 %v3240
        %v3306 = vpop.f32.mrf.mxu0
        %v3307 = vadd.f32 0.0, %v3306
        %v3308 = vpop.f32.mrf.mxu0
        %v3309 = vadd.f32 0.0, %v3308
        %3310 = vmatmul.bf16.gmra.mxu0 %v3243
        %v3311 = vpop.f32.mrf.mxu0
        %v3312 = vadd.f32 0.0, %v3311
        %v3313 = vpop.f32.mrf.mxu0
        %v3314 = vadd.f32 0.0, %v3313
        %3315 = vmatmul.bf16.gmra.mxu0 %v3246
        %v3316 = vpop.f32.mrf.mxu0
        %v3317 = vadd.f32 0.0, %v3316
        %v3318 = vpop.f32.mrf.mxu0
        %v3319 = vadd.f32 0.0, %v3318
        %3320 = vmatmul.bf16.gmra.mxu0 %v3249
        %v3321 = vpop.f32.mrf.mxu0
        %v3322 = vadd.f32 0.0, %v3321
        %v3323 = vpop.f32.mrf.mxu0
        %v3324 = vadd.f32 0.0, %v3323
        %3325 = vmatmul.bf16.gmra.mxu0 %v3252
        %v3326 = vpop.f32.mrf.mxu0
        %v3327 = vadd.f32 0.0, %v3326
        %v3328 = vpop.f32.mrf.mxu0
        %v3329 = vadd.f32 0.0, %v3328
        %3330 = vmatmul.bf16.gmra.mxu0 %v3255
        %v3331 = vpop.f32.mrf.mxu0
        %v3332 = vadd.f32 0.0, %v3331
        %v3333 = vpop.f32.mrf.mxu0
        %v3334 = vadd.f32 0.0, %v3333
        %3335 = vmatmul.bf16.gmra.mxu0 %v3258
        %v3336 = vpop.f32.mrf.mxu0
        %v3337 = vadd.f32 0.0, %v3336
        %v3338 = vpop.f32.mrf.mxu0
        %v3339 = vadd.f32 0.0, %v3338
        %3340 = vmatmul.bf16.gmra.mxu0 %v3261
        %v3341 = vpop.f32.mrf.mxu0
        %v3342 = vadd.f32 0.0, %v3341
        %v3343 = vpop.f32.mrf.mxu0
        %v3344 = vadd.f32 0.0, %v3343
        %3345 = vmatmul.bf16.gmra.mxu0 %v3264
        %v3346 = vpop.f32.mrf.mxu0
        %v3347 = vadd.f32 0.0, %v3346
        %v3348 = vpop.f32.mrf.mxu0
        %v3349 = vadd.f32 0.0, %v3348
        %3350 = vmatmul.bf16.gmra.mxu0 %v3267
        %v3351 = vpop.f32.mrf.mxu0
        %v3352 = vadd.f32 0.0, %v3351
        %v3353 = vpop.f32.mrf.mxu0
        %v3354 = vadd.f32 0.0, %v3353
        %3355 = vmatmul.bf16.gmra.mxu0 %v3270
        %v3356 = vpop.f32.mrf.mxu0
        %v3357 = vadd.f32 0.0, %v3356
        %v3358 = vpop.f32.mrf.mxu0
        %v3359 = vadd.f32 0.0, %v3358
        %3360 = vdwg.mxu0
        %v3363 = vunpack.c.l.b16 %v3165
        %v3364 = vunpack.c.l.b16 %v3166
        %v3365 = vpack.c.b16 %v3364, %v3363
        %v3368 = vsel %vm599, %v3149, 0
        %v3371 = vsel %vm599, %v3150, 0
        %v3374 = vsel %vm599, %v3151, 0
        %v3377 = vsel %vm599, %v3152, 0
        %v3380 = vsel %vm599, %v3153, 0
        %v3383 = vsel %vm599, %v3154, 0
        %v3386 = vsel %vm599, %v3155, 0
        %v3389 = vsel %vm599, %v3156, 0
        %v3392 = vsel %vm599, %v3157, 0
        %v3395 = vsel %vm599, %v3158, 0
        %v3398 = vsel %vm599, %v3159, 0
        %v3401 = vsel %vm599, %v3160, 0
        %v3404 = vsel %vm599, %v3161, 0
        %v3407 = vsel %vm599, %v3162, 0
        %v3410 = vsel %vm599, %v3163, 0
        %v3413 = vsel %vm599, %v3164, 0
        %3415 = vmatpush.bf16.msra.mxu0 0
        %3416 = vmatpush.bf16.msra.mxu0 0
        %3417 = vmatpush.bf16.msra.mxu0 0
        %3418 = vmatpush.bf16.msra.mxu0 0
        %3419 = vmatpush.bf16.msra.mxu0 0
        %3420 = vmatpush.bf16.msra.mxu0 0
        %3421 = vmatpush.bf16.msra.mxu0 0
        %3422 = vmatpush.bf16.msra.mxu0 %v3365
        %3423 = vmatmul.bf16.gmra.mxu0 %v3368
        %v3424 = vpop.f32.mrf.mxu0
        %v3425 = vadd.f32 %v3282, %v3424
        %v3426 = vpop.f32.mrf.mxu0
        %v3427 = vadd.f32 %v3284, %v3426
        %3428 = vmatmul.bf16.gmra.mxu0 %v3371
        %v3429 = vpop.f32.mrf.mxu0
        %v3430 = vadd.f32 %v3287, %v3429
        %v3431 = vpop.f32.mrf.mxu0
        %v3432 = vadd.f32 %v3289, %v3431
        %3433 = vmatmul.bf16.gmra.mxu0 %v3374
        %v3434 = vpop.f32.mrf.mxu0
        %v3435 = vadd.f32 %v3292, %v3434
        %v3436 = vpop.f32.mrf.mxu0
        %v3437 = vadd.f32 %v3294, %v3436
        %3438 = vmatmul.bf16.gmra.mxu0 %v3377
        %v3439 = vpop.f32.mrf.mxu0
        %v3440 = vadd.f32 %v3297, %v3439
        %v3441 = vpop.f32.mrf.mxu0
        %v3442 = vadd.f32 %v3299, %v3441
        %3443 = vmatmul.bf16.gmra.mxu0 %v3380
        %v3444 = vpop.f32.mrf.mxu0
        %v3445 = vadd.f32 %v3302, %v3444
        %v3446 = vpop.f32.mrf.mxu0
        %v3447 = vadd.f32 %v3304, %v3446
        %3448 = vmatmul.bf16.gmra.mxu0 %v3383
        %v3449 = vpop.f32.mrf.mxu0
        %v3450 = vadd.f32 %v3307, %v3449
        %v3451 = vpop.f32.mrf.mxu0
        %v3452 = vadd.f32 %v3309, %v3451
        %3453 = vmatmul.bf16.gmra.mxu0 %v3386
        %v3454 = vpop.f32.mrf.mxu0
        %v3455 = vadd.f32 %v3312, %v3454
        %v3456 = vpop.f32.mrf.mxu0
        %v3457 = vadd.f32 %v3314, %v3456
        %3458 = vmatmul.bf16.gmra.mxu0 %v3389
        %v3459 = vpop.f32.mrf.mxu0
        %v3460 = vadd.f32 %v3317, %v3459
        %v3461 = vpop.f32.mrf.mxu0
        %v3462 = vadd.f32 %v3319, %v3461
        %3463 = vmatmul.bf16.gmra.mxu0 %v3392
        %v3464 = vpop.f32.mrf.mxu0
        %v3465 = vadd.f32 %v3322, %v3464
        %v3466 = vpop.f32.mrf.mxu0
        %v3467 = vadd.f32 %v3324, %v3466
        %3468 = vmatmul.bf16.gmra.mxu0 %v3395
        %v3469 = vpop.f32.mrf.mxu0
        %v3470 = vadd.f32 %v3327, %v3469
        %v3471 = vpop.f32.mrf.mxu0
        %v3472 = vadd.f32 %v3329, %v3471
        %3473 = vmatmul.bf16.gmra.mxu0 %v3398
        %v3474 = vpop.f32.mrf.mxu0
        %v3475 = vadd.f32 %v3332, %v3474
        %v3476 = vpop.f32.mrf.mxu0
        %v3477 = vadd.f32 %v3334, %v3476
        %3478 = vmatmul.bf16.gmra.mxu0 %v3401
        %v3479 = vpop.f32.mrf.mxu0
        %v3480 = vadd.f32 %v3337, %v3479
        %v3481 = vpop.f32.mrf.mxu0
        %v3482 = vadd.f32 %v3339, %v3481
        %3483 = vmatmul.bf16.gmra.mxu0 %v3404
        %v3484 = vpop.f32.mrf.mxu0
        %v3485 = vadd.f32 %v3342, %v3484
        %v3486 = vpop.f32.mrf.mxu0
        %v3487 = vadd.f32 %v3344, %v3486
        %3488 = vmatmul.bf16.gmra.mxu0 %v3407
        %v3489 = vpop.f32.mrf.mxu0
        %v3490 = vadd.f32 %v3347, %v3489
        %v3491 = vpop.f32.mrf.mxu0
        %v3492 = vadd.f32 %v3349, %v3491
        %3493 = vmatmul.bf16.gmra.mxu0 %v3410
        %v3494 = vpop.f32.mrf.mxu0
        %v3495 = vadd.f32 %v3352, %v3494
        %v3496 = vpop.f32.mrf.mxu0
        %v3497 = vadd.f32 %v3354, %v3496
        %3498 = vmatmul.bf16.gmra.mxu0 %v3413
        %v3499 = vpop.f32.mrf.mxu0
        %v3500 = vadd.f32 %v3357, %v3499
        %v3501 = vpop.f32.mrf.mxu0
        %v3502 = vadd.f32 %v3359, %v3501
        %3503 = vdwg.mxu0
        %v3504 = vld [vmem:[#allocation3 + $0x2] sm:$0xff]
        %v3505 = vld [vmem:[#allocation3 + $0xa] sm:$0xff]
        %v3506 = vld [vmem:[#allocation3 + $0x1a] sm:$0xff]
        %v3507 = vld [vmem:[#allocation3 + $0x22] sm:$0xff]
        %v3508 = vld [vmem:[#allocation3 + $0x32] sm:$0xff]
        %v3509 = vld [vmem:[#allocation3 + $0x3a] sm:$0xff]
        %v3510 = vld [vmem:[#allocation3 + $0x4a] sm:$0xff]
        %v3511 = vld [vmem:[#allocation3 + $0x52] sm:$0xff]
        %v3512 = vld [vmem:[#allocation3 + $0x62] sm:$0xff]
        %v3513 = vld [vmem:[#allocation3 + $0x6a] sm:$0xff]
        %v3514 = vld [vmem:[#allocation3 + $0x7a] sm:$0xff]
        %v3515 = vld [vmem:[#allocation3 + $0x82] sm:$0xff]
        %v3516 = vld [vmem:[#allocation3 + $0x92] sm:$0xff]
        %v3517 = vld [vmem:[#allocation3 + $0x9a] sm:$0xff]
        %v3518 = vld [vmem:[#allocation3 + $0xaa] sm:$0xff]
        %v3519 = vld [vmem:[#allocation3 + $0xb2] sm:$0xff]
        %v3520 = vld [vmem:[#allocation3 + $0xc2] sm:$0xff]
        %v3521 = vld [vmem:[#allocation3 + $0xca] sm:$0xff]
        %v3522 = vld [vmem:[#allocation3 + $0xda] sm:$0xff]
        %v3523 = vld [vmem:[#allocation3 + $0xe2] sm:$0xff]
        %v3524 = vld [vmem:[#allocation3 + $0xf2] sm:$0xff]
        %v3525 = vld [vmem:[#allocation3 + $0xfa] sm:$0xff]
        %v3526 = vld [vmem:[#allocation3 + $0x10a] sm:$0xff]
        %v3527 = vld [vmem:[#allocation3 + $0x112] sm:$0xff]
        %v3528 = vld [vmem:[#allocation3 + $0x122] sm:$0xff]
        %v3529 = vld [vmem:[#allocation3 + $0x12a] sm:$0xff]
        %v3530 = vld [vmem:[#allocation3 + $0x13a] sm:$0xff]
        %v3531 = vld [vmem:[#allocation3 + $0x142] sm:$0xff]
        %v3532 = vld [vmem:[#allocation3 + $0x152] sm:$0xff]
        %v3533 = vld [vmem:[#allocation3 + $0x15a] sm:$0xff]
        %v3534 = vld [vmem:[#allocation3 + $0x16a] sm:$0xff]
        %v3535 = vld [vmem:[#allocation3 + $0x172] sm:$0xff]
        %v3536 = vpack.c.bf16 %v3505, %v3504
        %v3537 = vpack.c.bf16 %v3507, %v3506
        %v3538 = vpack.c.bf16 %v3509, %v3508
        %v3539 = vpack.c.bf16 %v3511, %v3510
        %v3540 = vpack.c.bf16 %v3513, %v3512
        %v3541 = vpack.c.bf16 %v3515, %v3514
        %v3542 = vpack.c.bf16 %v3517, %v3516
        %v3543 = vpack.c.bf16 %v3519, %v3518
        %v3544 = vpack.c.bf16 %v3521, %v3520
        %v3545 = vpack.c.bf16 %v3523, %v3522
        %v3546 = vpack.c.bf16 %v3525, %v3524
        %v3547 = vpack.c.bf16 %v3527, %v3526
        %v3548 = vpack.c.bf16 %v3529, %v3528
        %v3549 = vpack.c.bf16 %v3531, %v3530
        %v3550 = vpack.c.bf16 %v3533, %v3532
        %v3551 = vpack.c.bf16 %v3535, %v3534
        %s3552 = scalar_lea.vmem [#allocation11], 16
        %v3553 = vld [vmem:[%s3552] sm:$0xf]
        %v3554 = vld [vmem:[%s3552 + $0x4] sm:$0xf]
        %v3557 = vunpack.c.l.b16 %v3553
        %v3558 = vunpack.c.l.b16 %v3554
        %v3559 = vpack.c.b16 %v3558, %v3557
        %v3562 = vsel %vm599, %v3536, 0
        %v3565 = vsel %vm599, %v3537, 0
        %v3568 = vsel %vm599, %v3538, 0
        %v3571 = vsel %vm599, %v3539, 0
        %v3574 = vsel %vm599, %v3540, 0
        %v3577 = vsel %vm599, %v3541, 0
        %v3580 = vsel %vm599, %v3542, 0
        %v3583 = vsel %vm599, %v3543, 0
        %v3586 = vsel %vm599, %v3544, 0
        %v3589 = vsel %vm599, %v3545, 0
        %v3592 = vsel %vm599, %v3546, 0
        %v3595 = vsel %vm599, %v3547, 0
        %v3598 = vsel %vm599, %v3548, 0
        %v3601 = vsel %vm599, %v3549, 0
        %v3604 = vsel %vm599, %v3550, 0
        %v3607 = vsel %vm599, %v3551, 0
        %3609 = vmatpush.bf16.msra.mxu0 0
        %3610 = vmatpush.bf16.msra.mxu0 0
        %3611 = vmatpush.bf16.msra.mxu0 0
        %3612 = vmatpush.bf16.msra.mxu0 0
        %3613 = vmatpush.bf16.msra.mxu0 0
        %3614 = vmatpush.bf16.msra.mxu0 0
        %3615 = vmatpush.bf16.msra.mxu0 0
        %3616 = vmatpush.bf16.msra.mxu0 %v3559
        %3617 = vmatmul.bf16.gmra.mxu0 %v3562
        %v3618 = vpop.f32.mrf.mxu0
        %v3619 = vadd.f32 0.0, %v3618
        %v3620 = vpop.f32.mrf.mxu0
        %v3621 = vadd.f32 0.0, %v3620
        %3622 = vmatmul.bf16.gmra.mxu0 %v3565
        %v3623 = vpop.f32.mrf.mxu0
        %v3624 = vadd.f32 0.0, %v3623
        %v3625 = vpop.f32.mrf.mxu0
        %v3626 = vadd.f32 0.0, %v3625
        %3627 = vmatmul.bf16.gmra.mxu0 %v3568
        %v3628 = vpop.f32.mrf.mxu0
        %v3629 = vadd.f32 0.0, %v3628
        %v3630 = vpop.f32.mrf.mxu0
        %v3631 = vadd.f32 0.0, %v3630
        %3632 = vmatmul.bf16.gmra.mxu0 %v3571
        %v3633 = vpop.f32.mrf.mxu0
        %v3634 = vadd.f32 0.0, %v3633
        %v3635 = vpop.f32.mrf.mxu0
        %v3636 = vadd.f32 0.0, %v3635
        %3637 = vmatmul.bf16.gmra.mxu0 %v3574
        %v3638 = vpop.f32.mrf.mxu0
        %v3639 = vadd.f32 0.0, %v3638
        %v3640 = vpop.f32.mrf.mxu0
        %v3641 = vadd.f32 0.0, %v3640
        %3642 = vmatmul.bf16.gmra.mxu0 %v3577
        %v3643 = vpop.f32.mrf.mxu0
        %v3644 = vadd.f32 0.0, %v3643
        %v3645 = vpop.f32.mrf.mxu0
        %v3646 = vadd.f32 0.0, %v3645
        %3647 = vmatmul.bf16.gmra.mxu0 %v3580
        %v3648 = vpop.f32.mrf.mxu0
        %v3649 = vadd.f32 0.0, %v3648
        %v3650 = vpop.f32.mrf.mxu0
        %v3651 = vadd.f32 0.0, %v3650
        %3652 = vmatmul.bf16.gmra.mxu0 %v3583
        %v3653 = vpop.f32.mrf.mxu0
        %v3654 = vadd.f32 0.0, %v3653
        %v3655 = vpop.f32.mrf.mxu0
        %v3656 = vadd.f32 0.0, %v3655
        %3657 = vmatmul.bf16.gmra.mxu0 %v3586
        %v3658 = vpop.f32.mrf.mxu0
        %v3659 = vadd.f32 0.0, %v3658
        %v3660 = vpop.f32.mrf.mxu0
        %v3661 = vadd.f32 0.0, %v3660
        %3662 = vmatmul.bf16.gmra.mxu0 %v3589
        %v3663 = vpop.f32.mrf.mxu0
        %v3664 = vadd.f32 0.0, %v3663
        %v3665 = vpop.f32.mrf.mxu0
        %v3666 = vadd.f32 0.0, %v3665
        %3667 = vmatmul.bf16.gmra.mxu0 %v3592
        %v3668 = vpop.f32.mrf.mxu0
        %v3669 = vadd.f32 0.0, %v3668
        %v3670 = vpop.f32.mrf.mxu0
        %v3671 = vadd.f32 0.0, %v3670
        %3672 = vmatmul.bf16.gmra.mxu0 %v3595
        %v3673 = vpop.f32.mrf.mxu0
        %v3674 = vadd.f32 0.0, %v3673
        %v3675 = vpop.f32.mrf.mxu0
        %v3676 = vadd.f32 0.0, %v3675
        %3677 = vmatmul.bf16.gmra.mxu0 %v3598
        %v3678 = vpop.f32.mrf.mxu0
        %v3679 = vadd.f32 0.0, %v3678
        %v3680 = vpop.f32.mrf.mxu0
        %v3681 = vadd.f32 0.0, %v3680
        %3682 = vmatmul.bf16.gmra.mxu0 %v3601
        %v3683 = vpop.f32.mrf.mxu0
        %v3684 = vadd.f32 0.0, %v3683
        %v3685 = vpop.f32.mrf.mxu0
        %v3686 = vadd.f32 0.0, %v3685
        %3687 = vmatmul.bf16.gmra.mxu0 %v3604
        %v3688 = vpop.f32.mrf.mxu0
        %v3689 = vadd.f32 0.0, %v3688
        %v3690 = vpop.f32.mrf.mxu0
        %v3691 = vadd.f32 0.0, %v3690
        %3692 = vmatmul.bf16.gmra.mxu0 %v3607
        %v3693 = vpop.f32.mrf.mxu0
        %v3694 = vadd.f32 0.0, %v3693
        %v3695 = vpop.f32.mrf.mxu0
        %v3696 = vadd.f32 0.0, %v3695
        %3697 = vdwg.mxu0
        %v3698 = vadd.f32 %v3425, %v3619
        %v3699 = vadd.f32 %v3427, %v3621
        %v3700 = vadd.f32 %v3430, %v3624
        %v3701 = vadd.f32 %v3432, %v3626
        %v3702 = vadd.f32 %v3435, %v3629
        %v3703 = vadd.f32 %v3437, %v3631
        %v3704 = vadd.f32 %v3440, %v3634
        %v3705 = vadd.f32 %v3442, %v3636
        %v3706 = vadd.f32 %v3445, %v3639
        %v3707 = vadd.f32 %v3447, %v3641
        %v3708 = vadd.f32 %v3450, %v3644
        %v3709 = vadd.f32 %v3452, %v3646
        %v3710 = vadd.f32 %v3455, %v3649
        %v3711 = vadd.f32 %v3457, %v3651
        %v3712 = vadd.f32 %v3460, %v3654
        %v3713 = vadd.f32 %v3462, %v3656
        %v3714 = vadd.f32 %v3465, %v3659
        %v3715 = vadd.f32 %v3467, %v3661
        %v3716 = vadd.f32 %v3470, %v3664
        %v3717 = vadd.f32 %v3472, %v3666
        %v3718 = vadd.f32 %v3475, %v3669
        %v3719 = vadd.f32 %v3477, %v3671
        %v3720 = vadd.f32 %v3480, %v3674
        %v3721 = vadd.f32 %v3482, %v3676
        %v3722 = vadd.f32 %v3485, %v3679
        %v3723 = vadd.f32 %v3487, %v3681
        %v3724 = vadd.f32 %v3490, %v3684
        %v3725 = vadd.f32 %v3492, %v3686
        %v3726 = vadd.f32 %v3495, %v3689
        %v3727 = vadd.f32 %v3497, %v3691
        %v3728 = vadd.f32 %v3500, %v3694
        %v3729 = vadd.f32 %v3502, %v3696
        %v3730 = vld [vmem:[%s1149] sm:$0xff]
        %v3731 = vld [vmem:[%s1149 + $0x8] sm:$0xff]
        %v3732 = vld [vmem:[%s1149 + $0x18] sm:$0xff]
        %v3733 = vld [vmem:[%s1149 + $0x20] sm:$0xff]
        %v3734 = vld [vmem:[%s1149 + $0x30] sm:$0xff]
        %v3735 = vld [vmem:[%s1149 + $0x38] sm:$0xff]
        %v3736 = vld [vmem:[%s1149 + $0x48] sm:$0xff]
        %v3737 = vld [vmem:[%s1149 + $0x50] sm:$0xff]
        %v3738 = vld [vmem:[%s1149 + $0x60] sm:$0xff]
        %v3739 = vld [vmem:[%s1149 + $0x68] sm:$0xff]
        %v3740 = vld [vmem:[%s1149 + $0x78] sm:$0xff]
        %v3741 = vld [vmem:[%s1149 + $0x80] sm:$0xff]
        %v3742 = vld [vmem:[%s1149 + $0x90] sm:$0xff]
        %v3743 = vld [vmem:[%s1149 + $0x98] sm:$0xff]
        %v3744 = vld [vmem:[%s1149 + $0xa8] sm:$0xff]
        %v3745 = vld [vmem:[%s1149 + $0xb0] sm:$0xff]
        %v3746 = vld [vmem:[%s1149 + $0xc0] sm:$0xff]
        %v3747 = vld [vmem:[%s1149 + $0xc8] sm:$0xff]
        %v3748 = vld [vmem:[%s1149 + $0xd8] sm:$0xff]
        %v3749 = vld [vmem:[%s1149 + $0xe0] sm:$0xff]
        %v3750 = vld [vmem:[%s1149 + $0xf0] sm:$0xff]
        %v3751 = vld [vmem:[%s1149 + $0xf8] sm:$0xff]
        %v3752 = vld [vmem:[%s1149 + $0x108] sm:$0xff]
        %v3753 = vld [vmem:[%s1149 + $0x110] sm:$0xff]
        %v3754 = vld [vmem:[%s1149 + $0x120] sm:$0xff]
        %v3755 = vld [vmem:[%s1149 + $0x128] sm:$0xff]
        %v3756 = vld [vmem:[%s1149 + $0x138] sm:$0xff]
        %v3757 = vld [vmem:[%s1149 + $0x140] sm:$0xff]
        %v3758 = vld [vmem:[%s1149 + $0x150] sm:$0xff]
        %v3759 = vld [vmem:[%s1149 + $0x158] sm:$0xff]
        %v3760 = vld [vmem:[%s1149 + $0x168] sm:$0xff]
        %v3761 = vld [vmem:[%s1149 + $0x170] sm:$0xff]
        %v3762 = vpack.c.bf16 %v3731, %v3730
        %v3763 = vpack.c.bf16 %v3733, %v3732
        %v3764 = vpack.c.bf16 %v3735, %v3734
        %v3765 = vpack.c.bf16 %v3737, %v3736
        %v3766 = vpack.c.bf16 %v3739, %v3738
        %v3767 = vpack.c.bf16 %v3741, %v3740
        %v3768 = vpack.c.bf16 %v3743, %v3742
        %v3769 = vpack.c.bf16 %v3745, %v3744
        %v3770 = vpack.c.bf16 %v3747, %v3746
        %v3771 = vpack.c.bf16 %v3749, %v3748
        %v3772 = vpack.c.bf16 %v3751, %v3750
        %v3773 = vpack.c.bf16 %v3753, %v3752
        %v3774 = vpack.c.bf16 %v3755, %v3754
        %v3775 = vpack.c.bf16 %v3757, %v3756
        %v3776 = vpack.c.bf16 %v3759, %v3758
        %v3777 = vpack.c.bf16 %v3761, %v3760
        %s3778 = scalar_lea.vmem [#allocation11], 24
        %v3779 = vld [vmem:[%s3778] sm:$0xf]
        %v3780 = vld [vmem:[%s3778 + $0x4] sm:$0xf]
        %v3783 = vunpack.c.l.b16 %v3779
        %v3784 = vunpack.c.l.b16 %v3780
        %v3785 = vpack.c.b16 %v3784, %v3783
        %v3788 = vsel %vm599, %v3762, 0
        %v3791 = vsel %vm599, %v3763, 0
        %v3794 = vsel %vm599, %v3764, 0
        %v3797 = vsel %vm599, %v3765, 0
        %v3800 = vsel %vm599, %v3766, 0
        %v3803 = vsel %vm599, %v3767, 0
        %v3806 = vsel %vm599, %v3768, 0
        %v3809 = vsel %vm599, %v3769, 0
        %v3812 = vsel %vm599, %v3770, 0
        %v3815 = vsel %vm599, %v3771, 0
        %v3818 = vsel %vm599, %v3772, 0
        %v3821 = vsel %vm599, %v3773, 0
        %v3824 = vsel %vm599, %v3774, 0
        %v3827 = vsel %vm599, %v3775, 0
        %v3830 = vsel %vm599, %v3776, 0
        %v3833 = vsel %vm599, %v3777, 0
        %3835 = vmatpush.bf16.msra.mxu0 0
        %3836 = vmatpush.bf16.msra.mxu0 0
        %3837 = vmatpush.bf16.msra.mxu0 0
        %3838 = vmatpush.bf16.msra.mxu0 0
        %3839 = vmatpush.bf16.msra.mxu0 0
        %3840 = vmatpush.bf16.msra.mxu0 0
        %3841 = vmatpush.bf16.msra.mxu0 0
        %3842 = vmatpush.bf16.msra.mxu0 %v3785
        %3843 = vmatmul.bf16.gmra.mxu0 %v3788
        %v3844 = vpop.f32.mrf.mxu0
        %v3845 = vadd.f32 0.0, %v3844
        %v3846 = vpop.f32.mrf.mxu0
        %v3847 = vadd.f32 0.0, %v3846
        %3848 = vmatmul.bf16.gmra.mxu0 %v3791
        %v3849 = vpop.f32.mrf.mxu0
        %v3850 = vadd.f32 0.0, %v3849
        %v3851 = vpop.f32.mrf.mxu0
        %v3852 = vadd.f32 0.0, %v3851
        %3853 = vmatmul.bf16.gmra.mxu0 %v3794
        %v3854 = vpop.f32.mrf.mxu0
        %v3855 = vadd.f32 0.0, %v3854
        %v3856 = vpop.f32.mrf.mxu0
        %v3857 = vadd.f32 0.0, %v3856
        %3858 = vmatmul.bf16.gmra.mxu0 %v3797
        %v3859 = vpop.f32.mrf.mxu0
        %v3860 = vadd.f32 0.0, %v3859
        %v3861 = vpop.f32.mrf.mxu0
        %v3862 = vadd.f32 0.0, %v3861
        %3863 = vmatmul.bf16.gmra.mxu0 %v3800
        %v3864 = vpop.f32.mrf.mxu0
        %v3865 = vadd.f32 0.0, %v3864
        %v3866 = vpop.f32.mrf.mxu0
        %v3867 = vadd.f32 0.0, %v3866
        %3868 = vmatmul.bf16.gmra.mxu0 %v3803
        %v3869 = vpop.f32.mrf.mxu0
        %v3870 = vadd.f32 0.0, %v3869
        %v3871 = vpop.f32.mrf.mxu0
        %v3872 = vadd.f32 0.0, %v3871
        %3873 = vmatmul.bf16.gmra.mxu0 %v3806
        %v3874 = vpop.f32.mrf.mxu0
        %v3875 = vadd.f32 0.0, %v3874
        %v3876 = vpop.f32.mrf.mxu0
        %v3877 = vadd.f32 0.0, %v3876
        %3878 = vmatmul.bf16.gmra.mxu0 %v3809
        %v3879 = vpop.f32.mrf.mxu0
        %v3880 = vadd.f32 0.0, %v3879
        %v3881 = vpop.f32.mrf.mxu0
        %v3882 = vadd.f32 0.0, %v3881
        %3883 = vmatmul.bf16.gmra.mxu0 %v3812
        %v3884 = vpop.f32.mrf.mxu0
        %v3885 = vadd.f32 0.0, %v3884
        %v3886 = vpop.f32.mrf.mxu0
        %v3887 = vadd.f32 0.0, %v3886
        %3888 = vmatmul.bf16.gmra.mxu0 %v3815
        %v3889 = vpop.f32.mrf.mxu0
        %v3890 = vadd.f32 0.0, %v3889
        %v3891 = vpop.f32.mrf.mxu0
        %v3892 = vadd.f32 0.0, %v3891
        %3893 = vmatmul.bf16.gmra.mxu0 %v3818
        %v3894 = vpop.f32.mrf.mxu0
        %v3895 = vadd.f32 0.0, %v3894
        %v3896 = vpop.f32.mrf.mxu0
        %v3897 = vadd.f32 0.0, %v3896
        %3898 = vmatmul.bf16.gmra.mxu0 %v3821
        %v3899 = vpop.f32.mrf.mxu0
        %v3900 = vadd.f32 0.0, %v3899
        %v3901 = vpop.f32.mrf.mxu0
        %v3902 = vadd.f32 0.0, %v3901
        %3903 = vmatmul.bf16.gmra.mxu0 %v3824
        %v3904 = vpop.f32.mrf.mxu0
        %v3905 = vadd.f32 0.0, %v3904
        %v3906 = vpop.f32.mrf.mxu0
        %v3907 = vadd.f32 0.0, %v3906
        %3908 = vmatmul.bf16.gmra.mxu0 %v3827
        %v3909 = vpop.f32.mrf.mxu0
        %v3910 = vadd.f32 0.0, %v3909
        %v3911 = vpop.f32.mrf.mxu0
        %v3912 = vadd.f32 0.0, %v3911
        %3913 = vmatmul.bf16.gmra.mxu0 %v3830
        %v3914 = vpop.f32.mrf.mxu0
        %v3915 = vadd.f32 0.0, %v3914
        %v3916 = vpop.f32.mrf.mxu0
        %v3917 = vadd.f32 0.0, %v3916
        %3918 = vmatmul.bf16.gmra.mxu0 %v3833
        %v3919 = vpop.f32.mrf.mxu0
        %v3920 = vadd.f32 0.0, %v3919
        %v3921 = vpop.f32.mrf.mxu0
        %v3922 = vadd.f32 0.0, %v3921
        %3923 = vdwg.mxu0
        %v3924 = vadd.f32 %v3698, %v3845
        %v3925 = vadd.f32 %v3699, %v3847
        %v3926 = vadd.f32 %v3700, %v3850
        %v3927 = vadd.f32 %v3701, %v3852
        %v3928 = vadd.f32 %v3702, %v3855
        %v3929 = vadd.f32 %v3703, %v3857
        %v3930 = vadd.f32 %v3704, %v3860
        %v3931 = vadd.f32 %v3705, %v3862
        %v3932 = vadd.f32 %v3706, %v3865
        %v3933 = vadd.f32 %v3707, %v3867
        %v3934 = vadd.f32 %v3708, %v3870
        %v3935 = vadd.f32 %v3709, %v3872
        %v3936 = vadd.f32 %v3710, %v3875
        %v3937 = vadd.f32 %v3711, %v3877
        %v3938 = vadd.f32 %v3712, %v3880
        %v3939 = vadd.f32 %v3713, %v3882
        %v3940 = vadd.f32 %v3714, %v3885
        %v3941 = vadd.f32 %v3715, %v3887
        %v3942 = vadd.f32 %v3716, %v3890
        %v3943 = vadd.f32 %v3717, %v3892
        %v3944 = vadd.f32 %v3718, %v3895
        %v3945 = vadd.f32 %v3719, %v3897
        %v3946 = vadd.f32 %v3720, %v3900
        %v3947 = vadd.f32 %v3721, %v3902
        %v3948 = vadd.f32 %v3722, %v3905
        %v3949 = vadd.f32 %v3723, %v3907
        %v3950 = vadd.f32 %v3724, %v3910
        %v3951 = vadd.f32 %v3725, %v3912
        %v3952 = vadd.f32 %v3726, %v3915
        %v3953 = vadd.f32 %v3727, %v3917
        %v3954 = vadd.f32 %v3728, %v3920
        %v3955 = vadd.f32 %v3729, %v3922
        %v3956 = vld [vmem:[%s1149 + $0x1] sm:$0xff]
        %v3957 = vld [vmem:[%s1149 + $0x9] sm:$0xff]
        %v3958 = vld [vmem:[%s1149 + $0x19] sm:$0xff]
        %v3959 = vld [vmem:[%s1149 + $0x21] sm:$0xff]
        %v3960 = vld [vmem:[%s1149 + $0x31] sm:$0xff]
        %v3961 = vld [vmem:[%s1149 + $0x39] sm:$0xff]
        %v3962 = vld [vmem:[%s1149 + $0x49] sm:$0xff]
        %v3963 = vld [vmem:[%s1149 + $0x51] sm:$0xff]
        %v3964 = vld [vmem:[%s1149 + $0x61] sm:$0xff]
        %v3965 = vld [vmem:[%s1149 + $0x69] sm:$0xff]
        %v3966 = vld [vmem:[%s1149 + $0x79] sm:$0xff]
        %v3967 = vld [vmem:[%s1149 + $0x81] sm:$0xff]
        %v3968 = vld [vmem:[%s1149 + $0x91] sm:$0xff]
        %v3969 = vld [vmem:[%s1149 + $0x99] sm:$0xff]
        %v3970 = vld [vmem:[%s1149 + $0xa9] sm:$0xff]
        %v3971 = vld [vmem:[%s1149 + $0xb1] sm:$0xff]
        %v3972 = vld [vmem:[%s1149 + $0xc1] sm:$0xff]
        %v3973 = vld [vmem:[%s1149 + $0xc9] sm:$0xff]
        %v3974 = vld [vmem:[%s1149 + $0xd9] sm:$0xff]
        %v3975 = vld [vmem:[%s1149 + $0xe1] sm:$0xff]
        %v3976 = vld [vmem:[%s1149 + $0xf1] sm:$0xff]
        %v3977 = vld [vmem:[%s1149 + $0xf9] sm:$0xff]
        %v3978 = vld [vmem:[%s1149 + $0x109] sm:$0xff]
        %v3979 = vld [vmem:[%s1149 + $0x111] sm:$0xff]
        %v3980 = vld [vmem:[%s1149 + $0x121] sm:$0xff]
        %v3981 = vld [vmem:[%s1149 + $0x129] sm:$0xff]
        %v3982 = vld [vmem:[%s1149 + $0x139] sm:$0xff]
        %v3983 = vld [vmem:[%s1149 + $0x141] sm:$0xff]
        %v3984 = vld [vmem:[%s1149 + $0x151] sm:$0xff]
        %v3985 = vld [vmem:[%s1149 + $0x159] sm:$0xff]
        %v3986 = vld [vmem:[%s1149 + $0x169] sm:$0xff]
        %v3987 = vld [vmem:[%s1149 + $0x171] sm:$0xff]
        %v3988 = vpack.c.bf16 %v3957, %v3956
        %v3989 = vpack.c.bf16 %v3959, %v3958
        %v3990 = vpack.c.bf16 %v3961, %v3960
        %v3991 = vpack.c.bf16 %v3963, %v3962
        %v3992 = vpack.c.bf16 %v3965, %v3964
        %v3993 = vpack.c.bf16 %v3967, %v3966
        %v3994 = vpack.c.bf16 %v3969, %v3968
        %v3995 = vpack.c.bf16 %v3971, %v3970
        %v3996 = vpack.c.bf16 %v3973, %v3972
        %v3997 = vpack.c.bf16 %v3975, %v3974
        %v3998 = vpack.c.bf16 %v3977, %v3976
        %v3999 = vpack.c.bf16 %v3979, %v3978
        %v4000 = vpack.c.bf16 %v3981, %v3980
        %v4001 = vpack.c.bf16 %v3983, %v3982
        %v4002 = vpack.c.bf16 %v3985, %v3984
        %v4003 = vpack.c.bf16 %v3987, %v3986
        %s4004 = scalar_lea.vmem [#allocation11], 32
        %v4005 = vld [vmem:[%s4004] sm:$0xf]
        %v4006 = vld [vmem:[%s4004 + $0x4] sm:$0xf]
        %v4009 = vunpack.c.l.b16 %v4005
        %v4010 = vunpack.c.l.b16 %v4006
        %v4011 = vpack.c.b16 %v4010, %v4009
        %v4014 = vsel %vm599, %v3988, 0
        %v4017 = vsel %vm599, %v3989, 0
        %v4020 = vsel %vm599, %v3990, 0
        %v4023 = vsel %vm599, %v3991, 0
        %v4026 = vsel %vm599, %v3992, 0
        %v4029 = vsel %vm599, %v3993, 0
        %v4032 = vsel %vm599, %v3994, 0
        %v4035 = vsel %vm599, %v3995, 0
        %v4038 = vsel %vm599, %v3996, 0
        %v4041 = vsel %vm599, %v3997, 0
        %v4044 = vsel %vm599, %v3998, 0
        %v4047 = vsel %vm599, %v3999, 0
        %v4050 = vsel %vm599, %v4000, 0
        %v4053 = vsel %vm599, %v4001, 0
        %v4056 = vsel %vm599, %v4002, 0
        %v4059 = vsel %vm599, %v4003, 0
        %4061 = vmatpush.bf16.msra.mxu0 0
        %4062 = vmatpush.bf16.msra.mxu0 0
        %4063 = vmatpush.bf16.msra.mxu0 0
        %4064 = vmatpush.bf16.msra.mxu0 0
        %4065 = vmatpush.bf16.msra.mxu0 0
        %4066 = vmatpush.bf16.msra.mxu0 0
        %4067 = vmatpush.bf16.msra.mxu0 0
        %4068 = vmatpush.bf16.msra.mxu0 %v4011
        %4069 = vmatmul.bf16.gmra.mxu0 %v4014
        %v4070 = vpop.f32.mrf.mxu0
        %v4071 = vadd.f32 0.0, %v4070
        %v4072 = vpop.f32.mrf.mxu0
        %v4073 = vadd.f32 0.0, %v4072
        %4074 = vmatmul.bf16.gmra.mxu0 %v4017
        %v4075 = vpop.f32.mrf.mxu0
        %v4076 = vadd.f32 0.0, %v4075
        %v4077 = vpop.f32.mrf.mxu0
        %v4078 = vadd.f32 0.0, %v4077
        %4079 = vmatmul.bf16.gmra.mxu0 %v4020
        %v4080 = vpop.f32.mrf.mxu0
        %v4081 = vadd.f32 0.0, %v4080
        %v4082 = vpop.f32.mrf.mxu0
        %v4083 = vadd.f32 0.0, %v4082
        %4084 = vmatmul.bf16.gmra.mxu0 %v4023
        %v4085 = vpop.f32.mrf.mxu0
        %v4086 = vadd.f32 0.0, %v4085
        %v4087 = vpop.f32.mrf.mxu0
        %v4088 = vadd.f32 0.0, %v4087
        %4089 = vmatmul.bf16.gmra.mxu0 %v4026
        %v4090 = vpop.f32.mrf.mxu0
        %v4091 = vadd.f32 0.0, %v4090
        %v4092 = vpop.f32.mrf.mxu0
        %v4093 = vadd.f32 0.0, %v4092
        %4094 = vmatmul.bf16.gmra.mxu0 %v4029
        %v4095 = vpop.f32.mrf.mxu0
        %v4096 = vadd.f32 0.0, %v4095
        %v4097 = vpop.f32.mrf.mxu0
        %v4098 = vadd.f32 0.0, %v4097
        %4099 = vmatmul.bf16.gmra.mxu0 %v4032
        %v4100 = vpop.f32.mrf.mxu0
        %v4101 = vadd.f32 0.0, %v4100
        %v4102 = vpop.f32.mrf.mxu0
        %v4103 = vadd.f32 0.0, %v4102
        %4104 = vmatmul.bf16.gmra.mxu0 %v4035
        %v4105 = vpop.f32.mrf.mxu0
        %v4106 = vadd.f32 0.0, %v4105
        %v4107 = vpop.f32.mrf.mxu0
        %v4108 = vadd.f32 0.0, %v4107
        %4109 = vmatmul.bf16.gmra.mxu0 %v4038
        %v4110 = vpop.f32.mrf.mxu0
        %v4111 = vadd.f32 0.0, %v4110
        %v4112 = vpop.f32.mrf.mxu0
        %v4113 = vadd.f32 0.0, %v4112
        %4114 = vmatmul.bf16.gmra.mxu0 %v4041
        %v4115 = vpop.f32.mrf.mxu0
        %v4116 = vadd.f32 0.0, %v4115
        %v4117 = vpop.f32.mrf.mxu0
        %v4118 = vadd.f32 0.0, %v4117
        %4119 = vmatmul.bf16.gmra.mxu0 %v4044
        %v4120 = vpop.f32.mrf.mxu0
        %v4121 = vadd.f32 0.0, %v4120
        %v4122 = vpop.f32.mrf.mxu0
        %v4123 = vadd.f32 0.0, %v4122
        %4124 = vmatmul.bf16.gmra.mxu0 %v4047
        %v4125 = vpop.f32.mrf.mxu0
        %v4126 = vadd.f32 0.0, %v4125
        %v4127 = vpop.f32.mrf.mxu0
        %v4128 = vadd.f32 0.0, %v4127
        %4129 = vmatmul.bf16.gmra.mxu0 %v4050
        %v4130 = vpop.f32.mrf.mxu0
        %v4131 = vadd.f32 0.0, %v4130
        %v4132 = vpop.f32.mrf.mxu0
        %v4133 = vadd.f32 0.0, %v4132
        %4134 = vmatmul.bf16.gmra.mxu0 %v4053
        %v4135 = vpop.f32.mrf.mxu0
        %v4136 = vadd.f32 0.0, %v4135
        %v4137 = vpop.f32.mrf.mxu0
        %v4138 = vadd.f32 0.0, %v4137
        %4139 = vmatmul.bf16.gmra.mxu0 %v4056
        %v4140 = vpop.f32.mrf.mxu0
        %v4141 = vadd.f32 0.0, %v4140
        %v4142 = vpop.f32.mrf.mxu0
        %v4143 = vadd.f32 0.0, %v4142
        %4144 = vmatmul.bf16.gmra.mxu0 %v4059
        %v4145 = vpop.f32.mrf.mxu0
        %v4146 = vadd.f32 0.0, %v4145
        %v4147 = vpop.f32.mrf.mxu0
        %v4148 = vadd.f32 0.0, %v4147
        %4149 = vdwg.mxu0
        %v4150 = vadd.f32 %v3924, %v4071
        %v4151 = vadd.f32 %v3925, %v4073
        %v4152 = vadd.f32 %v3926, %v4076
        %v4153 = vadd.f32 %v3927, %v4078
        %v4154 = vadd.f32 %v3928, %v4081
        %v4155 = vadd.f32 %v3929, %v4083
        %v4156 = vadd.f32 %v3930, %v4086
        %v4157 = vadd.f32 %v3931, %v4088
        %v4158 = vadd.f32 %v3932, %v4091
        %v4159 = vadd.f32 %v3933, %v4093
        %v4160 = vadd.f32 %v3934, %v4096
        %v4161 = vadd.f32 %v3935, %v4098
        %v4162 = vadd.f32 %v3936, %v4101
        %v4163 = vadd.f32 %v3937, %v4103
        %v4164 = vadd.f32 %v3938, %v4106
        %v4165 = vadd.f32 %v3939, %v4108
        %v4166 = vadd.f32 %v3940, %v4111
        %v4167 = vadd.f32 %v3941, %v4113
        %v4168 = vadd.f32 %v3942, %v4116
        %v4169 = vadd.f32 %v3943, %v4118
        %v4170 = vadd.f32 %v3944, %v4121
        %v4171 = vadd.f32 %v3945, %v4123
        %v4172 = vadd.f32 %v3946, %v4126
        %v4173 = vadd.f32 %v3947, %v4128
        %v4174 = vadd.f32 %v3948, %v4131
        %v4175 = vadd.f32 %v3949, %v4133
        %v4176 = vadd.f32 %v3950, %v4136
        %v4177 = vadd.f32 %v3951, %v4138
        %v4178 = vadd.f32 %v3952, %v4141
        %v4179 = vadd.f32 %v3953, %v4143
        %v4180 = vadd.f32 %v3954, %v4146
        %v4181 = vadd.f32 %v3955, %v4148
        %v4182 = vld [vmem:[%s1149 + $0x2] sm:$0xff]
        %v4183 = vld [vmem:[%s1149 + $0xa] sm:$0xff]
        %v4184 = vld [vmem:[%s1149 + $0x1a] sm:$0xff]
        %v4185 = vld [vmem:[%s1149 + $0x22] sm:$0xff]
        %v4186 = vld [vmem:[%s1149 + $0x32] sm:$0xff]
        %v4187 = vld [vmem:[%s1149 + $0x3a] sm:$0xff]
        %v4188 = vld [vmem:[%s1149 + $0x4a] sm:$0xff]
        %v4189 = vld [vmem:[%s1149 + $0x52] sm:$0xff]
        %v4190 = vld [vmem:[%s1149 + $0x62] sm:$0xff]
        %v4191 = vld [vmem:[%s1149 + $0x6a] sm:$0xff]
        %v4192 = vld [vmem:[%s1149 + $0x7a] sm:$0xff]
        %v4193 = vld [vmem:[%s1149 + $0x82] sm:$0xff]
        %v4194 = vld [vmem:[%s1149 + $0x92] sm:$0xff]
        %v4195 = vld [vmem:[%s1149 + $0x9a] sm:$0xff]
        %v4196 = vld [vmem:[%s1149 + $0xaa] sm:$0xff]
        %v4197 = vld [vmem:[%s1149 + $0xb2] sm:$0xff]
        %v4198 = vld [vmem:[%s1149 + $0xc2] sm:$0xff]
        %v4199 = vld [vmem:[%s1149 + $0xca] sm:$0xff]
        %v4200 = vld [vmem:[%s1149 + $0xda] sm:$0xff]
        %v4201 = vld [vmem:[%s1149 + $0xe2] sm:$0xff]
        %v4202 = vld [vmem:[%s1149 + $0xf2] sm:$0xff]
        %v4203 = vld [vmem:[%s1149 + $0xfa] sm:$0xff]
        %v4204 = vld [vmem:[%s1149 + $0x10a] sm:$0xff]
        %v4205 = vld [vmem:[%s1149 + $0x112] sm:$0xff]
        %v4206 = vld [vmem:[%s1149 + $0x122] sm:$0xff]
        %v4207 = vld [vmem:[%s1149 + $0x12a] sm:$0xff]
        %v4208 = vld [vmem:[%s1149 + $0x13a] sm:$0xff]
        %v4209 = vld [vmem:[%s1149 + $0x142] sm:$0xff]
        %v4210 = vld [vmem:[%s1149 + $0x152] sm:$0xff]
        %v4211 = vld [vmem:[%s1149 + $0x15a] sm:$0xff]
        %v4212 = vld [vmem:[%s1149 + $0x16a] sm:$0xff]
        %v4213 = vld [vmem:[%s1149 + $0x172] sm:$0xff]
        %v4214 = vpack.c.bf16 %v4183, %v4182
        %v4215 = vpack.c.bf16 %v4185, %v4184
        %v4216 = vpack.c.bf16 %v4187, %v4186
        %v4217 = vpack.c.bf16 %v4189, %v4188
        %v4218 = vpack.c.bf16 %v4191, %v4190
        %v4219 = vpack.c.bf16 %v4193, %v4192
        %v4220 = vpack.c.bf16 %v4195, %v4194
        %v4221 = vpack.c.bf16 %v4197, %v4196
        %v4222 = vpack.c.bf16 %v4199, %v4198
        %v4223 = vpack.c.bf16 %v4201, %v4200
        %v4224 = vpack.c.bf16 %v4203, %v4202
        %v4225 = vpack.c.bf16 %v4205, %v4204
        %v4226 = vpack.c.bf16 %v4207, %v4206
        %v4227 = vpack.c.bf16 %v4209, %v4208
        %v4228 = vpack.c.bf16 %v4211, %v4210
        %v4229 = vpack.c.bf16 %v4213, %v4212
        %s4230 = scalar_lea.vmem [#allocation11], 40
        %v4231 = vld [vmem:[%s4230] sm:$0xf]
        %v4232 = vld [vmem:[%s4230 + $0x4] sm:$0xf]
        %v4235 = vunpack.c.l.b16 %v4231
        %v4236 = vunpack.c.l.b16 %v4232
        %v4237 = vpack.c.b16 %v4236, %v4235
        %v4240 = vsel %vm599, %v4214, 0
        %v4243 = vsel %vm599, %v4215, 0
        %v4246 = vsel %vm599, %v4216, 0
        %v4249 = vsel %vm599, %v4217, 0
        %v4252 = vsel %vm599, %v4218, 0
        %v4255 = vsel %vm599, %v4219, 0
        %v4258 = vsel %vm599, %v4220, 0
        %v4261 = vsel %vm599, %v4221, 0
        %v4264 = vsel %vm599, %v4222, 0
        %v4267 = vsel %vm599, %v4223, 0
        %v4270 = vsel %vm599, %v4224, 0
        %v4273 = vsel %vm599, %v4225, 0
        %v4276 = vsel %vm599, %v4226, 0
        %v4279 = vsel %vm599, %v4227, 0
        %v4282 = vsel %vm599, %v4228, 0
        %v4285 = vsel %vm599, %v4229, 0
        %4287 = vmatpush.bf16.msra.mxu0 0
        %4288 = vmatpush.bf16.msra.mxu0 0
        %4289 = vmatpush.bf16.msra.mxu0 0
        %4290 = vmatpush.bf16.msra.mxu0 0
        %4291 = vmatpush.bf16.msra.mxu0 0
        %4292 = vmatpush.bf16.msra.mxu0 0
        %4293 = vmatpush.bf16.msra.mxu0 0
        %4294 = vmatpush.bf16.msra.mxu0 %v4237
        %4295 = vmatmul.bf16.gmra.mxu0 %v4240
        %v4296 = vpop.f32.mrf.mxu0
        %v4297 = vadd.f32 0.0, %v4296
        %v4298 = vpop.f32.mrf.mxu0
        %v4299 = vadd.f32 0.0, %v4298
        %4300 = vmatmul.bf16.gmra.mxu0 %v4243
        %v4301 = vpop.f32.mrf.mxu0
        %v4302 = vadd.f32 0.0, %v4301
        %v4303 = vpop.f32.mrf.mxu0
        %v4304 = vadd.f32 0.0, %v4303
        %4305 = vmatmul.bf16.gmra.mxu0 %v4246
        %v4306 = vpop.f32.mrf.mxu0
        %v4307 = vadd.f32 0.0, %v4306
        %v4308 = vpop.f32.mrf.mxu0
        %v4309 = vadd.f32 0.0, %v4308
        %4310 = vmatmul.bf16.gmra.mxu0 %v4249
        %v4311 = vpop.f32.mrf.mxu0
        %v4312 = vadd.f32 0.0, %v4311
        %v4313 = vpop.f32.mrf.mxu0
        %v4314 = vadd.f32 0.0, %v4313
        %4315 = vmatmul.bf16.gmra.mxu0 %v4252
        %v4316 = vpop.f32.mrf.mxu0
        %v4317 = vadd.f32 0.0, %v4316
        %v4318 = vpop.f32.mrf.mxu0
        %v4319 = vadd.f32 0.0, %v4318
        %4320 = vmatmul.bf16.gmra.mxu0 %v4255
        %v4321 = vpop.f32.mrf.mxu0
        %v4322 = vadd.f32 0.0, %v4321
        %v4323 = vpop.f32.mrf.mxu0
        %v4324 = vadd.f32 0.0, %v4323
        %4325 = vmatmul.bf16.gmra.mxu0 %v4258
        %v4326 = vpop.f32.mrf.mxu0
        %v4327 = vadd.f32 0.0, %v4326
        %v4328 = vpop.f32.mrf.mxu0
        %v4329 = vadd.f32 0.0, %v4328
        %4330 = vmatmul.bf16.gmra.mxu0 %v4261
        %v4331 = vpop.f32.mrf.mxu0
        %v4332 = vadd.f32 0.0, %v4331
        %v4333 = vpop.f32.mrf.mxu0
        %v4334 = vadd.f32 0.0, %v4333
        %4335 = vmatmul.bf16.gmra.mxu0 %v4264
        %v4336 = vpop.f32.mrf.mxu0
        %v4337 = vadd.f32 0.0, %v4336
        %v4338 = vpop.f32.mrf.mxu0
        %v4339 = vadd.f32 0.0, %v4338
        %4340 = vmatmul.bf16.gmra.mxu0 %v4267
        %v4341 = vpop.f32.mrf.mxu0
        %v4342 = vadd.f32 0.0, %v4341
        %v4343 = vpop.f32.mrf.mxu0
        %v4344 = vadd.f32 0.0, %v4343
        %4345 = vmatmul.bf16.gmra.mxu0 %v4270
        %v4346 = vpop.f32.mrf.mxu0
        %v4347 = vadd.f32 0.0, %v4346
        %v4348 = vpop.f32.mrf.mxu0
        %v4349 = vadd.f32 0.0, %v4348
        %4350 = vmatmul.bf16.gmra.mxu0 %v4273
        %v4351 = vpop.f32.mrf.mxu0
        %v4352 = vadd.f32 0.0, %v4351
        %v4353 = vpop.f32.mrf.mxu0
        %v4354 = vadd.f32 0.0, %v4353
        %4355 = vmatmul.bf16.gmra.mxu0 %v4276
        %v4356 = vpop.f32.mrf.mxu0
        %v4357 = vadd.f32 0.0, %v4356
        %v4358 = vpop.f32.mrf.mxu0
        %v4359 = vadd.f32 0.0, %v4358
        %4360 = vmatmul.bf16.gmra.mxu0 %v4279
        %v4361 = vpop.f32.mrf.mxu0
        %v4362 = vadd.f32 0.0, %v4361
        %v4363 = vpop.f32.mrf.mxu0
        %v4364 = vadd.f32 0.0, %v4363
        %4365 = vmatmul.bf16.gmra.mxu0 %v4282
        %v4366 = vpop.f32.mrf.mxu0
        %v4367 = vadd.f32 0.0, %v4366
        %v4368 = vpop.f32.mrf.mxu0
        %v4369 = vadd.f32 0.0, %v4368
        %4370 = vmatmul.bf16.gmra.mxu0 %v4285
        %v4371 = vpop.f32.mrf.mxu0
        %v4372 = vadd.f32 0.0, %v4371
        %v4373 = vpop.f32.mrf.mxu0
        %v4374 = vadd.f32 0.0, %v4373
        %4375 = vdwg.mxu0
        %v4376 = vadd.f32 %v4150, %v4297
        %v4377 = vadd.f32 %v4151, %v4299
        %v4378 = vadd.f32 %v4152, %v4302
        %v4379 = vadd.f32 %v4153, %v4304
        %v4380 = vadd.f32 %v4154, %v4307
        %v4381 = vadd.f32 %v4155, %v4309
        %v4382 = vadd.f32 %v4156, %v4312
        %v4383 = vadd.f32 %v4157, %v4314
        %v4384 = vadd.f32 %v4158, %v4317
        %v4385 = vadd.f32 %v4159, %v4319
        %v4386 = vadd.f32 %v4160, %v4322
        %v4387 = vadd.f32 %v4161, %v4324
        %v4388 = vadd.f32 %v4162, %v4327
        %v4389 = vadd.f32 %v4163, %v4329
        %v4390 = vadd.f32 %v4164, %v4332
        %v4391 = vadd.f32 %v4165, %v4334
        %v4392 = vadd.f32 %v4166, %v4337
        %v4393 = vadd.f32 %v4167, %v4339
        %v4394 = vadd.f32 %v4168, %v4342
        %v4395 = vadd.f32 %v4169, %v4344
        %v4396 = vadd.f32 %v4170, %v4347
        %v4397 = vadd.f32 %v4171, %v4349
        %v4398 = vadd.f32 %v4172, %v4352
        %v4399 = vadd.f32 %v4173, %v4354
        %v4400 = vadd.f32 %v4174, %v4357
        %v4401 = vadd.f32 %v4175, %v4359
        %v4402 = vadd.f32 %v4176, %v4362
        %v4403 = vadd.f32 %v4177, %v4364
        %v4404 = vadd.f32 %v4178, %v4367
        %v4405 = vadd.f32 %v4179, %v4369
        %v4406 = vadd.f32 %v4180, %v4372
        %v4407 = vadd.f32 %v4181, %v4374
        %s4408 = scalar_lea.vmem [#allocation3], 48
        %v4409 = vld [vmem:[%s4408] sm:$0xff]
        %v4410 = vld [vmem:[%s4408 + $0x8] sm:$0xff]
        %v4411 = vld [vmem:[%s4408 + $0x18] sm:$0xff]
        %v4412 = vld [vmem:[%s4408 + $0x20] sm:$0xff]
        %v4413 = vld [vmem:[%s4408 + $0x30] sm:$0xff]
        %v4414 = vld [vmem:[%s4408 + $0x38] sm:$0xff]
        %v4415 = vld [vmem:[%s4408 + $0x48] sm:$0xff]
        %v4416 = vld [vmem:[%s4408 + $0x50] sm:$0xff]
        %v4417 = vld [vmem:[%s4408 + $0x60] sm:$0xff]
        %v4418 = vld [vmem:[%s4408 + $0x68] sm:$0xff]
        %v4419 = vld [vmem:[%s4408 + $0x78] sm:$0xff]
        %v4420 = vld [vmem:[%s4408 + $0x80] sm:$0xff]
        %v4421 = vld [vmem:[%s4408 + $0x90] sm:$0xff]
        %v4422 = vld [vmem:[%s4408 + $0x98] sm:$0xff]
        %v4423 = vld [vmem:[%s4408 + $0xa8] sm:$0xff]
        %v4424 = vld [vmem:[%s4408 + $0xb0] sm:$0xff]
        %v4425 = vld [vmem:[%s4408 + $0xc0] sm:$0xff]
        %v4426 = vld [vmem:[%s4408 + $0xc8] sm:$0xff]
        %v4427 = vld [vmem:[%s4408 + $0xd8] sm:$0xff]
        %v4428 = vld [vmem:[%s4408 + $0xe0] sm:$0xff]
        %v4429 = vld [vmem:[%s4408 + $0xf0] sm:$0xff]
        %v4430 = vld [vmem:[%s4408 + $0xf8] sm:$0xff]
        %v4431 = vld [vmem:[%s4408 + $0x108] sm:$0xff]
        %v4432 = vld [vmem:[%s4408 + $0x110] sm:$0xff]
        %v4433 = vld [vmem:[%s4408 + $0x120] sm:$0xff]
        %v4434 = vld [vmem:[%s4408 + $0x128] sm:$0xff]
        %v4435 = vld [vmem:[%s4408 + $0x138] sm:$0xff]
        %v4436 = vld [vmem:[%s4408 + $0x140] sm:$0xff]
        %v4437 = vld [vmem:[%s4408 + $0x150] sm:$0xff]
        %v4438 = vld [vmem:[%s4408 + $0x158] sm:$0xff]
        %v4439 = vld [vmem:[%s4408 + $0x168] sm:$0xff]
        %v4440 = vld [vmem:[%s4408 + $0x170] sm:$0xff]
        %v4441 = vpack.c.bf16 %v4410, %v4409
        %v4442 = vpack.c.bf16 %v4412, %v4411
        %v4443 = vpack.c.bf16 %v4414, %v4413
        %v4444 = vpack.c.bf16 %v4416, %v4415
        %v4445 = vpack.c.bf16 %v4418, %v4417
        %v4446 = vpack.c.bf16 %v4420, %v4419
        %v4447 = vpack.c.bf16 %v4422, %v4421
        %v4448 = vpack.c.bf16 %v4424, %v4423
        %v4449 = vpack.c.bf16 %v4426, %v4425
        %v4450 = vpack.c.bf16 %v4428, %v4427
        %v4451 = vpack.c.bf16 %v4430, %v4429
        %v4452 = vpack.c.bf16 %v4432, %v4431
        %v4453 = vpack.c.bf16 %v4434, %v4433
        %v4454 = vpack.c.bf16 %v4436, %v4435
        %v4455 = vpack.c.bf16 %v4438, %v4437
        %v4456 = vpack.c.bf16 %v4440, %v4439
        %s4457 = scalar_lea.vmem [#allocation11], 48
        %v4458 = vld [vmem:[%s4457] sm:$0xf]
        %v4459 = vld [vmem:[%s4457 + $0x4] sm:$0xf]
        %v4462 = vunpack.c.l.b16 %v4458
        %v4463 = vunpack.c.l.b16 %v4459
        %v4464 = vpack.c.b16 %v4463, %v4462
        %v4467 = vsel %vm599, %v4441, 0
        %v4470 = vsel %vm599, %v4442, 0
        %v4473 = vsel %vm599, %v4443, 0
        %v4476 = vsel %vm599, %v4444, 0
        %v4479 = vsel %vm599, %v4445, 0
        %v4482 = vsel %vm599, %v4446, 0
        %v4485 = vsel %vm599, %v4447, 0
        %v4488 = vsel %vm599, %v4448, 0
        %v4491 = vsel %vm599, %v4449, 0
        %v4494 = vsel %vm599, %v4450, 0
        %v4497 = vsel %vm599, %v4451, 0
        %v4500 = vsel %vm599, %v4452, 0
        %v4503 = vsel %vm599, %v4453, 0
        %v4506 = vsel %vm599, %v4454, 0
        %v4509 = vsel %vm599, %v4455, 0
        %v4512 = vsel %vm599, %v4456, 0
        %4514 = vmatpush.bf16.msra.mxu0 0
        %4515 = vmatpush.bf16.msra.mxu0 0
        %4516 = vmatpush.bf16.msra.mxu0 0
        %4517 = vmatpush.bf16.msra.mxu0 0
        %4518 = vmatpush.bf16.msra.mxu0 0
        %4519 = vmatpush.bf16.msra.mxu0 0
        %4520 = vmatpush.bf16.msra.mxu0 0
        %4521 = vmatpush.bf16.msra.mxu0 %v4464
        %4522 = vmatmul.bf16.gmra.mxu0 %v4467
        %v4523 = vpop.f32.mrf.mxu0
        %v4524 = vadd.f32 0.0, %v4523
        %v4525 = vpop.f32.mrf.mxu0
        %v4526 = vadd.f32 0.0, %v4525
        %4527 = vmatmul.bf16.gmra.mxu0 %v4470
        %v4528 = vpop.f32.mrf.mxu0
        %v4529 = vadd.f32 0.0, %v4528
        %v4530 = vpop.f32.mrf.mxu0
        %v4531 = vadd.f32 0.0, %v4530
        %4532 = vmatmul.bf16.gmra.mxu0 %v4473
        %v4533 = vpop.f32.mrf.mxu0
        %v4534 = vadd.f32 0.0, %v4533
        %v4535 = vpop.f32.mrf.mxu0
        %v4536 = vadd.f32 0.0, %v4535
        %4537 = vmatmul.bf16.gmra.mxu0 %v4476
        %v4538 = vpop.f32.mrf.mxu0
        %v4539 = vadd.f32 0.0, %v4538
        %v4540 = vpop.f32.mrf.mxu0
        %v4541 = vadd.f32 0.0, %v4540
        %4542 = vmatmul.bf16.gmra.mxu0 %v4479
        %v4543 = vpop.f32.mrf.mxu0
        %v4544 = vadd.f32 0.0, %v4543
        %v4545 = vpop.f32.mrf.mxu0
        %v4546 = vadd.f32 0.0, %v4545
        %4547 = vmatmul.bf16.gmra.mxu0 %v4482
        %v4548 = vpop.f32.mrf.mxu0
        %v4549 = vadd.f32 0.0, %v4548
        %v4550 = vpop.f32.mrf.mxu0
        %v4551 = vadd.f32 0.0, %v4550
        %4552 = vmatmul.bf16.gmra.mxu0 %v4485
        %v4553 = vpop.f32.mrf.mxu0
        %v4554 = vadd.f32 0.0, %v4553
        %v4555 = vpop.f32.mrf.mxu0
        %v4556 = vadd.f32 0.0, %v4555
        %4557 = vmatmul.bf16.gmra.mxu0 %v4488
        %v4558 = vpop.f32.mrf.mxu0
        %v4559 = vadd.f32 0.0, %v4558
        %v4560 = vpop.f32.mrf.mxu0
        %v4561 = vadd.f32 0.0, %v4560
        %4562 = vmatmul.bf16.gmra.mxu0 %v4491
        %v4563 = vpop.f32.mrf.mxu0
        %v4564 = vadd.f32 0.0, %v4563
        %v4565 = vpop.f32.mrf.mxu0
        %v4566 = vadd.f32 0.0, %v4565
        %4567 = vmatmul.bf16.gmra.mxu0 %v4494
        %v4568 = vpop.f32.mrf.mxu0
        %v4569 = vadd.f32 0.0, %v4568
        %v4570 = vpop.f32.mrf.mxu0
        %v4571 = vadd.f32 0.0, %v4570
        %4572 = vmatmul.bf16.gmra.mxu0 %v4497
        %v4573 = vpop.f32.mrf.mxu0
        %v4574 = vadd.f32 0.0, %v4573
        %v4575 = vpop.f32.mrf.mxu0
        %v4576 = vadd.f32 0.0, %v4575
        %4577 = vmatmul.bf16.gmra.mxu0 %v4500
        %v4578 = vpop.f32.mrf.mxu0
        %v4579 = vadd.f32 0.0, %v4578
        %v4580 = vpop.f32.mrf.mxu0
        %v4581 = vadd.f32 0.0, %v4580
        %4582 = vmatmul.bf16.gmra.mxu0 %v4503
        %v4583 = vpop.f32.mrf.mxu0
        %v4584 = vadd.f32 0.0, %v4583
        %v4585 = vpop.f32.mrf.mxu0
        %v4586 = vadd.f32 0.0, %v4585
        %4587 = vmatmul.bf16.gmra.mxu0 %v4506
        %v4588 = vpop.f32.mrf.mxu0
        %v4589 = vadd.f32 0.0, %v4588
        %v4590 = vpop.f32.mrf.mxu0
        %v4591 = vadd.f32 0.0, %v4590
        %4592 = vmatmul.bf16.gmra.mxu0 %v4509
        %v4593 = vpop.f32.mrf.mxu0
        %v4594 = vadd.f32 0.0, %v4593
        %v4595 = vpop.f32.mrf.mxu0
        %v4596 = vadd.f32 0.0, %v4595
        %4597 = vmatmul.bf16.gmra.mxu0 %v4512
        %v4598 = vpop.f32.mrf.mxu0
        %v4599 = vadd.f32 0.0, %v4598
        %v4600 = vpop.f32.mrf.mxu0
        %v4601 = vadd.f32 0.0, %v4600
        %4602 = vdwg.mxu0
        %v4603 = vadd.f32 %v4376, %v4524
        %v4604 = vadd.f32 %v4377, %v4526
        %v4605 = vadd.f32 %v4378, %v4529
        %v4606 = vadd.f32 %v4379, %v4531
        %v4607 = vadd.f32 %v4380, %v4534
        %v4608 = vadd.f32 %v4381, %v4536
        %v4609 = vadd.f32 %v4382, %v4539
        %v4610 = vadd.f32 %v4383, %v4541
        %v4611 = vadd.f32 %v4384, %v4544
        %v4612 = vadd.f32 %v4385, %v4546
        %v4613 = vadd.f32 %v4386, %v4549
        %v4614 = vadd.f32 %v4387, %v4551
        %v4615 = vadd.f32 %v4388, %v4554
        %v4616 = vadd.f32 %v4389, %v4556
        %v4617 = vadd.f32 %v4390, %v4559
        %v4618 = vadd.f32 %v4391, %v4561
        %v4619 = vadd.f32 %v4392, %v4564
        %v4620 = vadd.f32 %v4393, %v4566
        %v4621 = vadd.f32 %v4394, %v4569
        %v4622 = vadd.f32 %v4395, %v4571
        %v4623 = vadd.f32 %v4396, %v4574
        %v4624 = vadd.f32 %v4397, %v4576
        %v4625 = vadd.f32 %v4398, %v4579
        %v4626 = vadd.f32 %v4399, %v4581
        %v4627 = vadd.f32 %v4400, %v4584
        %v4628 = vadd.f32 %v4401, %v4586
        %v4629 = vadd.f32 %v4402, %v4589
        %v4630 = vadd.f32 %v4403, %v4591
        %v4631 = vadd.f32 %v4404, %v4594
        %v4632 = vadd.f32 %v4405, %v4596
        %v4633 = vadd.f32 %v4406, %v4599
        %v4634 = vadd.f32 %v4407, %v4601
        %v4635 = vld [vmem:[%s4408 + $0x1] sm:$0xff]
        %v4636 = vld [vmem:[%s4408 + $0x9] sm:$0xff]
        %v4637 = vld [vmem:[%s4408 + $0x19] sm:$0xff]
        %v4638 = vld [vmem:[%s4408 + $0x21] sm:$0xff]
        %v4639 = vld [vmem:[%s4408 + $0x31] sm:$0xff]
        %v4640 = vld [vmem:[%s4408 + $0x39] sm:$0xff]
        %v4641 = vld [vmem:[%s4408 + $0x49] sm:$0xff]
        %v4642 = vld [vmem:[%s4408 + $0x51] sm:$0xff]
        %v4643 = vld [vmem:[%s4408 + $0x61] sm:$0xff]
        %v4644 = vld [vmem:[%s4408 + $0x69] sm:$0xff]
        %v4645 = vld [vmem:[%s4408 + $0x79] sm:$0xff]
        %v4646 = vld [vmem:[%s4408 + $0x81] sm:$0xff]
        %v4647 = vld [vmem:[%s4408 + $0x91] sm:$0xff]
        %v4648 = vld [vmem:[%s4408 + $0x99] sm:$0xff]
        %v4649 = vld [vmem:[%s4408 + $0xa9] sm:$0xff]
        %v4650 = vld [vmem:[%s4408 + $0xb1] sm:$0xff]
        %v4651 = vld [vmem:[%s4408 + $0xc1] sm:$0xff]
        %v4652 = vld [vmem:[%s4408 + $0xc9] sm:$0xff]
        %v4653 = vld [vmem:[%s4408 + $0xd9] sm:$0xff]
        %v4654 = vld [vmem:[%s4408 + $0xe1] sm:$0xff]
        %v4655 = vld [vmem:[%s4408 + $0xf1] sm:$0xff]
        %v4656 = vld [vmem:[%s4408 + $0xf9] sm:$0xff]
        %v4657 = vld [vmem:[%s4408 + $0x109] sm:$0xff]
        %v4658 = vld [vmem:[%s4408 + $0x111] sm:$0xff]
        %v4659 = vld [vmem:[%s4408 + $0x121] sm:$0xff]
        %v4660 = vld [vmem:[%s4408 + $0x129] sm:$0xff]
        %v4661 = vld [vmem:[%s4408 + $0x139] sm:$0xff]
        %v4662 = vld [vmem:[%s4408 + $0x141] sm:$0xff]
        %v4663 = vld [vmem:[%s4408 + $0x151] sm:$0xff]
        %v4664 = vld [vmem:[%s4408 + $0x159] sm:$0xff]
        %v4665 = vld [vmem:[%s4408 + $0x169] sm:$0xff]
        %v4666 = vld [vmem:[%s4408 + $0x171] sm:$0xff]
        %v4667 = vpack.c.bf16 %v4636, %v4635
        %v4668 = vpack.c.bf16 %v4638, %v4637
        %v4669 = vpack.c.bf16 %v4640, %v4639
        %v4670 = vpack.c.bf16 %v4642, %v4641
        %v4671 = vpack.c.bf16 %v4644, %v4643
        %v4672 = vpack.c.bf16 %v4646, %v4645
        %v4673 = vpack.c.bf16 %v4648, %v4647
        %v4674 = vpack.c.bf16 %v4650, %v4649
        %v4675 = vpack.c.bf16 %v4652, %v4651
        %v4676 = vpack.c.bf16 %v4654, %v4653
        %v4677 = vpack.c.bf16 %v4656, %v4655
        %v4678 = vpack.c.bf16 %v4658, %v4657
        %v4679 = vpack.c.bf16 %v4660, %v4659
        %v4680 = vpack.c.bf16 %v4662, %v4661
        %v4681 = vpack.c.bf16 %v4664, %v4663
        %v4682 = vpack.c.bf16 %v4666, %v4665
        %s4683 = scalar_lea.vmem [#allocation11], 56
        %v4684 = vld [vmem:[%s4683] sm:$0xf]
        %v4685 = vld [vmem:[%s4683 + $0x4] sm:$0xf]
        %v4688 = vunpack.c.l.b16 %v4684
        %v4689 = vunpack.c.l.b16 %v4685
        %v4690 = vpack.c.b16 %v4689, %v4688
        %v4693 = vsel %vm599, %v4667, 0
        %v4696 = vsel %vm599, %v4668, 0
        %v4699 = vsel %vm599, %v4669, 0
        %v4702 = vsel %vm599, %v4670, 0
        %v4705 = vsel %vm599, %v4671, 0
        %v4708 = vsel %vm599, %v4672, 0
        %v4711 = vsel %vm599, %v4673, 0
        %v4714 = vsel %vm599, %v4674, 0
        %v4717 = vsel %vm599, %v4675, 0
        %v4720 = vsel %vm599, %v4676, 0
        %v4723 = vsel %vm599, %v4677, 0
        %v4726 = vsel %vm599, %v4678, 0
        %v4729 = vsel %vm599, %v4679, 0
        %v4732 = vsel %vm599, %v4680, 0
        %v4735 = vsel %vm599, %v4681, 0
        %v4738 = vsel %vm599, %v4682, 0
        %4740 = vmatpush.bf16.msra.mxu0 0
        %4741 = vmatpush.bf16.msra.mxu0 0
        %4742 = vmatpush.bf16.msra.mxu0 0
        %4743 = vmatpush.bf16.msra.mxu0 0
        %4744 = vmatpush.bf16.msra.mxu0 0
        %4745 = vmatpush.bf16.msra.mxu0 0
        %4746 = vmatpush.bf16.msra.mxu0 0
        %4747 = vmatpush.bf16.msra.mxu0 %v4690
        %4748 = vmatmul.bf16.gmra.mxu0 %v4693
        %v4749 = vpop.f32.mrf.mxu0
        %v4750 = vadd.f32 0.0, %v4749
        %v4751 = vpop.f32.mrf.mxu0
        %v4752 = vadd.f32 0.0, %v4751
        %4753 = vmatmul.bf16.gmra.mxu0 %v4696
        %v4754 = vpop.f32.mrf.mxu0
        %v4755 = vadd.f32 0.0, %v4754
        %v4756 = vpop.f32.mrf.mxu0
        %v4757 = vadd.f32 0.0, %v4756
        %4758 = vmatmul.bf16.gmra.mxu0 %v4699
        %v4759 = vpop.f32.mrf.mxu0
        %v4760 = vadd.f32 0.0, %v4759
        %v4761 = vpop.f32.mrf.mxu0
        %v4762 = vadd.f32 0.0, %v4761
        %4763 = vmatmul.bf16.gmra.mxu0 %v4702
        %v4764 = vpop.f32.mrf.mxu0
        %v4765 = vadd.f32 0.0, %v4764
        %v4766 = vpop.f32.mrf.mxu0
        %v4767 = vadd.f32 0.0, %v4766
        %4768 = vmatmul.bf16.gmra.mxu0 %v4705
        %v4769 = vpop.f32.mrf.mxu0
        %v4770 = vadd.f32 0.0, %v4769
        %v4771 = vpop.f32.mrf.mxu0
        %v4772 = vadd.f32 0.0, %v4771
        %4773 = vmatmul.bf16.gmra.mxu0 %v4708
        %v4774 = vpop.f32.mrf.mxu0
        %v4775 = vadd.f32 0.0, %v4774
        %v4776 = vpop.f32.mrf.mxu0
        %v4777 = vadd.f32 0.0, %v4776
        %4778 = vmatmul.bf16.gmra.mxu0 %v4711
        %v4779 = vpop.f32.mrf.mxu0
        %v4780 = vadd.f32 0.0, %v4779
        %v4781 = vpop.f32.mrf.mxu0
        %v4782 = vadd.f32 0.0, %v4781
        %4783 = vmatmul.bf16.gmra.mxu0 %v4714
        %v4784 = vpop.f32.mrf.mxu0
        %v4785 = vadd.f32 0.0, %v4784
        %v4786 = vpop.f32.mrf.mxu0
        %v4787 = vadd.f32 0.0, %v4786
        %4788 = vmatmul.bf16.gmra.mxu0 %v4717
        %v4789 = vpop.f32.mrf.mxu0
        %v4790 = vadd.f32 0.0, %v4789
        %v4791 = vpop.f32.mrf.mxu0
        %v4792 = vadd.f32 0.0, %v4791
        %4793 = vmatmul.bf16.gmra.mxu0 %v4720
        %v4794 = vpop.f32.mrf.mxu0
        %v4795 = vadd.f32 0.0, %v4794
        %v4796 = vpop.f32.mrf.mxu0
        %v4797 = vadd.f32 0.0, %v4796
        %4798 = vmatmul.bf16.gmra.mxu0 %v4723
        %v4799 = vpop.f32.mrf.mxu0
        %v4800 = vadd.f32 0.0, %v4799
        %v4801 = vpop.f32.mrf.mxu0
        %v4802 = vadd.f32 0.0, %v4801
        %4803 = vmatmul.bf16.gmra.mxu0 %v4726
        %v4804 = vpop.f32.mrf.mxu0
        %v4805 = vadd.f32 0.0, %v4804
        %v4806 = vpop.f32.mrf.mxu0
        %v4807 = vadd.f32 0.0, %v4806
        %4808 = vmatmul.bf16.gmra.mxu0 %v4729
        %v4809 = vpop.f32.mrf.mxu0
        %v4810 = vadd.f32 0.0, %v4809
        %v4811 = vpop.f32.mrf.mxu0
        %v4812 = vadd.f32 0.0, %v4811
        %4813 = vmatmul.bf16.gmra.mxu0 %v4732
        %v4814 = vpop.f32.mrf.mxu0
        %v4815 = vadd.f32 0.0, %v4814
        %v4816 = vpop.f32.mrf.mxu0
        %v4817 = vadd.f32 0.0, %v4816
        %4818 = vmatmul.bf16.gmra.mxu0 %v4735
        %v4819 = vpop.f32.mrf.mxu0
        %v4820 = vadd.f32 0.0, %v4819
        %v4821 = vpop.f32.mrf.mxu0
        %v4822 = vadd.f32 0.0, %v4821
        %4823 = vmatmul.bf16.gmra.mxu0 %v4738
        %v4824 = vpop.f32.mrf.mxu0
        %v4825 = vadd.f32 0.0, %v4824
        %v4826 = vpop.f32.mrf.mxu0
        %v4827 = vadd.f32 0.0, %v4826
        %4828 = vdwg.mxu0
        %v4829 = vadd.f32 %v4603, %v4750
        %v4830 = vadd.f32 %v4604, %v4752
        %v4831 = vadd.f32 %v4605, %v4755
        %v4832 = vadd.f32 %v4606, %v4757
        %v4833 = vadd.f32 %v4607, %v4760
        %v4834 = vadd.f32 %v4608, %v4762
        %v4835 = vadd.f32 %v4609, %v4765
        %v4836 = vadd.f32 %v4610, %v4767
        %v4837 = vadd.f32 %v4611, %v4770
        %v4838 = vadd.f32 %v4612, %v4772
        %v4839 = vadd.f32 %v4613, %v4775
        %v4840 = vadd.f32 %v4614, %v4777
        %v4841 = vadd.f32 %v4615, %v4780
        %v4842 = vadd.f32 %v4616, %v4782
        %v4843 = vadd.f32 %v4617, %v4785
        %v4844 = vadd.f32 %v4618, %v4787
        %v4845 = vadd.f32 %v4619, %v4790
        %v4846 = vadd.f32 %v4620, %v4792
        %v4847 = vadd.f32 %v4621, %v4795
        %v4848 = vadd.f32 %v4622, %v4797
        %v4849 = vadd.f32 %v4623, %v4800
        %v4850 = vadd.f32 %v4624, %v4802
        %v4851 = vadd.f32 %v4625, %v4805
        %v4852 = vadd.f32 %v4626, %v4807
        %v4853 = vadd.f32 %v4627, %v4810
        %v4854 = vadd.f32 %v4628, %v4812
        %v4855 = vadd.f32 %v4629, %v4815
        %v4856 = vadd.f32 %v4630, %v4817
        %v4857 = vadd.f32 %v4631, %v4820
        %v4858 = vadd.f32 %v4632, %v4822
        %v4859 = vadd.f32 %v4633, %v4825
        %v4860 = vadd.f32 %v4634, %v4827
        %v4861 = vld [vmem:[%s4408 + $0x2] sm:$0xff]
        %v4862 = vld [vmem:[%s4408 + $0xa] sm:$0xff]
        %v4863 = vld [vmem:[%s4408 + $0x1a] sm:$0xff]
        %v4864 = vld [vmem:[%s4408 + $0x22] sm:$0xff]
        %v4865 = vld [vmem:[%s4408 + $0x32] sm:$0xff]
        %v4866 = vld [vmem:[%s4408 + $0x3a] sm:$0xff]
        %v4867 = vld [vmem:[%s4408 + $0x4a] sm:$0xff]
        %v4868 = vld [vmem:[%s4408 + $0x52] sm:$0xff]
        %v4869 = vld [vmem:[%s4408 + $0x62] sm:$0xff]
        %v4870 = vld [vmem:[%s4408 + $0x6a] sm:$0xff]
        %v4871 = vld [vmem:[%s4408 + $0x7a] sm:$0xff]
        %v4872 = vld [vmem:[%s4408 + $0x82] sm:$0xff]
        %v4873 = vld [vmem:[%s4408 + $0x92] sm:$0xff]
        %v4874 = vld [vmem:[%s4408 + $0x9a] sm:$0xff]
        %v4875 = vld [vmem:[%s4408 + $0xaa] sm:$0xff]
        %v4876 = vld [vmem:[%s4408 + $0xb2] sm:$0xff]
        %v4877 = vld [vmem:[%s4408 + $0xc2] sm:$0xff]
        %v4878 = vld [vmem:[%s4408 + $0xca] sm:$0xff]
        %v4879 = vld [vmem:[%s4408 + $0xda] sm:$0xff]
        %v4880 = vld [vmem:[%s4408 + $0xe2] sm:$0xff]
        %v4881 = vld [vmem:[%s4408 + $0xf2] sm:$0xff]
        %v4882 = vld [vmem:[%s4408 + $0xfa] sm:$0xff]
        %v4883 = vld [vmem:[%s4408 + $0x10a] sm:$0xff]
        %v4884 = vld [vmem:[%s4408 + $0x112] sm:$0xff]
        %v4885 = vld [vmem:[%s4408 + $0x122] sm:$0xff]
        %v4886 = vld [vmem:[%s4408 + $0x12a] sm:$0xff]
        %v4887 = vld [vmem:[%s4408 + $0x13a] sm:$0xff]
        %v4888 = vld [vmem:[%s4408 + $0x142] sm:$0xff]
        %v4889 = vld [vmem:[%s4408 + $0x152] sm:$0xff]
        %v4890 = vld [vmem:[%s4408 + $0x15a] sm:$0xff]
        %v4891 = vld [vmem:[%s4408 + $0x16a] sm:$0xff]
        %v4892 = vld [vmem:[%s4408 + $0x172] sm:$0xff]
        %v4893 = vpack.c.bf16 %v4862, %v4861
        %v4894 = vpack.c.bf16 %v4864, %v4863
        %v4895 = vpack.c.bf16 %v4866, %v4865
        %v4896 = vpack.c.bf16 %v4868, %v4867
        %v4897 = vpack.c.bf16 %v4870, %v4869
        %v4898 = vpack.c.bf16 %v4872, %v4871
        %v4899 = vpack.c.bf16 %v4874, %v4873
        %v4900 = vpack.c.bf16 %v4876, %v4875
        %v4901 = vpack.c.bf16 %v4878, %v4877
        %v4902 = vpack.c.bf16 %v4880, %v4879
        %v4903 = vpack.c.bf16 %v4882, %v4881
        %v4904 = vpack.c.bf16 %v4884, %v4883
        %v4905 = vpack.c.bf16 %v4886, %v4885
        %v4906 = vpack.c.bf16 %v4888, %v4887
        %v4907 = vpack.c.bf16 %v4890, %v4889
        %v4908 = vpack.c.bf16 %v4892, %v4891
        %s4909 = scalar_lea.vmem [#allocation11], 64
        %v4910 = vld [vmem:[%s4909] sm:$0xf]
        %v4911 = vld [vmem:[%s4909 + $0x4] sm:$0xf]
        %v4914 = vunpack.c.l.b16 %v4910
        %v4915 = vunpack.c.l.b16 %v4911
        %v4916 = vpack.c.b16 %v4915, %v4914
        %v4919 = vsel %vm599, %v4893, 0
        %v4922 = vsel %vm599, %v4894, 0
        %v4925 = vsel %vm599, %v4895, 0
        %v4928 = vsel %vm599, %v4896, 0
        %v4931 = vsel %vm599, %v4897, 0
        %v4934 = vsel %vm599, %v4898, 0
        %v4937 = vsel %vm599, %v4899, 0
        %v4940 = vsel %vm599, %v4900, 0
        %v4943 = vsel %vm599, %v4901, 0
        %v4946 = vsel %vm599, %v4902, 0
        %v4949 = vsel %vm599, %v4903, 0
        %v4952 = vsel %vm599, %v4904, 0
        %v4955 = vsel %vm599, %v4905, 0
        %v4958 = vsel %vm599, %v4906, 0
        %v4961 = vsel %vm599, %v4907, 0
        %v4964 = vsel %vm599, %v4908, 0
        %4966 = vmatpush.bf16.msra.mxu0 0
        %4967 = vmatpush.bf16.msra.mxu0 0
        %4968 = vmatpush.bf16.msra.mxu0 0
        %4969 = vmatpush.bf16.msra.mxu0 0
        %4970 = vmatpush.bf16.msra.mxu0 0
        %4971 = vmatpush.bf16.msra.mxu0 0
        %4972 = vmatpush.bf16.msra.mxu0 0
        %4973 = vmatpush.bf16.msra.mxu0 %v4916
        %4974 = vmatmul.bf16.gmra.mxu0 %v4919
        %v4975 = vpop.f32.mrf.mxu0
        %v4976 = vadd.f32 0.0, %v4975
        %v4977 = vpop.f32.mrf.mxu0
        %v4978 = vadd.f32 0.0, %v4977
        %4979 = vmatmul.bf16.gmra.mxu0 %v4922
        %v4980 = vpop.f32.mrf.mxu0
        %v4981 = vadd.f32 0.0, %v4980
        %v4982 = vpop.f32.mrf.mxu0
        %v4983 = vadd.f32 0.0, %v4982
        %4984 = vmatmul.bf16.gmra.mxu0 %v4925
        %v4985 = vpop.f32.mrf.mxu0
        %v4986 = vadd.f32 0.0, %v4985
        %v4987 = vpop.f32.mrf.mxu0
        %v4988 = vadd.f32 0.0, %v4987
        %4989 = vmatmul.bf16.gmra.mxu0 %v4928
        %v4990 = vpop.f32.mrf.mxu0
        %v4991 = vadd.f32 0.0, %v4990
        %v4992 = vpop.f32.mrf.mxu0
        %v4993 = vadd.f32 0.0, %v4992
        %4994 = vmatmul.bf16.gmra.mxu0 %v4931
        %v4995 = vpop.f32.mrf.mxu0
        %v4996 = vadd.f32 0.0, %v4995
        %v4997 = vpop.f32.mrf.mxu0
        %v4998 = vadd.f32 0.0, %v4997
        %4999 = vmatmul.bf16.gmra.mxu0 %v4934
        %v5000 = vpop.f32.mrf.mxu0
        %v5001 = vadd.f32 0.0, %v5000
        %v5002 = vpop.f32.mrf.mxu0
        %v5003 = vadd.f32 0.0, %v5002
        %5004 = vmatmul.bf16.gmra.mxu0 %v4937
        %v5005 = vpop.f32.mrf.mxu0
        %v5006 = vadd.f32 0.0, %v5005
        %v5007 = vpop.f32.mrf.mxu0
        %v5008 = vadd.f32 0.0, %v5007
        %5009 = vmatmul.bf16.gmra.mxu0 %v4940
        %v5010 = vpop.f32.mrf.mxu0
        %v5011 = vadd.f32 0.0, %v5010
        %v5012 = vpop.f32.mrf.mxu0
        %v5013 = vadd.f32 0.0, %v5012
        %5014 = vmatmul.bf16.gmra.mxu0 %v4943
        %v5015 = vpop.f32.mrf.mxu0
        %v5016 = vadd.f32 0.0, %v5015
        %v5017 = vpop.f32.mrf.mxu0
        %v5018 = vadd.f32 0.0, %v5017
        %5019 = vmatmul.bf16.gmra.mxu0 %v4946
        %v5020 = vpop.f32.mrf.mxu0
        %v5021 = vadd.f32 0.0, %v5020
        %v5022 = vpop.f32.mrf.mxu0
        %v5023 = vadd.f32 0.0, %v5022
        %5024 = vmatmul.bf16.gmra.mxu0 %v4949
        %v5025 = vpop.f32.mrf.mxu0
        %v5026 = vadd.f32 0.0, %v5025
        %v5027 = vpop.f32.mrf.mxu0
        %v5028 = vadd.f32 0.0, %v5027
        %5029 = vmatmul.bf16.gmra.mxu0 %v4952
        %v5030 = vpop.f32.mrf.mxu0
        %v5031 = vadd.f32 0.0, %v5030
        %v5032 = vpop.f32.mrf.mxu0
        %v5033 = vadd.f32 0.0, %v5032
        %5034 = vmatmul.bf16.gmra.mxu0 %v4955
        %v5035 = vpop.f32.mrf.mxu0
        %v5036 = vadd.f32 0.0, %v5035
        %v5037 = vpop.f32.mrf.mxu0
        %v5038 = vadd.f32 0.0, %v5037
        %5039 = vmatmul.bf16.gmra.mxu0 %v4958
        %v5040 = vpop.f32.mrf.mxu0
        %v5041 = vadd.f32 0.0, %v5040
        %v5042 = vpop.f32.mrf.mxu0
        %v5043 = vadd.f32 0.0, %v5042
        %5044 = vmatmul.bf16.gmra.mxu0 %v4961
        %v5045 = vpop.f32.mrf.mxu0
        %v5046 = vadd.f32 0.0, %v5045
        %v5047 = vpop.f32.mrf.mxu0
        %v5048 = vadd.f32 0.0, %v5047
        %5049 = vmatmul.bf16.gmra.mxu0 %v4964
        %v5050 = vpop.f32.mrf.mxu0
        %v5051 = vadd.f32 0.0, %v5050
        %v5052 = vpop.f32.mrf.mxu0
        %v5053 = vadd.f32 0.0, %v5052
        %5054 = vdwg.mxu0
        %v5055 = vadd.f32 %v4829, %v4976
        %v5056 = vadd.f32 %v4830, %v4978
        %v5057 = vadd.f32 %v4831, %v4981
        %v5058 = vadd.f32 %v4832, %v4983
        %v5059 = vadd.f32 %v4833, %v4986
        %v5060 = vadd.f32 %v4834, %v4988
        %v5061 = vadd.f32 %v4835, %v4991
        %v5062 = vadd.f32 %v4836, %v4993
        %v5063 = vadd.f32 %v4837, %v4996
        %v5064 = vadd.f32 %v4838, %v4998
        %v5065 = vadd.f32 %v4839, %v5001
        %v5066 = vadd.f32 %v4840, %v5003
        %v5067 = vadd.f32 %v4841, %v5006
        %v5068 = vadd.f32 %v4842, %v5008
        %v5069 = vadd.f32 %v4843, %v5011
        %v5070 = vadd.f32 %v4844, %v5013
        %v5071 = vadd.f32 %v4845, %v5016
        %v5072 = vadd.f32 %v4846, %v5018
        %v5073 = vadd.f32 %v4847, %v5021
        %v5074 = vadd.f32 %v4848, %v5023
        %v5075 = vadd.f32 %v4849, %v5026
        %v5076 = vadd.f32 %v4850, %v5028
        %v5077 = vadd.f32 %v4851, %v5031
        %v5078 = vadd.f32 %v4852, %v5033
        %v5079 = vadd.f32 %v4853, %v5036
        %v5080 = vadd.f32 %v4854, %v5038
        %v5081 = vadd.f32 %v4855, %v5041
        %v5082 = vadd.f32 %v4856, %v5043
        %v5083 = vadd.f32 %v4857, %v5046
        %v5084 = vadd.f32 %v4858, %v5048
        %v5085 = vadd.f32 %v4859, %v5051
        %v5086 = vadd.f32 %v4860, %v5053
        %v5087 = vadd.f32 %v3085, %v5055
        %v5088 = vadd.f32 %v3086, %v5056
        %v5089 = vadd.f32 %v3087, %v5057
        %v5090 = vadd.f32 %v3088, %v5058
        %v5091 = vadd.f32 %v3089, %v5059
        %v5092 = vadd.f32 %v3090, %v5060
        %v5093 = vadd.f32 %v3091, %v5061
        %v5094 = vadd.f32 %v3092, %v5062
        %v5095 = vadd.f32 %v3093, %v5063
        %v5096 = vadd.f32 %v3094, %v5064
        %v5097 = vadd.f32 %v3095, %v5065
        %v5098 = vadd.f32 %v3096, %v5066
        %v5099 = vadd.f32 %v3097, %v5067
        %v5100 = vadd.f32 %v3098, %v5068
        %v5101 = vadd.f32 %v3099, %v5069
        %v5102 = vadd.f32 %v3100, %v5070
        %v5103 = vadd.f32 %v3101, %v5071
        %v5104 = vadd.f32 %v3102, %v5072
        %v5105 = vadd.f32 %v3103, %v5073
        %v5106 = vadd.f32 %v3104, %v5074
        %v5107 = vadd.f32 %v3105, %v5075
        %v5108 = vadd.f32 %v3106, %v5076
        %v5109 = vadd.f32 %v3107, %v5077
        %v5110 = vadd.f32 %v3108, %v5078
        %v5111 = vadd.f32 %v3109, %v5079
        %v5112 = vadd.f32 %v3110, %v5080
        %v5113 = vadd.f32 %v3111, %v5081
        %v5114 = vadd.f32 %v3112, %v5082
        %v5115 = vadd.f32 %v3113, %v5083
        %v5116 = vadd.f32 %v3114, %v5084
        %v5117 = vadd.f32 %v3115, %v5085
        %v5118 = vadd.f32 %v3116, %v5086
        %v5119 = vld [vmem:[%s6] sm:$0x1]
        %v5121 = vperm.slane %v5119, 0
        %v5123 = vadd.f32 %v5087, %v5121
        %v5124 = vadd.f32 %v5088, %v5121
        %v5125 = vadd.f32 %v5089, %v5121
        %v5126 = vadd.f32 %v5090, %v5121
        %v5127 = vadd.f32 %v5091, %v5121
        %v5128 = vadd.f32 %v5092, %v5121
        %v5129 = vadd.f32 %v5093, %v5121
        %v5130 = vadd.f32 %v5094, %v5121
        %v5131 = vadd.f32 %v5095, %v5121
        %v5132 = vadd.f32 %v5096, %v5121
        %v5133 = vadd.f32 %v5097, %v5121
        %v5134 = vadd.f32 %v5098, %v5121
        %v5135 = vadd.f32 %v5099, %v5121
        %v5136 = vadd.f32 %v5100, %v5121
        %v5137 = vadd.f32 %v5101, %v5121
        %v5138 = vadd.f32 %v5102, %v5121
        %v5139 = vadd.f32 %v5103, %v5121
        %v5140 = vadd.f32 %v5104, %v5121
        %v5141 = vadd.f32 %v5105, %v5121
        %v5142 = vadd.f32 %v5106, %v5121
        %v5143 = vadd.f32 %v5107, %v5121
        %v5144 = vadd.f32 %v5108, %v5121
        %v5145 = vadd.f32 %v5109, %v5121
        %v5146 = vadd.f32 %v5110, %v5121
        %v5147 = vadd.f32 %v5111, %v5121
        %v5148 = vadd.f32 %v5112, %v5121
        %v5149 = vadd.f32 %v5113, %v5121
        %v5150 = vadd.f32 %v5114, %v5121
        %v5151 = vadd.f32 %v5115, %v5121
        %v5152 = vadd.f32 %v5116, %v5121
        %v5153 = vadd.f32 %v5117, %v5121
        %v5154 = vadd.f32 %v5118, %v5121
        %v5155 = vld [vmem:[%s7] sm:$0x1]
        %v5156 = vld [vmem:[%s8] sm:$0x1]
        %v5157 = vsel %vm599, %v5123, 0.0
        %v5158 = vsel %vm599, %v5124, 0.0
        %v5159 = vadd.f32 %v5157, %v5158
        %v5160 = vsel %vm599, %v5125, 0.0
        %v5161 = vadd.f32 %v5159, %v5160
        %v5162 = vsel %vm599, %v5126, 0.0
        %v5163 = vadd.f32 %v5161, %v5162
        %v5164 = vsel %vm599, %v5127, 0.0
        %v5165 = vadd.f32 %v5163, %v5164
        %v5166 = vsel %vm599, %v5128, 0.0
        %v5167 = vadd.f32 %v5165, %v5166
        %v5168 = vsel %vm599, %v5129, 0.0
        %v5169 = vadd.f32 %v5167, %v5168
        %v5170 = vsel %vm599, %v5130, 0.0
        %v5171 = vadd.f32 %v5169, %v5170
        %v5172 = vsel %vm599, %v5131, 0.0
        %v5173 = vadd.f32 %v5171, %v5172
        %v5174 = vsel %vm599, %v5132, 0.0
        %v5175 = vadd.f32 %v5173, %v5174
        %v5176 = vsel %vm599, %v5133, 0.0
        %v5177 = vadd.f32 %v5175, %v5176
        %v5178 = vsel %vm599, %v5134, 0.0
        %v5179 = vadd.f32 %v5177, %v5178
        %v5180 = vsel %vm599, %v5135, 0.0
        %v5181 = vadd.f32 %v5179, %v5180
        %v5182 = vsel %vm599, %v5136, 0.0
        %v5183 = vadd.f32 %v5181, %v5182
        %v5184 = vsel %vm599, %v5137, 0.0
        %v5185 = vadd.f32 %v5183, %v5184
        %v5186 = vsel %vm599, %v5138, 0.0
        %v5187 = vadd.f32 %v5185, %v5186
        %v5188 = vsel %vm599, %v5139, 0.0
        %v5189 = vadd.f32 %v5187, %v5188
        %v5190 = vsel %vm599, %v5140, 0.0
        %v5191 = vadd.f32 %v5189, %v5190
        %v5192 = vsel %vm599, %v5141, 0.0
        %v5193 = vadd.f32 %v5191, %v5192
        %v5194 = vsel %vm599, %v5142, 0.0
        %v5195 = vadd.f32 %v5193, %v5194
        %v5196 = vsel %vm599, %v5143, 0.0
        %v5197 = vadd.f32 %v5195, %v5196
        %v5198 = vsel %vm599, %v5144, 0.0
        %v5199 = vadd.f32 %v5197, %v5198
        %v5200 = vsel %vm599, %v5145, 0.0
        %v5201 = vadd.f32 %v5199, %v5200
        %v5202 = vsel %vm599, %v5146, 0.0
        %v5203 = vadd.f32 %v5201, %v5202
        %v5204 = vsel %vm599, %v5147, 0.0
        %v5205 = vadd.f32 %v5203, %v5204
        %v5206 = vsel %vm599, %v5148, 0.0
        %v5207 = vadd.f32 %v5205, %v5206
        %v5208 = vsel %vm599, %v5149, 0.0
        %v5209 = vadd.f32 %v5207, %v5208
        %v5210 = vsel %vm599, %v5150, 0.0
        %v5211 = vadd.f32 %v5209, %v5210
        %v5212 = vsel %vm599, %v5151, 0.0
        %v5213 = vadd.f32 %v5211, %v5212
        %v5214 = vsel %vm599, %v5152, 0.0
        %v5215 = vadd.f32 %v5213, %v5214
        %v5216 = vsel %vm599, %v5153, 0.0
        %v5217 = vadd.f32 %v5215, %v5216
        %v5218 = vsel %vm599, %v5154, 0.0
        %v5219 = vadd.f32 %v5217, %v5218
        %v5220 = vrot.slane %v5219, 4
        %v5221 = vadd.f32 %v5219, %v5220
        %v5222 = vrot.slane %v5221, 2
        %v5223 = vadd.f32 %v5221, %v5222
        %v5224 = vrot.slane %v5223, 1
        %v5225 = vadd.f32 %v5223, %v5224
        %v5226 = vrcp.pop 256.0
        %v5227 = vmul.f32 256.0, %v5226
        %v5228 = vsub.f32 1.0, %v5227
        %v5229 = vmul.f32 %v5226, %v5228
        %v5230 = vadd.f32 %v5226, %v5229
        %vm5231 = vweird.f32 %v5226
        %v5232 = vsel %vm5231, %v5226, %v5230
        %v5233 = vmul.f32 %v5225, %v5232
        %v5234 = vld [vmem:[#allocation14] sm:$0xff]
        %v5235 = vld [vmem:[#allocation14 + $0x8] sm:$0xff]
        %v5237 = vsel %vm599, %v5233, 0
        %5239 = vmatpush.msra.mxu0 0.0
        %5240 = vmatpush.msra.mxu0 0.0
        %5241 = vmatpush.msra.mxu0 0.0
        %5242 = vmatpush.msra.mxu0 0.0
        %5243 = vmatpush.msra.mxu0 0.0
        %5244 = vmatpush.msra.mxu0 0.0
        %5245 = vmatpush.msra.mxu0 0.0
        %5246 = vmatpush.msra.mxu0 0.0
        %5247 = vmatpush.msra.mxu0 0.0
        %5248 = vmatpush.msra.mxu0 0.0
        %5249 = vmatpush.msra.mxu0 0.0
        %5250 = vmatpush.msra.mxu0 0.0
        %5251 = vmatpush.msra.mxu0 0.0
        %5252 = vmatpush.msra.mxu0 0.0
        %5253 = vmatpush.msra.mxu0 %v5235
        %5254 = vmatpush.msra.mxu0 %v5234
        %5255 = vmatmul.f32.gmra.mxu0 %v5237
        %v5256 = vpop.f32.mrf.mxu0
        %v5257 = vadd.f32 0.0, %v5256
        %5258 = vdwg.mxu0
        %v5259 = vperm.slane %v5257, 0
        %v5260 = vsub.f32 %v5123, %v5259
        %v5261 = vsub.f32 %v5124, %v5259
        %v5262 = vsub.f32 %v5125, %v5259
        %v5263 = vsub.f32 %v5126, %v5259
        %v5264 = vsub.f32 %v5127, %v5259
        %v5265 = vsub.f32 %v5128, %v5259
        %v5266 = vsub.f32 %v5129, %v5259
        %v5267 = vsub.f32 %v5130, %v5259
        %v5268 = vsub.f32 %v5131, %v5259
        %v5269 = vsub.f32 %v5132, %v5259
        %v5270 = vsub.f32 %v5133, %v5259
        %v5271 = vsub.f32 %v5134, %v5259
        %v5272 = vsub.f32 %v5135, %v5259
        %v5273 = vsub.f32 %v5136, %v5259
        %v5274 = vsub.f32 %v5137, %v5259
        %v5275 = vsub.f32 %v5138, %v5259
        %v5276 = vsub.f32 %v5139, %v5259
        %v5277 = vsub.f32 %v5140, %v5259
        %v5278 = vsub.f32 %v5141, %v5259
        %v5279 = vsub.f32 %v5142, %v5259
        %v5280 = vsub.f32 %v5143, %v5259
        %v5281 = vsub.f32 %v5144, %v5259
        %v5282 = vsub.f32 %v5145, %v5259
        %v5283 = vsub.f32 %v5146, %v5259
        %v5284 = vsub.f32 %v5147, %v5259
        %v5285 = vsub.f32 %v5148, %v5259
        %v5286 = vsub.f32 %v5149, %v5259
        %v5287 = vsub.f32 %v5150, %v5259
        %v5288 = vsub.f32 %v5151, %v5259
        %v5289 = vsub.f32 %v5152, %v5259
        %v5290 = vsub.f32 %v5153, %v5259
        %v5291 = vsub.f32 %v5154, %v5259
        %v5292 = vmul.f32 %v5260, %v5260
        %v5293 = vmul.f32 %v5261, %v5261
        %v5294 = vmul.f32 %v5262, %v5262
        %v5295 = vmul.f32 %v5263, %v5263
        %v5296 = vmul.f32 %v5264, %v5264
        %v5297 = vmul.f32 %v5265, %v5265
        %v5298 = vmul.f32 %v5266, %v5266
        %v5299 = vmul.f32 %v5267, %v5267
        %v5300 = vmul.f32 %v5268, %v5268
        %v5301 = vmul.f32 %v5269, %v5269
        %v5302 = vmul.f32 %v5270, %v5270
        %v5303 = vmul.f32 %v5271, %v5271
        %v5304 = vmul.f32 %v5272, %v5272
        %v5305 = vmul.f32 %v5273, %v5273
        %v5306 = vmul.f32 %v5274, %v5274
        %v5307 = vmul.f32 %v5275, %v5275
        %v5308 = vmul.f32 %v5276, %v5276
        %v5309 = vmul.f32 %v5277, %v5277
        %v5310 = vmul.f32 %v5278, %v5278
        %v5311 = vmul.f32 %v5279, %v5279
        %v5312 = vmul.f32 %v5280, %v5280
        %v5313 = vmul.f32 %v5281, %v5281
        %v5314 = vmul.f32 %v5282, %v5282
        %v5315 = vmul.f32 %v5283, %v5283
        %v5316 = vmul.f32 %v5284, %v5284
        %v5317 = vmul.f32 %v5285, %v5285
        %v5318 = vmul.f32 %v5286, %v5286
        %v5319 = vmul.f32 %v5287, %v5287
        %v5320 = vmul.f32 %v5288, %v5288
        %v5321 = vmul.f32 %v5289, %v5289
        %v5322 = vmul.f32 %v5290, %v5290
        %v5323 = vmul.f32 %v5291, %v5291
        %v5324 = vsel %vm599, %v5292, 0.0
        %v5325 = vsel %vm599, %v5293, 0.0
        %v5326 = vadd.f32 %v5324, %v5325
        %v5327 = vsel %vm599, %v5294, 0.0
        %v5328 = vadd.f32 %v5326, %v5327
        %v5329 = vsel %vm599, %v5295, 0.0
        %v5330 = vadd.f32 %v5328, %v5329
        %v5331 = vsel %vm599, %v5296, 0.0
        %v5332 = vadd.f32 %v5330, %v5331
        %v5333 = vsel %vm599, %v5297, 0.0
        %v5334 = vadd.f32 %v5332, %v5333
        %v5335 = vsel %vm599, %v5298, 0.0
        %v5336 = vadd.f32 %v5334, %v5335
        %v5337 = vsel %vm599, %v5299, 0.0
        %v5338 = vadd.f32 %v5336, %v5337
        %v5339 = vsel %vm599, %v5300, 0.0
        %v5340 = vadd.f32 %v5338, %v5339
        %v5341 = vsel %vm599, %v5301, 0.0
        %v5342 = vadd.f32 %v5340, %v5341
        %v5343 = vsel %vm599, %v5302, 0.0
        %v5344 = vadd.f32 %v5342, %v5343
        %v5345 = vsel %vm599, %v5303, 0.0
        %v5346 = vadd.f32 %v5344, %v5345
        %v5347 = vsel %vm599, %v5304, 0.0
        %v5348 = vadd.f32 %v5346, %v5347
        %v5349 = vsel %vm599, %v5305, 0.0
        %v5350 = vadd.f32 %v5348, %v5349
        %v5351 = vsel %vm599, %v5306, 0.0
        %v5352 = vadd.f32 %v5350, %v5351
        %v5353 = vsel %vm599, %v5307, 0.0
        %v5354 = vadd.f32 %v5352, %v5353
        %v5355 = vsel %vm599, %v5308, 0.0
        %v5356 = vadd.f32 %v5354, %v5355
        %v5357 = vsel %vm599, %v5309, 0.0
        %v5358 = vadd.f32 %v5356, %v5357
        %v5359 = vsel %vm599, %v5310, 0.0
        %v5360 = vadd.f32 %v5358, %v5359
        %v5361 = vsel %vm599, %v5311, 0.0
        %v5362 = vadd.f32 %v5360, %v5361
        %v5363 = vsel %vm599, %v5312, 0.0
        %v5364 = vadd.f32 %v5362, %v5363
        %v5365 = vsel %vm599, %v5313, 0.0
        %v5366 = vadd.f32 %v5364, %v5365
        %v5367 = vsel %vm599, %v5314, 0.0
        %v5368 = vadd.f32 %v5366, %v5367
        %v5369 = vsel %vm599, %v5315, 0.0
        %v5370 = vadd.f32 %v5368, %v5369
        %v5371 = vsel %vm599, %v5316, 0.0
        %v5372 = vadd.f32 %v5370, %v5371
        %v5373 = vsel %vm599, %v5317, 0.0
        %v5374 = vadd.f32 %v5372, %v5373
        %v5375 = vsel %vm599, %v5318, 0.0
        %v5376 = vadd.f32 %v5374, %v5375
        %v5377 = vsel %vm599, %v5319, 0.0
        %v5378 = vadd.f32 %v5376, %v5377
        %v5379 = vsel %vm599, %v5320, 0.0
        %v5380 = vadd.f32 %v5378, %v5379
        %v5381 = vsel %vm599, %v5321, 0.0
        %v5382 = vadd.f32 %v5380, %v5381
        %v5383 = vsel %vm599, %v5322, 0.0
        %v5384 = vadd.f32 %v5382, %v5383
        %v5385 = vsel %vm599, %v5323, 0.0
        %v5386 = vadd.f32 %v5384, %v5385
        %v5387 = vrot.slane %v5386, 4
        %v5388 = vadd.f32 %v5386, %v5387
        %v5389 = vrot.slane %v5388, 2
        %v5390 = vadd.f32 %v5388, %v5389
        %v5391 = vrot.slane %v5390, 1
        %v5392 = vadd.f32 %v5390, %v5391
        %v5393 = vmul.f32 %v5392, %v5232
        %v5395 = vsel %vm599, %v5393, 0
        %5397 = vmatpush.msra.mxu0 0.0
        %5398 = vmatpush.msra.mxu0 0.0
        %5399 = vmatpush.msra.mxu0 0.0
        %5400 = vmatpush.msra.mxu0 0.0
        %5401 = vmatpush.msra.mxu0 0.0
        %5402 = vmatpush.msra.mxu0 0.0
        %5403 = vmatpush.msra.mxu0 0.0
        %5404 = vmatpush.msra.mxu0 0.0
        %5405 = vmatpush.msra.mxu0 0.0
        %5406 = vmatpush.msra.mxu0 0.0
        %5407 = vmatpush.msra.mxu0 0.0
        %5408 = vmatpush.msra.mxu0 0.0
        %5409 = vmatpush.msra.mxu0 0.0
        %5410 = vmatpush.msra.mxu0 0.0
        %5411 = vmatpush.msra.mxu0 %v5235
        %5412 = vmatpush.msra.mxu0 %v5234
        %5413 = vmatmul.f32.gmra.mxu0 %v5395
        %v5414 = vpop.f32.mrf.mxu0
        %v5415 = vadd.f32 1e-05, %v5414
        %5416 = vdwg.mxu0
        %v5417 = vrsqrt.pop %v5415
        %v5418 = vmul.f32 %v5417, %v5415
        %v5419 = vmul.f32 %v5418, %v5417
        %v5420 = vmul.f32 0.5, %v5419
        %v5421 = vsub.f32 1.5, %v5420
        %v5422 = vmul.f32 %v5417, %v5421
        %vm5423 = vweird.f32 %v5415
        %vm5424 = vweird.f32 %v5417
        %vm5425 = vmor %vm5423, %vm5424
        %v5426 = vsel %vm5425, %v5417, %v5422
        %v5427 = vperm.slane %v5426, 0
        %v5428 = vmul.f32 %v5260, %v5427
        %v5429 = vmul.f32 %v5261, %v5427
        %v5430 = vmul.f32 %v5262, %v5427
        %v5431 = vmul.f32 %v5263, %v5427
        %v5432 = vmul.f32 %v5264, %v5427
        %v5433 = vmul.f32 %v5265, %v5427
        %v5434 = vmul.f32 %v5266, %v5427
        %v5435 = vmul.f32 %v5267, %v5427
        %v5436 = vmul.f32 %v5268, %v5427
        %v5437 = vmul.f32 %v5269, %v5427
        %v5438 = vmul.f32 %v5270, %v5427
        %v5439 = vmul.f32 %v5271, %v5427
        %v5440 = vmul.f32 %v5272, %v5427
        %v5441 = vmul.f32 %v5273, %v5427
        %v5442 = vmul.f32 %v5274, %v5427
        %v5443 = vmul.f32 %v5275, %v5427
        %v5444 = vmul.f32 %v5276, %v5427
        %v5445 = vmul.f32 %v5277, %v5427
        %v5446 = vmul.f32 %v5278, %v5427
        %v5447 = vmul.f32 %v5279, %v5427
        %v5448 = vmul.f32 %v5280, %v5427
        %v5449 = vmul.f32 %v5281, %v5427
        %v5450 = vmul.f32 %v5282, %v5427
        %v5451 = vmul.f32 %v5283, %v5427
        %v5452 = vmul.f32 %v5284, %v5427
        %v5453 = vmul.f32 %v5285, %v5427
        %v5454 = vmul.f32 %v5286, %v5427
        %v5455 = vmul.f32 %v5287, %v5427
        %v5456 = vmul.f32 %v5288, %v5427
        %v5457 = vmul.f32 %v5289, %v5427
        %v5458 = vmul.f32 %v5290, %v5427
        %v5459 = vmul.f32 %v5291, %v5427
        %v5461 = vperm.slane %v5155, 0
        %v5463 = vmul.f32 %v5428, %v5461
        %v5464 = vmul.f32 %v5429, %v5461
        %v5465 = vmul.f32 %v5430, %v5461
        %v5466 = vmul.f32 %v5431, %v5461
        %v5467 = vmul.f32 %v5432, %v5461
        %v5468 = vmul.f32 %v5433, %v5461
        %v5469 = vmul.f32 %v5434, %v5461
        %v5470 = vmul.f32 %v5435, %v5461
        %v5471 = vmul.f32 %v5436, %v5461
        %v5472 = vmul.f32 %v5437, %v5461
        %v5473 = vmul.f32 %v5438, %v5461
        %v5474 = vmul.f32 %v5439, %v5461
        %v5475 = vmul.f32 %v5440, %v5461
        %v5476 = vmul.f32 %v5441, %v5461
        %v5477 = vmul.f32 %v5442, %v5461
        %v5478 = vmul.f32 %v5443, %v5461
        %v5479 = vmul.f32 %v5444, %v5461
        %v5480 = vmul.f32 %v5445, %v5461
        %v5481 = vmul.f32 %v5446, %v5461
        %v5482 = vmul.f32 %v5447, %v5461
        %v5483 = vmul.f32 %v5448, %v5461
        %v5484 = vmul.f32 %v5449, %v5461
        %v5485 = vmul.f32 %v5450, %v5461
        %v5486 = vmul.f32 %v5451, %v5461
        %v5487 = vmul.f32 %v5452, %v5461
        %v5488 = vmul.f32 %v5453, %v5461
        %v5489 = vmul.f32 %v5454, %v5461
        %v5490 = vmul.f32 %v5455, %v5461
        %v5491 = vmul.f32 %v5456, %v5461
        %v5492 = vmul.f32 %v5457, %v5461
        %v5493 = vmul.f32 %v5458, %v5461
        %v5494 = vmul.f32 %v5459, %v5461
        %v5496 = vperm.slane %v5156, 0
        %v5498 = vadd.f32 %v5463, %v5496
        %v5499 = vadd.f32 %v5464, %v5496
        %v5500 = vadd.f32 %v5465, %v5496
        %v5501 = vadd.f32 %v5466, %v5496
        %v5502 = vadd.f32 %v5467, %v5496
        %v5503 = vadd.f32 %v5468, %v5496
        %v5504 = vadd.f32 %v5469, %v5496
        %v5505 = vadd.f32 %v5470, %v5496
        %v5506 = vadd.f32 %v5471, %v5496
        %v5507 = vadd.f32 %v5472, %v5496
        %v5508 = vadd.f32 %v5473, %v5496
        %v5509 = vadd.f32 %v5474, %v5496
        %v5510 = vadd.f32 %v5475, %v5496
        %v5511 = vadd.f32 %v5476, %v5496
        %v5512 = vadd.f32 %v5477, %v5496
        %v5513 = vadd.f32 %v5478, %v5496
        %v5514 = vadd.f32 %v5479, %v5496
        %v5515 = vadd.f32 %v5480, %v5496
        %v5516 = vadd.f32 %v5481, %v5496
        %v5517 = vadd.f32 %v5482, %v5496
        %v5518 = vadd.f32 %v5483, %v5496
        %v5519 = vadd.f32 %v5484, %v5496
        %v5520 = vadd.f32 %v5485, %v5496
        %v5521 = vadd.f32 %v5486, %v5496
        %v5522 = vadd.f32 %v5487, %v5496
        %v5523 = vadd.f32 %v5488, %v5496
        %v5524 = vadd.f32 %v5489, %v5496
        %v5525 = vadd.f32 %v5490, %v5496
        %v5526 = vadd.f32 %v5491, %v5496
        %v5527 = vadd.f32 %v5492, %v5496
        %v5528 = vadd.f32 %v5493, %v5496
        %v5529 = vadd.f32 %v5494, %v5496
        %v5530 = vxor.u32 %v5498, 2147483648
        %v5531 = vxor.u32 %v5499, 2147483648
        %v5532 = vxor.u32 %v5500, 2147483648
        %v5533 = vxor.u32 %v5501, 2147483648
        %v5534 = vxor.u32 %v5502, 2147483648
        %v5535 = vxor.u32 %v5503, 2147483648
        %v5536 = vxor.u32 %v5504, 2147483648
        %v5537 = vxor.u32 %v5505, 2147483648
        %v5538 = vxor.u32 %v5506, 2147483648
        %v5539 = vxor.u32 %v5507, 2147483648
        %v5540 = vxor.u32 %v5508, 2147483648
        %v5541 = vxor.u32 %v5509, 2147483648
        %v5542 = vxor.u32 %v5510, 2147483648
        %v5543 = vxor.u32 %v5511, 2147483648
        %v5544 = vxor.u32 %v5512, 2147483648
        %v5545 = vxor.u32 %v5513, 2147483648
        %v5546 = vxor.u32 %v5514, 2147483648
        %v5547 = vxor.u32 %v5515, 2147483648
        %v5548 = vxor.u32 %v5516, 2147483648
        %v5549 = vxor.u32 %v5517, 2147483648
        %v5550 = vxor.u32 %v5518, 2147483648
        %v5551 = vxor.u32 %v5519, 2147483648
        %v5552 = vxor.u32 %v5520, 2147483648
        %v5553 = vxor.u32 %v5521, 2147483648
        %v5554 = vxor.u32 %v5522, 2147483648
        %v5555 = vxor.u32 %v5523, 2147483648
        %v5556 = vxor.u32 %v5524, 2147483648
        %v5557 = vxor.u32 %v5525, 2147483648
        %v5558 = vxor.u32 %v5526, 2147483648
        %v5559 = vxor.u32 %v5527, 2147483648
        %v5560 = vxor.u32 %v5528, 2147483648
        %v5561 = vxor.u32 %v5529, 2147483648
        %v5562 = vmul.f32 %v5530, 1.442695
        %v5563 = vpow.pop %v5562
        %v5564 = vmul.f32 %v5531, 1.442695
        %v5565 = vpow.pop %v5564
        %v5566 = vmul.f32 %v5532, 1.442695
        %v5567 = vpow.pop %v5566
        %v5568 = vmul.f32 %v5533, 1.442695
        %v5569 = vpow.pop %v5568
        %v5570 = vmul.f32 %v5534, 1.442695
        %v5571 = vpow.pop %v5570
        %v5572 = vmul.f32 %v5535, 1.442695
        %v5573 = vpow.pop %v5572
        %v5574 = vmul.f32 %v5536, 1.442695
        %v5575 = vpow.pop %v5574
        %v5576 = vmul.f32 %v5537, 1.442695
        %v5577 = vpow.pop %v5576
        %v5578 = vmul.f32 %v5538, 1.442695
        %v5579 = vpow.pop %v5578
        %v5580 = vmul.f32 %v5539, 1.442695
        %v5581 = vpow.pop %v5580
        %v5582 = vmul.f32 %v5540, 1.442695
        %v5583 = vpow.pop %v5582
        %v5584 = vmul.f32 %v5541, 1.442695
        %v5585 = vpow.pop %v5584
        %v5586 = vmul.f32 %v5542, 1.442695
        %v5587 = vpow.pop %v5586
        %v5588 = vmul.f32 %v5543, 1.442695
        %v5589 = vpow.pop %v5588
        %v5590 = vmul.f32 %v5544, 1.442695
        %v5591 = vpow.pop %v5590
        %v5592 = vmul.f32 %v5545, 1.442695
        %v5593 = vpow.pop %v5592
        %v5594 = vmul.f32 %v5546, 1.442695
        %v5595 = vpow.pop %v5594
        %v5596 = vmul.f32 %v5547, 1.442695
        %v5597 = vpow.pop %v5596
        %v5598 = vmul.f32 %v5548, 1.442695
        %v5599 = vpow.pop %v5598
        %v5600 = vmul.f32 %v5549, 1.442695
        %v5601 = vpow.pop %v5600
        %v5602 = vmul.f32 %v5550, 1.442695
        %v5603 = vpow.pop %v5602
        %v5604 = vmul.f32 %v5551, 1.442695
        %v5605 = vpow.pop %v5604
        %v5606 = vmul.f32 %v5552, 1.442695
        %v5607 = vpow.pop %v5606
        %v5608 = vmul.f32 %v5553, 1.442695
        %v5609 = vpow.pop %v5608
        %v5610 = vmul.f32 %v5554, 1.442695
        %v5611 = vpow.pop %v5610
        %v5612 = vmul.f32 %v5555, 1.442695
        %v5613 = vpow.pop %v5612
        %v5614 = vmul.f32 %v5556, 1.442695
        %v5615 = vpow.pop %v5614
        %v5616 = vmul.f32 %v5557, 1.442695
        %v5617 = vpow.pop %v5616
        %v5618 = vmul.f32 %v5558, 1.442695
        %v5619 = vpow.pop %v5618
        %v5620 = vmul.f32 %v5559, 1.442695
        %v5621 = vpow.pop %v5620
        %v5622 = vmul.f32 %v5560, 1.442695
        %v5623 = vpow.pop %v5622
        %v5624 = vmul.f32 %v5561, 1.442695
        %v5625 = vpow.pop %v5624
        %v5626 = vadd.f32 %v5563, 1.0
        %v5627 = vadd.f32 %v5565, 1.0
        %v5628 = vadd.f32 %v5567, 1.0
        %v5629 = vadd.f32 %v5569, 1.0
        %v5630 = vadd.f32 %v5571, 1.0
        %v5631 = vadd.f32 %v5573, 1.0
        %v5632 = vadd.f32 %v5575, 1.0
        %v5633 = vadd.f32 %v5577, 1.0
        %v5634 = vadd.f32 %v5579, 1.0
        %v5635 = vadd.f32 %v5581, 1.0
        %v5636 = vadd.f32 %v5583, 1.0
        %v5637 = vadd.f32 %v5585, 1.0
        %v5638 = vadd.f32 %v5587, 1.0
        %v5639 = vadd.f32 %v5589, 1.0
        %v5640 = vadd.f32 %v5591, 1.0
        %v5641 = vadd.f32 %v5593, 1.0
        %v5642 = vadd.f32 %v5595, 1.0
        %v5643 = vadd.f32 %v5597, 1.0
        %v5644 = vadd.f32 %v5599, 1.0
        %v5645 = vadd.f32 %v5601, 1.0
        %v5646 = vadd.f32 %v5603, 1.0
        %v5647 = vadd.f32 %v5605, 1.0
        %v5648 = vadd.f32 %v5607, 1.0
        %v5649 = vadd.f32 %v5609, 1.0
        %v5650 = vadd.f32 %v5611, 1.0
        %v5651 = vadd.f32 %v5613, 1.0
        %v5652 = vadd.f32 %v5615, 1.0
        %v5653 = vadd.f32 %v5617, 1.0
        %v5654 = vadd.f32 %v5619, 1.0
        %v5655 = vadd.f32 %v5621, 1.0
        %v5656 = vadd.f32 %v5623, 1.0
        %v5657 = vadd.f32 %v5625, 1.0
        %v5658 = vrcp.pop %v5626
        %v5659 = vmul.f32 %v5626, %v5658
        %v5660 = vsub.f32 1.0, %v5659
        %v5661 = vmul.f32 %v5658, %v5660
        %v5662 = vadd.f32 %v5658, %v5661
        %vm5663 = vweird.f32 %v5626
        %vm5664 = vweird.f32 %v5658
        %vm5665 = vmor %vm5663, %vm5664
        %v5666 = vsel %vm5665, %v5658, %v5662
        %v5667 = vand.u32 2147483647, %v5626
        %vm5668 = vcmp.eq.f32.partialorder %v5667, 8.507059e+37
        %v5669 = vand.u32 %v5626, 2147483648
        %v5670 = vor.u32 1.1754944e-38, %v5669
        %v5671 = vsel %vm5668, %v5670, %v5666
        %v5672 = vmul.f32 1.0, %v5671
        %v5673 = vrcp.pop %v5627
        %v5674 = vmul.f32 %v5627, %v5673
        %v5675 = vsub.f32 1.0, %v5674
        %v5676 = vmul.f32 %v5673, %v5675
        %v5677 = vadd.f32 %v5673, %v5676
        %vm5678 = vweird.f32 %v5627
        %vm5679 = vweird.f32 %v5673
        %vm5680 = vmor %vm5678, %vm5679
        %v5681 = vsel %vm5680, %v5673, %v5677
        %v5682 = vand.u32 2147483647, %v5627
        %vm5683 = vcmp.eq.f32.partialorder %v5682, 8.507059e+37
        %v5684 = vand.u32 %v5627, 2147483648
        %v5685 = vor.u32 1.1754944e-38, %v5684
        %v5686 = vsel %vm5683, %v5685, %v5681
        %v5687 = vmul.f32 1.0, %v5686
        %v5688 = vrcp.pop %v5628
        %v5689 = vmul.f32 %v5628, %v5688
        %v5690 = vsub.f32 1.0, %v5689
        %v5691 = vmul.f32 %v5688, %v5690
        %v5692 = vadd.f32 %v5688, %v5691
        %vm5693 = vweird.f32 %v5628
        %vm5694 = vweird.f32 %v5688
        %vm5695 = vmor %vm5693, %vm5694
        %v5696 = vsel %vm5695, %v5688, %v5692
        %v5697 = vand.u32 2147483647, %v5628
        %vm5698 = vcmp.eq.f32.partialorder %v5697, 8.507059e+37
        %v5699 = vand.u32 %v5628, 2147483648
        %v5700 = vor.u32 1.1754944e-38, %v5699
        %v5701 = vsel %vm5698, %v5700, %v5696
        %v5702 = vmul.f32 1.0, %v5701
        %v5703 = vrcp.pop %v5629
        %v5704 = vmul.f32 %v5629, %v5703
        %v5705 = vsub.f32 1.0, %v5704
        %v5706 = vmul.f32 %v5703, %v5705
        %v5707 = vadd.f32 %v5703, %v5706
        %vm5708 = vweird.f32 %v5629
        %vm5709 = vweird.f32 %v5703
        %vm5710 = vmor %vm5708, %vm5709
        %v5711 = vsel %vm5710, %v5703, %v5707
        %v5712 = vand.u32 2147483647, %v5629
        %vm5713 = vcmp.eq.f32.partialorder %v5712, 8.507059e+37
        %v5714 = vand.u32 %v5629, 2147483648
        %v5715 = vor.u32 1.1754944e-38, %v5714
        %v5716 = vsel %vm5713, %v5715, %v5711
        %v5717 = vmul.f32 1.0, %v5716
        %v5718 = vrcp.pop %v5630
        %v5719 = vmul.f32 %v5630, %v5718
        %v5720 = vsub.f32 1.0, %v5719
        %v5721 = vmul.f32 %v5718, %v5720
        %v5722 = vadd.f32 %v5718, %v5721
        %vm5723 = vweird.f32 %v5630
        %vm5724 = vweird.f32 %v5718
        %vm5725 = vmor %vm5723, %vm5724
        %v5726 = vsel %vm5725, %v5718, %v5722
        %v5727 = vand.u32 2147483647, %v5630
        %vm5728 = vcmp.eq.f32.partialorder %v5727, 8.507059e+37
        %v5729 = vand.u32 %v5630, 2147483648
        %v5730 = vor.u32 1.1754944e-38, %v5729
        %v5731 = vsel %vm5728, %v5730, %v5726
        %v5732 = vmul.f32 1.0, %v5731
        %v5733 = vrcp.pop %v5631
        %v5734 = vmul.f32 %v5631, %v5733
        %v5735 = vsub.f32 1.0, %v5734
        %v5736 = vmul.f32 %v5733, %v5735
        %v5737 = vadd.f32 %v5733, %v5736
        %vm5738 = vweird.f32 %v5631
        %vm5739 = vweird.f32 %v5733
        %vm5740 = vmor %vm5738, %vm5739
        %v5741 = vsel %vm5740, %v5733, %v5737
        %v5742 = vand.u32 2147483647, %v5631
        %vm5743 = vcmp.eq.f32.partialorder %v5742, 8.507059e+37
        %v5744 = vand.u32 %v5631, 2147483648
        %v5745 = vor.u32 1.1754944e-38, %v5744
        %v5746 = vsel %vm5743, %v5745, %v5741
        %v5747 = vmul.f32 1.0, %v5746
        %v5748 = vrcp.pop %v5632
        %v5749 = vmul.f32 %v5632, %v5748
        %v5750 = vsub.f32 1.0, %v5749
        %v5751 = vmul.f32 %v5748, %v5750
        %v5752 = vadd.f32 %v5748, %v5751
        %vm5753 = vweird.f32 %v5632
        %vm5754 = vweird.f32 %v5748
        %vm5755 = vmor %vm5753, %vm5754
        %v5756 = vsel %vm5755, %v5748, %v5752
        %v5757 = vand.u32 2147483647, %v5632
        %vm5758 = vcmp.eq.f32.partialorder %v5757, 8.507059e+37
        %v5759 = vand.u32 %v5632, 2147483648
        %v5760 = vor.u32 1.1754944e-38, %v5759
        %v5761 = vsel %vm5758, %v5760, %v5756
        %v5762 = vmul.f32 1.0, %v5761
        %v5763 = vrcp.pop %v5633
        %v5764 = vmul.f32 %v5633, %v5763
        %v5765 = vsub.f32 1.0, %v5764
        %v5766 = vmul.f32 %v5763, %v5765
        %v5767 = vadd.f32 %v5763, %v5766
        %vm5768 = vweird.f32 %v5633
        %vm5769 = vweird.f32 %v5763
        %vm5770 = vmor %vm5768, %vm5769
        %v5771 = vsel %vm5770, %v5763, %v5767
        %v5772 = vand.u32 2147483647, %v5633
        %vm5773 = vcmp.eq.f32.partialorder %v5772, 8.507059e+37
        %v5774 = vand.u32 %v5633, 2147483648
        %v5775 = vor.u32 1.1754944e-38, %v5774
        %v5776 = vsel %vm5773, %v5775, %v5771
        %v5777 = vmul.f32 1.0, %v5776
        %v5778 = vrcp.pop %v5634
        %v5779 = vmul.f32 %v5634, %v5778
        %v5780 = vsub.f32 1.0, %v5779
        %v5781 = vmul.f32 %v5778, %v5780
        %v5782 = vadd.f32 %v5778, %v5781
        %vm5783 = vweird.f32 %v5634
        %vm5784 = vweird.f32 %v5778
        %vm5785 = vmor %vm5783, %vm5784
        %v5786 = vsel %vm5785, %v5778, %v5782
        %v5787 = vand.u32 2147483647, %v5634
        %vm5788 = vcmp.eq.f32.partialorder %v5787, 8.507059e+37
        %v5789 = vand.u32 %v5634, 2147483648
        %v5790 = vor.u32 1.1754944e-38, %v5789
        %v5791 = vsel %vm5788, %v5790, %v5786
        %v5792 = vmul.f32 1.0, %v5791
        %v5793 = vrcp.pop %v5635
        %v5794 = vmul.f32 %v5635, %v5793
        %v5795 = vsub.f32 1.0, %v5794
        %v5796 = vmul.f32 %v5793, %v5795
        %v5797 = vadd.f32 %v5793, %v5796
        %vm5798 = vweird.f32 %v5635
        %vm5799 = vweird.f32 %v5793
        %vm5800 = vmor %vm5798, %vm5799
        %v5801 = vsel %vm5800, %v5793, %v5797
        %v5802 = vand.u32 2147483647, %v5635
        %vm5803 = vcmp.eq.f32.partialorder %v5802, 8.507059e+37
        %v5804 = vand.u32 %v5635, 2147483648
        %v5805 = vor.u32 1.1754944e-38, %v5804
        %v5806 = vsel %vm5803, %v5805, %v5801
        %v5807 = vmul.f32 1.0, %v5806
        %v5808 = vrcp.pop %v5636
        %v5809 = vmul.f32 %v5636, %v5808
        %v5810 = vsub.f32 1.0, %v5809
        %v5811 = vmul.f32 %v5808, %v5810
        %v5812 = vadd.f32 %v5808, %v5811
        %vm5813 = vweird.f32 %v5636
        %vm5814 = vweird.f32 %v5808
        %vm5815 = vmor %vm5813, %vm5814
        %v5816 = vsel %vm5815, %v5808, %v5812
        %v5817 = vand.u32 2147483647, %v5636
        %vm5818 = vcmp.eq.f32.partialorder %v5817, 8.507059e+37
        %v5819 = vand.u32 %v5636, 2147483648
        %v5820 = vor.u32 1.1754944e-38, %v5819
        %v5821 = vsel %vm5818, %v5820, %v5816
        %v5822 = vmul.f32 1.0, %v5821
        %v5823 = vrcp.pop %v5637
        %v5824 = vmul.f32 %v5637, %v5823
        %v5825 = vsub.f32 1.0, %v5824
        %v5826 = vmul.f32 %v5823, %v5825
        %v5827 = vadd.f32 %v5823, %v5826
        %vm5828 = vweird.f32 %v5637
        %vm5829 = vweird.f32 %v5823
        %vm5830 = vmor %vm5828, %vm5829
        %v5831 = vsel %vm5830, %v5823, %v5827
        %v5832 = vand.u32 2147483647, %v5637
        %vm5833 = vcmp.eq.f32.partialorder %v5832, 8.507059e+37
        %v5834 = vand.u32 %v5637, 2147483648
        %v5835 = vor.u32 1.1754944e-38, %v5834
        %v5836 = vsel %vm5833, %v5835, %v5831
        %v5837 = vmul.f32 1.0, %v5836
        %v5838 = vrcp.pop %v5638
        %v5839 = vmul.f32 %v5638, %v5838
        %v5840 = vsub.f32 1.0, %v5839
        %v5841 = vmul.f32 %v5838, %v5840
        %v5842 = vadd.f32 %v5838, %v5841
        %vm5843 = vweird.f32 %v5638
        %vm5844 = vweird.f32 %v5838
        %vm5845 = vmor %vm5843, %vm5844
        %v5846 = vsel %vm5845, %v5838, %v5842
        %v5847 = vand.u32 2147483647, %v5638
        %vm5848 = vcmp.eq.f32.partialorder %v5847, 8.507059e+37
        %v5849 = vand.u32 %v5638, 2147483648
        %v5850 = vor.u32 1.1754944e-38, %v5849
        %v5851 = vsel %vm5848, %v5850, %v5846
        %v5852 = vmul.f32 1.0, %v5851
        %v5853 = vrcp.pop %v5639
        %v5854 = vmul.f32 %v5639, %v5853
        %v5855 = vsub.f32 1.0, %v5854
        %v5856 = vmul.f32 %v5853, %v5855
        %v5857 = vadd.f32 %v5853, %v5856
        %vm5858 = vweird.f32 %v5639
        %vm5859 = vweird.f32 %v5853
        %vm5860 = vmor %vm5858, %vm5859
        %v5861 = vsel %vm5860, %v5853, %v5857
        %v5862 = vand.u32 2147483647, %v5639
        %vm5863 = vcmp.eq.f32.partialorder %v5862, 8.507059e+37
        %v5864 = vand.u32 %v5639, 2147483648
        %v5865 = vor.u32 1.1754944e-38, %v5864
        %v5866 = vsel %vm5863, %v5865, %v5861
        %v5867 = vmul.f32 1.0, %v5866
        %v5868 = vrcp.pop %v5640
        %v5869 = vmul.f32 %v5640, %v5868
        %v5870 = vsub.f32 1.0, %v5869
        %v5871 = vmul.f32 %v5868, %v5870
        %v5872 = vadd.f32 %v5868, %v5871
        %vm5873 = vweird.f32 %v5640
        %vm5874 = vweird.f32 %v5868
        %vm5875 = vmor %vm5873, %vm5874
        %v5876 = vsel %vm5875, %v5868, %v5872
        %v5877 = vand.u32 2147483647, %v5640
        %vm5878 = vcmp.eq.f32.partialorder %v5877, 8.507059e+37
        %v5879 = vand.u32 %v5640, 2147483648
        %v5880 = vor.u32 1.1754944e-38, %v5879
        %v5881 = vsel %vm5878, %v5880, %v5876
        %v5882 = vmul.f32 1.0, %v5881
        %v5883 = vrcp.pop %v5641
        %v5884 = vmul.f32 %v5641, %v5883
        %v5885 = vsub.f32 1.0, %v5884
        %v5886 = vmul.f32 %v5883, %v5885
        %v5887 = vadd.f32 %v5883, %v5886
        %vm5888 = vweird.f32 %v5641
        %vm5889 = vweird.f32 %v5883
        %vm5890 = vmor %vm5888, %vm5889
        %v5891 = vsel %vm5890, %v5883, %v5887
        %v5892 = vand.u32 2147483647, %v5641
        %vm5893 = vcmp.eq.f32.partialorder %v5892, 8.507059e+37
        %v5894 = vand.u32 %v5641, 2147483648
        %v5895 = vor.u32 1.1754944e-38, %v5894
        %v5896 = vsel %vm5893, %v5895, %v5891
        %v5897 = vmul.f32 1.0, %v5896
        %v5898 = vrcp.pop %v5642
        %v5899 = vmul.f32 %v5642, %v5898
        %v5900 = vsub.f32 1.0, %v5899
        %v5901 = vmul.f32 %v5898, %v5900
        %v5902 = vadd.f32 %v5898, %v5901
        %vm5903 = vweird.f32 %v5642
        %vm5904 = vweird.f32 %v5898
        %vm5905 = vmor %vm5903, %vm5904
        %v5906 = vsel %vm5905, %v5898, %v5902
        %v5907 = vand.u32 2147483647, %v5642
        %vm5908 = vcmp.eq.f32.partialorder %v5907, 8.507059e+37
        %v5909 = vand.u32 %v5642, 2147483648
        %v5910 = vor.u32 1.1754944e-38, %v5909
        %v5911 = vsel %vm5908, %v5910, %v5906
        %v5912 = vmul.f32 1.0, %v5911
        %v5913 = vrcp.pop %v5643
        %v5914 = vmul.f32 %v5643, %v5913
        %v5915 = vsub.f32 1.0, %v5914
        %v5916 = vmul.f32 %v5913, %v5915
        %v5917 = vadd.f32 %v5913, %v5916
        %vm5918 = vweird.f32 %v5643
        %vm5919 = vweird.f32 %v5913
        %vm5920 = vmor %vm5918, %vm5919
        %v5921 = vsel %vm5920, %v5913, %v5917
        %v5922 = vand.u32 2147483647, %v5643
        %vm5923 = vcmp.eq.f32.partialorder %v5922, 8.507059e+37
        %v5924 = vand.u32 %v5643, 2147483648
        %v5925 = vor.u32 1.1754944e-38, %v5924
        %v5926 = vsel %vm5923, %v5925, %v5921
        %v5927 = vmul.f32 1.0, %v5926
        %v5928 = vrcp.pop %v5644
        %v5929 = vmul.f32 %v5644, %v5928
        %v5930 = vsub.f32 1.0, %v5929
        %v5931 = vmul.f32 %v5928, %v5930
        %v5932 = vadd.f32 %v5928, %v5931
        %vm5933 = vweird.f32 %v5644
        %vm5934 = vweird.f32 %v5928
        %vm5935 = vmor %vm5933, %vm5934
        %v5936 = vsel %vm5935, %v5928, %v5932
        %v5937 = vand.u32 2147483647, %v5644
        %vm5938 = vcmp.eq.f32.partialorder %v5937, 8.507059e+37
        %v5939 = vand.u32 %v5644, 2147483648
        %v5940 = vor.u32 1.1754944e-38, %v5939
        %v5941 = vsel %vm5938, %v5940, %v5936
        %v5942 = vmul.f32 1.0, %v5941
        %v5943 = vrcp.pop %v5645
        %v5944 = vmul.f32 %v5645, %v5943
        %v5945 = vsub.f32 1.0, %v5944
        %v5946 = vmul.f32 %v5943, %v5945
        %v5947 = vadd.f32 %v5943, %v5946
        %vm5948 = vweird.f32 %v5645
        %vm5949 = vweird.f32 %v5943
        %vm5950 = vmor %vm5948, %vm5949
        %v5951 = vsel %vm5950, %v5943, %v5947
        %v5952 = vand.u32 2147483647, %v5645
        %vm5953 = vcmp.eq.f32.partialorder %v5952, 8.507059e+37
        %v5954 = vand.u32 %v5645, 2147483648
        %v5955 = vor.u32 1.1754944e-38, %v5954
        %v5956 = vsel %vm5953, %v5955, %v5951
        %v5957 = vmul.f32 1.0, %v5956
        %v5958 = vrcp.pop %v5646
        %v5959 = vmul.f32 %v5646, %v5958
        %v5960 = vsub.f32 1.0, %v5959
        %v5961 = vmul.f32 %v5958, %v5960
        %v5962 = vadd.f32 %v5958, %v5961
        %vm5963 = vweird.f32 %v5646
        %vm5964 = vweird.f32 %v5958
        %vm5965 = vmor %vm5963, %vm5964
        %v5966 = vsel %vm5965, %v5958, %v5962
        %v5967 = vand.u32 2147483647, %v5646
        %vm5968 = vcmp.eq.f32.partialorder %v5967, 8.507059e+37
        %v5969 = vand.u32 %v5646, 2147483648
        %v5970 = vor.u32 1.1754944e-38, %v5969
        %v5971 = vsel %vm5968, %v5970, %v5966
        %v5972 = vmul.f32 1.0, %v5971
        %v5973 = vrcp.pop %v5647
        %v5974 = vmul.f32 %v5647, %v5973
        %v5975 = vsub.f32 1.0, %v5974
        %v5976 = vmul.f32 %v5973, %v5975
        %v5977 = vadd.f32 %v5973, %v5976
        %vm5978 = vweird.f32 %v5647
        %vm5979 = vweird.f32 %v5973
        %vm5980 = vmor %vm5978, %vm5979
        %v5981 = vsel %vm5980, %v5973, %v5977
        %v5982 = vand.u32 2147483647, %v5647
        %vm5983 = vcmp.eq.f32.partialorder %v5982, 8.507059e+37
        %v5984 = vand.u32 %v5647, 2147483648
        %v5985 = vor.u32 1.1754944e-38, %v5984
        %v5986 = vsel %vm5983, %v5985, %v5981
        %v5987 = vmul.f32 1.0, %v5986
        %v5988 = vrcp.pop %v5648
        %v5989 = vmul.f32 %v5648, %v5988
        %v5990 = vsub.f32 1.0, %v5989
        %v5991 = vmul.f32 %v5988, %v5990
        %v5992 = vadd.f32 %v5988, %v5991
        %vm5993 = vweird.f32 %v5648
        %vm5994 = vweird.f32 %v5988
        %vm5995 = vmor %vm5993, %vm5994
        %v5996 = vsel %vm5995, %v5988, %v5992
        %v5997 = vand.u32 2147483647, %v5648
        %vm5998 = vcmp.eq.f32.partialorder %v5997, 8.507059e+37
        %v5999 = vand.u32 %v5648, 2147483648
        %v6000 = vor.u32 1.1754944e-38, %v5999
        %v6001 = vsel %vm5998, %v6000, %v5996
        %v6002 = vmul.f32 1.0, %v6001
        %v6003 = vrcp.pop %v5649
        %v6004 = vmul.f32 %v5649, %v6003
        %v6005 = vsub.f32 1.0, %v6004
        %v6006 = vmul.f32 %v6003, %v6005
        %v6007 = vadd.f32 %v6003, %v6006
        %vm6008 = vweird.f32 %v5649
        %vm6009 = vweird.f32 %v6003
        %vm6010 = vmor %vm6008, %vm6009
        %v6011 = vsel %vm6010, %v6003, %v6007
        %v6012 = vand.u32 2147483647, %v5649
        %vm6013 = vcmp.eq.f32.partialorder %v6012, 8.507059e+37
        %v6014 = vand.u32 %v5649, 2147483648
        %v6015 = vor.u32 1.1754944e-38, %v6014
        %v6016 = vsel %vm6013, %v6015, %v6011
        %v6017 = vmul.f32 1.0, %v6016
        %v6018 = vrcp.pop %v5650
        %v6019 = vmul.f32 %v5650, %v6018
        %v6020 = vsub.f32 1.0, %v6019
        %v6021 = vmul.f32 %v6018, %v6020
        %v6022 = vadd.f32 %v6018, %v6021
        %vm6023 = vweird.f32 %v5650
        %vm6024 = vweird.f32 %v6018
        %vm6025 = vmor %vm6023, %vm6024
        %v6026 = vsel %vm6025, %v6018, %v6022
        %v6027 = vand.u32 2147483647, %v5650
        %vm6028 = vcmp.eq.f32.partialorder %v6027, 8.507059e+37
        %v6029 = vand.u32 %v5650, 2147483648
        %v6030 = vor.u32 1.1754944e-38, %v6029
        %v6031 = vsel %vm6028, %v6030, %v6026
        %v6032 = vmul.f32 1.0, %v6031
        %v6033 = vrcp.pop %v5651
        %v6034 = vmul.f32 %v5651, %v6033
        %v6035 = vsub.f32 1.0, %v6034
        %v6036 = vmul.f32 %v6033, %v6035
        %v6037 = vadd.f32 %v6033, %v6036
        %vm6038 = vweird.f32 %v5651
        %vm6039 = vweird.f32 %v6033
        %vm6040 = vmor %vm6038, %vm6039
        %v6041 = vsel %vm6040, %v6033, %v6037
        %v6042 = vand.u32 2147483647, %v5651
        %vm6043 = vcmp.eq.f32.partialorder %v6042, 8.507059e+37
        %v6044 = vand.u32 %v5651, 2147483648
        %v6045 = vor.u32 1.1754944e-38, %v6044
        %v6046 = vsel %vm6043, %v6045, %v6041
        %v6047 = vmul.f32 1.0, %v6046
        %v6048 = vrcp.pop %v5652
        %v6049 = vmul.f32 %v5652, %v6048
        %v6050 = vsub.f32 1.0, %v6049
        %v6051 = vmul.f32 %v6048, %v6050
        %v6052 = vadd.f32 %v6048, %v6051
        %vm6053 = vweird.f32 %v5652
        %vm6054 = vweird.f32 %v6048
        %vm6055 = vmor %vm6053, %vm6054
        %v6056 = vsel %vm6055, %v6048, %v6052
        %v6057 = vand.u32 2147483647, %v5652
        %vm6058 = vcmp.eq.f32.partialorder %v6057, 8.507059e+37
        %v6059 = vand.u32 %v5652, 2147483648
        %v6060 = vor.u32 1.1754944e-38, %v6059
        %v6061 = vsel %vm6058, %v6060, %v6056
        %v6062 = vmul.f32 1.0, %v6061
        %v6063 = vrcp.pop %v5653
        %v6064 = vmul.f32 %v5653, %v6063
        %v6065 = vsub.f32 1.0, %v6064
        %v6066 = vmul.f32 %v6063, %v6065
        %v6067 = vadd.f32 %v6063, %v6066
        %vm6068 = vweird.f32 %v5653
        %vm6069 = vweird.f32 %v6063
        %vm6070 = vmor %vm6068, %vm6069
        %v6071 = vsel %vm6070, %v6063, %v6067
        %v6072 = vand.u32 2147483647, %v5653
        %vm6073 = vcmp.eq.f32.partialorder %v6072, 8.507059e+37
        %v6074 = vand.u32 %v5653, 2147483648
        %v6075 = vor.u32 1.1754944e-38, %v6074
        %v6076 = vsel %vm6073, %v6075, %v6071
        %v6077 = vmul.f32 1.0, %v6076
        %v6078 = vrcp.pop %v5654
        %v6079 = vmul.f32 %v5654, %v6078
        %v6080 = vsub.f32 1.0, %v6079
        %v6081 = vmul.f32 %v6078, %v6080
        %v6082 = vadd.f32 %v6078, %v6081
        %vm6083 = vweird.f32 %v5654
        %vm6084 = vweird.f32 %v6078
        %vm6085 = vmor %vm6083, %vm6084
        %v6086 = vsel %vm6085, %v6078, %v6082
        %v6087 = vand.u32 2147483647, %v5654
        %vm6088 = vcmp.eq.f32.partialorder %v6087, 8.507059e+37
        %v6089 = vand.u32 %v5654, 2147483648
        %v6090 = vor.u32 1.1754944e-38, %v6089
        %v6091 = vsel %vm6088, %v6090, %v6086
        %v6092 = vmul.f32 1.0, %v6091
        %v6093 = vrcp.pop %v5655
        %v6094 = vmul.f32 %v5655, %v6093
        %v6095 = vsub.f32 1.0, %v6094
        %v6096 = vmul.f32 %v6093, %v6095
        %v6097 = vadd.f32 %v6093, %v6096
        %vm6098 = vweird.f32 %v5655
        %vm6099 = vweird.f32 %v6093
        %vm6100 = vmor %vm6098, %vm6099
        %v6101 = vsel %vm6100, %v6093, %v6097
        %v6102 = vand.u32 2147483647, %v5655
        %vm6103 = vcmp.eq.f32.partialorder %v6102, 8.507059e+37
        %v6104 = vand.u32 %v5655, 2147483648
        %v6105 = vor.u32 1.1754944e-38, %v6104
        %v6106 = vsel %vm6103, %v6105, %v6101
        %v6107 = vmul.f32 1.0, %v6106
        %v6108 = vrcp.pop %v5656
        %v6109 = vmul.f32 %v5656, %v6108
        %v6110 = vsub.f32 1.0, %v6109
        %v6111 = vmul.f32 %v6108, %v6110
        %v6112 = vadd.f32 %v6108, %v6111
        %vm6113 = vweird.f32 %v5656
        %vm6114 = vweird.f32 %v6108
        %vm6115 = vmor %vm6113, %vm6114
        %v6116 = vsel %vm6115, %v6108, %v6112
        %v6117 = vand.u32 2147483647, %v5656
        %vm6118 = vcmp.eq.f32.partialorder %v6117, 8.507059e+37
        %v6119 = vand.u32 %v5656, 2147483648
        %v6120 = vor.u32 1.1754944e-38, %v6119
        %v6121 = vsel %vm6118, %v6120, %v6116
        %v6122 = vmul.f32 1.0, %v6121
        %v6123 = vrcp.pop %v5657
        %v6124 = vmul.f32 %v5657, %v6123
        %v6125 = vsub.f32 1.0, %v6124
        %v6126 = vmul.f32 %v6123, %v6125
        %v6127 = vadd.f32 %v6123, %v6126
        %vm6128 = vweird.f32 %v5657
        %vm6129 = vweird.f32 %v6123
        %vm6130 = vmor %vm6128, %vm6129
        %v6131 = vsel %vm6130, %v6123, %v6127
        %v6132 = vand.u32 2147483647, %v5657
        %vm6133 = vcmp.eq.f32.partialorder %v6132, 8.507059e+37
        %v6134 = vand.u32 %v5657, 2147483648
        %v6135 = vor.u32 1.1754944e-38, %v6134
        %v6136 = vsel %vm6133, %v6135, %v6131
        %v6137 = vmul.f32 1.0, %v6136
        %v6138 = vmul.f32 %v5498, %v5672
        %v6139 = vmul.f32 %v5499, %v5687
        %v6140 = vmul.f32 %v5500, %v5702
        %v6141 = vmul.f32 %v5501, %v5717
        %v6142 = vmul.f32 %v5502, %v5732
        %v6143 = vmul.f32 %v5503, %v5747
        %v6144 = vmul.f32 %v5504, %v5762
        %v6145 = vmul.f32 %v5505, %v5777
        %v6146 = vmul.f32 %v5506, %v5792
        %v6147 = vmul.f32 %v5507, %v5807
        %v6148 = vmul.f32 %v5508, %v5822
        %v6149 = vmul.f32 %v5509, %v5837
        %v6150 = vmul.f32 %v5510, %v5852
        %v6151 = vmul.f32 %v5511, %v5867
        %v6152 = vmul.f32 %v5512, %v5882
        %v6153 = vmul.f32 %v5513, %v5897
        %v6154 = vmul.f32 %v5514, %v5912
        %v6155 = vmul.f32 %v5515, %v5927
        %v6156 = vmul.f32 %v5516, %v5942
        %v6157 = vmul.f32 %v5517, %v5957
        %v6158 = vmul.f32 %v5518, %v5972
        %v6159 = vmul.f32 %v5519, %v5987
        %v6160 = vmul.f32 %v5520, %v6002
        %v6161 = vmul.f32 %v5521, %v6017
        %v6162 = vmul.f32 %v5522, %v6032
        %v6163 = vmul.f32 %v5523, %v6047
        %v6164 = vmul.f32 %v5524, %v6062
        %v6165 = vmul.f32 %v5525, %v6077
        %v6166 = vmul.f32 %v5526, %v6092
        %v6167 = vmul.f32 %v5527, %v6107
        %v6168 = vmul.f32 %v5528, %v6122
        %v6169 = vmul.f32 %v5529, %v6137
        %s6170 = scalar_lea.vmem [#allocation4], 24
        %6171 = vst.msk [vmem:[%s6170 + $0x1] sm:$0xff] %vm599, %v6138
        %6172 = vst.msk [vmem:[%s6170 + $0x9] sm:$0xff] %vm599, %v6139
        %6173 = vst.msk [vmem:[%s6170 + $0x19] sm:$0xff] %vm599, %v6140
        %6174 = vst.msk [vmem:[%s6170 + $0x21] sm:$0xff] %vm599, %v6141
        %6175 = vst.msk [vmem:[%s6170 + $0x31] sm:$0xff] %vm599, %v6142
        %6176 = vst.msk [vmem:[%s6170 + $0x39] sm:$0xff] %vm599, %v6143
        %6177 = vst.msk [vmem:[%s6170 + $0x49] sm:$0xff] %vm599, %v6144
        %6178 = vst.msk [vmem:[%s6170 + $0x51] sm:$0xff] %vm599, %v6145
        %6179 = vst.msk [vmem:[%s6170 + $0x61] sm:$0xff] %vm599, %v6146
        %6180 = vst.msk [vmem:[%s6170 + $0x69] sm:$0xff] %vm599, %v6147
        %6181 = vst.msk [vmem:[%s6170 + $0x79] sm:$0xff] %vm599, %v6148
        %6182 = vst.msk [vmem:[%s6170 + $0x81] sm:$0xff] %vm599, %v6149
        %6183 = vst.msk [vmem:[%s6170 + $0x91] sm:$0xff] %vm599, %v6150
        %6184 = vst.msk [vmem:[%s6170 + $0x99] sm:$0xff] %vm599, %v6151
        %6185 = vst.msk [vmem:[%s6170 + $0xa9] sm:$0xff] %vm599, %v6152
        %6186 = vst.msk [vmem:[%s6170 + $0xb1] sm:$0xff] %vm599, %v6153
        %6187 = vst.msk [vmem:[%s6170 + $0xc1] sm:$0xff] %vm599, %v6154
        %6188 = vst.msk [vmem:[%s6170 + $0xc9] sm:$0xff] %vm599, %v6155
        %6189 = vst.msk [vmem:[%s6170 + $0xd9] sm:$0xff] %vm599, %v6156
        %6190 = vst.msk [vmem:[%s6170 + $0xe1] sm:$0xff] %vm599, %v6157
        %6191 = vst.msk [vmem:[%s6170 + $0xf1] sm:$0xff] %vm599, %v6158
        %6192 = vst.msk [vmem:[%s6170 + $0xf9] sm:$0xff] %vm599, %v6159
        %6193 = vst.msk [vmem:[%s6170 + $0x109] sm:$0xff] %vm599, %v6160
        %6194 = vst.msk [vmem:[%s6170 + $0x111] sm:$0xff] %vm599, %v6161
        %6195 = vst.msk [vmem:[%s6170 + $0x121] sm:$0xff] %vm599, %v6162
        %6196 = vst.msk [vmem:[%s6170 + $0x129] sm:$0xff] %vm599, %v6163
        %6197 = vst.msk [vmem:[%s6170 + $0x139] sm:$0xff] %vm599, %v6164
        %6198 = vst.msk [vmem:[%s6170 + $0x141] sm:$0xff] %vm599, %v6165
        %6199 = vst.msk [vmem:[%s6170 + $0x151] sm:$0xff] %vm599, %v6166
        %6200 = vst.msk [vmem:[%s6170 + $0x159] sm:$0xff] %vm599, %v6167
        %6201 = vst.msk [vmem:[%s6170 + $0x169] sm:$0xff] %vm599, %v6168
        %6202 = vst.msk [vmem:[%s6170 + $0x171] sm:$0xff] %vm599, %v6169
        %v6203 = vld [vmem:[#allocation4] sm:$0xff]
        %v6204 = vld [vmem:[#allocation4 + $0x8] sm:$0xff]
        %v6205 = vld [vmem:[#allocation4 + $0x18] sm:$0xff]
        %v6206 = vld [vmem:[#allocation4 + $0x20] sm:$0xff]
        %v6207 = vld [vmem:[#allocation4 + $0x30] sm:$0xff]
        %v6208 = vld [vmem:[#allocation4 + $0x38] sm:$0xff]
        %v6209 = vld [vmem:[#allocation4 + $0x48] sm:$0xff]
        %v6210 = vld [vmem:[#allocation4 + $0x50] sm:$0xff]
        %v6211 = vld [vmem:[#allocation4 + $0x60] sm:$0xff]
        %v6212 = vld [vmem:[#allocation4 + $0x68] sm:$0xff]
        %v6213 = vld [vmem:[#allocation4 + $0x78] sm:$0xff]
        %v6214 = vld [vmem:[#allocation4 + $0x80] sm:$0xff]
        %v6215 = vld [vmem:[#allocation4 + $0x90] sm:$0xff]
        %v6216 = vld [vmem:[#allocation4 + $0x98] sm:$0xff]
        %v6217 = vld [vmem:[#allocation4 + $0xa8] sm:$0xff]
        %v6218 = vld [vmem:[#allocation4 + $0xb0] sm:$0xff]
        %v6219 = vld [vmem:[#allocation4 + $0xc0] sm:$0xff]
        %v6220 = vld [vmem:[#allocation4 + $0xc8] sm:$0xff]
        %v6221 = vld [vmem:[#allocation4 + $0xd8] sm:$0xff]
        %v6222 = vld [vmem:[#allocation4 + $0xe0] sm:$0xff]
        %v6223 = vld [vmem:[#allocation4 + $0xf0] sm:$0xff]
        %v6224 = vld [vmem:[#allocation4 + $0xf8] sm:$0xff]
        %v6225 = vld [vmem:[#allocation4 + $0x108] sm:$0xff]
        %v6226 = vld [vmem:[#allocation4 + $0x110] sm:$0xff]
        %v6227 = vld [vmem:[#allocation4 + $0x120] sm:$0xff]
        %v6228 = vld [vmem:[#allocation4 + $0x128] sm:$0xff]
        %v6229 = vld [vmem:[#allocation4 + $0x138] sm:$0xff]
        %v6230 = vld [vmem:[#allocation4 + $0x140] sm:$0xff]
        %v6231 = vld [vmem:[#allocation4 + $0x150] sm:$0xff]
        %v6232 = vld [vmem:[#allocation4 + $0x158] sm:$0xff]
        %v6233 = vld [vmem:[#allocation4 + $0x168] sm:$0xff]
        %v6234 = vld [vmem:[#allocation4 + $0x170] sm:$0xff]
        %v6235 = vpack.c.bf16 %v6204, %v6203
        %v6236 = vpack.c.bf16 %v6206, %v6205
        %v6237 = vpack.c.bf16 %v6208, %v6207
        %v6238 = vpack.c.bf16 %v6210, %v6209
        %v6239 = vpack.c.bf16 %v6212, %v6211
        %v6240 = vpack.c.bf16 %v6214, %v6213
        %v6241 = vpack.c.bf16 %v6216, %v6215
        %v6242 = vpack.c.bf16 %v6218, %v6217
        %v6243 = vpack.c.bf16 %v6220, %v6219
        %v6244 = vpack.c.bf16 %v6222, %v6221
        %v6245 = vpack.c.bf16 %v6224, %v6223
        %v6246 = vpack.c.bf16 %v6226, %v6225
        %v6247 = vpack.c.bf16 %v6228, %v6227
        %v6248 = vpack.c.bf16 %v6230, %v6229
        %v6249 = vpack.c.bf16 %v6232, %v6231
        %v6250 = vpack.c.bf16 %v6234, %v6233
        %v6251 = vld [vmem:[#allocation13] sm:$0xf]
        %v6252 = vld [vmem:[#allocation13 + $0x4] sm:$0xf]
        %v6253 = vld [vmem:[#allocation4 + $0x1] sm:$0xff]
        %v6254 = vld [vmem:[#allocation4 + $0x9] sm:$0xff]
        %v6255 = vld [vmem:[#allocation4 + $0x19] sm:$0xff]
        %v6256 = vld [vmem:[#allocation4 + $0x21] sm:$0xff]
        %v6257 = vld [vmem:[#allocation4 + $0x31] sm:$0xff]
        %v6258 = vld [vmem:[#allocation4 + $0x39] sm:$0xff]
        %v6259 = vld [vmem:[#allocation4 + $0x49] sm:$0xff]
        %v6260 = vld [vmem:[#allocation4 + $0x51] sm:$0xff]
        %v6261 = vld [vmem:[#allocation4 + $0x61] sm:$0xff]
        %v6262 = vld [vmem:[#allocation4 + $0x69] sm:$0xff]
        %v6263 = vld [vmem:[#allocation4 + $0x79] sm:$0xff]
        %v6264 = vld [vmem:[#allocation4 + $0x81] sm:$0xff]
        %v6265 = vld [vmem:[#allocation4 + $0x91] sm:$0xff]
        %v6266 = vld [vmem:[#allocation4 + $0x99] sm:$0xff]
        %v6267 = vld [vmem:[#allocation4 + $0xa9] sm:$0xff]
        %v6268 = vld [vmem:[#allocation4 + $0xb1] sm:$0xff]
        %v6269 = vld [vmem:[#allocation4 + $0xc1] sm:$0xff]
        %v6270 = vld [vmem:[#allocation4 + $0xc9] sm:$0xff]
        %v6271 = vld [vmem:[#allocation4 + $0xd9] sm:$0xff]
        %v6272 = vld [vmem:[#allocation4 + $0xe1] sm:$0xff]
        %v6273 = vld [vmem:[#allocation4 + $0xf1] sm:$0xff]
        %v6274 = vld [vmem:[#allocation4 + $0xf9] sm:$0xff]
        %v6275 = vld [vmem:[#allocation4 + $0x109] sm:$0xff]
        %v6276 = vld [vmem:[#allocation4 + $0x111] sm:$0xff]
        %v6277 = vld [vmem:[#allocation4 + $0x121] sm:$0xff]
        %v6278 = vld [vmem:[#allocation4 + $0x129] sm:$0xff]
        %v6279 = vld [vmem:[#allocation4 + $0x139] sm:$0xff]
        %v6280 = vld [vmem:[#allocation4 + $0x141] sm:$0xff]
        %v6281 = vld [vmem:[#allocation4 + $0x151] sm:$0xff]
        %v6282 = vld [vmem:[#allocation4 + $0x159] sm:$0xff]
        %v6283 = vld [vmem:[#allocation4 + $0x169] sm:$0xff]
        %v6284 = vld [vmem:[#allocation4 + $0x171] sm:$0xff]
        %v6285 = vpack.c.bf16 %v6254, %v6253
        %v6286 = vpack.c.bf16 %v6256, %v6255
        %v6287 = vpack.c.bf16 %v6258, %v6257
        %v6288 = vpack.c.bf16 %v6260, %v6259
        %v6289 = vpack.c.bf16 %v6262, %v6261
        %v6290 = vpack.c.bf16 %v6264, %v6263
        %v6291 = vpack.c.bf16 %v6266, %v6265
        %v6292 = vpack.c.bf16 %v6268, %v6267
        %v6293 = vpack.c.bf16 %v6270, %v6269
        %v6294 = vpack.c.bf16 %v6272, %v6271
        %v6295 = vpack.c.bf16 %v6274, %v6273
        %v6296 = vpack.c.bf16 %v6276, %v6275
        %v6297 = vpack.c.bf16 %v6278, %v6277
        %v6298 = vpack.c.bf16 %v6280, %v6279
        %v6299 = vpack.c.bf16 %v6282, %v6281
        %v6300 = vpack.c.bf16 %v6284, %v6283
        %s6301 = scalar_lea.vmem [#allocation13], 8
        %v6302 = vld [vmem:[%s6301] sm:$0xf]
        %v6303 = vld [vmem:[%s6301 + $0x4] sm:$0xf]
        %v6306 = vunpack.c.l.b16 %v6302
        %v6307 = vunpack.c.l.b16 %v6303
        %v6308 = vpack.c.b16 %v6307, %v6306
        %v6311 = vsel %vm599, %v6285, 0
        %v6314 = vsel %vm599, %v6286, 0
        %v6317 = vsel %vm599, %v6287, 0
        %v6320 = vsel %vm599, %v6288, 0
        %v6323 = vsel %vm599, %v6289, 0
        %v6326 = vsel %vm599, %v6290, 0
        %v6329 = vsel %vm599, %v6291, 0
        %v6332 = vsel %vm599, %v6292, 0
        %v6335 = vsel %vm599, %v6293, 0
        %v6338 = vsel %vm599, %v6294, 0
        %v6341 = vsel %vm599, %v6295, 0
        %v6344 = vsel %vm599, %v6296, 0
        %v6347 = vsel %vm599, %v6297, 0
        %v6350 = vsel %vm599, %v6298, 0
        %v6353 = vsel %vm599, %v6299, 0
        %v6356 = vsel %vm599, %v6300, 0
        %6358 = vmatpush.bf16.msra.mxu0 0
        %6359 = vmatpush.bf16.msra.mxu0 0
        %6360 = vmatpush.bf16.msra.mxu0 0
        %6361 = vmatpush.bf16.msra.mxu0 0
        %6362 = vmatpush.bf16.msra.mxu0 0
        %6363 = vmatpush.bf16.msra.mxu0 0
        %6364 = vmatpush.bf16.msra.mxu0 0
        %6365 = vmatpush.bf16.msra.mxu0 %v6308
        %6366 = vmatmul.bf16.gmra.mxu0 %v6311
        %v6367 = vpop.f32.mrf.mxu0
        %v6368 = vadd.f32 0.0, %v6367
        %v6369 = vpop.f32.mrf.mxu0
        %v6370 = vadd.f32 0.0, %v6369
        %6371 = vmatmul.bf16.gmra.mxu0 %v6314
        %v6372 = vpop.f32.mrf.mxu0
        %v6373 = vadd.f32 0.0, %v6372
        %v6374 = vpop.f32.mrf.mxu0
        %v6375 = vadd.f32 0.0, %v6374
        %6376 = vmatmul.bf16.gmra.mxu0 %v6317
        %v6377 = vpop.f32.mrf.mxu0
        %v6378 = vadd.f32 0.0, %v6377
        %v6379 = vpop.f32.mrf.mxu0
        %v6380 = vadd.f32 0.0, %v6379
        %6381 = vmatmul.bf16.gmra.mxu0 %v6320
        %v6382 = vpop.f32.mrf.mxu0
        %v6383 = vadd.f32 0.0, %v6382
        %v6384 = vpop.f32.mrf.mxu0
        %v6385 = vadd.f32 0.0, %v6384
        %6386 = vmatmul.bf16.gmra.mxu0 %v6323
        %v6387 = vpop.f32.mrf.mxu0
        %v6388 = vadd.f32 0.0, %v6387
        %v6389 = vpop.f32.mrf.mxu0
        %v6390 = vadd.f32 0.0, %v6389
        %6391 = vmatmul.bf16.gmra.mxu0 %v6326
        %v6392 = vpop.f32.mrf.mxu0
        %v6393 = vadd.f32 0.0, %v6392
        %v6394 = vpop.f32.mrf.mxu0
        %v6395 = vadd.f32 0.0, %v6394
        %6396 = vmatmul.bf16.gmra.mxu0 %v6329
        %v6397 = vpop.f32.mrf.mxu0
        %v6398 = vadd.f32 0.0, %v6397
        %v6399 = vpop.f32.mrf.mxu0
        %v6400 = vadd.f32 0.0, %v6399
        %6401 = vmatmul.bf16.gmra.mxu0 %v6332
        %v6402 = vpop.f32.mrf.mxu0
        %v6403 = vadd.f32 0.0, %v6402
        %v6404 = vpop.f32.mrf.mxu0
        %v6405 = vadd.f32 0.0, %v6404
        %6406 = vmatmul.bf16.gmra.mxu0 %v6335
        %v6407 = vpop.f32.mrf.mxu0
        %v6408 = vadd.f32 0.0, %v6407
        %v6409 = vpop.f32.mrf.mxu0
        %v6410 = vadd.f32 0.0, %v6409
        %6411 = vmatmul.bf16.gmra.mxu0 %v6338
        %v6412 = vpop.f32.mrf.mxu0
        %v6413 = vadd.f32 0.0, %v6412
        %v6414 = vpop.f32.mrf.mxu0
        %v6415 = vadd.f32 0.0, %v6414
        %6416 = vmatmul.bf16.gmra.mxu0 %v6341
        %v6417 = vpop.f32.mrf.mxu0
        %v6418 = vadd.f32 0.0, %v6417
        %v6419 = vpop.f32.mrf.mxu0
        %v6420 = vadd.f32 0.0, %v6419
        %6421 = vmatmul.bf16.gmra.mxu0 %v6344
        %v6422 = vpop.f32.mrf.mxu0
        %v6423 = vadd.f32 0.0, %v6422
        %v6424 = vpop.f32.mrf.mxu0
        %v6425 = vadd.f32 0.0, %v6424
        %6426 = vmatmul.bf16.gmra.mxu0 %v6347
        %v6427 = vpop.f32.mrf.mxu0
        %v6428 = vadd.f32 0.0, %v6427
        %v6429 = vpop.f32.mrf.mxu0
        %v6430 = vadd.f32 0.0, %v6429
        %6431 = vmatmul.bf16.gmra.mxu0 %v6350
        %v6432 = vpop.f32.mrf.mxu0
        %v6433 = vadd.f32 0.0, %v6432
        %v6434 = vpop.f32.mrf.mxu0
        %v6435 = vadd.f32 0.0, %v6434
        %6436 = vmatmul.bf16.gmra.mxu0 %v6353
        %v6437 = vpop.f32.mrf.mxu0
        %v6438 = vadd.f32 0.0, %v6437
        %v6439 = vpop.f32.mrf.mxu0
        %v6440 = vadd.f32 0.0, %v6439
        %6441 = vmatmul.bf16.gmra.mxu0 %v6356
        %v6442 = vpop.f32.mrf.mxu0
        %v6443 = vadd.f32 0.0, %v6442
        %v6444 = vpop.f32.mrf.mxu0
        %v6445 = vadd.f32 0.0, %v6444
        %6446 = vdwg.mxu0
        %v6449 = vunpack.c.l.b16 %v6251
        %v6450 = vunpack.c.l.b16 %v6252
        %v6451 = vpack.c.b16 %v6450, %v6449
        %v6454 = vsel %vm599, %v6235, 0
        %v6457 = vsel %vm599, %v6236, 0
        %v6460 = vsel %vm599, %v6237, 0
        %v6463 = vsel %vm599, %v6238, 0
        %v6466 = vsel %vm599, %v6239, 0
        %v6469 = vsel %vm599, %v6240, 0
        %v6472 = vsel %vm599, %v6241, 0
        %v6475 = vsel %vm599, %v6242, 0
        %v6478 = vsel %vm599, %v6243, 0
        %v6481 = vsel %vm599, %v6244, 0
        %v6484 = vsel %vm599, %v6245, 0
        %v6487 = vsel %vm599, %v6246, 0
        %v6490 = vsel %vm599, %v6247, 0
        %v6493 = vsel %vm599, %v6248, 0
        %v6496 = vsel %vm599, %v6249, 0
        %v6499 = vsel %vm599, %v6250, 0
        %6501 = vmatpush.bf16.msra.mxu0 0
        %6502 = vmatpush.bf16.msra.mxu0 0
        %6503 = vmatpush.bf16.msra.mxu0 0
        %6504 = vmatpush.bf16.msra.mxu0 0
        %6505 = vmatpush.bf16.msra.mxu0 0
        %6506 = vmatpush.bf16.msra.mxu0 0
        %6507 = vmatpush.bf16.msra.mxu0 0
        %6508 = vmatpush.bf16.msra.mxu0 %v6451
        %6509 = vmatmul.bf16.gmra.mxu0 %v6454
        %v6510 = vpop.f32.mrf.mxu0
        %v6511 = vadd.f32 %v6368, %v6510
        %v6512 = vpop.f32.mrf.mxu0
        %v6513 = vadd.f32 %v6370, %v6512
        %6514 = vmatmul.bf16.gmra.mxu0 %v6457
        %v6515 = vpop.f32.mrf.mxu0
        %v6516 = vadd.f32 %v6373, %v6515
        %v6517 = vpop.f32.mrf.mxu0
        %v6518 = vadd.f32 %v6375, %v6517
        %6519 = vmatmul.bf16.gmra.mxu0 %v6460
        %v6520 = vpop.f32.mrf.mxu0
        %v6521 = vadd.f32 %v6378, %v6520
        %v6522 = vpop.f32.mrf.mxu0
        %v6523 = vadd.f32 %v6380, %v6522
        %6524 = vmatmul.bf16.gmra.mxu0 %v6463
        %v6525 = vpop.f32.mrf.mxu0
        %v6526 = vadd.f32 %v6383, %v6525
        %v6527 = vpop.f32.mrf.mxu0
        %v6528 = vadd.f32 %v6385, %v6527
        %6529 = vmatmul.bf16.gmra.mxu0 %v6466
        %v6530 = vpop.f32.mrf.mxu0
        %v6531 = vadd.f32 %v6388, %v6530
        %v6532 = vpop.f32.mrf.mxu0
        %v6533 = vadd.f32 %v6390, %v6532
        %6534 = vmatmul.bf16.gmra.mxu0 %v6469
        %v6535 = vpop.f32.mrf.mxu0
        %v6536 = vadd.f32 %v6393, %v6535
        %v6537 = vpop.f32.mrf.mxu0
        %v6538 = vadd.f32 %v6395, %v6537
        %6539 = vmatmul.bf16.gmra.mxu0 %v6472
        %v6540 = vpop.f32.mrf.mxu0
        %v6541 = vadd.f32 %v6398, %v6540
        %v6542 = vpop.f32.mrf.mxu0
        %v6543 = vadd.f32 %v6400, %v6542
        %6544 = vmatmul.bf16.gmra.mxu0 %v6475
        %v6545 = vpop.f32.mrf.mxu0
        %v6546 = vadd.f32 %v6403, %v6545
        %v6547 = vpop.f32.mrf.mxu0
        %v6548 = vadd.f32 %v6405, %v6547
        %6549 = vmatmul.bf16.gmra.mxu0 %v6478
        %v6550 = vpop.f32.mrf.mxu0
        %v6551 = vadd.f32 %v6408, %v6550
        %v6552 = vpop.f32.mrf.mxu0
        %v6553 = vadd.f32 %v6410, %v6552
        %6554 = vmatmul.bf16.gmra.mxu0 %v6481
        %v6555 = vpop.f32.mrf.mxu0
        %v6556 = vadd.f32 %v6413, %v6555
        %v6557 = vpop.f32.mrf.mxu0
        %v6558 = vadd.f32 %v6415, %v6557
        %6559 = vmatmul.bf16.gmra.mxu0 %v6484
        %v6560 = vpop.f32.mrf.mxu0
        %v6561 = vadd.f32 %v6418, %v6560
        %v6562 = vpop.f32.mrf.mxu0
        %v6563 = vadd.f32 %v6420, %v6562
        %6564 = vmatmul.bf16.gmra.mxu0 %v6487
        %v6565 = vpop.f32.mrf.mxu0
        %v6566 = vadd.f32 %v6423, %v6565
        %v6567 = vpop.f32.mrf.mxu0
        %v6568 = vadd.f32 %v6425, %v6567
        %6569 = vmatmul.bf16.gmra.mxu0 %v6490
        %v6570 = vpop.f32.mrf.mxu0
        %v6571 = vadd.f32 %v6428, %v6570
        %v6572 = vpop.f32.mrf.mxu0
        %v6573 = vadd.f32 %v6430, %v6572
        %6574 = vmatmul.bf16.gmra.mxu0 %v6493
        %v6575 = vpop.f32.mrf.mxu0
        %v6576 = vadd.f32 %v6433, %v6575
        %v6577 = vpop.f32.mrf.mxu0
        %v6578 = vadd.f32 %v6435, %v6577
        %6579 = vmatmul.bf16.gmra.mxu0 %v6496
        %v6580 = vpop.f32.mrf.mxu0
        %v6581 = vadd.f32 %v6438, %v6580
        %v6582 = vpop.f32.mrf.mxu0
        %v6583 = vadd.f32 %v6440, %v6582
        %6584 = vmatmul.bf16.gmra.mxu0 %v6499
        %v6585 = vpop.f32.mrf.mxu0
        %v6586 = vadd.f32 %v6443, %v6585
        %v6587 = vpop.f32.mrf.mxu0
        %v6588 = vadd.f32 %v6445, %v6587
        %6589 = vdwg.mxu0
        %v6590 = vld [vmem:[#allocation4 + $0x2] sm:$0xff]
        %v6591 = vld [vmem:[#allocation4 + $0xa] sm:$0xff]
        %v6592 = vld [vmem:[#allocation4 + $0x1a] sm:$0xff]
        %v6593 = vld [vmem:[#allocation4 + $0x22] sm:$0xff]
        %v6594 = vld [vmem:[#allocation4 + $0x32] sm:$0xff]
        %v6595 = vld [vmem:[#allocation4 + $0x3a] sm:$0xff]
        %v6596 = vld [vmem:[#allocation4 + $0x4a] sm:$0xff]
        %v6597 = vld [vmem:[#allocation4 + $0x52] sm:$0xff]
        %v6598 = vld [vmem:[#allocation4 + $0x62] sm:$0xff]
        %v6599 = vld [vmem:[#allocation4 + $0x6a] sm:$0xff]
        %v6600 = vld [vmem:[#allocation4 + $0x7a] sm:$0xff]
        %v6601 = vld [vmem:[#allocation4 + $0x82] sm:$0xff]
        %v6602 = vld [vmem:[#allocation4 + $0x92] sm:$0xff]
        %v6603 = vld [vmem:[#allocation4 + $0x9a] sm:$0xff]
        %v6604 = vld [vmem:[#allocation4 + $0xaa] sm:$0xff]
        %v6605 = vld [vmem:[#allocation4 + $0xb2] sm:$0xff]
        %v6606 = vld [vmem:[#allocation4 + $0xc2] sm:$0xff]
        %v6607 = vld [vmem:[#allocation4 + $0xca] sm:$0xff]
        %v6608 = vld [vmem:[#allocation4 + $0xda] sm:$0xff]
        %v6609 = vld [vmem:[#allocation4 + $0xe2] sm:$0xff]
        %v6610 = vld [vmem:[#allocation4 + $0xf2] sm:$0xff]
        %v6611 = vld [vmem:[#allocation4 + $0xfa] sm:$0xff]
        %v6612 = vld [vmem:[#allocation4 + $0x10a] sm:$0xff]
        %v6613 = vld [vmem:[#allocation4 + $0x112] sm:$0xff]
        %v6614 = vld [vmem:[#allocation4 + $0x122] sm:$0xff]
        %v6615 = vld [vmem:[#allocation4 + $0x12a] sm:$0xff]
        %v6616 = vld [vmem:[#allocation4 + $0x13a] sm:$0xff]
        %v6617 = vld [vmem:[#allocation4 + $0x142] sm:$0xff]
        %v6618 = vld [vmem:[#allocation4 + $0x152] sm:$0xff]
        %v6619 = vld [vmem:[#allocation4 + $0x15a] sm:$0xff]
        %v6620 = vld [vmem:[#allocation4 + $0x16a] sm:$0xff]
        %v6621 = vld [vmem:[#allocation4 + $0x172] sm:$0xff]
        %v6622 = vpack.c.bf16 %v6591, %v6590
        %v6623 = vpack.c.bf16 %v6593, %v6592
        %v6624 = vpack.c.bf16 %v6595, %v6594
        %v6625 = vpack.c.bf16 %v6597, %v6596
        %v6626 = vpack.c.bf16 %v6599, %v6598
        %v6627 = vpack.c.bf16 %v6601, %v6600
        %v6628 = vpack.c.bf16 %v6603, %v6602
        %v6629 = vpack.c.bf16 %v6605, %v6604
        %v6630 = vpack.c.bf16 %v6607, %v6606
        %v6631 = vpack.c.bf16 %v6609, %v6608
        %v6632 = vpack.c.bf16 %v6611, %v6610
        %v6633 = vpack.c.bf16 %v6613, %v6612
        %v6634 = vpack.c.bf16 %v6615, %v6614
        %v6635 = vpack.c.bf16 %v6617, %v6616
        %v6636 = vpack.c.bf16 %v6619, %v6618
        %v6637 = vpack.c.bf16 %v6621, %v6620
        %s6638 = scalar_lea.vmem [#allocation13], 16
        %v6639 = vld [vmem:[%s6638] sm:$0xf]
        %v6640 = vld [vmem:[%s6638 + $0x4] sm:$0xf]
        %v6643 = vunpack.c.l.b16 %v6639
        %v6644 = vunpack.c.l.b16 %v6640
        %v6645 = vpack.c.b16 %v6644, %v6643
        %v6648 = vsel %vm599, %v6622, 0
        %v6651 = vsel %vm599, %v6623, 0
        %v6654 = vsel %vm599, %v6624, 0
        %v6657 = vsel %vm599, %v6625, 0
        %v6660 = vsel %vm599, %v6626, 0
        %v6663 = vsel %vm599, %v6627, 0
        %v6666 = vsel %vm599, %v6628, 0
        %v6669 = vsel %vm599, %v6629, 0
        %v6672 = vsel %vm599, %v6630, 0
        %v6675 = vsel %vm599, %v6631, 0
        %v6678 = vsel %vm599, %v6632, 0
        %v6681 = vsel %vm599, %v6633, 0
        %v6684 = vsel %vm599, %v6634, 0
        %v6687 = vsel %vm599, %v6635, 0
        %v6690 = vsel %vm599, %v6636, 0
        %v6693 = vsel %vm599, %v6637, 0
        %6695 = vmatpush.bf16.msra.mxu0 0
        %6696 = vmatpush.bf16.msra.mxu0 0
        %6697 = vmatpush.bf16.msra.mxu0 0
        %6698 = vmatpush.bf16.msra.mxu0 0
        %6699 = vmatpush.bf16.msra.mxu0 0
        %6700 = vmatpush.bf16.msra.mxu0 0
        %6701 = vmatpush.bf16.msra.mxu0 0
        %6702 = vmatpush.bf16.msra.mxu0 %v6645
        %6703 = vmatmul.bf16.gmra.mxu0 %v6648
        %v6704 = vpop.f32.mrf.mxu0
        %v6705 = vadd.f32 0.0, %v6704
        %v6706 = vpop.f32.mrf.mxu0
        %v6707 = vadd.f32 0.0, %v6706
        %6708 = vmatmul.bf16.gmra.mxu0 %v6651
        %v6709 = vpop.f32.mrf.mxu0
        %v6710 = vadd.f32 0.0, %v6709
        %v6711 = vpop.f32.mrf.mxu0
        %v6712 = vadd.f32 0.0, %v6711
        %6713 = vmatmul.bf16.gmra.mxu0 %v6654
        %v6714 = vpop.f32.mrf.mxu0
        %v6715 = vadd.f32 0.0, %v6714
        %v6716 = vpop.f32.mrf.mxu0
        %v6717 = vadd.f32 0.0, %v6716
        %6718 = vmatmul.bf16.gmra.mxu0 %v6657
        %v6719 = vpop.f32.mrf.mxu0
        %v6720 = vadd.f32 0.0, %v6719
        %v6721 = vpop.f32.mrf.mxu0
        %v6722 = vadd.f32 0.0, %v6721
        %6723 = vmatmul.bf16.gmra.mxu0 %v6660
        %v6724 = vpop.f32.mrf.mxu0
        %v6725 = vadd.f32 0.0, %v6724
        %v6726 = vpop.f32.mrf.mxu0
        %v6727 = vadd.f32 0.0, %v6726
        %6728 = vmatmul.bf16.gmra.mxu0 %v6663
        %v6729 = vpop.f32.mrf.mxu0
        %v6730 = vadd.f32 0.0, %v6729
        %v6731 = vpop.f32.mrf.mxu0
        %v6732 = vadd.f32 0.0, %v6731
        %6733 = vmatmul.bf16.gmra.mxu0 %v6666
        %v6734 = vpop.f32.mrf.mxu0
        %v6735 = vadd.f32 0.0, %v6734
        %v6736 = vpop.f32.mrf.mxu0
        %v6737 = vadd.f32 0.0, %v6736
        %6738 = vmatmul.bf16.gmra.mxu0 %v6669
        %v6739 = vpop.f32.mrf.mxu0
        %v6740 = vadd.f32 0.0, %v6739
        %v6741 = vpop.f32.mrf.mxu0
        %v6742 = vadd.f32 0.0, %v6741
        %6743 = vmatmul.bf16.gmra.mxu0 %v6672
        %v6744 = vpop.f32.mrf.mxu0
        %v6745 = vadd.f32 0.0, %v6744
        %v6746 = vpop.f32.mrf.mxu0
        %v6747 = vadd.f32 0.0, %v6746
        %6748 = vmatmul.bf16.gmra.mxu0 %v6675
        %v6749 = vpop.f32.mrf.mxu0
        %v6750 = vadd.f32 0.0, %v6749
        %v6751 = vpop.f32.mrf.mxu0
        %v6752 = vadd.f32 0.0, %v6751
        %6753 = vmatmul.bf16.gmra.mxu0 %v6678
        %v6754 = vpop.f32.mrf.mxu0
        %v6755 = vadd.f32 0.0, %v6754
        %v6756 = vpop.f32.mrf.mxu0
        %v6757 = vadd.f32 0.0, %v6756
        %6758 = vmatmul.bf16.gmra.mxu0 %v6681
        %v6759 = vpop.f32.mrf.mxu0
        %v6760 = vadd.f32 0.0, %v6759
        %v6761 = vpop.f32.mrf.mxu0
        %v6762 = vadd.f32 0.0, %v6761
        %6763 = vmatmul.bf16.gmra.mxu0 %v6684
        %v6764 = vpop.f32.mrf.mxu0
        %v6765 = vadd.f32 0.0, %v6764
        %v6766 = vpop.f32.mrf.mxu0
        %v6767 = vadd.f32 0.0, %v6766
        %6768 = vmatmul.bf16.gmra.mxu0 %v6687
        %v6769 = vpop.f32.mrf.mxu0
        %v6770 = vadd.f32 0.0, %v6769
        %v6771 = vpop.f32.mrf.mxu0
        %v6772 = vadd.f32 0.0, %v6771
        %6773 = vmatmul.bf16.gmra.mxu0 %v6690
        %v6774 = vpop.f32.mrf.mxu0
        %v6775 = vadd.f32 0.0, %v6774
        %v6776 = vpop.f32.mrf.mxu0
        %v6777 = vadd.f32 0.0, %v6776
        %6778 = vmatmul.bf16.gmra.mxu0 %v6693
        %v6779 = vpop.f32.mrf.mxu0
        %v6780 = vadd.f32 0.0, %v6779
        %v6781 = vpop.f32.mrf.mxu0
        %v6782 = vadd.f32 0.0, %v6781
        %6783 = vdwg.mxu0
        %v6784 = vadd.f32 %v6511, %v6705
        %v6785 = vadd.f32 %v6513, %v6707
        %v6786 = vadd.f32 %v6516, %v6710
        %v6787 = vadd.f32 %v6518, %v6712
        %v6788 = vadd.f32 %v6521, %v6715
        %v6789 = vadd.f32 %v6523, %v6717
        %v6790 = vadd.f32 %v6526, %v6720
        %v6791 = vadd.f32 %v6528, %v6722
        %v6792 = vadd.f32 %v6531, %v6725
        %v6793 = vadd.f32 %v6533, %v6727
        %v6794 = vadd.f32 %v6536, %v6730
        %v6795 = vadd.f32 %v6538, %v6732
        %v6796 = vadd.f32 %v6541, %v6735
        %v6797 = vadd.f32 %v6543, %v6737
        %v6798 = vadd.f32 %v6546, %v6740
        %v6799 = vadd.f32 %v6548, %v6742
        %v6800 = vadd.f32 %v6551, %v6745
        %v6801 = vadd.f32 %v6553, %v6747
        %v6802 = vadd.f32 %v6556, %v6750
        %v6803 = vadd.f32 %v6558, %v6752
        %v6804 = vadd.f32 %v6561, %v6755
        %v6805 = vadd.f32 %v6563, %v6757
        %v6806 = vadd.f32 %v6566, %v6760
        %v6807 = vadd.f32 %v6568, %v6762
        %v6808 = vadd.f32 %v6571, %v6765
        %v6809 = vadd.f32 %v6573, %v6767
        %v6810 = vadd.f32 %v6576, %v6770
        %v6811 = vadd.f32 %v6578, %v6772
        %v6812 = vadd.f32 %v6581, %v6775
        %v6813 = vadd.f32 %v6583, %v6777
        %v6814 = vadd.f32 %v6586, %v6780
        %v6815 = vadd.f32 %v6588, %v6782
        %v6816 = vld [vmem:[%s6170] sm:$0xff]
        %v6817 = vld [vmem:[%s6170 + $0x8] sm:$0xff]
        %v6818 = vld [vmem:[%s6170 + $0x18] sm:$0xff]
        %v6819 = vld [vmem:[%s6170 + $0x20] sm:$0xff]
        %v6820 = vld [vmem:[%s6170 + $0x30] sm:$0xff]
        %v6821 = vld [vmem:[%s6170 + $0x38] sm:$0xff]
        %v6822 = vld [vmem:[%s6170 + $0x48] sm:$0xff]
        %v6823 = vld [vmem:[%s6170 + $0x50] sm:$0xff]
        %v6824 = vld [vmem:[%s6170 + $0x60] sm:$0xff]
        %v6825 = vld [vmem:[%s6170 + $0x68] sm:$0xff]
        %v6826 = vld [vmem:[%s6170 + $0x78] sm:$0xff]
        %v6827 = vld [vmem:[%s6170 + $0x80] sm:$0xff]
        %v6828 = vld [vmem:[%s6170 + $0x90] sm:$0xff]
        %v6829 = vld [vmem:[%s6170 + $0x98] sm:$0xff]
        %v6830 = vld [vmem:[%s6170 + $0xa8] sm:$0xff]
        %v6831 = vld [vmem:[%s6170 + $0xb0] sm:$0xff]
        %v6832 = vld [vmem:[%s6170 + $0xc0] sm:$0xff]
        %v6833 = vld [vmem:[%s6170 + $0xc8] sm:$0xff]
        %v6834 = vld [vmem:[%s6170 + $0xd8] sm:$0xff]
        %v6835 = vld [vmem:[%s6170 + $0xe0] sm:$0xff]
        %v6836 = vld [vmem:[%s6170 + $0xf0] sm:$0xff]
        %v6837 = vld [vmem:[%s6170 + $0xf8] sm:$0xff]
        %v6838 = vld [vmem:[%s6170 + $0x108] sm:$0xff]
        %v6839 = vld [vmem:[%s6170 + $0x110] sm:$0xff]
        %v6840 = vld [vmem:[%s6170 + $0x120] sm:$0xff]
        %v6841 = vld [vmem:[%s6170 + $0x128] sm:$0xff]
        %v6842 = vld [vmem:[%s6170 + $0x138] sm:$0xff]
        %v6843 = vld [vmem:[%s6170 + $0x140] sm:$0xff]
        %v6844 = vld [vmem:[%s6170 + $0x150] sm:$0xff]
        %v6845 = vld [vmem:[%s6170 + $0x158] sm:$0xff]
        %v6846 = vld [vmem:[%s6170 + $0x168] sm:$0xff]
        %v6847 = vld [vmem:[%s6170 + $0x170] sm:$0xff]
        %v6848 = vpack.c.bf16 %v6817, %v6816
        %v6849 = vpack.c.bf16 %v6819, %v6818
        %v6850 = vpack.c.bf16 %v6821, %v6820
        %v6851 = vpack.c.bf16 %v6823, %v6822
        %v6852 = vpack.c.bf16 %v6825, %v6824
        %v6853 = vpack.c.bf16 %v6827, %v6826
        %v6854 = vpack.c.bf16 %v6829, %v6828
        %v6855 = vpack.c.bf16 %v6831, %v6830
        %v6856 = vpack.c.bf16 %v6833, %v6832
        %v6857 = vpack.c.bf16 %v6835, %v6834
        %v6858 = vpack.c.bf16 %v6837, %v6836
        %v6859 = vpack.c.bf16 %v6839, %v6838
        %v6860 = vpack.c.bf16 %v6841, %v6840
        %v6861 = vpack.c.bf16 %v6843, %v6842
        %v6862 = vpack.c.bf16 %v6845, %v6844
        %v6863 = vpack.c.bf16 %v6847, %v6846
        %s6864 = scalar_lea.vmem [#allocation13], 24
        %v6865 = vld [vmem:[%s6864] sm:$0xf]
        %v6866 = vld [vmem:[%s6864 + $0x4] sm:$0xf]
        %v6869 = vunpack.c.l.b16 %v6865
        %v6870 = vunpack.c.l.b16 %v6866
        %v6871 = vpack.c.b16 %v6870, %v6869
        %v6874 = vsel %vm599, %v6848, 0
        %v6877 = vsel %vm599, %v6849, 0
        %v6880 = vsel %vm599, %v6850, 0
        %v6883 = vsel %vm599, %v6851, 0
        %v6886 = vsel %vm599, %v6852, 0
        %v6889 = vsel %vm599, %v6853, 0
        %v6892 = vsel %vm599, %v6854, 0
        %v6895 = vsel %vm599, %v6855, 0
        %v6898 = vsel %vm599, %v6856, 0
        %v6901 = vsel %vm599, %v6857, 0
        %v6904 = vsel %vm599, %v6858, 0
        %v6907 = vsel %vm599, %v6859, 0
        %v6910 = vsel %vm599, %v6860, 0
        %v6913 = vsel %vm599, %v6861, 0
        %v6916 = vsel %vm599, %v6862, 0
        %v6919 = vsel %vm599, %v6863, 0
        %6921 = vmatpush.bf16.msra.mxu0 0
        %6922 = vmatpush.bf16.msra.mxu0 0
        %6923 = vmatpush.bf16.msra.mxu0 0
        %6924 = vmatpush.bf16.msra.mxu0 0
        %6925 = vmatpush.bf16.msra.mxu0 0
        %6926 = vmatpush.bf16.msra.mxu0 0
        %6927 = vmatpush.bf16.msra.mxu0 0
        %6928 = vmatpush.bf16.msra.mxu0 %v6871
        %6929 = vmatmul.bf16.gmra.mxu0 %v6874
        %v6930 = vpop.f32.mrf.mxu0
        %v6931 = vadd.f32 0.0, %v6930
        %v6932 = vpop.f32.mrf.mxu0
        %v6933 = vadd.f32 0.0, %v6932
        %6934 = vmatmul.bf16.gmra.mxu0 %v6877
        %v6935 = vpop.f32.mrf.mxu0
        %v6936 = vadd.f32 0.0, %v6935
        %v6937 = vpop.f32.mrf.mxu0
        %v6938 = vadd.f32 0.0, %v6937
        %6939 = vmatmul.bf16.gmra.mxu0 %v6880
        %v6940 = vpop.f32.mrf.mxu0
        %v6941 = vadd.f32 0.0, %v6940
        %v6942 = vpop.f32.mrf.mxu0
        %v6943 = vadd.f32 0.0, %v6942
        %6944 = vmatmul.bf16.gmra.mxu0 %v6883
        %v6945 = vpop.f32.mrf.mxu0
        %v6946 = vadd.f32 0.0, %v6945
        %v6947 = vpop.f32.mrf.mxu0
        %v6948 = vadd.f32 0.0, %v6947
        %6949 = vmatmul.bf16.gmra.mxu0 %v6886
        %v6950 = vpop.f32.mrf.mxu0
        %v6951 = vadd.f32 0.0, %v6950
        %v6952 = vpop.f32.mrf.mxu0
        %v6953 = vadd.f32 0.0, %v6952
        %6954 = vmatmul.bf16.gmra.mxu0 %v6889
        %v6955 = vpop.f32.mrf.mxu0
        %v6956 = vadd.f32 0.0, %v6955
        %v6957 = vpop.f32.mrf.mxu0
        %v6958 = vadd.f32 0.0, %v6957
        %6959 = vmatmul.bf16.gmra.mxu0 %v6892
        %v6960 = vpop.f32.mrf.mxu0
        %v6961 = vadd.f32 0.0, %v6960
        %v6962 = vpop.f32.mrf.mxu0
        %v6963 = vadd.f32 0.0, %v6962
        %6964 = vmatmul.bf16.gmra.mxu0 %v6895
        %v6965 = vpop.f32.mrf.mxu0
        %v6966 = vadd.f32 0.0, %v6965
        %v6967 = vpop.f32.mrf.mxu0
        %v6968 = vadd.f32 0.0, %v6967
        %6969 = vmatmul.bf16.gmra.mxu0 %v6898
        %v6970 = vpop.f32.mrf.mxu0
        %v6971 = vadd.f32 0.0, %v6970
        %v6972 = vpop.f32.mrf.mxu0
        %v6973 = vadd.f32 0.0, %v6972
        %6974 = vmatmul.bf16.gmra.mxu0 %v6901
        %v6975 = vpop.f32.mrf.mxu0
        %v6976 = vadd.f32 0.0, %v6975
        %v6977 = vpop.f32.mrf.mxu0
        %v6978 = vadd.f32 0.0, %v6977
        %6979 = vmatmul.bf16.gmra.mxu0 %v6904
        %v6980 = vpop.f32.mrf.mxu0
        %v6981 = vadd.f32 0.0, %v6980
        %v6982 = vpop.f32.mrf.mxu0
        %v6983 = vadd.f32 0.0, %v6982
        %6984 = vmatmul.bf16.gmra.mxu0 %v6907
        %v6985 = vpop.f32.mrf.mxu0
        %v6986 = vadd.f32 0.0, %v6985
        %v6987 = vpop.f32.mrf.mxu0
        %v6988 = vadd.f32 0.0, %v6987
        %6989 = vmatmul.bf16.gmra.mxu0 %v6910
        %v6990 = vpop.f32.mrf.mxu0
        %v6991 = vadd.f32 0.0, %v6990
        %v6992 = vpop.f32.mrf.mxu0
        %v6993 = vadd.f32 0.0, %v6992
        %6994 = vmatmul.bf16.gmra.mxu0 %v6913
        %v6995 = vpop.f32.mrf.mxu0
        %v6996 = vadd.f32 0.0, %v6995
        %v6997 = vpop.f32.mrf.mxu0
        %v6998 = vadd.f32 0.0, %v6997
        %6999 = vmatmul.bf16.gmra.mxu0 %v6916
        %v7000 = vpop.f32.mrf.mxu0
        %v7001 = vadd.f32 0.0, %v7000
        %v7002 = vpop.f32.mrf.mxu0
        %v7003 = vadd.f32 0.0, %v7002
        %7004 = vmatmul.bf16.gmra.mxu0 %v6919
        %v7005 = vpop.f32.mrf.mxu0
        %v7006 = vadd.f32 0.0, %v7005
        %v7007 = vpop.f32.mrf.mxu0
        %v7008 = vadd.f32 0.0, %v7007
        %7009 = vdwg.mxu0
        %v7010 = vadd.f32 %v6784, %v6931
        %v7011 = vadd.f32 %v6785, %v6933
        %v7012 = vadd.f32 %v6786, %v6936
        %v7013 = vadd.f32 %v6787, %v6938
        %v7014 = vadd.f32 %v6788, %v6941
        %v7015 = vadd.f32 %v6789, %v6943
        %v7016 = vadd.f32 %v6790, %v6946
        %v7017 = vadd.f32 %v6791, %v6948
        %v7018 = vadd.f32 %v6792, %v6951
        %v7019 = vadd.f32 %v6793, %v6953
        %v7020 = vadd.f32 %v6794, %v6956
        %v7021 = vadd.f32 %v6795, %v6958
        %v7022 = vadd.f32 %v6796, %v6961
        %v7023 = vadd.f32 %v6797, %v6963
        %v7024 = vadd.f32 %v6798, %v6966
        %v7025 = vadd.f32 %v6799, %v6968
        %v7026 = vadd.f32 %v6800, %v6971
        %v7027 = vadd.f32 %v6801, %v6973
        %v7028 = vadd.f32 %v6802, %v6976
        %v7029 = vadd.f32 %v6803, %v6978
        %v7030 = vadd.f32 %v6804, %v6981
        %v7031 = vadd.f32 %v6805, %v6983
        %v7032 = vadd.f32 %v6806, %v6986
        %v7033 = vadd.f32 %v6807, %v6988
        %v7034 = vadd.f32 %v6808, %v6991
        %v7035 = vadd.f32 %v6809, %v6993
        %v7036 = vadd.f32 %v6810, %v6996
        %v7037 = vadd.f32 %v6811, %v6998
        %v7038 = vadd.f32 %v6812, %v7001
        %v7039 = vadd.f32 %v6813, %v7003
        %v7040 = vadd.f32 %v6814, %v7006
        %v7041 = vadd.f32 %v6815, %v7008
        %v7042 = vld [vmem:[%s6170 + $0x1] sm:$0xff]
        %v7043 = vld [vmem:[%s6170 + $0x9] sm:$0xff]
        %v7044 = vld [vmem:[%s6170 + $0x19] sm:$0xff]
        %v7045 = vld [vmem:[%s6170 + $0x21] sm:$0xff]
        %v7046 = vld [vmem:[%s6170 + $0x31] sm:$0xff]
        %v7047 = vld [vmem:[%s6170 + $0x39] sm:$0xff]
        %v7048 = vld [vmem:[%s6170 + $0x49] sm:$0xff]
        %v7049 = vld [vmem:[%s6170 + $0x51] sm:$0xff]
        %v7050 = vld [vmem:[%s6170 + $0x61] sm:$0xff]
        %v7051 = vld [vmem:[%s6170 + $0x69] sm:$0xff]
        %v7052 = vld [vmem:[%s6170 + $0x79] sm:$0xff]
        %v7053 = vld [vmem:[%s6170 + $0x81] sm:$0xff]
        %v7054 = vld [vmem:[%s6170 + $0x91] sm:$0xff]
        %v7055 = vld [vmem:[%s6170 + $0x99] sm:$0xff]
        %v7056 = vld [vmem:[%s6170 + $0xa9] sm:$0xff]
        %v7057 = vld [vmem:[%s6170 + $0xb1] sm:$0xff]
        %v7058 = vld [vmem:[%s6170 + $0xc1] sm:$0xff]
        %v7059 = vld [vmem:[%s6170 + $0xc9] sm:$0xff]
        %v7060 = vld [vmem:[%s6170 + $0xd9] sm:$0xff]
        %v7061 = vld [vmem:[%s6170 + $0xe1] sm:$0xff]
        %v7062 = vld [vmem:[%s6170 + $0xf1] sm:$0xff]
        %v7063 = vld [vmem:[%s6170 + $0xf9] sm:$0xff]
        %v7064 = vld [vmem:[%s6170 + $0x109] sm:$0xff]
        %v7065 = vld [vmem:[%s6170 + $0x111] sm:$0xff]
        %v7066 = vld [vmem:[%s6170 + $0x121] sm:$0xff]
        %v7067 = vld [vmem:[%s6170 + $0x129] sm:$0xff]
        %v7068 = vld [vmem:[%s6170 + $0x139] sm:$0xff]
        %v7069 = vld [vmem:[%s6170 + $0x141] sm:$0xff]
        %v7070 = vld [vmem:[%s6170 + $0x151] sm:$0xff]
        %v7071 = vld [vmem:[%s6170 + $0x159] sm:$0xff]
        %v7072 = vld [vmem:[%s6170 + $0x169] sm:$0xff]
        %v7073 = vld [vmem:[%s6170 + $0x171] sm:$0xff]
        %v7074 = vpack.c.bf16 %v7043, %v7042
        %v7075 = vpack.c.bf16 %v7045, %v7044
        %v7076 = vpack.c.bf16 %v7047, %v7046
        %v7077 = vpack.c.bf16 %v7049, %v7048
        %v7078 = vpack.c.bf16 %v7051, %v7050
        %v7079 = vpack.c.bf16 %v7053, %v7052
        %v7080 = vpack.c.bf16 %v7055, %v7054
        %v7081 = vpack.c.bf16 %v7057, %v7056
        %v7082 = vpack.c.bf16 %v7059, %v7058
        %v7083 = vpack.c.bf16 %v7061, %v7060
        %v7084 = vpack.c.bf16 %v7063, %v7062
        %v7085 = vpack.c.bf16 %v7065, %v7064
        %v7086 = vpack.c.bf16 %v7067, %v7066
        %v7087 = vpack.c.bf16 %v7069, %v7068
        %v7088 = vpack.c.bf16 %v7071, %v7070
        %v7089 = vpack.c.bf16 %v7073, %v7072
        %s7090 = scalar_lea.vmem [#allocation13], 32
        %v7091 = vld [vmem:[%s7090] sm:$0xf]
        %v7092 = vld [vmem:[%s7090 + $0x4] sm:$0xf]
        %v7095 = vunpack.c.l.b16 %v7091
        %v7096 = vunpack.c.l.b16 %v7092
        %v7097 = vpack.c.b16 %v7096, %v7095
        %v7100 = vsel %vm599, %v7074, 0
        %v7103 = vsel %vm599, %v7075, 0
        %v7106 = vsel %vm599, %v7076, 0
        %v7109 = vsel %vm599, %v7077, 0
        %v7112 = vsel %vm599, %v7078, 0
        %v7115 = vsel %vm599, %v7079, 0
        %v7118 = vsel %vm599, %v7080, 0
        %v7121 = vsel %vm599, %v7081, 0
        %v7124 = vsel %vm599, %v7082, 0
        %v7127 = vsel %vm599, %v7083, 0
        %v7130 = vsel %vm599, %v7084, 0
        %v7133 = vsel %vm599, %v7085, 0
        %v7136 = vsel %vm599, %v7086, 0
        %v7139 = vsel %vm599, %v7087, 0
        %v7142 = vsel %vm599, %v7088, 0
        %v7145 = vsel %vm599, %v7089, 0
        %7147 = vmatpush.bf16.msra.mxu0 0
        %7148 = vmatpush.bf16.msra.mxu0 0
        %7149 = vmatpush.bf16.msra.mxu0 0
        %7150 = vmatpush.bf16.msra.mxu0 0
        %7151 = vmatpush.bf16.msra.mxu0 0
        %7152 = vmatpush.bf16.msra.mxu0 0
        %7153 = vmatpush.bf16.msra.mxu0 0
        %7154 = vmatpush.bf16.msra.mxu0 %v7097
        %7155 = vmatmul.bf16.gmra.mxu0 %v7100
        %v7156 = vpop.f32.mrf.mxu0
        %v7157 = vadd.f32 0.0, %v7156
        %v7158 = vpop.f32.mrf.mxu0
        %v7159 = vadd.f32 0.0, %v7158
        %7160 = vmatmul.bf16.gmra.mxu0 %v7103
        %v7161 = vpop.f32.mrf.mxu0
        %v7162 = vadd.f32 0.0, %v7161
        %v7163 = vpop.f32.mrf.mxu0
        %v7164 = vadd.f32 0.0, %v7163
        %7165 = vmatmul.bf16.gmra.mxu0 %v7106
        %v7166 = vpop.f32.mrf.mxu0
        %v7167 = vadd.f32 0.0, %v7166
        %v7168 = vpop.f32.mrf.mxu0
        %v7169 = vadd.f32 0.0, %v7168
        %7170 = vmatmul.bf16.gmra.mxu0 %v7109
        %v7171 = vpop.f32.mrf.mxu0
        %v7172 = vadd.f32 0.0, %v7171
        %v7173 = vpop.f32.mrf.mxu0
        %v7174 = vadd.f32 0.0, %v7173
        %7175 = vmatmul.bf16.gmra.mxu0 %v7112
        %v7176 = vpop.f32.mrf.mxu0
        %v7177 = vadd.f32 0.0, %v7176
        %v7178 = vpop.f32.mrf.mxu0
        %v7179 = vadd.f32 0.0, %v7178
        %7180 = vmatmul.bf16.gmra.mxu0 %v7115
        %v7181 = vpop.f32.mrf.mxu0
        %v7182 = vadd.f32 0.0, %v7181
        %v7183 = vpop.f32.mrf.mxu0
        %v7184 = vadd.f32 0.0, %v7183
        %7185 = vmatmul.bf16.gmra.mxu0 %v7118
        %v7186 = vpop.f32.mrf.mxu0
        %v7187 = vadd.f32 0.0, %v7186
        %v7188 = vpop.f32.mrf.mxu0
        %v7189 = vadd.f32 0.0, %v7188
        %7190 = vmatmul.bf16.gmra.mxu0 %v7121
        %v7191 = vpop.f32.mrf.mxu0
        %v7192 = vadd.f32 0.0, %v7191
        %v7193 = vpop.f32.mrf.mxu0
        %v7194 = vadd.f32 0.0, %v7193
        %7195 = vmatmul.bf16.gmra.mxu0 %v7124
        %v7196 = vpop.f32.mrf.mxu0
        %v7197 = vadd.f32 0.0, %v7196
        %v7198 = vpop.f32.mrf.mxu0
        %v7199 = vadd.f32 0.0, %v7198
        %7200 = vmatmul.bf16.gmra.mxu0 %v7127
        %v7201 = vpop.f32.mrf.mxu0
        %v7202 = vadd.f32 0.0, %v7201
        %v7203 = vpop.f32.mrf.mxu0
        %v7204 = vadd.f32 0.0, %v7203
        %7205 = vmatmul.bf16.gmra.mxu0 %v7130
        %v7206 = vpop.f32.mrf.mxu0
        %v7207 = vadd.f32 0.0, %v7206
        %v7208 = vpop.f32.mrf.mxu0
        %v7209 = vadd.f32 0.0, %v7208
        %7210 = vmatmul.bf16.gmra.mxu0 %v7133
        %v7211 = vpop.f32.mrf.mxu0
        %v7212 = vadd.f32 0.0, %v7211
        %v7213 = vpop.f32.mrf.mxu0
        %v7214 = vadd.f32 0.0, %v7213
        %7215 = vmatmul.bf16.gmra.mxu0 %v7136
        %v7216 = vpop.f32.mrf.mxu0
        %v7217 = vadd.f32 0.0, %v7216
        %v7218 = vpop.f32.mrf.mxu0
        %v7219 = vadd.f32 0.0, %v7218
        %7220 = vmatmul.bf16.gmra.mxu0 %v7139
        %v7221 = vpop.f32.mrf.mxu0
        %v7222 = vadd.f32 0.0, %v7221
        %v7223 = vpop.f32.mrf.mxu0
        %v7224 = vadd.f32 0.0, %v7223
        %7225 = vmatmul.bf16.gmra.mxu0 %v7142
        %v7226 = vpop.f32.mrf.mxu0
        %v7227 = vadd.f32 0.0, %v7226
        %v7228 = vpop.f32.mrf.mxu0
        %v7229 = vadd.f32 0.0, %v7228
        %7230 = vmatmul.bf16.gmra.mxu0 %v7145
        %v7231 = vpop.f32.mrf.mxu0
        %v7232 = vadd.f32 0.0, %v7231
        %v7233 = vpop.f32.mrf.mxu0
        %v7234 = vadd.f32 0.0, %v7233
        %7235 = vdwg.mxu0
        %v7236 = vadd.f32 %v7010, %v7157
        %v7237 = vadd.f32 %v7011, %v7159
        %v7238 = vadd.f32 %v7012, %v7162
        %v7239 = vadd.f32 %v7013, %v7164
        %v7240 = vadd.f32 %v7014, %v7167
        %v7241 = vadd.f32 %v7015, %v7169
        %v7242 = vadd.f32 %v7016, %v7172
        %v7243 = vadd.f32 %v7017, %v7174
        %v7244 = vadd.f32 %v7018, %v7177
        %v7245 = vadd.f32 %v7019, %v7179
        %v7246 = vadd.f32 %v7020, %v7182
        %v7247 = vadd.f32 %v7021, %v7184
        %v7248 = vadd.f32 %v7022, %v7187
        %v7249 = vadd.f32 %v7023, %v7189
        %v7250 = vadd.f32 %v7024, %v7192
        %v7251 = vadd.f32 %v7025, %v7194
        %v7252 = vadd.f32 %v7026, %v7197
        %v7253 = vadd.f32 %v7027, %v7199
        %v7254 = vadd.f32 %v7028, %v7202
        %v7255 = vadd.f32 %v7029, %v7204
        %v7256 = vadd.f32 %v7030, %v7207
        %v7257 = vadd.f32 %v7031, %v7209
        %v7258 = vadd.f32 %v7032, %v7212
        %v7259 = vadd.f32 %v7033, %v7214
        %v7260 = vadd.f32 %v7034, %v7217
        %v7261 = vadd.f32 %v7035, %v7219
        %v7262 = vadd.f32 %v7036, %v7222
        %v7263 = vadd.f32 %v7037, %v7224
        %v7264 = vadd.f32 %v7038, %v7227
        %v7265 = vadd.f32 %v7039, %v7229
        %v7266 = vadd.f32 %v7040, %v7232
        %v7267 = vadd.f32 %v7041, %v7234
        %v7268 = vld [vmem:[%s6170 + $0x2] sm:$0xff]
        %v7269 = vld [vmem:[%s6170 + $0xa] sm:$0xff]
        %v7270 = vld [vmem:[%s6170 + $0x1a] sm:$0xff]
        %v7271 = vld [vmem:[%s6170 + $0x22] sm:$0xff]
        %v7272 = vld [vmem:[%s6170 + $0x32] sm:$0xff]
        %v7273 = vld [vmem:[%s6170 + $0x3a] sm:$0xff]
        %v7274 = vld [vmem:[%s6170 + $0x4a] sm:$0xff]
        %v7275 = vld [vmem:[%s6170 + $0x52] sm:$0xff]
        %v7276 = vld [vmem:[%s6170 + $0x62] sm:$0xff]
        %v7277 = vld [vmem:[%s6170 + $0x6a] sm:$0xff]
        %v7278 = vld [vmem:[%s6170 + $0x7a] sm:$0xff]
        %v7279 = vld [vmem:[%s6170 + $0x82] sm:$0xff]
        %v7280 = vld [vmem:[%s6170 + $0x92] sm:$0xff]
        %v7281 = vld [vmem:[%s6170 + $0x9a] sm:$0xff]
        %v7282 = vld [vmem:[%s6170 + $0xaa] sm:$0xff]
        %v7283 = vld [vmem:[%s6170 + $0xb2] sm:$0xff]
        %v7284 = vld [vmem:[%s6170 + $0xc2] sm:$0xff]
        %v7285 = vld [vmem:[%s6170 + $0xca] sm:$0xff]
        %v7286 = vld [vmem:[%s6170 + $0xda] sm:$0xff]
        %v7287 = vld [vmem:[%s6170 + $0xe2] sm:$0xff]
        %v7288 = vld [vmem:[%s6170 + $0xf2] sm:$0xff]
        %v7289 = vld [vmem:[%s6170 + $0xfa] sm:$0xff]
        %v7290 = vld [vmem:[%s6170 + $0x10a] sm:$0xff]
        %v7291 = vld [vmem:[%s6170 + $0x112] sm:$0xff]
        %v7292 = vld [vmem:[%s6170 + $0x122] sm:$0xff]
        %v7293 = vld [vmem:[%s6170 + $0x12a] sm:$0xff]
        %v7294 = vld [vmem:[%s6170 + $0x13a] sm:$0xff]
        %v7295 = vld [vmem:[%s6170 + $0x142] sm:$0xff]
        %v7296 = vld [vmem:[%s6170 + $0x152] sm:$0xff]
        %v7297 = vld [vmem:[%s6170 + $0x15a] sm:$0xff]
        %v7298 = vld [vmem:[%s6170 + $0x16a] sm:$0xff]
        %v7299 = vld [vmem:[%s6170 + $0x172] sm:$0xff]
        %v7300 = vpack.c.bf16 %v7269, %v7268
        %v7301 = vpack.c.bf16 %v7271, %v7270
        %v7302 = vpack.c.bf16 %v7273, %v7272
        %v7303 = vpack.c.bf16 %v7275, %v7274
        %v7304 = vpack.c.bf16 %v7277, %v7276
        %v7305 = vpack.c.bf16 %v7279, %v7278
        %v7306 = vpack.c.bf16 %v7281, %v7280
        %v7307 = vpack.c.bf16 %v7283, %v7282
        %v7308 = vpack.c.bf16 %v7285, %v7284
        %v7309 = vpack.c.bf16 %v7287, %v7286
        %v7310 = vpack.c.bf16 %v7289, %v7288
        %v7311 = vpack.c.bf16 %v7291, %v7290
        %v7312 = vpack.c.bf16 %v7293, %v7292
        %v7313 = vpack.c.bf16 %v7295, %v7294
        %v7314 = vpack.c.bf16 %v7297, %v7296
        %v7315 = vpack.c.bf16 %v7299, %v7298
        %s7316 = scalar_lea.vmem [#allocation13], 40
        %v7317 = vld [vmem:[%s7316] sm:$0xf]
        %v7318 = vld [vmem:[%s7316 + $0x4] sm:$0xf]
        %v7321 = vunpack.c.l.b16 %v7317
        %v7322 = vunpack.c.l.b16 %v7318
        %v7323 = vpack.c.b16 %v7322, %v7321
        %v7326 = vsel %vm599, %v7300, 0
        %v7329 = vsel %vm599, %v7301, 0
        %v7332 = vsel %vm599, %v7302, 0
        %v7335 = vsel %vm599, %v7303, 0
        %v7338 = vsel %vm599, %v7304, 0
        %v7341 = vsel %vm599, %v7305, 0
        %v7344 = vsel %vm599, %v7306, 0
        %v7347 = vsel %vm599, %v7307, 0
        %v7350 = vsel %vm599, %v7308, 0
        %v7353 = vsel %vm599, %v7309, 0
        %v7356 = vsel %vm599, %v7310, 0
        %v7359 = vsel %vm599, %v7311, 0
        %v7362 = vsel %vm599, %v7312, 0
        %v7365 = vsel %vm599, %v7313, 0
        %v7368 = vsel %vm599, %v7314, 0
        %v7371 = vsel %vm599, %v7315, 0
        %7373 = vmatpush.bf16.msra.mxu0 0
        %7374 = vmatpush.bf16.msra.mxu0 0
        %7375 = vmatpush.bf16.msra.mxu0 0
        %7376 = vmatpush.bf16.msra.mxu0 0
        %7377 = vmatpush.bf16.msra.mxu0 0
        %7378 = vmatpush.bf16.msra.mxu0 0
        %7379 = vmatpush.bf16.msra.mxu0 0
        %7380 = vmatpush.bf16.msra.mxu0 %v7323
        %7381 = vmatmul.bf16.gmra.mxu0 %v7326
        %v7382 = vpop.f32.mrf.mxu0
        %v7383 = vadd.f32 0.0, %v7382
        %v7384 = vpop.f32.mrf.mxu0
        %v7385 = vadd.f32 0.0, %v7384
        %7386 = vmatmul.bf16.gmra.mxu0 %v7329
        %v7387 = vpop.f32.mrf.mxu0
        %v7388 = vadd.f32 0.0, %v7387
        %v7389 = vpop.f32.mrf.mxu0
        %v7390 = vadd.f32 0.0, %v7389
        %7391 = vmatmul.bf16.gmra.mxu0 %v7332
        %v7392 = vpop.f32.mrf.mxu0
        %v7393 = vadd.f32 0.0, %v7392
        %v7394 = vpop.f32.mrf.mxu0
        %v7395 = vadd.f32 0.0, %v7394
        %7396 = vmatmul.bf16.gmra.mxu0 %v7335
        %v7397 = vpop.f32.mrf.mxu0
        %v7398 = vadd.f32 0.0, %v7397
        %v7399 = vpop.f32.mrf.mxu0
        %v7400 = vadd.f32 0.0, %v7399
        %7401 = vmatmul.bf16.gmra.mxu0 %v7338
        %v7402 = vpop.f32.mrf.mxu0
        %v7403 = vadd.f32 0.0, %v7402
        %v7404 = vpop.f32.mrf.mxu0
        %v7405 = vadd.f32 0.0, %v7404
        %7406 = vmatmul.bf16.gmra.mxu0 %v7341
        %v7407 = vpop.f32.mrf.mxu0
        %v7408 = vadd.f32 0.0, %v7407
        %v7409 = vpop.f32.mrf.mxu0
        %v7410 = vadd.f32 0.0, %v7409
        %7411 = vmatmul.bf16.gmra.mxu0 %v7344
        %v7412 = vpop.f32.mrf.mxu0
        %v7413 = vadd.f32 0.0, %v7412
        %v7414 = vpop.f32.mrf.mxu0
        %v7415 = vadd.f32 0.0, %v7414
        %7416 = vmatmul.bf16.gmra.mxu0 %v7347
        %v7417 = vpop.f32.mrf.mxu0
        %v7418 = vadd.f32 0.0, %v7417
        %v7419 = vpop.f32.mrf.mxu0
        %v7420 = vadd.f32 0.0, %v7419
        %7421 = vmatmul.bf16.gmra.mxu0 %v7350
        %v7422 = vpop.f32.mrf.mxu0
        %v7423 = vadd.f32 0.0, %v7422
        %v7424 = vpop.f32.mrf.mxu0
        %v7425 = vadd.f32 0.0, %v7424
        %7426 = vmatmul.bf16.gmra.mxu0 %v7353
        %v7427 = vpop.f32.mrf.mxu0
        %v7428 = vadd.f32 0.0, %v7427
        %v7429 = vpop.f32.mrf.mxu0
        %v7430 = vadd.f32 0.0, %v7429
        %7431 = vmatmul.bf16.gmra.mxu0 %v7356
        %v7432 = vpop.f32.mrf.mxu0
        %v7433 = vadd.f32 0.0, %v7432
        %v7434 = vpop.f32.mrf.mxu0
        %v7435 = vadd.f32 0.0, %v7434
        %7436 = vmatmul.bf16.gmra.mxu0 %v7359
        %v7437 = vpop.f32.mrf.mxu0
        %v7438 = vadd.f32 0.0, %v7437
        %v7439 = vpop.f32.mrf.mxu0
        %v7440 = vadd.f32 0.0, %v7439
        %7441 = vmatmul.bf16.gmra.mxu0 %v7362
        %v7442 = vpop.f32.mrf.mxu0
        %v7443 = vadd.f32 0.0, %v7442
        %v7444 = vpop.f32.mrf.mxu0
        %v7445 = vadd.f32 0.0, %v7444
        %7446 = vmatmul.bf16.gmra.mxu0 %v7365
        %v7447 = vpop.f32.mrf.mxu0
        %v7448 = vadd.f32 0.0, %v7447
        %v7449 = vpop.f32.mrf.mxu0
        %v7450 = vadd.f32 0.0, %v7449
        %7451 = vmatmul.bf16.gmra.mxu0 %v7368
        %v7452 = vpop.f32.mrf.mxu0
        %v7453 = vadd.f32 0.0, %v7452
        %v7454 = vpop.f32.mrf.mxu0
        %v7455 = vadd.f32 0.0, %v7454
        %7456 = vmatmul.bf16.gmra.mxu0 %v7371
        %v7457 = vpop.f32.mrf.mxu0
        %v7458 = vadd.f32 0.0, %v7457
        %v7459 = vpop.f32.mrf.mxu0
        %v7460 = vadd.f32 0.0, %v7459
        %7461 = vdwg.mxu0
        %v7462 = vadd.f32 %v7236, %v7383
        %v7463 = vadd.f32 %v7237, %v7385
        %v7464 = vadd.f32 %v7238, %v7388
        %v7465 = vadd.f32 %v7239, %v7390
        %v7466 = vadd.f32 %v7240, %v7393
        %v7467 = vadd.f32 %v7241, %v7395
        %v7468 = vadd.f32 %v7242, %v7398
        %v7469 = vadd.f32 %v7243, %v7400
        %v7470 = vadd.f32 %v7244, %v7403
        %v7471 = vadd.f32 %v7245, %v7405
        %v7472 = vadd.f32 %v7246, %v7408
        %v7473 = vadd.f32 %v7247, %v7410
        %v7474 = vadd.f32 %v7248, %v7413
        %v7475 = vadd.f32 %v7249, %v7415
        %v7476 = vadd.f32 %v7250, %v7418
        %v7477 = vadd.f32 %v7251, %v7420
        %v7478 = vadd.f32 %v7252, %v7423
        %v7479 = vadd.f32 %v7253, %v7425
        %v7480 = vadd.f32 %v7254, %v7428
        %v7481 = vadd.f32 %v7255, %v7430
        %v7482 = vadd.f32 %v7256, %v7433
        %v7483 = vadd.f32 %v7257, %v7435
        %v7484 = vadd.f32 %v7258, %v7438
        %v7485 = vadd.f32 %v7259, %v7440
        %v7486 = vadd.f32 %v7260, %v7443
        %v7487 = vadd.f32 %v7261, %v7445
        %v7488 = vadd.f32 %v7262, %v7448
        %v7489 = vadd.f32 %v7263, %v7450
        %v7490 = vadd.f32 %v7264, %v7453
        %v7491 = vadd.f32 %v7265, %v7455
        %v7492 = vadd.f32 %v7266, %v7458
        %v7493 = vadd.f32 %v7267, %v7460
        %s7494 = scalar_lea.vmem [#allocation4], 48
        %v7495 = vld [vmem:[%s7494] sm:$0xff]
        %v7496 = vld [vmem:[%s7494 + $0x8] sm:$0xff]
        %v7497 = vld [vmem:[%s7494 + $0x18] sm:$0xff]
        %v7498 = vld [vmem:[%s7494 + $0x20] sm:$0xff]
        %v7499 = vld [vmem:[%s7494 + $0x30] sm:$0xff]
        %v7500 = vld [vmem:[%s7494 + $0x38] sm:$0xff]
        %v7501 = vld [vmem:[%s7494 + $0x48] sm:$0xff]
        %v7502 = vld [vmem:[%s7494 + $0x50] sm:$0xff]
        %v7503 = vld [vmem:[%s7494 + $0x60] sm:$0xff]
        %v7504 = vld [vmem:[%s7494 + $0x68] sm:$0xff]
        %v7505 = vld [vmem:[%s7494 + $0x78] sm:$0xff]
        %v7506 = vld [vmem:[%s7494 + $0x80] sm:$0xff]
        %v7507 = vld [vmem:[%s7494 + $0x90] sm:$0xff]
        %v7508 = vld [vmem:[%s7494 + $0x98] sm:$0xff]
        %v7509 = vld [vmem:[%s7494 + $0xa8] sm:$0xff]
        %v7510 = vld [vmem:[%s7494 + $0xb0] sm:$0xff]
        %v7511 = vld [vmem:[%s7494 + $0xc0] sm:$0xff]
        %v7512 = vld [vmem:[%s7494 + $0xc8] sm:$0xff]
        %v7513 = vld [vmem:[%s7494 + $0xd8] sm:$0xff]
        %v7514 = vld [vmem:[%s7494 + $0xe0] sm:$0xff]
        %v7515 = vld [vmem:[%s7494 + $0xf0] sm:$0xff]
        %v7516 = vld [vmem:[%s7494 + $0xf8] sm:$0xff]
        %v7517 = vld [vmem:[%s7494 + $0x108] sm:$0xff]
        %v7518 = vld [vmem:[%s7494 + $0x110] sm:$0xff]
        %v7519 = vld [vmem:[%s7494 + $0x120] sm:$0xff]
        %v7520 = vld [vmem:[%s7494 + $0x128] sm:$0xff]
        %v7521 = vld [vmem:[%s7494 + $0x138] sm:$0xff]
        %v7522 = vld [vmem:[%s7494 + $0x140] sm:$0xff]
        %v7523 = vld [vmem:[%s7494 + $0x150] sm:$0xff]
        %v7524 = vld [vmem:[%s7494 + $0x158] sm:$0xff]
        %v7525 = vld [vmem:[%s7494 + $0x168] sm:$0xff]
        %v7526 = vld [vmem:[%s7494 + $0x170] sm:$0xff]
        %v7527 = vpack.c.bf16 %v7496, %v7495
        %v7528 = vpack.c.bf16 %v7498, %v7497
        %v7529 = vpack.c.bf16 %v7500, %v7499
        %v7530 = vpack.c.bf16 %v7502, %v7501
        %v7531 = vpack.c.bf16 %v7504, %v7503
        %v7532 = vpack.c.bf16 %v7506, %v7505
        %v7533 = vpack.c.bf16 %v7508, %v7507
        %v7534 = vpack.c.bf16 %v7510, %v7509
        %v7535 = vpack.c.bf16 %v7512, %v7511
        %v7536 = vpack.c.bf16 %v7514, %v7513
        %v7537 = vpack.c.bf16 %v7516, %v7515
        %v7538 = vpack.c.bf16 %v7518, %v7517
        %v7539 = vpack.c.bf16 %v7520, %v7519
        %v7540 = vpack.c.bf16 %v7522, %v7521
        %v7541 = vpack.c.bf16 %v7524, %v7523
        %v7542 = vpack.c.bf16 %v7526, %v7525
        %s7543 = scalar_lea.vmem [#allocation13], 48
        %v7544 = vld [vmem:[%s7543] sm:$0xf]
        %v7545 = vld [vmem:[%s7543 + $0x4] sm:$0xf]
        %v7548 = vunpack.c.l.b16 %v7544
        %v7549 = vunpack.c.l.b16 %v7545
        %v7550 = vpack.c.b16 %v7549, %v7548
        %v7553 = vsel %vm599, %v7527, 0
        %v7556 = vsel %vm599, %v7528, 0
        %v7559 = vsel %vm599, %v7529, 0
        %v7562 = vsel %vm599, %v7530, 0
        %v7565 = vsel %vm599, %v7531, 0
        %v7568 = vsel %vm599, %v7532, 0
        %v7571 = vsel %vm599, %v7533, 0
        %v7574 = vsel %vm599, %v7534, 0
        %v7577 = vsel %vm599, %v7535, 0
        %v7580 = vsel %vm599, %v7536, 0
        %v7583 = vsel %vm599, %v7537, 0
        %v7586 = vsel %vm599, %v7538, 0
        %v7589 = vsel %vm599, %v7539, 0
        %v7592 = vsel %vm599, %v7540, 0
        %v7595 = vsel %vm599, %v7541, 0
        %v7598 = vsel %vm599, %v7542, 0
        %7600 = vmatpush.bf16.msra.mxu0 0
        %7601 = vmatpush.bf16.msra.mxu0 0
        %7602 = vmatpush.bf16.msra.mxu0 0
        %7603 = vmatpush.bf16.msra.mxu0 0
        %7604 = vmatpush.bf16.msra.mxu0 0
        %7605 = vmatpush.bf16.msra.mxu0 0
        %7606 = vmatpush.bf16.msra.mxu0 0
        %7607 = vmatpush.bf16.msra.mxu0 %v7550
        %7608 = vmatmul.bf16.gmra.mxu0 %v7553
        %v7609 = vpop.f32.mrf.mxu0
        %v7610 = vadd.f32 0.0, %v7609
        %v7611 = vpop.f32.mrf.mxu0
        %v7612 = vadd.f32 0.0, %v7611
        %7613 = vmatmul.bf16.gmra.mxu0 %v7556
        %v7614 = vpop.f32.mrf.mxu0
        %v7615 = vadd.f32 0.0, %v7614
        %v7616 = vpop.f32.mrf.mxu0
        %v7617 = vadd.f32 0.0, %v7616
        %7618 = vmatmul.bf16.gmra.mxu0 %v7559
        %v7619 = vpop.f32.mrf.mxu0
        %v7620 = vadd.f32 0.0, %v7619
        %v7621 = vpop.f32.mrf.mxu0
        %v7622 = vadd.f32 0.0, %v7621
        %7623 = vmatmul.bf16.gmra.mxu0 %v7562
        %v7624 = vpop.f32.mrf.mxu0
        %v7625 = vadd.f32 0.0, %v7624
        %v7626 = vpop.f32.mrf.mxu0
        %v7627 = vadd.f32 0.0, %v7626
        %7628 = vmatmul.bf16.gmra.mxu0 %v7565
        %v7629 = vpop.f32.mrf.mxu0
        %v7630 = vadd.f32 0.0, %v7629
        %v7631 = vpop.f32.mrf.mxu0
        %v7632 = vadd.f32 0.0, %v7631
        %7633 = vmatmul.bf16.gmra.mxu0 %v7568
        %v7634 = vpop.f32.mrf.mxu0
        %v7635 = vadd.f32 0.0, %v7634
        %v7636 = vpop.f32.mrf.mxu0
        %v7637 = vadd.f32 0.0, %v7636
        %7638 = vmatmul.bf16.gmra.mxu0 %v7571
        %v7639 = vpop.f32.mrf.mxu0
        %v7640 = vadd.f32 0.0, %v7639
        %v7641 = vpop.f32.mrf.mxu0
        %v7642 = vadd.f32 0.0, %v7641
        %7643 = vmatmul.bf16.gmra.mxu0 %v7574
        %v7644 = vpop.f32.mrf.mxu0
        %v7645 = vadd.f32 0.0, %v7644
        %v7646 = vpop.f32.mrf.mxu0
        %v7647 = vadd.f32 0.0, %v7646
        %7648 = vmatmul.bf16.gmra.mxu0 %v7577
        %v7649 = vpop.f32.mrf.mxu0
        %v7650 = vadd.f32 0.0, %v7649
        %v7651 = vpop.f32.mrf.mxu0
        %v7652 = vadd.f32 0.0, %v7651
        %7653 = vmatmul.bf16.gmra.mxu0 %v7580
        %v7654 = vpop.f32.mrf.mxu0
        %v7655 = vadd.f32 0.0, %v7654
        %v7656 = vpop.f32.mrf.mxu0
        %v7657 = vadd.f32 0.0, %v7656
        %7658 = vmatmul.bf16.gmra.mxu0 %v7583
        %v7659 = vpop.f32.mrf.mxu0
        %v7660 = vadd.f32 0.0, %v7659
        %v7661 = vpop.f32.mrf.mxu0
        %v7662 = vadd.f32 0.0, %v7661
        %7663 = vmatmul.bf16.gmra.mxu0 %v7586
        %v7664 = vpop.f32.mrf.mxu0
        %v7665 = vadd.f32 0.0, %v7664
        %v7666 = vpop.f32.mrf.mxu0
        %v7667 = vadd.f32 0.0, %v7666
        %7668 = vmatmul.bf16.gmra.mxu0 %v7589
        %v7669 = vpop.f32.mrf.mxu0
        %v7670 = vadd.f32 0.0, %v7669
        %v7671 = vpop.f32.mrf.mxu0
        %v7672 = vadd.f32 0.0, %v7671
        %7673 = vmatmul.bf16.gmra.mxu0 %v7592
        %v7674 = vpop.f32.mrf.mxu0
        %v7675 = vadd.f32 0.0, %v7674
        %v7676 = vpop.f32.mrf.mxu0
        %v7677 = vadd.f32 0.0, %v7676
        %7678 = vmatmul.bf16.gmra.mxu0 %v7595
        %v7679 = vpop.f32.mrf.mxu0
        %v7680 = vadd.f32 0.0, %v7679
        %v7681 = vpop.f32.mrf.mxu0
        %v7682 = vadd.f32 0.0, %v7681
        %7683 = vmatmul.bf16.gmra.mxu0 %v7598
        %v7684 = vpop.f32.mrf.mxu0
        %v7685 = vadd.f32 0.0, %v7684
        %v7686 = vpop.f32.mrf.mxu0
        %v7687 = vadd.f32 0.0, %v7686
        %7688 = vdwg.mxu0
        %v7689 = vadd.f32 %v7462, %v7610
        %v7690 = vadd.f32 %v7463, %v7612
        %v7691 = vadd.f32 %v7464, %v7615
        %v7692 = vadd.f32 %v7465, %v7617
        %v7693 = vadd.f32 %v7466, %v7620
        %v7694 = vadd.f32 %v7467, %v7622
        %v7695 = vadd.f32 %v7468, %v7625
        %v7696 = vadd.f32 %v7469, %v7627
        %v7697 = vadd.f32 %v7470, %v7630
        %v7698 = vadd.f32 %v7471, %v7632
        %v7699 = vadd.f32 %v7472, %v7635
        %v7700 = vadd.f32 %v7473, %v7637
        %v7701 = vadd.f32 %v7474, %v7640
        %v7702 = vadd.f32 %v7475, %v7642
        %v7703 = vadd.f32 %v7476, %v7645
        %v7704 = vadd.f32 %v7477, %v7647
        %v7705 = vadd.f32 %v7478, %v7650
        %v7706 = vadd.f32 %v7479, %v7652
        %v7707 = vadd.f32 %v7480, %v7655
        %v7708 = vadd.f32 %v7481, %v7657
        %v7709 = vadd.f32 %v7482, %v7660
        %v7710 = vadd.f32 %v7483, %v7662
        %v7711 = vadd.f32 %v7484, %v7665
        %v7712 = vadd.f32 %v7485, %v7667
        %v7713 = vadd.f32 %v7486, %v7670
        %v7714 = vadd.f32 %v7487, %v7672
        %v7715 = vadd.f32 %v7488, %v7675
        %v7716 = vadd.f32 %v7489, %v7677
        %v7717 = vadd.f32 %v7490, %v7680
        %v7718 = vadd.f32 %v7491, %v7682
        %v7719 = vadd.f32 %v7492, %v7685
        %v7720 = vadd.f32 %v7493, %v7687
        %v7721 = vld [vmem:[%s7494 + $0x1] sm:$0xff]
        %v7722 = vld [vmem:[%s7494 + $0x9] sm:$0xff]
        %v7723 = vld [vmem:[%s7494 + $0x19] sm:$0xff]
        %v7724 = vld [vmem:[%s7494 + $0x21] sm:$0xff]
        %v7725 = vld [vmem:[%s7494 + $0x31] sm:$0xff]
        %v7726 = vld [vmem:[%s7494 + $0x39] sm:$0xff]
        %v7727 = vld [vmem:[%s7494 + $0x49] sm:$0xff]
        %v7728 = vld [vmem:[%s7494 + $0x51] sm:$0xff]
        %v7729 = vld [vmem:[%s7494 + $0x61] sm:$0xff]
        %v7730 = vld [vmem:[%s7494 + $0x69] sm:$0xff]
        %v7731 = vld [vmem:[%s7494 + $0x79] sm:$0xff]
        %v7732 = vld [vmem:[%s7494 + $0x81] sm:$0xff]
        %v7733 = vld [vmem:[%s7494 + $0x91] sm:$0xff]
        %v7734 = vld [vmem:[%s7494 + $0x99] sm:$0xff]
        %v7735 = vld [vmem:[%s7494 + $0xa9] sm:$0xff]
        %v7736 = vld [vmem:[%s7494 + $0xb1] sm:$0xff]
        %v7737 = vld [vmem:[%s7494 + $0xc1] sm:$0xff]
        %v7738 = vld [vmem:[%s7494 + $0xc9] sm:$0xff]
        %v7739 = vld [vmem:[%s7494 + $0xd9] sm:$0xff]
        %v7740 = vld [vmem:[%s7494 + $0xe1] sm:$0xff]
        %v7741 = vld [vmem:[%s7494 + $0xf1] sm:$0xff]
        %v7742 = vld [vmem:[%s7494 + $0xf9] sm:$0xff]
        %v7743 = vld [vmem:[%s7494 + $0x109] sm:$0xff]
        %v7744 = vld [vmem:[%s7494 + $0x111] sm:$0xff]
        %v7745 = vld [vmem:[%s7494 + $0x121] sm:$0xff]
        %v7746 = vld [vmem:[%s7494 + $0x129] sm:$0xff]
        %v7747 = vld [vmem:[%s7494 + $0x139] sm:$0xff]
        %v7748 = vld [vmem:[%s7494 + $0x141] sm:$0xff]
        %v7749 = vld [vmem:[%s7494 + $0x151] sm:$0xff]
        %v7750 = vld [vmem:[%s7494 + $0x159] sm:$0xff]
        %v7751 = vld [vmem:[%s7494 + $0x169] sm:$0xff]
        %v7752 = vld [vmem:[%s7494 + $0x171] sm:$0xff]
        %v7753 = vpack.c.bf16 %v7722, %v7721
        %v7754 = vpack.c.bf16 %v7724, %v7723
        %v7755 = vpack.c.bf16 %v7726, %v7725
        %v7756 = vpack.c.bf16 %v7728, %v7727
        %v7757 = vpack.c.bf16 %v7730, %v7729
        %v7758 = vpack.c.bf16 %v7732, %v7731
        %v7759 = vpack.c.bf16 %v7734, %v7733
        %v7760 = vpack.c.bf16 %v7736, %v7735
        %v7761 = vpack.c.bf16 %v7738, %v7737
        %v7762 = vpack.c.bf16 %v7740, %v7739
        %v7763 = vpack.c.bf16 %v7742, %v7741
        %v7764 = vpack.c.bf16 %v7744, %v7743
        %v7765 = vpack.c.bf16 %v7746, %v7745
        %v7766 = vpack.c.bf16 %v7748, %v7747
        %v7767 = vpack.c.bf16 %v7750, %v7749
        %v7768 = vpack.c.bf16 %v7752, %v7751
        %s7769 = scalar_lea.vmem [#allocation13], 56
        %v7770 = vld [vmem:[%s7769] sm:$0xf]
        %v7771 = vld [vmem:[%s7769 + $0x4] sm:$0xf]
        %v7774 = vunpack.c.l.b16 %v7770
        %v7775 = vunpack.c.l.b16 %v7771
        %v7776 = vpack.c.b16 %v7775, %v7774
        %v7779 = vsel %vm599, %v7753, 0
        %v7782 = vsel %vm599, %v7754, 0
        %v7785 = vsel %vm599, %v7755, 0
        %v7788 = vsel %vm599, %v7756, 0
        %v7791 = vsel %vm599, %v7757, 0
        %v7794 = vsel %vm599, %v7758, 0
        %v7797 = vsel %vm599, %v7759, 0
        %v7800 = vsel %vm599, %v7760, 0
        %v7803 = vsel %vm599, %v7761, 0
        %v7806 = vsel %vm599, %v7762, 0
        %v7809 = vsel %vm599, %v7763, 0
        %v7812 = vsel %vm599, %v7764, 0
        %v7815 = vsel %vm599, %v7765, 0
        %v7818 = vsel %vm599, %v7766, 0
        %v7821 = vsel %vm599, %v7767, 0
        %v7824 = vsel %vm599, %v7768, 0
        %7826 = vmatpush.bf16.msra.mxu0 0
        %7827 = vmatpush.bf16.msra.mxu0 0
        %7828 = vmatpush.bf16.msra.mxu0 0
        %7829 = vmatpush.bf16.msra.mxu0 0
        %7830 = vmatpush.bf16.msra.mxu0 0
        %7831 = vmatpush.bf16.msra.mxu0 0
        %7832 = vmatpush.bf16.msra.mxu0 0
        %7833 = vmatpush.bf16.msra.mxu0 %v7776
        %7834 = vmatmul.bf16.gmra.mxu0 %v7779
        %v7835 = vpop.f32.mrf.mxu0
        %v7836 = vadd.f32 0.0, %v7835
        %v7837 = vpop.f32.mrf.mxu0
        %v7838 = vadd.f32 0.0, %v7837
        %7839 = vmatmul.bf16.gmra.mxu0 %v7782
        %v7840 = vpop.f32.mrf.mxu0
        %v7841 = vadd.f32 0.0, %v7840
        %v7842 = vpop.f32.mrf.mxu0
        %v7843 = vadd.f32 0.0, %v7842
        %7844 = vmatmul.bf16.gmra.mxu0 %v7785
        %v7845 = vpop.f32.mrf.mxu0
        %v7846 = vadd.f32 0.0, %v7845
        %v7847 = vpop.f32.mrf.mxu0
        %v7848 = vadd.f32 0.0, %v7847
        %7849 = vmatmul.bf16.gmra.mxu0 %v7788
        %v7850 = vpop.f32.mrf.mxu0
        %v7851 = vadd.f32 0.0, %v7850
        %v7852 = vpop.f32.mrf.mxu0
        %v7853 = vadd.f32 0.0, %v7852
        %7854 = vmatmul.bf16.gmra.mxu0 %v7791
        %v7855 = vpop.f32.mrf.mxu0
        %v7856 = vadd.f32 0.0, %v7855
        %v7857 = vpop.f32.mrf.mxu0
        %v7858 = vadd.f32 0.0, %v7857
        %7859 = vmatmul.bf16.gmra.mxu0 %v7794
        %v7860 = vpop.f32.mrf.mxu0
        %v7861 = vadd.f32 0.0, %v7860
        %v7862 = vpop.f32.mrf.mxu0
        %v7863 = vadd.f32 0.0, %v7862
        %7864 = vmatmul.bf16.gmra.mxu0 %v7797
        %v7865 = vpop.f32.mrf.mxu0
        %v7866 = vadd.f32 0.0, %v7865
        %v7867 = vpop.f32.mrf.mxu0
        %v7868 = vadd.f32 0.0, %v7867
        %7869 = vmatmul.bf16.gmra.mxu0 %v7800
        %v7870 = vpop.f32.mrf.mxu0
        %v7871 = vadd.f32 0.0, %v7870
        %v7872 = vpop.f32.mrf.mxu0
        %v7873 = vadd.f32 0.0, %v7872
        %7874 = vmatmul.bf16.gmra.mxu0 %v7803
        %v7875 = vpop.f32.mrf.mxu0
        %v7876 = vadd.f32 0.0, %v7875
        %v7877 = vpop.f32.mrf.mxu0
        %v7878 = vadd.f32 0.0, %v7877
        %7879 = vmatmul.bf16.gmra.mxu0 %v7806
        %v7880 = vpop.f32.mrf.mxu0
        %v7881 = vadd.f32 0.0, %v7880
        %v7882 = vpop.f32.mrf.mxu0
        %v7883 = vadd.f32 0.0, %v7882
        %7884 = vmatmul.bf16.gmra.mxu0 %v7809
        %v7885 = vpop.f32.mrf.mxu0
        %v7886 = vadd.f32 0.0, %v7885
        %v7887 = vpop.f32.mrf.mxu0
        %v7888 = vadd.f32 0.0, %v7887
        %7889 = vmatmul.bf16.gmra.mxu0 %v7812
        %v7890 = vpop.f32.mrf.mxu0
        %v7891 = vadd.f32 0.0, %v7890
        %v7892 = vpop.f32.mrf.mxu0
        %v7893 = vadd.f32 0.0, %v7892
        %7894 = vmatmul.bf16.gmra.mxu0 %v7815
        %v7895 = vpop.f32.mrf.mxu0
        %v7896 = vadd.f32 0.0, %v7895
        %v7897 = vpop.f32.mrf.mxu0
        %v7898 = vadd.f32 0.0, %v7897
        %7899 = vmatmul.bf16.gmra.mxu0 %v7818
        %v7900 = vpop.f32.mrf.mxu0
        %v7901 = vadd.f32 0.0, %v7900
        %v7902 = vpop.f32.mrf.mxu0
        %v7903 = vadd.f32 0.0, %v7902
        %7904 = vmatmul.bf16.gmra.mxu0 %v7821
        %v7905 = vpop.f32.mrf.mxu0
        %v7906 = vadd.f32 0.0, %v7905
        %v7907 = vpop.f32.mrf.mxu0
        %v7908 = vadd.f32 0.0, %v7907
        %7909 = vmatmul.bf16.gmra.mxu0 %v7824
        %v7910 = vpop.f32.mrf.mxu0
        %v7911 = vadd.f32 0.0, %v7910
        %v7912 = vpop.f32.mrf.mxu0
        %v7913 = vadd.f32 0.0, %v7912
        %7914 = vdwg.mxu0
        %v7915 = vadd.f32 %v7689, %v7836
        %v7916 = vadd.f32 %v7690, %v7838
        %v7917 = vadd.f32 %v7691, %v7841
        %v7918 = vadd.f32 %v7692, %v7843
        %v7919 = vadd.f32 %v7693, %v7846
        %v7920 = vadd.f32 %v7694, %v7848
        %v7921 = vadd.f32 %v7695, %v7851
        %v7922 = vadd.f32 %v7696, %v7853
        %v7923 = vadd.f32 %v7697, %v7856
        %v7924 = vadd.f32 %v7698, %v7858
        %v7925 = vadd.f32 %v7699, %v7861
        %v7926 = vadd.f32 %v7700, %v7863
        %v7927 = vadd.f32 %v7701, %v7866
        %v7928 = vadd.f32 %v7702, %v7868
        %v7929 = vadd.f32 %v7703, %v7871
        %v7930 = vadd.f32 %v7704, %v7873
        %v7931 = vadd.f32 %v7705, %v7876
        %v7932 = vadd.f32 %v7706, %v7878
        %v7933 = vadd.f32 %v7707, %v7881
        %v7934 = vadd.f32 %v7708, %v7883
        %v7935 = vadd.f32 %v7709, %v7886
        %v7936 = vadd.f32 %v7710, %v7888
        %v7937 = vadd.f32 %v7711, %v7891
        %v7938 = vadd.f32 %v7712, %v7893
        %v7939 = vadd.f32 %v7713, %v7896
        %v7940 = vadd.f32 %v7714, %v7898
        %v7941 = vadd.f32 %v7715, %v7901
        %v7942 = vadd.f32 %v7716, %v7903
        %v7943 = vadd.f32 %v7717, %v7906
        %v7944 = vadd.f32 %v7718, %v7908
        %v7945 = vadd.f32 %v7719, %v7911
        %v7946 = vadd.f32 %v7720, %v7913
        %v7947 = vld [vmem:[%s7494 + $0x2] sm:$0xff]
        %v7948 = vld [vmem:[%s7494 + $0xa] sm:$0xff]
        %v7949 = vld [vmem:[%s7494 + $0x1a] sm:$0xff]
        %v7950 = vld [vmem:[%s7494 + $0x22] sm:$0xff]
        %v7951 = vld [vmem:[%s7494 + $0x32] sm:$0xff]
        %v7952 = vld [vmem:[%s7494 + $0x3a] sm:$0xff]
        %v7953 = vld [vmem:[%s7494 + $0x4a] sm:$0xff]
        %v7954 = vld [vmem:[%s7494 + $0x52] sm:$0xff]
        %v7955 = vld [vmem:[%s7494 + $0x62] sm:$0xff]
        %v7956 = vld [vmem:[%s7494 + $0x6a] sm:$0xff]
        %v7957 = vld [vmem:[%s7494 + $0x7a] sm:$0xff]
        %v7958 = vld [vmem:[%s7494 + $0x82] sm:$0xff]
        %v7959 = vld [vmem:[%s7494 + $0x92] sm:$0xff]
        %v7960 = vld [vmem:[%s7494 + $0x9a] sm:$0xff]
        %v7961 = vld [vmem:[%s7494 + $0xaa] sm:$0xff]
        %v7962 = vld [vmem:[%s7494 + $0xb2] sm:$0xff]
        %v7963 = vld [vmem:[%s7494 + $0xc2] sm:$0xff]
        %v7964 = vld [vmem:[%s7494 + $0xca] sm:$0xff]
        %v7965 = vld [vmem:[%s7494 + $0xda] sm:$0xff]
        %v7966 = vld [vmem:[%s7494 + $0xe2] sm:$0xff]
        %v7967 = vld [vmem:[%s7494 + $0xf2] sm:$0xff]
        %v7968 = vld [vmem:[%s7494 + $0xfa] sm:$0xff]
        %v7969 = vld [vmem:[%s7494 + $0x10a] sm:$0xff]
        %v7970 = vld [vmem:[%s7494 + $0x112] sm:$0xff]
        %v7971 = vld [vmem:[%s7494 + $0x122] sm:$0xff]
        %v7972 = vld [vmem:[%s7494 + $0x12a] sm:$0xff]
        %v7973 = vld [vmem:[%s7494 + $0x13a] sm:$0xff]
        %v7974 = vld [vmem:[%s7494 + $0x142] sm:$0xff]
        %v7975 = vld [vmem:[%s7494 + $0x152] sm:$0xff]
        %v7976 = vld [vmem:[%s7494 + $0x15a] sm:$0xff]
        %v7977 = vld [vmem:[%s7494 + $0x16a] sm:$0xff]
        %v7978 = vld [vmem:[%s7494 + $0x172] sm:$0xff]
        %v7979 = vpack.c.bf16 %v7948, %v7947
        %v7980 = vpack.c.bf16 %v7950, %v7949
        %v7981 = vpack.c.bf16 %v7952, %v7951
        %v7982 = vpack.c.bf16 %v7954, %v7953
        %v7983 = vpack.c.bf16 %v7956, %v7955
        %v7984 = vpack.c.bf16 %v7958, %v7957
        %v7985 = vpack.c.bf16 %v7960, %v7959
        %v7986 = vpack.c.bf16 %v7962, %v7961
        %v7987 = vpack.c.bf16 %v7964, %v7963
        %v7988 = vpack.c.bf16 %v7966, %v7965
        %v7989 = vpack.c.bf16 %v7968, %v7967
        %v7990 = vpack.c.bf16 %v7970, %v7969
        %v7991 = vpack.c.bf16 %v7972, %v7971
        %v7992 = vpack.c.bf16 %v7974, %v7973
        %v7993 = vpack.c.bf16 %v7976, %v7975
        %v7994 = vpack.c.bf16 %v7978, %v7977
        %s7995 = scalar_lea.vmem [#allocation13], 64
        %v7996 = vld [vmem:[%s7995] sm:$0xf]
        %v7997 = vld [vmem:[%s7995 + $0x4] sm:$0xf]
        %v8000 = vunpack.c.l.b16 %v7996
        %v8001 = vunpack.c.l.b16 %v7997
        %v8002 = vpack.c.b16 %v8001, %v8000
        %v8005 = vsel %vm599, %v7979, 0
        %v8008 = vsel %vm599, %v7980, 0
        %v8011 = vsel %vm599, %v7981, 0
        %v8014 = vsel %vm599, %v7982, 0
        %v8017 = vsel %vm599, %v7983, 0
        %v8020 = vsel %vm599, %v7984, 0
        %v8023 = vsel %vm599, %v7985, 0
        %v8026 = vsel %vm599, %v7986, 0
        %v8029 = vsel %vm599, %v7987, 0
        %v8032 = vsel %vm599, %v7988, 0
        %v8035 = vsel %vm599, %v7989, 0
        %v8038 = vsel %vm599, %v7990, 0
        %v8041 = vsel %vm599, %v7991, 0
        %v8044 = vsel %vm599, %v7992, 0
        %v8047 = vsel %vm599, %v7993, 0
        %v8050 = vsel %vm599, %v7994, 0
        %8052 = vmatpush.bf16.msra.mxu0 0
        %8053 = vmatpush.bf16.msra.mxu0 0
        %8054 = vmatpush.bf16.msra.mxu0 0
        %8055 = vmatpush.bf16.msra.mxu0 0
        %8056 = vmatpush.bf16.msra.mxu0 0
        %8057 = vmatpush.bf16.msra.mxu0 0
        %8058 = vmatpush.bf16.msra.mxu0 0
        %8059 = vmatpush.bf16.msra.mxu0 %v8002
        %8060 = vmatmul.bf16.gmra.mxu0 %v8005
        %v8061 = vpop.f32.mrf.mxu0
        %v8062 = vadd.f32 0.0, %v8061
        %v8063 = vpop.f32.mrf.mxu0
        %v8064 = vadd.f32 0.0, %v8063
        %8065 = vmatmul.bf16.gmra.mxu0 %v8008
        %v8066 = vpop.f32.mrf.mxu0
        %v8067 = vadd.f32 0.0, %v8066
        %v8068 = vpop.f32.mrf.mxu0
        %v8069 = vadd.f32 0.0, %v8068
        %8070 = vmatmul.bf16.gmra.mxu0 %v8011
        %v8071 = vpop.f32.mrf.mxu0
        %v8072 = vadd.f32 0.0, %v8071
        %v8073 = vpop.f32.mrf.mxu0
        %v8074 = vadd.f32 0.0, %v8073
        %8075 = vmatmul.bf16.gmra.mxu0 %v8014
        %v8076 = vpop.f32.mrf.mxu0
        %v8077 = vadd.f32 0.0, %v8076
        %v8078 = vpop.f32.mrf.mxu0
        %v8079 = vadd.f32 0.0, %v8078
        %8080 = vmatmul.bf16.gmra.mxu0 %v8017
        %v8081 = vpop.f32.mrf.mxu0
        %v8082 = vadd.f32 0.0, %v8081
        %v8083 = vpop.f32.mrf.mxu0
        %v8084 = vadd.f32 0.0, %v8083
        %8085 = vmatmul.bf16.gmra.mxu0 %v8020
        %v8086 = vpop.f32.mrf.mxu0
        %v8087 = vadd.f32 0.0, %v8086
        %v8088 = vpop.f32.mrf.mxu0
        %v8089 = vadd.f32 0.0, %v8088
        %8090 = vmatmul.bf16.gmra.mxu0 %v8023
        %v8091 = vpop.f32.mrf.mxu0
        %v8092 = vadd.f32 0.0, %v8091
        %v8093 = vpop.f32.mrf.mxu0
        %v8094 = vadd.f32 0.0, %v8093
        %8095 = vmatmul.bf16.gmra.mxu0 %v8026
        %v8096 = vpop.f32.mrf.mxu0
        %v8097 = vadd.f32 0.0, %v8096
        %v8098 = vpop.f32.mrf.mxu0
        %v8099 = vadd.f32 0.0, %v8098
        %8100 = vmatmul.bf16.gmra.mxu0 %v8029
        %v8101 = vpop.f32.mrf.mxu0
        %v8102 = vadd.f32 0.0, %v8101
        %v8103 = vpop.f32.mrf.mxu0
        %v8104 = vadd.f32 0.0, %v8103
        %8105 = vmatmul.bf16.gmra.mxu0 %v8032
        %v8106 = vpop.f32.mrf.mxu0
        %v8107 = vadd.f32 0.0, %v8106
        %v8108 = vpop.f32.mrf.mxu0
        %v8109 = vadd.f32 0.0, %v8108
        %8110 = vmatmul.bf16.gmra.mxu0 %v8035
        %v8111 = vpop.f32.mrf.mxu0
        %v8112 = vadd.f32 0.0, %v8111
        %v8113 = vpop.f32.mrf.mxu0
        %v8114 = vadd.f32 0.0, %v8113
        %8115 = vmatmul.bf16.gmra.mxu0 %v8038
        %v8116 = vpop.f32.mrf.mxu0
        %v8117 = vadd.f32 0.0, %v8116
        %v8118 = vpop.f32.mrf.mxu0
        %v8119 = vadd.f32 0.0, %v8118
        %8120 = vmatmul.bf16.gmra.mxu0 %v8041
        %v8121 = vpop.f32.mrf.mxu0
        %v8122 = vadd.f32 0.0, %v8121
        %v8123 = vpop.f32.mrf.mxu0
        %v8124 = vadd.f32 0.0, %v8123
        %8125 = vmatmul.bf16.gmra.mxu0 %v8044
        %v8126 = vpop.f32.mrf.mxu0
        %v8127 = vadd.f32 0.0, %v8126
        %v8128 = vpop.f32.mrf.mxu0
        %v8129 = vadd.f32 0.0, %v8128
        %8130 = vmatmul.bf16.gmra.mxu0 %v8047
        %v8131 = vpop.f32.mrf.mxu0
        %v8132 = vadd.f32 0.0, %v8131
        %v8133 = vpop.f32.mrf.mxu0
        %v8134 = vadd.f32 0.0, %v8133
        %8135 = vmatmul.bf16.gmra.mxu0 %v8050
        %v8136 = vpop.f32.mrf.mxu0
        %v8137 = vadd.f32 0.0, %v8136
        %v8138 = vpop.f32.mrf.mxu0
        %v8139 = vadd.f32 0.0, %v8138
        %8140 = vdwg.mxu0
        %v8141 = vadd.f32 %v7915, %v8062
        %v8142 = vadd.f32 %v7916, %v8064
        %v8143 = vadd.f32 %v7917, %v8067
        %v8144 = vadd.f32 %v7918, %v8069
        %v8145 = vadd.f32 %v7919, %v8072
        %v8146 = vadd.f32 %v7920, %v8074
        %v8147 = vadd.f32 %v7921, %v8077
        %v8148 = vadd.f32 %v7922, %v8079
        %v8149 = vadd.f32 %v7923, %v8082
        %v8150 = vadd.f32 %v7924, %v8084
        %v8151 = vadd.f32 %v7925, %v8087
        %v8152 = vadd.f32 %v7926, %v8089
        %v8153 = vadd.f32 %v7927, %v8092
        %v8154 = vadd.f32 %v7928, %v8094
        %v8155 = vadd.f32 %v7929, %v8097
        %v8156 = vadd.f32 %v7930, %v8099
        %v8157 = vadd.f32 %v7931, %v8102
        %v8158 = vadd.f32 %v7932, %v8104
        %v8159 = vadd.f32 %v7933, %v8107
        %v8160 = vadd.f32 %v7934, %v8109
        %v8161 = vadd.f32 %v7935, %v8112
        %v8162 = vadd.f32 %v7936, %v8114
        %v8163 = vadd.f32 %v7937, %v8117
        %v8164 = vadd.f32 %v7938, %v8119
        %v8165 = vadd.f32 %v7939, %v8122
        %v8166 = vadd.f32 %v7940, %v8124
        %v8167 = vadd.f32 %v7941, %v8127
        %v8168 = vadd.f32 %v7942, %v8129
        %v8169 = vadd.f32 %v7943, %v8132
        %v8170 = vadd.f32 %v7944, %v8134
        %v8171 = vadd.f32 %v7945, %v8137
        %v8172 = vadd.f32 %v7946, %v8139
        %v8173 = vld [vmem:[%s9] sm:$0x1]
        %v8175 = vperm.slane %v8173, 0
        %v8177 = vadd.f32 %v8141, %v8175
        %v8178 = vadd.f32 %v8142, %v8175
        %v8179 = vadd.f32 %v8143, %v8175
        %v8180 = vadd.f32 %v8144, %v8175
        %v8181 = vadd.f32 %v8145, %v8175
        %v8182 = vadd.f32 %v8146, %v8175
        %v8183 = vadd.f32 %v8147, %v8175
        %v8184 = vadd.f32 %v8148, %v8175
        %v8185 = vadd.f32 %v8149, %v8175
        %v8186 = vadd.f32 %v8150, %v8175
        %v8187 = vadd.f32 %v8151, %v8175
        %v8188 = vadd.f32 %v8152, %v8175
        %v8189 = vadd.f32 %v8153, %v8175
        %v8190 = vadd.f32 %v8154, %v8175
        %v8191 = vadd.f32 %v8155, %v8175
        %v8192 = vadd.f32 %v8156, %v8175
        %v8193 = vadd.f32 %v8157, %v8175
        %v8194 = vadd.f32 %v8158, %v8175
        %v8195 = vadd.f32 %v8159, %v8175
        %v8196 = vadd.f32 %v8160, %v8175
        %v8197 = vadd.f32 %v8161, %v8175
        %v8198 = vadd.f32 %v8162, %v8175
        %v8199 = vadd.f32 %v8163, %v8175
        %v8200 = vadd.f32 %v8164, %v8175
        %v8201 = vadd.f32 %v8165, %v8175
        %v8202 = vadd.f32 %v8166, %v8175
        %v8203 = vadd.f32 %v8167, %v8175
        %v8204 = vadd.f32 %v8168, %v8175
        %v8205 = vadd.f32 %v8169, %v8175
        %v8206 = vadd.f32 %v8170, %v8175
        %v8207 = vadd.f32 %v8171, %v8175
        %v8208 = vadd.f32 %v8172, %v8175
        %v8209 = vld [vmem:[%s10] sm:$0x1]
        %v8210 = vld [vmem:[%s11] sm:$0x1]
        %v8211 = vsel %vm599, %v8177, 0.0
        %v8212 = vsel %vm599, %v8178, 0.0
        %v8213 = vadd.f32 %v8211, %v8212
        %v8214 = vsel %vm599, %v8179, 0.0
        %v8215 = vadd.f32 %v8213, %v8214
        %v8216 = vsel %vm599, %v8180, 0.0
        %v8217 = vadd.f32 %v8215, %v8216
        %v8218 = vsel %vm599, %v8181, 0.0
        %v8219 = vadd.f32 %v8217, %v8218
        %v8220 = vsel %vm599, %v8182, 0.0
        %v8221 = vadd.f32 %v8219, %v8220
        %v8222 = vsel %vm599, %v8183, 0.0
        %v8223 = vadd.f32 %v8221, %v8222
        %v8224 = vsel %vm599, %v8184, 0.0
        %v8225 = vadd.f32 %v8223, %v8224
        %v8226 = vsel %vm599, %v8185, 0.0
        %v8227 = vadd.f32 %v8225, %v8226
        %v8228 = vsel %vm599, %v8186, 0.0
        %v8229 = vadd.f32 %v8227, %v8228
        %v8230 = vsel %vm599, %v8187, 0.0
        %v8231 = vadd.f32 %v8229, %v8230
        %v8232 = vsel %vm599, %v8188, 0.0
        %v8233 = vadd.f32 %v8231, %v8232
        %v8234 = vsel %vm599, %v8189, 0.0
        %v8235 = vadd.f32 %v8233, %v8234
        %v8236 = vsel %vm599, %v8190, 0.0
        %v8237 = vadd.f32 %v8235, %v8236
        %v8238 = vsel %vm599, %v8191, 0.0
        %v8239 = vadd.f32 %v8237, %v8238
        %v8240 = vsel %vm599, %v8192, 0.0
        %v8241 = vadd.f32 %v8239, %v8240
        %v8242 = vsel %vm599, %v8193, 0.0
        %v8243 = vadd.f32 %v8241, %v8242
        %v8244 = vsel %vm599, %v8194, 0.0
        %v8245 = vadd.f32 %v8243, %v8244
        %v8246 = vsel %vm599, %v8195, 0.0
        %v8247 = vadd.f32 %v8245, %v8246
        %v8248 = vsel %vm599, %v8196, 0.0
        %v8249 = vadd.f32 %v8247, %v8248
        %v8250 = vsel %vm599, %v8197, 0.0
        %v8251 = vadd.f32 %v8249, %v8250
        %v8252 = vsel %vm599, %v8198, 0.0
        %v8253 = vadd.f32 %v8251, %v8252
        %v8254 = vsel %vm599, %v8199, 0.0
        %v8255 = vadd.f32 %v8253, %v8254
        %v8256 = vsel %vm599, %v8200, 0.0
        %v8257 = vadd.f32 %v8255, %v8256
        %v8258 = vsel %vm599, %v8201, 0.0
        %v8259 = vadd.f32 %v8257, %v8258
        %v8260 = vsel %vm599, %v8202, 0.0
        %v8261 = vadd.f32 %v8259, %v8260
        %v8262 = vsel %vm599, %v8203, 0.0
        %v8263 = vadd.f32 %v8261, %v8262
        %v8264 = vsel %vm599, %v8204, 0.0
        %v8265 = vadd.f32 %v8263, %v8264
        %v8266 = vsel %vm599, %v8205, 0.0
        %v8267 = vadd.f32 %v8265, %v8266
        %v8268 = vsel %vm599, %v8206, 0.0
        %v8269 = vadd.f32 %v8267, %v8268
        %v8270 = vsel %vm599, %v8207, 0.0
        %v8271 = vadd.f32 %v8269, %v8270
        %v8272 = vsel %vm599, %v8208, 0.0
        %v8273 = vadd.f32 %v8271, %v8272
        %v8274 = vrot.slane %v8273, 4
        %v8275 = vadd.f32 %v8273, %v8274
        %v8276 = vrot.slane %v8275, 2
        %v8277 = vadd.f32 %v8275, %v8276
        %v8278 = vrot.slane %v8277, 1
        %v8279 = vadd.f32 %v8277, %v8278
        %v8280 = vmul.f32 %v8279, %v5232
        %v8281 = vld [vmem:[#allocation14] sm:$0xff]
        %v8282 = vld [vmem:[#allocation14 + $0x8] sm:$0xff]
        %v8284 = vsel %vm599, %v8280, 0
        %8286 = vmatpush.msra.mxu0 0.0
        %8287 = vmatpush.msra.mxu0 0.0
        %8288 = vmatpush.msra.mxu0 0.0
        %8289 = vmatpush.msra.mxu0 0.0
        %8290 = vmatpush.msra.mxu0 0.0
        %8291 = vmatpush.msra.mxu0 0.0
        %8292 = vmatpush.msra.mxu0 0.0
        %8293 = vmatpush.msra.mxu0 0.0
        %8294 = vmatpush.msra.mxu0 0.0
        %8295 = vmatpush.msra.mxu0 0.0
        %8296 = vmatpush.msra.mxu0 0.0
        %8297 = vmatpush.msra.mxu0 0.0
        %8298 = vmatpush.msra.mxu0 0.0
        %8299 = vmatpush.msra.mxu0 0.0
        %8300 = vmatpush.msra.mxu0 %v8282
        %8301 = vmatpush.msra.mxu0 %v8281
        %8302 = vmatmul.f32.gmra.mxu0 %v8284
        %v8303 = vpop.f32.mrf.mxu0
        %v8304 = vadd.f32 0.0, %v8303
        %8305 = vdwg.mxu0
        %v8306 = vperm.slane %v8304, 0
        %v8307 = vsub.f32 %v8177, %v8306
        %v8308 = vsub.f32 %v8178, %v8306
        %v8309 = vsub.f32 %v8179, %v8306
        %v8310 = vsub.f32 %v8180, %v8306
        %v8311 = vsub.f32 %v8181, %v8306
        %v8312 = vsub.f32 %v8182, %v8306
        %v8313 = vsub.f32 %v8183, %v8306
        %v8314 = vsub.f32 %v8184, %v8306
        %v8315 = vsub.f32 %v8185, %v8306
        %v8316 = vsub.f32 %v8186, %v8306
        %v8317 = vsub.f32 %v8187, %v8306
        %v8318 = vsub.f32 %v8188, %v8306
        %v8319 = vsub.f32 %v8189, %v8306
        %v8320 = vsub.f32 %v8190, %v8306
        %v8321 = vsub.f32 %v8191, %v8306
        %v8322 = vsub.f32 %v8192, %v8306
        %v8323 = vsub.f32 %v8193, %v8306
        %v8324 = vsub.f32 %v8194, %v8306
        %v8325 = vsub.f32 %v8195, %v8306
        %v8326 = vsub.f32 %v8196, %v8306
        %v8327 = vsub.f32 %v8197, %v8306
        %v8328 = vsub.f32 %v8198, %v8306
        %v8329 = vsub.f32 %v8199, %v8306
        %v8330 = vsub.f32 %v8200, %v8306
        %v8331 = vsub.f32 %v8201, %v8306
        %v8332 = vsub.f32 %v8202, %v8306
        %v8333 = vsub.f32 %v8203, %v8306
        %v8334 = vsub.f32 %v8204, %v8306
        %v8335 = vsub.f32 %v8205, %v8306
        %v8336 = vsub.f32 %v8206, %v8306
        %v8337 = vsub.f32 %v8207, %v8306
        %v8338 = vsub.f32 %v8208, %v8306
        %v8339 = vmul.f32 %v8307, %v8307
        %v8340 = vmul.f32 %v8308, %v8308
        %v8341 = vmul.f32 %v8309, %v8309
        %v8342 = vmul.f32 %v8310, %v8310
        %v8343 = vmul.f32 %v8311, %v8311
        %v8344 = vmul.f32 %v8312, %v8312
        %v8345 = vmul.f32 %v8313, %v8313
        %v8346 = vmul.f32 %v8314, %v8314
        %v8347 = vmul.f32 %v8315, %v8315
        %v8348 = vmul.f32 %v8316, %v8316
        %v8349 = vmul.f32 %v8317, %v8317
        %v8350 = vmul.f32 %v8318, %v8318
        %v8351 = vmul.f32 %v8319, %v8319
        %v8352 = vmul.f32 %v8320, %v8320
        %v8353 = vmul.f32 %v8321, %v8321
        %v8354 = vmul.f32 %v8322, %v8322
        %v8355 = vmul.f32 %v8323, %v8323
        %v8356 = vmul.f32 %v8324, %v8324
        %v8357 = vmul.f32 %v8325, %v8325
        %v8358 = vmul.f32 %v8326, %v8326
        %v8359 = vmul.f32 %v8327, %v8327
        %v8360 = vmul.f32 %v8328, %v8328
        %v8361 = vmul.f32 %v8329, %v8329
        %v8362 = vmul.f32 %v8330, %v8330
        %v8363 = vmul.f32 %v8331, %v8331
        %v8364 = vmul.f32 %v8332, %v8332
        %v8365 = vmul.f32 %v8333, %v8333
        %v8366 = vmul.f32 %v8334, %v8334
        %v8367 = vmul.f32 %v8335, %v8335
        %v8368 = vmul.f32 %v8336, %v8336
        %v8369 = vmul.f32 %v8337, %v8337
        %v8370 = vmul.f32 %v8338, %v8338
        %v8371 = vsel %vm599, %v8339, 0.0
        %v8372 = vsel %vm599, %v8340, 0.0
        %v8373 = vadd.f32 %v8371, %v8372
        %v8374 = vsel %vm599, %v8341, 0.0
        %v8375 = vadd.f32 %v8373, %v8374
        %v8376 = vsel %vm599, %v8342, 0.0
        %v8377 = vadd.f32 %v8375, %v8376
        %v8378 = vsel %vm599, %v8343, 0.0
        %v8379 = vadd.f32 %v8377, %v8378
        %v8380 = vsel %vm599, %v8344, 0.0
        %v8381 = vadd.f32 %v8379, %v8380
        %v8382 = vsel %vm599, %v8345, 0.0
        %v8383 = vadd.f32 %v8381, %v8382
        %v8384 = vsel %vm599, %v8346, 0.0
        %v8385 = vadd.f32 %v8383, %v8384
        %v8386 = vsel %vm599, %v8347, 0.0
        %v8387 = vadd.f32 %v8385, %v8386
        %v8388 = vsel %vm599, %v8348, 0.0
        %v8389 = vadd.f32 %v8387, %v8388
        %v8390 = vsel %vm599, %v8349, 0.0
        %v8391 = vadd.f32 %v8389, %v8390
        %v8392 = vsel %vm599, %v8350, 0.0
        %v8393 = vadd.f32 %v8391, %v8392
        %v8394 = vsel %vm599, %v8351, 0.0
        %v8395 = vadd.f32 %v8393, %v8394
        %v8396 = vsel %vm599, %v8352, 0.0
        %v8397 = vadd.f32 %v8395, %v8396
        %v8398 = vsel %vm599, %v8353, 0.0
        %v8399 = vadd.f32 %v8397, %v8398
        %v8400 = vsel %vm599, %v8354, 0.0
        %v8401 = vadd.f32 %v8399, %v8400
        %v8402 = vsel %vm599, %v8355, 0.0
        %v8403 = vadd.f32 %v8401, %v8402
        %v8404 = vsel %vm599, %v8356, 0.0
        %v8405 = vadd.f32 %v8403, %v8404
        %v8406 = vsel %vm599, %v8357, 0.0
        %v8407 = vadd.f32 %v8405, %v8406
        %v8408 = vsel %vm599, %v8358, 0.0
        %v8409 = vadd.f32 %v8407, %v8408
        %v8410 = vsel %vm599, %v8359, 0.0
        %v8411 = vadd.f32 %v8409, %v8410
        %v8412 = vsel %vm599, %v8360, 0.0
        %v8413 = vadd.f32 %v8411, %v8412
        %v8414 = vsel %vm599, %v8361, 0.0
        %v8415 = vadd.f32 %v8413, %v8414
        %v8416 = vsel %vm599, %v8362, 0.0
        %v8417 = vadd.f32 %v8415, %v8416
        %v8418 = vsel %vm599, %v8363, 0.0
        %v8419 = vadd.f32 %v8417, %v8418
        %v8420 = vsel %vm599, %v8364, 0.0
        %v8421 = vadd.f32 %v8419, %v8420
        %v8422 = vsel %vm599, %v8365, 0.0
        %v8423 = vadd.f32 %v8421, %v8422
        %v8424 = vsel %vm599, %v8366, 0.0
        %v8425 = vadd.f32 %v8423, %v8424
        %v8426 = vsel %vm599, %v8367, 0.0
        %v8427 = vadd.f32 %v8425, %v8426
        %v8428 = vsel %vm599, %v8368, 0.0
        %v8429 = vadd.f32 %v8427, %v8428
        %v8430 = vsel %vm599, %v8369, 0.0
        %v8431 = vadd.f32 %v8429, %v8430
        %v8432 = vsel %vm599, %v8370, 0.0
        %v8433 = vadd.f32 %v8431, %v8432
        %v8434 = vrot.slane %v8433, 4
        %v8435 = vadd.f32 %v8433, %v8434
        %v8436 = vrot.slane %v8435, 2
        %v8437 = vadd.f32 %v8435, %v8436
        %v8438 = vrot.slane %v8437, 1
        %v8439 = vadd.f32 %v8437, %v8438
        %v8440 = vmul.f32 %v8439, %v5232
        %v8442 = vsel %vm599, %v8440, 0
        %8444 = vmatpush.msra.mxu0 0.0
        %8445 = vmatpush.msra.mxu0 0.0
        %8446 = vmatpush.msra.mxu0 0.0
        %8447 = vmatpush.msra.mxu0 0.0
        %8448 = vmatpush.msra.mxu0 0.0
        %8449 = vmatpush.msra.mxu0 0.0
        %8450 = vmatpush.msra.mxu0 0.0
        %8451 = vmatpush.msra.mxu0 0.0
        %8452 = vmatpush.msra.mxu0 0.0
        %8453 = vmatpush.msra.mxu0 0.0
        %8454 = vmatpush.msra.mxu0 0.0
        %8455 = vmatpush.msra.mxu0 0.0
        %8456 = vmatpush.msra.mxu0 0.0
        %8457 = vmatpush.msra.mxu0 0.0
        %8458 = vmatpush.msra.mxu0 %v8282
        %8459 = vmatpush.msra.mxu0 %v8281
        %8460 = vmatmul.f32.gmra.mxu0 %v8442
        %v8461 = vpop.f32.mrf.mxu0
        %v8462 = vadd.f32 1e-05, %v8461
        %8463 = vdwg.mxu0
        %v8464 = vrsqrt.pop %v8462
        %v8465 = vmul.f32 %v8464, %v8462
        %v8466 = vmul.f32 %v8465, %v8464
        %v8467 = vmul.f32 0.5, %v8466
        %v8468 = vsub.f32 1.5, %v8467
        %v8469 = vmul.f32 %v8464, %v8468
        %vm8470 = vweird.f32 %v8462
        %vm8471 = vweird.f32 %v8464
        %vm8472 = vmor %vm8470, %vm8471
        %v8473 = vsel %vm8472, %v8464, %v8469
        %v8474 = vperm.slane %v8473, 0
        %v8475 = vmul.f32 %v8307, %v8474
        %v8476 = vmul.f32 %v8308, %v8474
        %v8477 = vmul.f32 %v8309, %v8474
        %v8478 = vmul.f32 %v8310, %v8474
        %v8479 = vmul.f32 %v8311, %v8474
        %v8480 = vmul.f32 %v8312, %v8474
        %v8481 = vmul.f32 %v8313, %v8474
        %v8482 = vmul.f32 %v8314, %v8474
        %v8483 = vmul.f32 %v8315, %v8474
        %v8484 = vmul.f32 %v8316, %v8474
        %v8485 = vmul.f32 %v8317, %v8474
        %v8486 = vmul.f32 %v8318, %v8474
        %v8487 = vmul.f32 %v8319, %v8474
        %v8488 = vmul.f32 %v8320, %v8474
        %v8489 = vmul.f32 %v8321, %v8474
        %v8490 = vmul.f32 %v8322, %v8474
        %v8491 = vmul.f32 %v8323, %v8474
        %v8492 = vmul.f32 %v8324, %v8474
        %v8493 = vmul.f32 %v8325, %v8474
        %v8494 = vmul.f32 %v8326, %v8474
        %v8495 = vmul.f32 %v8327, %v8474
        %v8496 = vmul.f32 %v8328, %v8474
        %v8497 = vmul.f32 %v8329, %v8474
        %v8498 = vmul.f32 %v8330, %v8474
        %v8499 = vmul.f32 %v8331, %v8474
        %v8500 = vmul.f32 %v8332, %v8474
        %v8501 = vmul.f32 %v8333, %v8474
        %v8502 = vmul.f32 %v8334, %v8474
        %v8503 = vmul.f32 %v8335, %v8474
        %v8504 = vmul.f32 %v8336, %v8474
        %v8505 = vmul.f32 %v8337, %v8474
        %v8506 = vmul.f32 %v8338, %v8474
        %v8508 = vperm.slane %v8209, 0
        %v8510 = vmul.f32 %v8475, %v8508
        %v8511 = vmul.f32 %v8476, %v8508
        %v8512 = vmul.f32 %v8477, %v8508
        %v8513 = vmul.f32 %v8478, %v8508
        %v8514 = vmul.f32 %v8479, %v8508
        %v8515 = vmul.f32 %v8480, %v8508
        %v8516 = vmul.f32 %v8481, %v8508
        %v8517 = vmul.f32 %v8482, %v8508
        %v8518 = vmul.f32 %v8483, %v8508
        %v8519 = vmul.f32 %v8484, %v8508
        %v8520 = vmul.f32 %v8485, %v8508
        %v8521 = vmul.f32 %v8486, %v8508
        %v8522 = vmul.f32 %v8487, %v8508
        %v8523 = vmul.f32 %v8488, %v8508
        %v8524 = vmul.f32 %v8489, %v8508
        %v8525 = vmul.f32 %v8490, %v8508
        %v8526 = vmul.f32 %v8491, %v8508
        %v8527 = vmul.f32 %v8492, %v8508
        %v8528 = vmul.f32 %v8493, %v8508
        %v8529 = vmul.f32 %v8494, %v8508
        %v8530 = vmul.f32 %v8495, %v8508
        %v8531 = vmul.f32 %v8496, %v8508
        %v8532 = vmul.f32 %v8497, %v8508
        %v8533 = vmul.f32 %v8498, %v8508
        %v8534 = vmul.f32 %v8499, %v8508
        %v8535 = vmul.f32 %v8500, %v8508
        %v8536 = vmul.f32 %v8501, %v8508
        %v8537 = vmul.f32 %v8502, %v8508
        %v8538 = vmul.f32 %v8503, %v8508
        %v8539 = vmul.f32 %v8504, %v8508
        %v8540 = vmul.f32 %v8505, %v8508
        %v8541 = vmul.f32 %v8506, %v8508
        %v8543 = vperm.slane %v8210, 0
        %v8545 = vadd.f32 %v8510, %v8543
        %v8546 = vadd.f32 %v8511, %v8543
        %v8547 = vadd.f32 %v8512, %v8543
        %v8548 = vadd.f32 %v8513, %v8543
        %v8549 = vadd.f32 %v8514, %v8543
        %v8550 = vadd.f32 %v8515, %v8543
        %v8551 = vadd.f32 %v8516, %v8543
        %v8552 = vadd.f32 %v8517, %v8543
        %v8553 = vadd.f32 %v8518, %v8543
        %v8554 = vadd.f32 %v8519, %v8543
        %v8555 = vadd.f32 %v8520, %v8543
        %v8556 = vadd.f32 %v8521, %v8543
        %v8557 = vadd.f32 %v8522, %v8543
        %v8558 = vadd.f32 %v8523, %v8543
        %v8559 = vadd.f32 %v8524, %v8543
        %v8560 = vadd.f32 %v8525, %v8543
        %v8561 = vadd.f32 %v8526, %v8543
        %v8562 = vadd.f32 %v8527, %v8543
        %v8563 = vadd.f32 %v8528, %v8543
        %v8564 = vadd.f32 %v8529, %v8543
        %v8565 = vadd.f32 %v8530, %v8543
        %v8566 = vadd.f32 %v8531, %v8543
        %v8567 = vadd.f32 %v8532, %v8543
        %v8568 = vadd.f32 %v8533, %v8543
        %v8569 = vadd.f32 %v8534, %v8543
        %v8570 = vadd.f32 %v8535, %v8543
        %v8571 = vadd.f32 %v8536, %v8543
        %v8572 = vadd.f32 %v8537, %v8543
        %v8573 = vadd.f32 %v8538, %v8543
        %v8574 = vadd.f32 %v8539, %v8543
        %v8575 = vadd.f32 %v8540, %v8543
        %v8576 = vadd.f32 %v8541, %v8543
        %v8577 = vxor.u32 %v8545, 2147483648
        %v8578 = vxor.u32 %v8546, 2147483648
        %v8579 = vxor.u32 %v8547, 2147483648
        %v8580 = vxor.u32 %v8548, 2147483648
        %v8581 = vxor.u32 %v8549, 2147483648
        %v8582 = vxor.u32 %v8550, 2147483648
        %v8583 = vxor.u32 %v8551, 2147483648
        %v8584 = vxor.u32 %v8552, 2147483648
        %v8585 = vxor.u32 %v8553, 2147483648
        %v8586 = vxor.u32 %v8554, 2147483648
        %v8587 = vxor.u32 %v8555, 2147483648
        %v8588 = vxor.u32 %v8556, 2147483648
        %v8589 = vxor.u32 %v8557, 2147483648
        %v8590 = vxor.u32 %v8558, 2147483648
        %v8591 = vxor.u32 %v8559, 2147483648
        %v8592 = vxor.u32 %v8560, 2147483648
        %v8593 = vxor.u32 %v8561, 2147483648
        %v8594 = vxor.u32 %v8562, 2147483648
        %v8595 = vxor.u32 %v8563, 2147483648
        %v8596 = vxor.u32 %v8564, 2147483648
        %v8597 = vxor.u32 %v8565, 2147483648
        %v8598 = vxor.u32 %v8566, 2147483648
        %v8599 = vxor.u32 %v8567, 2147483648
        %v8600 = vxor.u32 %v8568, 2147483648
        %v8601 = vxor.u32 %v8569, 2147483648
        %v8602 = vxor.u32 %v8570, 2147483648
        %v8603 = vxor.u32 %v8571, 2147483648
        %v8604 = vxor.u32 %v8572, 2147483648
        %v8605 = vxor.u32 %v8573, 2147483648
        %v8606 = vxor.u32 %v8574, 2147483648
        %v8607 = vxor.u32 %v8575, 2147483648
        %v8608 = vxor.u32 %v8576, 2147483648
        %v8609 = vmul.f32 %v8577, 1.442695
        %v8610 = vpow.pop %v8609
        %v8611 = vmul.f32 %v8578, 1.442695
        %v8612 = vpow.pop %v8611
        %v8613 = vmul.f32 %v8579, 1.442695
        %v8614 = vpow.pop %v8613
        %v8615 = vmul.f32 %v8580, 1.442695
        %v8616 = vpow.pop %v8615
        %v8617 = vmul.f32 %v8581, 1.442695
        %v8618 = vpow.pop %v8617
        %v8619 = vmul.f32 %v8582, 1.442695
        %v8620 = vpow.pop %v8619
        %v8621 = vmul.f32 %v8583, 1.442695
        %v8622 = vpow.pop %v8621
        %v8623 = vmul.f32 %v8584, 1.442695
        %v8624 = vpow.pop %v8623
        %v8625 = vmul.f32 %v8585, 1.442695
        %v8626 = vpow.pop %v8625
        %v8627 = vmul.f32 %v8586, 1.442695
        %v8628 = vpow.pop %v8627
        %v8629 = vmul.f32 %v8587, 1.442695
        %v8630 = vpow.pop %v8629
        %v8631 = vmul.f32 %v8588, 1.442695
        %v8632 = vpow.pop %v8631
        %v8633 = vmul.f32 %v8589, 1.442695
        %v8634 = vpow.pop %v8633
        %v8635 = vmul.f32 %v8590, 1.442695
        %v8636 = vpow.pop %v8635
        %v8637 = vmul.f32 %v8591, 1.442695
        %v8638 = vpow.pop %v8637
        %v8639 = vmul.f32 %v8592, 1.442695
        %v8640 = vpow.pop %v8639
        %v8641 = vmul.f32 %v8593, 1.442695
        %v8642 = vpow.pop %v8641
        %v8643 = vmul.f32 %v8594, 1.442695
        %v8644 = vpow.pop %v8643
        %v8645 = vmul.f32 %v8595, 1.442695
        %v8646 = vpow.pop %v8645
        %v8647 = vmul.f32 %v8596, 1.442695
        %v8648 = vpow.pop %v8647
        %v8649 = vmul.f32 %v8597, 1.442695
        %v8650 = vpow.pop %v8649
        %v8651 = vmul.f32 %v8598, 1.442695
        %v8652 = vpow.pop %v8651
        %v8653 = vmul.f32 %v8599, 1.442695
        %v8654 = vpow.pop %v8653
        %v8655 = vmul.f32 %v8600, 1.442695
        %v8656 = vpow.pop %v8655
        %v8657 = vmul.f32 %v8601, 1.442695
        %v8658 = vpow.pop %v8657
        %v8659 = vmul.f32 %v8602, 1.442695
        %v8660 = vpow.pop %v8659
        %v8661 = vmul.f32 %v8603, 1.442695
        %v8662 = vpow.pop %v8661
        %v8663 = vmul.f32 %v8604, 1.442695
        %v8664 = vpow.pop %v8663
        %v8665 = vmul.f32 %v8605, 1.442695
        %v8666 = vpow.pop %v8665
        %v8667 = vmul.f32 %v8606, 1.442695
        %v8668 = vpow.pop %v8667
        %v8669 = vmul.f32 %v8607, 1.442695
        %v8670 = vpow.pop %v8669
        %v8671 = vmul.f32 %v8608, 1.442695
        %v8672 = vpow.pop %v8671
        %v8673 = vadd.f32 %v8610, 1.0
        %v8674 = vadd.f32 %v8612, 1.0
        %v8675 = vadd.f32 %v8614, 1.0
        %v8676 = vadd.f32 %v8616, 1.0
        %v8677 = vadd.f32 %v8618, 1.0
        %v8678 = vadd.f32 %v8620, 1.0
        %v8679 = vadd.f32 %v8622, 1.0
        %v8680 = vadd.f32 %v8624, 1.0
        %v8681 = vadd.f32 %v8626, 1.0
        %v8682 = vadd.f32 %v8628, 1.0
        %v8683 = vadd.f32 %v8630, 1.0
        %v8684 = vadd.f32 %v8632, 1.0
        %v8685 = vadd.f32 %v8634, 1.0
        %v8686 = vadd.f32 %v8636, 1.0
        %v8687 = vadd.f32 %v8638, 1.0
        %v8688 = vadd.f32 %v8640, 1.0
        %v8689 = vadd.f32 %v8642, 1.0
        %v8690 = vadd.f32 %v8644, 1.0
        %v8691 = vadd.f32 %v8646, 1.0
        %v8692 = vadd.f32 %v8648, 1.0
        %v8693 = vadd.f32 %v8650, 1.0
        %v8694 = vadd.f32 %v8652, 1.0
        %v8695 = vadd.f32 %v8654, 1.0
        %v8696 = vadd.f32 %v8656, 1.0
        %v8697 = vadd.f32 %v8658, 1.0
        %v8698 = vadd.f32 %v8660, 1.0
        %v8699 = vadd.f32 %v8662, 1.0
        %v8700 = vadd.f32 %v8664, 1.0
        %v8701 = vadd.f32 %v8666, 1.0
        %v8702 = vadd.f32 %v8668, 1.0
        %v8703 = vadd.f32 %v8670, 1.0
        %v8704 = vadd.f32 %v8672, 1.0
        %v8705 = vrcp.pop %v8673
        %v8706 = vmul.f32 %v8673, %v8705
        %v8707 = vsub.f32 1.0, %v8706
        %v8708 = vmul.f32 %v8705, %v8707
        %v8709 = vadd.f32 %v8705, %v8708
        %vm8710 = vweird.f32 %v8673
        %vm8711 = vweird.f32 %v8705
        %vm8712 = vmor %vm8710, %vm8711
        %v8713 = vsel %vm8712, %v8705, %v8709
        %v8714 = vand.u32 2147483647, %v8673
        %vm8715 = vcmp.eq.f32.partialorder %v8714, 8.507059e+37
        %v8716 = vand.u32 %v8673, 2147483648
        %v8717 = vor.u32 1.1754944e-38, %v8716
        %v8718 = vsel %vm8715, %v8717, %v8713
        %v8719 = vmul.f32 1.0, %v8718
        %v8720 = vrcp.pop %v8674
        %v8721 = vmul.f32 %v8674, %v8720
        %v8722 = vsub.f32 1.0, %v8721
        %v8723 = vmul.f32 %v8720, %v8722
        %v8724 = vadd.f32 %v8720, %v8723
        %vm8725 = vweird.f32 %v8674
        %vm8726 = vweird.f32 %v8720
        %vm8727 = vmor %vm8725, %vm8726
        %v8728 = vsel %vm8727, %v8720, %v8724
        %v8729 = vand.u32 2147483647, %v8674
        %vm8730 = vcmp.eq.f32.partialorder %v8729, 8.507059e+37
        %v8731 = vand.u32 %v8674, 2147483648
        %v8732 = vor.u32 1.1754944e-38, %v8731
        %v8733 = vsel %vm8730, %v8732, %v8728
        %v8734 = vmul.f32 1.0, %v8733
        %v8735 = vrcp.pop %v8675
        %v8736 = vmul.f32 %v8675, %v8735
        %v8737 = vsub.f32 1.0, %v8736
        %v8738 = vmul.f32 %v8735, %v8737
        %v8739 = vadd.f32 %v8735, %v8738
        %vm8740 = vweird.f32 %v8675
        %vm8741 = vweird.f32 %v8735
        %vm8742 = vmor %vm8740, %vm8741
        %v8743 = vsel %vm8742, %v8735, %v8739
        %v8744 = vand.u32 2147483647, %v8675
        %vm8745 = vcmp.eq.f32.partialorder %v8744, 8.507059e+37
        %v8746 = vand.u32 %v8675, 2147483648
        %v8747 = vor.u32 1.1754944e-38, %v8746
        %v8748 = vsel %vm8745, %v8747, %v8743
        %v8749 = vmul.f32 1.0, %v8748
        %v8750 = vrcp.pop %v8676
        %v8751 = vmul.f32 %v8676, %v8750
        %v8752 = vsub.f32 1.0, %v8751
        %v8753 = vmul.f32 %v8750, %v8752
        %v8754 = vadd.f32 %v8750, %v8753
        %vm8755 = vweird.f32 %v8676
        %vm8756 = vweird.f32 %v8750
        %vm8757 = vmor %vm8755, %vm8756
        %v8758 = vsel %vm8757, %v8750, %v8754
        %v8759 = vand.u32 2147483647, %v8676
        %vm8760 = vcmp.eq.f32.partialorder %v8759, 8.507059e+37
        %v8761 = vand.u32 %v8676, 2147483648
        %v8762 = vor.u32 1.1754944e-38, %v8761
        %v8763 = vsel %vm8760, %v8762, %v8758
        %v8764 = vmul.f32 1.0, %v8763
        %v8765 = vrcp.pop %v8677
        %v8766 = vmul.f32 %v8677, %v8765
        %v8767 = vsub.f32 1.0, %v8766
        %v8768 = vmul.f32 %v8765, %v8767
        %v8769 = vadd.f32 %v8765, %v8768
        %vm8770 = vweird.f32 %v8677
        %vm8771 = vweird.f32 %v8765
        %vm8772 = vmor %vm8770, %vm8771
        %v8773 = vsel %vm8772, %v8765, %v8769
        %v8774 = vand.u32 2147483647, %v8677
        %vm8775 = vcmp.eq.f32.partialorder %v8774, 8.507059e+37
        %v8776 = vand.u32 %v8677, 2147483648
        %v8777 = vor.u32 1.1754944e-38, %v8776
        %v8778 = vsel %vm8775, %v8777, %v8773
        %v8779 = vmul.f32 1.0, %v8778
        %v8780 = vrcp.pop %v8678
        %v8781 = vmul.f32 %v8678, %v8780
        %v8782 = vsub.f32 1.0, %v8781
        %v8783 = vmul.f32 %v8780, %v8782
        %v8784 = vadd.f32 %v8780, %v8783
        %vm8785 = vweird.f32 %v8678
        %vm8786 = vweird.f32 %v8780
        %vm8787 = vmor %vm8785, %vm8786
        %v8788 = vsel %vm8787, %v8780, %v8784
        %v8789 = vand.u32 2147483647, %v8678
        %vm8790 = vcmp.eq.f32.partialorder %v8789, 8.507059e+37
        %v8791 = vand.u32 %v8678, 2147483648
        %v8792 = vor.u32 1.1754944e-38, %v8791
        %v8793 = vsel %vm8790, %v8792, %v8788
        %v8794 = vmul.f32 1.0, %v8793
        %v8795 = vrcp.pop %v8679
        %v8796 = vmul.f32 %v8679, %v8795
        %v8797 = vsub.f32 1.0, %v8796
        %v8798 = vmul.f32 %v8795, %v8797
        %v8799 = vadd.f32 %v8795, %v8798
        %vm8800 = vweird.f32 %v8679
        %vm8801 = vweird.f32 %v8795
        %vm8802 = vmor %vm8800, %vm8801
        %v8803 = vsel %vm8802, %v8795, %v8799
        %v8804 = vand.u32 2147483647, %v8679
        %vm8805 = vcmp.eq.f32.partialorder %v8804, 8.507059e+37
        %v8806 = vand.u32 %v8679, 2147483648
        %v8807 = vor.u32 1.1754944e-38, %v8806
        %v8808 = vsel %vm8805, %v8807, %v8803
        %v8809 = vmul.f32 1.0, %v8808
        %v8810 = vrcp.pop %v8680
        %v8811 = vmul.f32 %v8680, %v8810
        %v8812 = vsub.f32 1.0, %v8811
        %v8813 = vmul.f32 %v8810, %v8812
        %v8814 = vadd.f32 %v8810, %v8813
        %vm8815 = vweird.f32 %v8680
        %vm8816 = vweird.f32 %v8810
        %vm8817 = vmor %vm8815, %vm8816
        %v8818 = vsel %vm8817, %v8810, %v8814
        %v8819 = vand.u32 2147483647, %v8680
        %vm8820 = vcmp.eq.f32.partialorder %v8819, 8.507059e+37
        %v8821 = vand.u32 %v8680, 2147483648
        %v8822 = vor.u32 1.1754944e-38, %v8821
        %v8823 = vsel %vm8820, %v8822, %v8818
        %v8824 = vmul.f32 1.0, %v8823
        %v8825 = vrcp.pop %v8681
        %v8826 = vmul.f32 %v8681, %v8825
        %v8827 = vsub.f32 1.0, %v8826
        %v8828 = vmul.f32 %v8825, %v8827
        %v8829 = vadd.f32 %v8825, %v8828
        %vm8830 = vweird.f32 %v8681
        %vm8831 = vweird.f32 %v8825
        %vm8832 = vmor %vm8830, %vm8831
        %v8833 = vsel %vm8832, %v8825, %v8829
        %v8834 = vand.u32 2147483647, %v8681
        %vm8835 = vcmp.eq.f32.partialorder %v8834, 8.507059e+37
        %v8836 = vand.u32 %v8681, 2147483648
        %v8837 = vor.u32 1.1754944e-38, %v8836
        %v8838 = vsel %vm8835, %v8837, %v8833
        %v8839 = vmul.f32 1.0, %v8838
        %v8840 = vrcp.pop %v8682
        %v8841 = vmul.f32 %v8682, %v8840
        %v8842 = vsub.f32 1.0, %v8841
        %v8843 = vmul.f32 %v8840, %v8842
        %v8844 = vadd.f32 %v8840, %v8843
        %vm8845 = vweird.f32 %v8682
        %vm8846 = vweird.f32 %v8840
        %vm8847 = vmor %vm8845, %vm8846
        %v8848 = vsel %vm8847, %v8840, %v8844
        %v8849 = vand.u32 2147483647, %v8682
        %vm8850 = vcmp.eq.f32.partialorder %v8849, 8.507059e+37
        %v8851 = vand.u32 %v8682, 2147483648
        %v8852 = vor.u32 1.1754944e-38, %v8851
        %v8853 = vsel %vm8850, %v8852, %v8848
        %v8854 = vmul.f32 1.0, %v8853
        %v8855 = vrcp.pop %v8683
        %v8856 = vmul.f32 %v8683, %v8855
        %v8857 = vsub.f32 1.0, %v8856
        %v8858 = vmul.f32 %v8855, %v8857
        %v8859 = vadd.f32 %v8855, %v8858
        %vm8860 = vweird.f32 %v8683
        %vm8861 = vweird.f32 %v8855
        %vm8862 = vmor %vm8860, %vm8861
        %v8863 = vsel %vm8862, %v8855, %v8859
        %v8864 = vand.u32 2147483647, %v8683
        %vm8865 = vcmp.eq.f32.partialorder %v8864, 8.507059e+37
        %v8866 = vand.u32 %v8683, 2147483648
        %v8867 = vor.u32 1.1754944e-38, %v8866
        %v8868 = vsel %vm8865, %v8867, %v8863
        %v8869 = vmul.f32 1.0, %v8868
        %v8870 = vrcp.pop %v8684
        %v8871 = vmul.f32 %v8684, %v8870
        %v8872 = vsub.f32 1.0, %v8871
        %v8873 = vmul.f32 %v8870, %v8872
        %v8874 = vadd.f32 %v8870, %v8873
        %vm8875 = vweird.f32 %v8684
        %vm8876 = vweird.f32 %v8870
        %vm8877 = vmor %vm8875, %vm8876
        %v8878 = vsel %vm8877, %v8870, %v8874
        %v8879 = vand.u32 2147483647, %v8684
        %vm8880 = vcmp.eq.f32.partialorder %v8879, 8.507059e+37
        %v8881 = vand.u32 %v8684, 2147483648
        %v8882 = vor.u32 1.1754944e-38, %v8881
        %v8883 = vsel %vm8880, %v8882, %v8878
        %v8884 = vmul.f32 1.0, %v8883
        %v8885 = vrcp.pop %v8685
        %v8886 = vmul.f32 %v8685, %v8885
        %v8887 = vsub.f32 1.0, %v8886
        %v8888 = vmul.f32 %v8885, %v8887
        %v8889 = vadd.f32 %v8885, %v8888
        %vm8890 = vweird.f32 %v8685
        %vm8891 = vweird.f32 %v8885
        %vm8892 = vmor %vm8890, %vm8891
        %v8893 = vsel %vm8892, %v8885, %v8889
        %v8894 = vand.u32 2147483647, %v8685
        %vm8895 = vcmp.eq.f32.partialorder %v8894, 8.507059e+37
        %v8896 = vand.u32 %v8685, 2147483648
        %v8897 = vor.u32 1.1754944e-38, %v8896
        %v8898 = vsel %vm8895, %v8897, %v8893
        %v8899 = vmul.f32 1.0, %v8898
        %v8900 = vrcp.pop %v8686
        %v8901 = vmul.f32 %v8686, %v8900
        %v8902 = vsub.f32 1.0, %v8901
        %v8903 = vmul.f32 %v8900, %v8902
        %v8904 = vadd.f32 %v8900, %v8903
        %vm8905 = vweird.f32 %v8686
        %vm8906 = vweird.f32 %v8900
        %vm8907 = vmor %vm8905, %vm8906
        %v8908 = vsel %vm8907, %v8900, %v8904
        %v8909 = vand.u32 2147483647, %v8686
        %vm8910 = vcmp.eq.f32.partialorder %v8909, 8.507059e+37
        %v8911 = vand.u32 %v8686, 2147483648
        %v8912 = vor.u32 1.1754944e-38, %v8911
        %v8913 = vsel %vm8910, %v8912, %v8908
        %v8914 = vmul.f32 1.0, %v8913
        %v8915 = vrcp.pop %v8687
        %v8916 = vmul.f32 %v8687, %v8915
        %v8917 = vsub.f32 1.0, %v8916
        %v8918 = vmul.f32 %v8915, %v8917
        %v8919 = vadd.f32 %v8915, %v8918
        %vm8920 = vweird.f32 %v8687
        %vm8921 = vweird.f32 %v8915
        %vm8922 = vmor %vm8920, %vm8921
        %v8923 = vsel %vm8922, %v8915, %v8919
        %v8924 = vand.u32 2147483647, %v8687
        %vm8925 = vcmp.eq.f32.partialorder %v8924, 8.507059e+37
        %v8926 = vand.u32 %v8687, 2147483648
        %v8927 = vor.u32 1.1754944e-38, %v8926
        %v8928 = vsel %vm8925, %v8927, %v8923
        %v8929 = vmul.f32 1.0, %v8928
        %v8930 = vrcp.pop %v8688
        %v8931 = vmul.f32 %v8688, %v8930
        %v8932 = vsub.f32 1.0, %v8931
        %v8933 = vmul.f32 %v8930, %v8932
        %v8934 = vadd.f32 %v8930, %v8933
        %vm8935 = vweird.f32 %v8688
        %vm8936 = vweird.f32 %v8930
        %vm8937 = vmor %vm8935, %vm8936
        %v8938 = vsel %vm8937, %v8930, %v8934
        %v8939 = vand.u32 2147483647, %v8688
        %vm8940 = vcmp.eq.f32.partialorder %v8939, 8.507059e+37
        %v8941 = vand.u32 %v8688, 2147483648
        %v8942 = vor.u32 1.1754944e-38, %v8941
        %v8943 = vsel %vm8940, %v8942, %v8938
        %v8944 = vmul.f32 1.0, %v8943
        %v8945 = vrcp.pop %v8689
        %v8946 = vmul.f32 %v8689, %v8945
        %v8947 = vsub.f32 1.0, %v8946
        %v8948 = vmul.f32 %v8945, %v8947
        %v8949 = vadd.f32 %v8945, %v8948
        %vm8950 = vweird.f32 %v8689
        %vm8951 = vweird.f32 %v8945
        %vm8952 = vmor %vm8950, %vm8951
        %v8953 = vsel %vm8952, %v8945, %v8949
        %v8954 = vand.u32 2147483647, %v8689
        %vm8955 = vcmp.eq.f32.partialorder %v8954, 8.507059e+37
        %v8956 = vand.u32 %v8689, 2147483648
        %v8957 = vor.u32 1.1754944e-38, %v8956
        %v8958 = vsel %vm8955, %v8957, %v8953
        %v8959 = vmul.f32 1.0, %v8958
        %v8960 = vrcp.pop %v8690
        %v8961 = vmul.f32 %v8690, %v8960
        %v8962 = vsub.f32 1.0, %v8961
        %v8963 = vmul.f32 %v8960, %v8962
        %v8964 = vadd.f32 %v8960, %v8963
        %vm8965 = vweird.f32 %v8690
        %vm8966 = vweird.f32 %v8960
        %vm8967 = vmor %vm8965, %vm8966
        %v8968 = vsel %vm8967, %v8960, %v8964
        %v8969 = vand.u32 2147483647, %v8690
        %vm8970 = vcmp.eq.f32.partialorder %v8969, 8.507059e+37
        %v8971 = vand.u32 %v8690, 2147483648
        %v8972 = vor.u32 1.1754944e-38, %v8971
        %v8973 = vsel %vm8970, %v8972, %v8968
        %v8974 = vmul.f32 1.0, %v8973
        %v8975 = vrcp.pop %v8691
        %v8976 = vmul.f32 %v8691, %v8975
        %v8977 = vsub.f32 1.0, %v8976
        %v8978 = vmul.f32 %v8975, %v8977
        %v8979 = vadd.f32 %v8975, %v8978
        %vm8980 = vweird.f32 %v8691
        %vm8981 = vweird.f32 %v8975
        %vm8982 = vmor %vm8980, %vm8981
        %v8983 = vsel %vm8982, %v8975, %v8979
        %v8984 = vand.u32 2147483647, %v8691
        %vm8985 = vcmp.eq.f32.partialorder %v8984, 8.507059e+37
        %v8986 = vand.u32 %v8691, 2147483648
        %v8987 = vor.u32 1.1754944e-38, %v8986
        %v8988 = vsel %vm8985, %v8987, %v8983
        %v8989 = vmul.f32 1.0, %v8988
        %v8990 = vrcp.pop %v8692
        %v8991 = vmul.f32 %v8692, %v8990
        %v8992 = vsub.f32 1.0, %v8991
        %v8993 = vmul.f32 %v8990, %v8992
        %v8994 = vadd.f32 %v8990, %v8993
        %vm8995 = vweird.f32 %v8692
        %vm8996 = vweird.f32 %v8990
        %vm8997 = vmor %vm8995, %vm8996
        %v8998 = vsel %vm8997, %v8990, %v8994
        %v8999 = vand.u32 2147483647, %v8692
        %vm9000 = vcmp.eq.f32.partialorder %v8999, 8.507059e+37
        %v9001 = vand.u32 %v8692, 2147483648
        %v9002 = vor.u32 1.1754944e-38, %v9001
        %v9003 = vsel %vm9000, %v9002, %v8998
        %v9004 = vmul.f32 1.0, %v9003
        %v9005 = vrcp.pop %v8693
        %v9006 = vmul.f32 %v8693, %v9005
        %v9007 = vsub.f32 1.0, %v9006
        %v9008 = vmul.f32 %v9005, %v9007
        %v9009 = vadd.f32 %v9005, %v9008
        %vm9010 = vweird.f32 %v8693
        %vm9011 = vweird.f32 %v9005
        %vm9012 = vmor %vm9010, %vm9011
        %v9013 = vsel %vm9012, %v9005, %v9009
        %v9014 = vand.u32 2147483647, %v8693
        %vm9015 = vcmp.eq.f32.partialorder %v9014, 8.507059e+37
        %v9016 = vand.u32 %v8693, 2147483648
        %v9017 = vor.u32 1.1754944e-38, %v9016
        %v9018 = vsel %vm9015, %v9017, %v9013
        %v9019 = vmul.f32 1.0, %v9018
        %v9020 = vrcp.pop %v8694
        %v9021 = vmul.f32 %v8694, %v9020
        %v9022 = vsub.f32 1.0, %v9021
        %v9023 = vmul.f32 %v9020, %v9022
        %v9024 = vadd.f32 %v9020, %v9023
        %vm9025 = vweird.f32 %v8694
        %vm9026 = vweird.f32 %v9020
        %vm9027 = vmor %vm9025, %vm9026
        %v9028 = vsel %vm9027, %v9020, %v9024
        %v9029 = vand.u32 2147483647, %v8694
        %vm9030 = vcmp.eq.f32.partialorder %v9029, 8.507059e+37
        %v9031 = vand.u32 %v8694, 2147483648
        %v9032 = vor.u32 1.1754944e-38, %v9031
        %v9033 = vsel %vm9030, %v9032, %v9028
        %v9034 = vmul.f32 1.0, %v9033
        %v9035 = vrcp.pop %v8695
        %v9036 = vmul.f32 %v8695, %v9035
        %v9037 = vsub.f32 1.0, %v9036
        %v9038 = vmul.f32 %v9035, %v9037
        %v9039 = vadd.f32 %v9035, %v9038
        %vm9040 = vweird.f32 %v8695
        %vm9041 = vweird.f32 %v9035
        %vm9042 = vmor %vm9040, %vm9041
        %v9043 = vsel %vm9042, %v9035, %v9039
        %v9044 = vand.u32 2147483647, %v8695
        %vm9045 = vcmp.eq.f32.partialorder %v9044, 8.507059e+37
        %v9046 = vand.u32 %v8695, 2147483648
        %v9047 = vor.u32 1.1754944e-38, %v9046
        %v9048 = vsel %vm9045, %v9047, %v9043
        %v9049 = vmul.f32 1.0, %v9048
        %v9050 = vrcp.pop %v8696
        %v9051 = vmul.f32 %v8696, %v9050
        %v9052 = vsub.f32 1.0, %v9051
        %v9053 = vmul.f32 %v9050, %v9052
        %v9054 = vadd.f32 %v9050, %v9053
        %vm9055 = vweird.f32 %v8696
        %vm9056 = vweird.f32 %v9050
        %vm9057 = vmor %vm9055, %vm9056
        %v9058 = vsel %vm9057, %v9050, %v9054
        %v9059 = vand.u32 2147483647, %v8696
        %vm9060 = vcmp.eq.f32.partialorder %v9059, 8.507059e+37
        %v9061 = vand.u32 %v8696, 2147483648
        %v9062 = vor.u32 1.1754944e-38, %v9061
        %v9063 = vsel %vm9060, %v9062, %v9058
        %v9064 = vmul.f32 1.0, %v9063
        %v9065 = vrcp.pop %v8697
        %v9066 = vmul.f32 %v8697, %v9065
        %v9067 = vsub.f32 1.0, %v9066
        %v9068 = vmul.f32 %v9065, %v9067
        %v9069 = vadd.f32 %v9065, %v9068
        %vm9070 = vweird.f32 %v8697
        %vm9071 = vweird.f32 %v9065
        %vm9072 = vmor %vm9070, %vm9071
        %v9073 = vsel %vm9072, %v9065, %v9069
        %v9074 = vand.u32 2147483647, %v8697
        %vm9075 = vcmp.eq.f32.partialorder %v9074, 8.507059e+37
        %v9076 = vand.u32 %v8697, 2147483648
        %v9077 = vor.u32 1.1754944e-38, %v9076
        %v9078 = vsel %vm9075, %v9077, %v9073
        %v9079 = vmul.f32 1.0, %v9078
        %v9080 = vrcp.pop %v8698
        %v9081 = vmul.f32 %v8698, %v9080
        %v9082 = vsub.f32 1.0, %v9081
        %v9083 = vmul.f32 %v9080, %v9082
        %v9084 = vadd.f32 %v9080, %v9083
        %vm9085 = vweird.f32 %v8698
        %vm9086 = vweird.f32 %v9080
        %vm9087 = vmor %vm9085, %vm9086
        %v9088 = vsel %vm9087, %v9080, %v9084
        %v9089 = vand.u32 2147483647, %v8698
        %vm9090 = vcmp.eq.f32.partialorder %v9089, 8.507059e+37
        %v9091 = vand.u32 %v8698, 2147483648
        %v9092 = vor.u32 1.1754944e-38, %v9091
        %v9093 = vsel %vm9090, %v9092, %v9088
        %v9094 = vmul.f32 1.0, %v9093
        %v9095 = vrcp.pop %v8699
        %v9096 = vmul.f32 %v8699, %v9095
        %v9097 = vsub.f32 1.0, %v9096
        %v9098 = vmul.f32 %v9095, %v9097
        %v9099 = vadd.f32 %v9095, %v9098
        %vm9100 = vweird.f32 %v8699
        %vm9101 = vweird.f32 %v9095
        %vm9102 = vmor %vm9100, %vm9101
        %v9103 = vsel %vm9102, %v9095, %v9099
        %v9104 = vand.u32 2147483647, %v8699
        %vm9105 = vcmp.eq.f32.partialorder %v9104, 8.507059e+37
        %v9106 = vand.u32 %v8699, 2147483648
        %v9107 = vor.u32 1.1754944e-38, %v9106
        %v9108 = vsel %vm9105, %v9107, %v9103
        %v9109 = vmul.f32 1.0, %v9108
        %v9110 = vrcp.pop %v8700
        %v9111 = vmul.f32 %v8700, %v9110
        %v9112 = vsub.f32 1.0, %v9111
        %v9113 = vmul.f32 %v9110, %v9112
        %v9114 = vadd.f32 %v9110, %v9113
        %vm9115 = vweird.f32 %v8700
        %vm9116 = vweird.f32 %v9110
        %vm9117 = vmor %vm9115, %vm9116
        %v9118 = vsel %vm9117, %v9110, %v9114
        %v9119 = vand.u32 2147483647, %v8700
        %vm9120 = vcmp.eq.f32.partialorder %v9119, 8.507059e+37
        %v9121 = vand.u32 %v8700, 2147483648
        %v9122 = vor.u32 1.1754944e-38, %v9121
        %v9123 = vsel %vm9120, %v9122, %v9118
        %v9124 = vmul.f32 1.0, %v9123
        %v9125 = vrcp.pop %v8701
        %v9126 = vmul.f32 %v8701, %v9125
        %v9127 = vsub.f32 1.0, %v9126
        %v9128 = vmul.f32 %v9125, %v9127
        %v9129 = vadd.f32 %v9125, %v9128
        %vm9130 = vweird.f32 %v8701
        %vm9131 = vweird.f32 %v9125
        %vm9132 = vmor %vm9130, %vm9131
        %v9133 = vsel %vm9132, %v9125, %v9129
        %v9134 = vand.u32 2147483647, %v8701
        %vm9135 = vcmp.eq.f32.partialorder %v9134, 8.507059e+37
        %v9136 = vand.u32 %v8701, 2147483648
        %v9137 = vor.u32 1.1754944e-38, %v9136
        %v9138 = vsel %vm9135, %v9137, %v9133
        %v9139 = vmul.f32 1.0, %v9138
        %v9140 = vrcp.pop %v8702
        %v9141 = vmul.f32 %v8702, %v9140
        %v9142 = vsub.f32 1.0, %v9141
        %v9143 = vmul.f32 %v9140, %v9142
        %v9144 = vadd.f32 %v9140, %v9143
        %vm9145 = vweird.f32 %v8702
        %vm9146 = vweird.f32 %v9140
        %vm9147 = vmor %vm9145, %vm9146
        %v9148 = vsel %vm9147, %v9140, %v9144
        %v9149 = vand.u32 2147483647, %v8702
        %vm9150 = vcmp.eq.f32.partialorder %v9149, 8.507059e+37
        %v9151 = vand.u32 %v8702, 2147483648
        %v9152 = vor.u32 1.1754944e-38, %v9151
        %v9153 = vsel %vm9150, %v9152, %v9148
        %v9154 = vmul.f32 1.0, %v9153
        %v9155 = vrcp.pop %v8703
        %v9156 = vmul.f32 %v8703, %v9155
        %v9157 = vsub.f32 1.0, %v9156
        %v9158 = vmul.f32 %v9155, %v9157
        %v9159 = vadd.f32 %v9155, %v9158
        %vm9160 = vweird.f32 %v8703
        %vm9161 = vweird.f32 %v9155
        %vm9162 = vmor %vm9160, %vm9161
        %v9163 = vsel %vm9162, %v9155, %v9159
        %v9164 = vand.u32 2147483647, %v8703
        %vm9165 = vcmp.eq.f32.partialorder %v9164, 8.507059e+37
        %v9166 = vand.u32 %v8703, 2147483648
        %v9167 = vor.u32 1.1754944e-38, %v9166
        %v9168 = vsel %vm9165, %v9167, %v9163
        %v9169 = vmul.f32 1.0, %v9168
        %v9170 = vrcp.pop %v8704
        %v9171 = vmul.f32 %v8704, %v9170
        %v9172 = vsub.f32 1.0, %v9171
        %v9173 = vmul.f32 %v9170, %v9172
        %v9174 = vadd.f32 %v9170, %v9173
        %vm9175 = vweird.f32 %v8704
        %vm9176 = vweird.f32 %v9170
        %vm9177 = vmor %vm9175, %vm9176
        %v9178 = vsel %vm9177, %v9170, %v9174
        %v9179 = vand.u32 2147483647, %v8704
        %vm9180 = vcmp.eq.f32.partialorder %v9179, 8.507059e+37
        %v9181 = vand.u32 %v8704, 2147483648
        %v9182 = vor.u32 1.1754944e-38, %v9181
        %v9183 = vsel %vm9180, %v9182, %v9178
        %v9184 = vmul.f32 1.0, %v9183
        %v9185 = vmul.f32 %v8545, %v8719
        %v9186 = vmul.f32 %v8546, %v8734
        %v9187 = vmul.f32 %v8547, %v8749
        %v9188 = vmul.f32 %v8548, %v8764
        %v9189 = vmul.f32 %v8549, %v8779
        %v9190 = vmul.f32 %v8550, %v8794
        %v9191 = vmul.f32 %v8551, %v8809
        %v9192 = vmul.f32 %v8552, %v8824
        %v9193 = vmul.f32 %v8553, %v8839
        %v9194 = vmul.f32 %v8554, %v8854
        %v9195 = vmul.f32 %v8555, %v8869
        %v9196 = vmul.f32 %v8556, %v8884
        %v9197 = vmul.f32 %v8557, %v8899
        %v9198 = vmul.f32 %v8558, %v8914
        %v9199 = vmul.f32 %v8559, %v8929
        %v9200 = vmul.f32 %v8560, %v8944
        %v9201 = vmul.f32 %v8561, %v8959
        %v9202 = vmul.f32 %v8562, %v8974
        %v9203 = vmul.f32 %v8563, %v8989
        %v9204 = vmul.f32 %v8564, %v9004
        %v9205 = vmul.f32 %v8565, %v9019
        %v9206 = vmul.f32 %v8566, %v9034
        %v9207 = vmul.f32 %v8567, %v9049
        %v9208 = vmul.f32 %v8568, %v9064
        %v9209 = vmul.f32 %v8569, %v9079
        %v9210 = vmul.f32 %v8570, %v9094
        %v9211 = vmul.f32 %v8571, %v9109
        %v9212 = vmul.f32 %v8572, %v9124
        %v9213 = vmul.f32 %v8573, %v9139
        %v9214 = vmul.f32 %v8574, %v9154
        %v9215 = vmul.f32 %v8575, %v9169
        %v9216 = vmul.f32 %v8576, %v9184
        %9217 = vst.msk [vmem:[%s541] sm:$0xff] %vm599, %v9185
        %9218 = vst.msk [vmem:[%s541 + $0x8] sm:$0xff] %vm599, %v9186
        %9219 = vst.msk [vmem:[%s541 + $0x10] sm:$0xff] %vm599, %v9187
        %9220 = vst.msk [vmem:[%s541 + $0x18] sm:$0xff] %vm599, %v9188
        %9221 = vst.msk [vmem:[%s541 + $0x20] sm:$0xff] %vm599, %v9189
        %9222 = vst.msk [vmem:[%s541 + $0x28] sm:$0xff] %vm599, %v9190
        %9223 = vst.msk [vmem:[%s541 + $0x30] sm:$0xff] %vm599, %v9191
        %9224 = vst.msk [vmem:[%s541 + $0x38] sm:$0xff] %vm599, %v9192
        %9225 = vst.msk [vmem:[%s541 + $0x40] sm:$0xff] %vm599, %v9193
        %9226 = vst.msk [vmem:[%s541 + $0x48] sm:$0xff] %vm599, %v9194
        %9227 = vst.msk [vmem:[%s541 + $0x50] sm:$0xff] %vm599, %v9195
        %9228 = vst.msk [vmem:[%s541 + $0x58] sm:$0xff] %vm599, %v9196
        %9229 = vst.msk [vmem:[%s541 + $0x60] sm:$0xff] %vm599, %v9197
        %9230 = vst.msk [vmem:[%s541 + $0x68] sm:$0xff] %vm599, %v9198
        %9231 = vst.msk [vmem:[%s541 + $0x70] sm:$0xff] %vm599, %v9199
        %9232 = vst.msk [vmem:[%s541 + $0x78] sm:$0xff] %vm599, %v9200
        %9233 = vst.msk [vmem:[%s541 + $0x80] sm:$0xff] %vm599, %v9201
        %9234 = vst.msk [vmem:[%s541 + $0x88] sm:$0xff] %vm599, %v9202
        %9235 = vst.msk [vmem:[%s541 + $0x90] sm:$0xff] %vm599, %v9203
        %9236 = vst.msk [vmem:[%s541 + $0x98] sm:$0xff] %vm599, %v9204
        %9237 = vst.msk [vmem:[%s541 + $0xa0] sm:$0xff] %vm599, %v9205
        %9238 = vst.msk [vmem:[%s541 + $0xa8] sm:$0xff] %vm599, %v9206
        %9239 = vst.msk [vmem:[%s541 + $0xb0] sm:$0xff] %vm599, %v9207
        %9240 = vst.msk [vmem:[%s541 + $0xb8] sm:$0xff] %vm599, %v9208
        %9241 = vst.msk [vmem:[%s541 + $0xc0] sm:$0xff] %vm599, %v9209
        %9242 = vst.msk [vmem:[%s541 + $0xc8] sm:$0xff] %vm599, %v9210
        %9243 = vst.msk [vmem:[%s541 + $0xd0] sm:$0xff] %vm599, %v9211
        %9244 = vst.msk [vmem:[%s541 + $0xd8] sm:$0xff] %vm599, %v9212
        %9245 = vst.msk [vmem:[%s541 + $0xe0] sm:$0xff] %vm599, %v9213
        %9246 = vst.msk [vmem:[%s541 + $0xe8] sm:$0xff] %vm599, %v9214
        %9247 = vst.msk [vmem:[%s541 + $0xf0] sm:$0xff] %vm599, %v9215
        %9248 = vst.msk [vmem:[%s541 + $0xf8] sm:$0xff] %vm599, %v9216
        %s9249 = sand.u32 %s304, 1
        %s9250 = scalar_lea.sflag [#allocation7], %s9249
        %s9251 = sand.u32 %s304, 1
        %s9252 = smul.addr %s9251, 256
        %s9253 = scalar_lea.vmem [#allocation16], %s9252
        // Predicated region
        $region93: #{tpu_custom_call.1} parent=67 // pred_check
          %p9254 = pneg %p314
        $region94: #{tpu_custom_call.1} parent=67 // pred_check_branch
          %9256 = sbr.rel (%p9254) target = $region96
        $region95: #{tpu_custom_call.1} parent=67 // pred_region
          %9258 = vsyncadd %s9250, 0
          %s9259 = smul.addr %s34, 32
          %s9260 = smul.addr %s9259, 8
          %s9261 = scalar_lea.hbm %s12, %s9260
          %s9262 = sshll.u32 %s9253, 4
          %s9263 = int_to_ptr.vmem [resolvable:$true] %s9262
          %s9264 = sshll.u32 %s9261, 4
          %s9265 = int_to_ptr.hbm [resolvable:$true] %s9264
          %9270 = dma.vmem_to_hbm [thread:$0]  %s9263, 4096, %s9265, %s9250, 128, 128, 8
        $region96: #{tpu_custom_call.1} parent=67 // pred_fallthru
          _
      $region68: #{tpu_custom_call.1} parent=5 // pred_fallthru
        _
      %p9271 = scmp.le.s32.totalorder 2, %s29
      // Predicated region
      $region97: #{tpu_custom_call.1} parent=5 // pred_check
        %p9272 = pneg %p9271
      $region98: #{tpu_custom_call.1} parent=5 // pred_check_branch
        %9274 = sbr.rel (%p9272) target = $region100
      $region99: #{tpu_custom_call.1} parent=5 // pred_region
        %s9275 = ssub.s32 %s29, 2
        // Predicated region
        $region101: #{tpu_custom_call.1} parent=99 // pred_check
          %p9276 = pneg %p320
        $region102: #{tpu_custom_call.1} parent=99 // pred_check_branch
          %9278 = sbr.rel (%p9276) target = $region104
        $region103: #{tpu_custom_call.1} parent=99 // pred_region
          %s9279 = sand.u32 %s305, 1
          %s9280 = scalar_lea.sflag [#allocation7], %s9279
          %s9281 = sand.u32 %s305, 1
          %s9282 = smul.addr %s9281, 256
          %s9283 = scalar_lea.vmem [#allocation16], %s9282
          %9285 = dma.done %s9280, 4096
        $region104: #{tpu_custom_call.1} parent=99 // pred_fallthru
          _
      $region100: #{tpu_custom_call.1} parent=5 // pred_fallthru
        _
    $region6: #{tpu_custom_call.1} parent=1 // loop_footer
      %s33 = sadd.s32 1, %s29
    $region7: #{tpu_custom_call.1} parent=1 // loop_footer_branch
      %28 = sbr.rel target = $region3
    $region8: #{tpu_custom_call.1} parent=1 // loop_exit
      _
    %9286 = vsyncpa [#allocation6], 1
    %s9287 = scalar_lea.sflag [#allocation6], 1
    %9288 = vsyncpa %s9287, 1
    %9289 = vsyncpa [#allocation9], 1
    %s9290 = scalar_lea.sflag [#allocation9], 1
    %9291 = vsyncpa %s9290, 1
    %9292 = vsyncpa [#allocation12], 1
    %9293 = vsyncpa [#allocation15], 1
    %9294 = vsyncpa [#allocation7], 1
    %s9295 = scalar_lea.sflag [#allocation7], 1
    %9296 = vsyncpa %s9295, 1

</llo_original>
